<compile_context>
chip_gen: v5e
topology: v5e:2x2
jax: 0.10.0
libtpu: 0.0.40
codegen_flags: <defaults>
</compile_context>

<pallas_src>
import jax
import jax.numpy as jnp
import numpy as np
from jax.experimental import pallas as pl
from jax.experimental.pallas import tpu as pltpu


# Model hyper-parameters (small shapes consistent with the module's forward).
T = 8                 # fix_length (sequence length, time-major)
B = 2                 # batch
E = 16                # embedding_dim
H = 32                # hidden_dim
KD = 16               # kernel_dim
OUT = 8               # output_dim
KERNELS = (2, 3, 4)   # conv kernel sizes
VOCAB = 50
PAD_IDX = 1
NB = 4                # branches: creative_id, advertiser_id, ad_id, product_id
# n_layers = 1, bidirectional = True; nn.Dropout is never applied in forward.

# Fused-layout constants.
HB = NB * H                          # 128 : per-direction hidden width (all branches)
HW = 2 * HB                          # 256 : bidirectional hidden/cell width
GATES = 4 * HW                       # 1024: gate width  (i|f|o|g, each HW)
XB = 2 * GATES                       # 2048: hoisted x-projection width (fwd slab | bwd slab)
CW = 2 * KD * NB                     # 128 : conv columns per tap (conv1|conv2, all branches)
TAP_BASE = (0, KERNELS[0] * CW, (KERNELS[0] + KERNELS[1]) * CW)   # (0, 256, 640)
CONVW = sum(KERNELS) * CW            # 1152: total conv-product width
FCB0 = XB + len(KERNELS) * CW        # 2432: branch-fc bias offset inside b_all (lane aligned)
OUTB0 = FCB0 + 128                   # 2560: output_fc bias offset (lane aligned)
BALL_W = OUTB0 + 128                 # 2688: packed bias vector width
GATE_PT = (0, 1, 3, 2)               # our gate order (i,f,o,g) -> PyTorch chunk (i,f,g,o)


# -----------------------------------------------------------------------------
# The fused kernel: bidirectional LSTM + gated Conv1d (k=2,3,4) + max-pool +
# branch Linear + output_fc for all 4 branches in one invocation.
# -----------------------------------------------------------------------------
def _fused_kernel(emb_ref,           # (T*B, NB*E)   = (16, 64)
                  wx_ref,            # (NB*E, XB)    = (64, 2048) block-diag input proj
                  whh_ref,           # (HW, GATES)   = (256, 1024) block-diag recurrent
                  wconv_ref,         # (HW, CONVW)   = (256, 1152) all conv taps
                  ball_ref,          # (1, BALL_W)   = (1, 2688)  all biases, lane-padded
                  wfc_ref,           # (3*NB*KD, NB*OUT) = (192, 32) block-diag branch fc
                  wout_ref,          # (NB*OUT, OUT) = (32, 8)   output_fc
                  out_ref,           # (B, OUT)      = (2, 8)
                  hseq_ref):         # VMEM scratch (T*B, HW) = (16, 256)
    f32 = jnp.float32
    emb = emb_ref[...]

    # Hoisted input projection for all branches/directions/gates: one matmul.
    # Columns [:GATES] carry the forward-direction contribution (backward
    # columns structurally zero), columns [GATES:] the backward contribution.
    xproj = jnp.dot(emb, wx_ref[...], preferred_element_type=f32) + ball_ref[:, :XB]

    w_hh = whh_ref[...]                                   # (256, 1024)

    # Bidirectional LSTM recurrence: both directions and all 4 branches fused
    # into ONE (B,256)@(256,1024) MXU op per step.  Fully unrolled (T static).
    h = jnp.zeros((B, HW), f32)
    c = jnp.zeros((B, HW), f32)
    for i in range(T):
        rf = i * B                    # forward direction consumes time step i
        rb = (T - 1 - i) * B          # backward direction consumes time step T-1-i
        x_t = xproj[rf:rf + B, :GATES] + xproj[rb:rb + B, GATES:]
        gates = x_t + jnp.dot(h, w_hh, preferred_element_type=f32)   # (B, 1024)
        sig = jax.nn.sigmoid(gates[:, :3 * HW])           # i | f | o  (one EUP span)
        g = jnp.tanh(gates[:, 3 * HW:])                   # g          (one EUP span)
        c = sig[:, HW:2 * HW] * c + sig[:, :HW] * g
        h = sig[:, 2 * HW:3 * HW] * jnp.tanh(c)
        # Store straight into the time-major VMEM scratch (no 8-way concat).
        hseq_ref[rf:rf + B, :HB] = h[:, :HB]              # fwd hidden @ time i
        hseq_ref[rb:rb + B, HB:] = h[:, HB:]              # bwd hidden @ time T-1-i

    hs = hseq_ref[...]                                    # (T*B, 256)

    # Gated Conv1d: conv1 & conv2, all taps, all kernel sizes, all branches in
    # ONE matmul; tap-window accumulation is static row-slice adds below.
    p = jnp.dot(hs, wconv_ref[...], preferred_element_type=f32)   # (16, 1152)

    pooled = []
    for ki, k in enumerate(KERNELS):
        L = T - k + 1                                     # valid-conv output length
        acc = None
        for j in range(k):
            col = TAP_BASE[ki] + j * CW
            win = p[j * B:(j + L) * B, col:col + CW]      # windows 0..L-1 for tap j
            acc = win if acc is None else acc + win
        acc = acc + ball_ref[:, XB + ki * CW:XB + (ki + 1) * CW]     # conv biases
        # relu(conv1) * tanh(conv2): column halves are conv1 / conv2 of all branches.
        gated = jnp.maximum(acc[:, :CW // 2], 0.0) * jnp.tanh(acc[:, CW // 2:])  # (L*B, 64)
        # Temporal max-pool over the L windows: short unrolled chain of wide
        # (B, 64) maxima (kept instead of a sub-tile reshape+reduce for
        # lowering robustness; <= 6 VPU maxima per kernel size).
        pool = gated[:B]
        for t in range(1, L):
            pool = jnp.maximum(pool, gated[t * B:(t + 1) * B])
        pooled.append(pool)                               # (B, NB*KD)

    feat = jnp.concatenate(pooled, axis=-1)               # (B, 3*NB*KD) = (2, 192)

    # Block-diagonal branch Linear, then the final output_fc, so the kernel
    # emits the module's (B, OUT) result directly (single lane-dense store).
    branch_out = (jnp.dot(feat, wfc_ref[...], preferred_element_type=f32)
                  + ball_ref[:, FCB0:FCB0 + NB * OUT])    # (B, NB*OUT) = (2, 32)
    out_ref[...] = (jnp.dot(branch_out, wout_ref[...], preferred_element_type=f32)
                    + ball_ref[:, OUTB0:OUTB0 + OUT])     # (B, OUT)


def fused_forward(emb_stack, packed):
    """emb_stack: (T*B, NB*E) lane-stacked embedded tokens; packed: fused weights."""
    vmem = pl.BlockSpec(memory_space=pltpu.MemorySpace.VMEM)
    return pl.pallas_call(
        _fused_kernel,
        out_shape=jax.ShapeDtypeStruct((B, OUT), jnp.float32),
        in_specs=[vmem] * 7,
        out_specs=vmem,
        scratch_shapes=[pltpu.VMEM((T * B, HW), jnp.float32)],
    )(emb_stack, packed["w_x"], packed["w_hh"], packed["w_conv"],
      packed["b_all"], packed["w_fc"], packed["w_out"])


# -----------------------------------------------------------------------------
# Parameter construction (PyTorch-native layouts) and repacking into the fused
# block-diagonal layouts (explicit transposes, as a real checkpoint would need).
# -----------------------------------------------------------------------------
def init_branch_params(key):
    keys = iter(jax.random.split(key, 24))

    def rnd(shape, scale=0.1):
        return scale * jax.random.normal(next(keys), shape, jnp.float32)

    emb_table = rnd((VOCAB, E)).at[PAD_IDX].set(0.0)      # padding_idx row is zero
    return dict(
        emb_table=emb_table,
        # nn.LSTM parameters, PyTorch layout; gate order (i, f, g, o) along dim 0.
        w_ih_f=rnd((4 * H, E)), w_hh_f=rnd((4 * H, H)),
        b_ih_f=rnd((4 * H,)), b_hh_f=rnd((4 * H,)),
        w_ih_b=rnd((4 * H, E)), w_hh_b=rnd((4 * H, H)),
        b_ih_b=rnd((4 * H,)), b_hh_b=rnd((4 * H,)),
        # nn.Conv1d parameters (out=KD, in=2H, kernel=k).
        conv1_w=[rnd((KD, 2 * H, k)) for k in KERNELS],
        conv1_b=[rnd((KD,)) for _ in KERNELS],
        conv2_w=[rnd((KD, 2 * H, k)) for k in KERNELS],
        conv2_b=[rnd((KD,)) for _ in KERNELS],
        # branch nn.Linear (out=OUT, in=3*KD).
        fc_w=rnd((OUT, 3 * KD)), fc_b=rnd((OUT,)),
    )


def pack_params(params_list, out_w, out_b):
    """Repack per-branch PyTorch-layout weights into the fused block layouts."""
    wx = np.zeros((NB * E, XB), np.float32)
    bx = np.zeros((XB,), np.float32)
    whh = np.zeros((HW, GATES), np.float32)
    for n, prm in enumerate(params_list):
        dirs = ((prm["w_ih_f"], prm["w_hh_f"], prm["b_ih_f"], prm["b_hh_f"]),
                (prm["w_ih_b"], prm["w_hh_b"], prm["b_ih_b"], prm["b_hh_b"]))
        for d, (wi, wh, bi, bh) in enumerate(dirs):
            wi, wh = np.asarray(wi), np.asarray(wh)
            bi, bh = np.asarray(bi), np.asarray(bh)
            for gi, pt in enumerate(GATE_PT):
                col = gi * HW + d * HB + n * H            # gate column block (gate,dir,branch)
                wx[n * E:(n + 1) * E,
                   d * GATES + col:d * GATES + col + H] = wi[pt * H:(pt + 1) * H, :].T
                bx[d * GATES + col:d * GATES + col + H] = (bi[pt * H:(pt + 1) * H]
                                                           + bh[pt * H:(pt + 1) * H])
                whh[d * HB + n * H:d * HB + (n + 1) * H,
                    col:col + H] = wh[pt * H:(pt + 1) * H, :].T

    wconv = np.zeros((HW, CONVW), np.float32)
    bconv = np.zeros((len(KERNELS) * CW,), np.float32)
    for n, prm in enumerate(params_list):
        for ki, k in enumerate(KERNELS):
            w1 = np.asarray(prm["conv1_w"][ki])           # (KD, 2H, k)
            w2 = np.asarray(prm["conv2_w"][ki])
            for j in range(k):
                col = TAP_BASE[ki] + j * CW
                c1 = col + n * KD                         # conv1 columns of branch n
                c2 = col + NB * KD + n * KD               # conv2 columns of branch n
                wconv[n * H:(n + 1) * H, c1:c1 + KD] = w1[:, :H, j].T          # fwd channels
                wconv[HB + n * H:HB + (n + 1) * H, c1:c1 + KD] = w1[:, H:, j].T  # bwd channels
                wconv[n * H:(n + 1) * H, c2:c2 + KD] = w2[:, :H, j].T
                wconv[HB + n * H:HB + (n + 1) * H, c2:c2 + KD] = w2[:, H:, j].T
            bconv[ki * CW + n * KD:ki * CW + (n + 1) * KD] = np.asarray(prm["conv1_b"][ki])
            bconv[ki * CW + NB * KD + n * KD:
                  ki * CW + NB * KD + (n + 1) * KD] = np.asarray(prm["conv2_b"][ki])

    wfc = np.zeros((len(KERNELS) * NB * KD, NB * OUT), np.float32)
    bfc = np.zeros((NB * OUT,), np.float32)
    for n, prm in enumerate(params_list):
        fw = np.asarray(prm["fc_w"])                      # (OUT, 3*KD)
        for ki in range(len(KERNELS)):
            wfc[ki * NB * KD + n * KD:ki * NB * KD + (n + 1) * KD,
                n * OUT:(n + 1) * OUT] = fw[:, ki * KD:(ki + 1) * KD].T
        bfc[n * OUT:(n + 1) * OUT] = np.asarray(prm["fc_b"])

    ball = np.zeros((1, BALL_W), np.float32)
    ball[0, :XB] = bx
    ball[0, XB:XB + len(KERNELS) * CW] = bconv
    ball[0, FCB0:FCB0 + NB * OUT] = bfc
    ball[0, OUTB0:OUTB0 + OUT] = np.asarray(out_b)

    return dict(
        w_x=jnp.asarray(wx), w_hh=jnp.asarray(whh), w_conv=jnp.asarray(wconv),
        b_all=jnp.asarray(ball), w_fc=jnp.asarray(wfc),
        w_out=jnp.asarray(np.asarray(out_w).T.copy()),    # (4*OUT, OUT)
    )


# -----------------------------------------------------------------------------
# Pure-JAX reference mirroring the PyTorch forward (for a numerical check).
# -----------------------------------------------------------------------------
def reference_forward(tokens_list, params_list, out_w, out_b):
    def run_dir(wi, wh, bi, bh, xs):
        h = jnp.zeros((B, H), jnp.float32)
        c = jnp.zeros((B, H), jnp.float32)
        hs = []
        for t in range(xs.shape[0]):
            g = xs[t] @ wi.T + bi + h @ wh.T + bh                 # (B, 4H), order i,f,g,o
            i_ = jax.nn.sigmoid(g[:, :H])
            f_ = jax.nn.sigmoid(g[:, H:2 * H])
            gg = jnp.tanh(g[:, 2 * H:3 * H])
            o_ = jax.nn.sigmoid(g[:, 3 * H:])
            c = f_ * c + i_ * gg
            h = o_ * jnp.tanh(c)
            hs.append(h)
        return jnp.stack(hs)

    branch_fc = []
    for tokens, prm in zip(tokens_list, params_list):
        emb = prm["emb_table"][tokens]                            # (T, B, E)
        hf = run_dir(prm["w_ih_f"], prm["w_hh_f"], prm["b_ih_f"], prm["b_hh_f"], emb)
        hb = run_dir(prm["w_ih_b"], prm["w_hh_b"], prm["b_ih_b"], prm["b_hh_b"],
                     emb[::-1])[::-1]
        hidden = jnp.concatenate([hf, hb], axis=-1)               # (T, B, 2H)
        x = hidden.transpose(1, 2, 0)                             # (B, 2H, T)
        feats = []
        for ki, k in enumerate(KERNELS):
            L = T - k + 1

            def conv(w, bb):
                outs = [jnp.einsum("mcj,bcj->bm", w, x[:, :, l:l + k]) + bb
                        for l in range(L)]
                return jnp.stack(outs, axis=-1)                   # (B, KD, L)

            o1 = jnp.maximum(conv(prm["conv1_w"][ki], prm["conv1_b"][ki]), 0.0)
            o2 = jnp.tanh(conv(prm["conv2_w"][ki], prm["conv2_b"][ki]))
            feats.append(jnp.max(o1 * o2, axis=-1))               # (B, KD) max_pool1d
        feat = jnp.concatenate(feats, axis=-1)                    # (B, 3*KD)
        branch_fc.append(feat @ prm["fc_w"].T + prm["fc_b"])      # (B, OUT)
    hidden_all = jnp.concatenate(branch_fc, axis=-1)              # (B, 4*OUT)
    return hidden_all @ out_w.T + out_b


if __name__ == "__main__":
    key = jax.random.PRNGKey(0)
    k_tok, k_par, k_out = jax.random.split(key, 3)
    par_keys = jax.random.split(k_par, NB)
    tok_keys = jax.random.split(k_tok, NB)
    k_ow, k_ob = jax.random.split(k_out)

    # Branch order: creative_id, advertiser_id, ad_id, product_id.
    params_list = [init_branch_params(par_keys[i]) for i in range(NB)]
    out_w = 0.1 * jax.random.normal(k_ow, (OUT, 4 * OUT), jnp.float32)   # PyTorch Linear layout
    out_b = 0.1 * jax.random.normal(k_ob, (OUT,), jnp.float32)
    packed = pack_params(params_list, out_w, out_b)

    # Token ids, time-major (T, B), per branch; all sequence lengths == fix_length.
    # TODO(synk): pack_padded_sequence / pad_packed_sequence masking for variable
    # lengths; with every length == fix_length they are an identity, reproduced here.
    tokens_list = [jax.random.randint(tok_keys[i], (T, B), 2, VOCAB, jnp.int32)
                   for i in range(NB)]
    # Embedding gathers stay as XLA glue; the kernel starts at the LSTM.
    embs = [params_list[i]["emb_table"][tokens_list[i]].reshape(T * B, E)
            for i in range(NB)]
    emb_stack = jnp.concatenate(embs, axis=-1)                    # (T*B, NB*E)

    result = fused_forward(emb_stack, packed)                     # (B, OUT)
    jax.block_until_ready(result)

    ref = reference_forward(tokens_list, params_list, out_w, out_b)
    err = float(jnp.max(jnp.abs(result - ref)))
    assert result.shape == (B, OUT)
    assert err < 1e-3, f"kernel/reference mismatch: max abs err = {err}"
    print("KERNEL_OK")
</pallas_src>

<mosaic_0001>
module attributes {stable_mosaic.version = 11 : i64} {
  func.func @_fused_kernel(%arg0: memref<16x64xf32, #tpu.memory_space<vmem>>, %arg1: memref<64x2048xf32, #tpu.memory_space<vmem>>, %arg2: memref<256x1024xf32, #tpu.memory_space<vmem>>, %arg3: memref<256x1152xf32, #tpu.memory_space<vmem>>, %arg4: memref<1x2688xf32, #tpu.memory_space<vmem>>, %arg5: memref<192x32xf32, #tpu.memory_space<vmem>>, %arg6: memref<32x8xf32, #tpu.memory_space<vmem>>, %arg7: memref<2x8xf32, #tpu.memory_space<vmem>>, %arg8: memref<16x256xf32, #tpu.memory_space<vmem>>) attributes {dimension_semantics = [], scalar_prefetch = 0 : i64, scratch_operands = 1 : i64, tpu.core_type = #tpu.core_type<tc>} {
    %c0 = arith.constant 0 : index
    %c0_0 = arith.constant 0 : index
    %0 = vector.load %arg0[%c0, %c0_0] : memref<16x64xf32, #tpu.memory_space<vmem>>, vector<16x64xf32>
    %c0_1 = arith.constant 0 : index
    %c0_2 = arith.constant 0 : index
    %1 = vector.load %arg1[%c0_1, %c0_2] : memref<64x2048xf32, #tpu.memory_space<vmem>>, vector<64x2048xf32>
    %cst = arith.constant dense<0.000000e+00> : vector<16x2048xf32>
    %2 = tpu.matmul %0, %1, %cst {dimension_numbers = #tpu.dot_dimension_numbers<[1], [0], [0], [1], [0, 0, 1, 1], [], []>} : vector<16x64xf32>, vector<64x2048xf32>, vector<16x2048xf32> -> vector<16x2048xf32>
    %c0_3 = arith.constant 0 : index
    %c0_4 = arith.constant 0 : index
    %3 = vector.load %arg4[%c0_3, %c0_4] : memref<1x2688xf32, #tpu.memory_space<vmem>>, vector<1x2048xf32>
    %4 = vector.broadcast %3 : vector<1x2048xf32> to vector<16x2048xf32>
    %5 = arith.addf %2, %4 : vector<16x2048xf32>
    %c0_5 = arith.constant 0 : index
    %c0_6 = arith.constant 0 : index
    %6 = vector.load %arg2[%c0_5, %c0_6] : memref<256x1024xf32, #tpu.memory_space<vmem>>, vector<256x1024xf32>
    %cst_7 = arith.constant 0.000000e+00 : f32
    %7 = vector.broadcast %cst_7 : f32 to vector<2x256xf32>
    %cst_8 = arith.constant 0.000000e+00 : f32
    %8 = vector.broadcast %cst_8 : f32 to vector<2x256xf32>
    %9 = vector.extract_strided_slice %5 {offsets = [0, 0], sizes = [2, 1024], strides = [1, 1]} : vector<16x2048xf32> to vector<2x1024xf32>
    %10 = vector.extract_strided_slice %5 {offsets = [14, 1024], sizes = [2, 1024], strides = [1, 1]} : vector<16x2048xf32> to vector<2x1024xf32>
    %11 = arith.addf %9, %10 : vector<2x1024xf32>
    %cst_9 = arith.constant dense<0.000000e+00> : vector<2x1024xf32>
    %12 = tpu.matmul %7, %6, %cst_9 {dimension_numbers = #tpu.dot_dimension_numbers<[1], [0], [0], [1], [0, 0, 1, 1], [], []>} : vector<2x256xf32>, vector<256x1024xf32>, vector<2x1024xf32> -> vector<2x1024xf32>
    %13 = arith.addf %11, %12 : vector<2x1024xf32>
    %14 = vector.extract_strided_slice %13 {offsets = [0, 0], sizes = [2, 768], strides = [1, 1]} : vector<2x1024xf32> to vector<2x768xf32>
    %15 = arith.negf %14 : vector<2x768xf32>
    %16 = math.exp %15 : vector<2x768xf32>
    %cst_10 = arith.constant 1.000000e+00 : f32
    %17 = vector.broadcast %cst_10 : f32 to vector<2x768xf32>
    %18 = arith.addf %17, %16 : vector<2x768xf32>
    %19 = arith.divf %17, %18 : vector<2x768xf32>
    %20 = vector.extract_strided_slice %13 {offsets = [0, 768], sizes = [2, 256], strides = [1, 1]} : vector<2x1024xf32> to vector<2x256xf32>
    %21 = math.tanh %20 : vector<2x256xf32>
    %22 = vector.extract_strided_slice %19 {offsets = [0, 256], sizes = [2, 256], strides = [1, 1]} : vector<2x768xf32> to vector<2x256xf32>
    %23 = arith.mulf %22, %8 : vector<2x256xf32>
    %24 = vector.extract_strided_slice %19 {offsets = [0, 0], sizes = [2, 256], strides = [1, 1]} : vector<2x768xf32> to vector<2x256xf32>
    %25 = arith.mulf %24, %21 : vector<2x256xf32>
    %26 = arith.addf %23, %25 : vector<2x256xf32>
    %27 = vector.extract_strided_slice %19 {offsets = [0, 512], sizes = [2, 256], strides = [1, 1]} : vector<2x768xf32> to vector<2x256xf32>
    %28 = math.tanh %26 : vector<2x256xf32>
    %29 = arith.mulf %27, %28 : vector<2x256xf32>
    %30 = vector.extract_strided_slice %29 {offsets = [0, 0], sizes = [2, 128], strides = [1, 1]} : vector<2x256xf32> to vector<2x128xf32>
    %c0_11 = arith.constant 0 : index
    %c0_12 = arith.constant 0 : index
    %31 = vector.load %arg8[%c0_11, %c0_12] : memref<16x256xf32, #tpu.memory_space<vmem>>, vector<2x128xf32>
    tpu.vector_store %arg8[%c0_11, %c0_12], %30 {strides = array<i32>} : memref<16x256xf32, #tpu.memory_space<vmem>>, vector<2x128xf32>,
    %32 = vector.extract_strided_slice %29 {offsets = [0, 128], sizes = [2, 128], strides = [1, 1]} : vector<2x256xf32> to vector<2x128xf32>
    %c14 = arith.constant 14 : index
    %c128 = arith.constant 128 : index
    %33 = vector.load %arg8[%c14, %c128] : memref<16x256xf32, #tpu.memory_space<vmem>>, vector<2x128xf32>
    tpu.vector_store %arg8[%c14, %c128], %32 {strides = array<i32>} : memref<16x256xf32, #tpu.memory_space<vmem>>, vector<2x128xf32>,
    %34 = vector.extract_strided_slice %5 {offsets = [2, 0], sizes = [2, 1024], strides = [1, 1]} : vector<16x2048xf32> to vector<2x1024xf32>
    %35 = vector.extract_strided_slice %5 {offsets = [12, 1024], sizes = [2, 1024], strides = [1, 1]} : vector<16x2048xf32> to vector<2x1024xf32>
    %36 = arith.addf %34, %35 : vector<2x1024xf32>
    %cst_13 = arith.constant dense<0.000000e+00> : vector<2x1024xf32>
    %37 = tpu.matmul %29, %6, %cst_13 {dimension_numbers = #tpu.dot_dimension_numbers<[1], [0], [0], [1], [0, 0, 1, 1], [], []>} : vector<2x256xf32>, vector<256x1024xf32>, vector<2x1024xf32> -> vector<2x1024xf32>
    %38 = arith.addf %36, %37 : vector<2x1024xf32>
    %39 = vector.extract_strided_slice %38 {offsets = [0, 0], sizes = [2, 768], strides = [1, 1]} : vector<2x1024xf32> to vector<2x768xf32>
    %40 = arith.negf %39 : vector<2x768xf32>
    %41 = math.exp %40 : vector<2x768xf32>
    %cst_14 = arith.constant 1.000000e+00 : f32
    %42 = vector.broadcast %cst_14 : f32 to vector<2x768xf32>
    %43 = arith.addf %42, %41 : vector<2x768xf32>
    %44 = arith.divf %42, %43 : vector<2x768xf32>
    %45 = vector.extract_strided_slice %38 {offsets = [0, 768], sizes = [2, 256], strides = [1, 1]} : vector<2x1024xf32> to vector<2x256xf32>
    %46 = math.tanh %45 : vector<2x256xf32>
    %47 = vector.extract_strided_slice %44 {offsets = [0, 256], sizes = [2, 256], strides = [1, 1]} : vector<2x768xf32> to vector<2x256xf32>
    %48 = arith.mulf %47, %26 : vector<2x256xf32>
    %49 = vector.extract_strided_slice %44 {offsets = [0, 0], sizes = [2, 256], strides = [1, 1]} : vector<2x768xf32> to vector<2x256xf32>
    %50 = arith.mulf %49, %46 : vector<2x256xf32>
    %51 = arith.addf %48, %50 : vector<2x256xf32>
    %52 = vector.extract_strided_slice %44 {offsets = [0, 512], sizes = [2, 256], strides = [1, 1]} : vector<2x768xf32> to vector<2x256xf32>
    %53 = math.tanh %51 : vector<2x256xf32>
    %54 = arith.mulf %52, %53 : vector<2x256xf32>
    %55 = vector.extract_strided_slice %54 {offsets = [0, 0], sizes = [2, 128], strides = [1, 1]} : vector<2x256xf32> to vector<2x128xf32>
    %c2 = arith.constant 2 : index
    %c0_15 = arith.constant 0 : index
    %56 = vector.load %arg8[%c2, %c0_15] : memref<16x256xf32, #tpu.memory_space<vmem>>, vector<2x128xf32>
    tpu.vector_store %arg8[%c2, %c0_15], %55 {strides = array<i32>} : memref<16x256xf32, #tpu.memory_space<vmem>>, vector<2x128xf32>,
    %57 = vector.extract_strided_slice %54 {offsets = [0, 128], sizes = [2, 128], strides = [1, 1]} : vector<2x256xf32> to vector<2x128xf32>
    %c12 = arith.constant 12 : index
    %c128_16 = arith.constant 128 : index
    %58 = vector.load %arg8[%c12, %c128_16] : memref<16x256xf32, #tpu.memory_space<vmem>>, vector<2x128xf32>
    tpu.vector_store %arg8[%c12, %c128_16], %57 {strides = array<i32>} : memref<16x256xf32, #tpu.memory_space<vmem>>, vector<2x128xf32>,
    %59 = vector.extract_strided_slice %5 {offsets = [4, 0], sizes = [2, 1024], strides = [1, 1]} : vector<16x2048xf32> to vector<2x1024xf32>
    %60 = vector.extract_strided_slice %5 {offsets = [10, 1024], sizes = [2, 1024], strides = [1, 1]} : vector<16x2048xf32> to vector<2x1024xf32>
    %61 = arith.addf %59, %60 : vector<2x1024xf32>
    %cst_17 = arith.constant dense<0.000000e+00> : vector<2x1024xf32>
    %62 = tpu.matmul %54, %6, %cst_17 {dimension_numbers = #tpu.dot_dimension_numbers<[1], [0], [0], [1], [0, 0, 1, 1], [], []>} : vector<2x256xf32>, vector<256x1024xf32>, vector<2x1024xf32> -> vector<2x1024xf32>
    %63 = arith.addf %61, %62 : vector<2x1024xf32>
    %64 = vector.extract_strided_slice %63 {offsets = [0, 0], sizes = [2, 768], strides = [1, 1]} : vector<2x1024xf32> to vector<2x768xf32>
    %65 = arith.negf %64 : vector<2x768xf32>
    %66 = math.exp %65 : vector<2x768xf32>
    %cst_18 = arith.constant 1.000000e+00 : f32
    %67 = vector.broadcast %cst_18 : f32 to vector<2x768xf32>
    %68 = arith.addf %67, %66 : vector<2x768xf32>
    %69 = arith.divf %67, %68 : vector<2x768xf32>
    %70 = vector.extract_strided_slice %63 {offsets = [0, 768], sizes = [2, 256], strides = [1, 1]} : vector<2x1024xf32> to vector<2x256xf32>
    %71 = math.tanh %70 : vector<2x256xf32>
    %72 = vector.extract_strided_slice %69 {offsets = [0, 256], sizes = [2, 256], strides = [1, 1]} : vector<2x768xf32> to vector<2x256xf32>
    %73 = arith.mulf %72, %51 : vector<2x256xf32>
    %74 = vector.extract_strided_slice %69 {offsets = [0, 0], sizes = [2, 256], strides = [1, 1]} : vector<2x768xf32> to vector<2x256xf32>
    %75 = arith.mulf %74, %71 : vector<2x256xf32>
    %76 = arith.addf %73, %75 : vector<2x256xf32>
    %77 = vector.extract_strided_slice %69 {offsets = [0, 512], sizes = [2, 256], strides = [1, 1]} : vector<2x768xf32> to vector<2x256xf32>
    %78 = math.tanh %76 : vector<2x256xf32>
    %79 = arith.mulf %77, %78 : vector<2x256xf32>
    %80 = vector.extract_strided_slice %79 {offsets = [0, 0], sizes = [2, 128], strides = [1, 1]} : vector<2x256xf32> to vector<2x128xf32>
    %c4 = arith.constant 4 : index
    %c0_19 = arith.constant 0 : index
    %81 = vector.load %arg8[%c4, %c0_19] : memref<16x256xf32, #tpu.memory_space<vmem>>, vector<2x128xf32>
    tpu.vector_store %arg8[%c4, %c0_19], %80 {strides = array<i32>} : memref<16x256xf32, #tpu.memory_space<vmem>>, vector<2x128xf32>,
    %82 = vector.extract_strided_slice %79 {offsets = [0, 128], sizes = [2, 128], strides = [1, 1]} : vector<2x256xf32> to vector<2x128xf32>
    %c10 = arith.constant 10 : index
    %c128_20 = arith.constant 128 : index
    %83 = vector.load %arg8[%c10, %c128_20] : memref<16x256xf32, #tpu.memory_space<vmem>>, vector<2x128xf32>
    tpu.vector_store %arg8[%c10, %c128_20], %82 {strides = array<i32>} : memref<16x256xf32, #tpu.memory_space<vmem>>, vector<2x128xf32>,
    %84 = vector.extract_strided_slice %5 {offsets = [6, 0], sizes = [2, 1024], strides = [1, 1]} : vector<16x2048xf32> to vector<2x1024xf32>
    %85 = vector.extract_strided_slice %5 {offsets = [8, 1024], sizes = [2, 1024], strides = [1, 1]} : vector<16x2048xf32> to vector<2x1024xf32>
    %86 = arith.addf %84, %85 : vector<2x1024xf32>
    %cst_21 = arith.constant dense<0.000000e+00> : vector<2x1024xf32>
    %87 = tpu.matmul %79, %6, %cst_21 {dimension_numbers = #tpu.dot_dimension_numbers<[1], [0], [0], [1], [0, 0, 1, 1], [], []>} : vector<2x256xf32>, vector<256x1024xf32>, vector<2x1024xf32> -> vector<2x1024xf32>
    %88 = arith.addf %86, %87 : vector<2x1024xf32>
    %89 = vector.extract_strided_slice %88 {offsets = [0, 0], sizes = [2, 768], strides = [1, 1]} : vector<2x1024xf32> to vector<2x768xf32>
    %90 = arith.negf %89 : vector<2x768xf32>
    %91 = math.exp %90 : vector<2x768xf32>
    %cst_22 = arith.constant 1.000000e+00 : f32
    %92 = vector.broadcast %cst_22 : f32 to vector<2x768xf32>
    %93 = arith.addf %92, %91 : vector<2x768xf32>
    %94 = arith.divf %92, %93 : vector<2x768xf32>
    %95 = vector.extract_strided_slice %88 {offsets = [0, 768], sizes = [2, 256], strides = [1, 1]} : vector<2x1024xf32> to vector<2x256xf32>
    %96 = math.tanh %95 : vector<2x256xf32>
    %97 = vector.extract_strided_slice %94 {offsets = [0, 256], sizes = [2, 256], strides = [1, 1]} : vector<2x768xf32> to vector<2x256xf32>
    %98 = arith.mulf %97, %76 : vector<2x256xf32>
    %99 = vector.extract_strided_slice %94 {offsets = [0, 0], sizes = [2, 256], strides = [1, 1]} : vector<2x768xf32> to vector<2x256xf32>
    %100 = arith.mulf %99, %96 : vector<2x256xf32>
    %101 = arith.addf %98, %100 : vector<2x256xf32>
    %102 = vector.extract_strided_slice %94 {offsets = [0, 512], sizes = [2, 256], strides = [1, 1]} : vector<2x768xf32> to vector<2x256xf32>
    %103 = math.tanh %101 : vector<2x256xf32>
    %104 = arith.mulf %102, %103 : vector<2x256xf32>
    %105 = vector.extract_strided_slice %104 {offsets = [0, 0], sizes = [2, 128], strides = [1, 1]} : vector<2x256xf32> to vector<2x128xf32>
    %c6 = arith.constant 6 : index
    %c0_23 = arith.constant 0 : index
    %106 = vector.load %arg8[%c6, %c0_23] : memref<16x256xf32, #tpu.memory_space<vmem>>, vector<2x128xf32>
    tpu.vector_store %arg8[%c6, %c0_23], %105 {strides = array<i32>} : memref<16x256xf32, #tpu.memory_space<vmem>>, vector<2x128xf32>,
    %107 = vector.extract_strided_slice %104 {offsets = [0, 128], sizes = [2, 128], strides = [1, 1]} : vector<2x256xf32> to vector<2x128xf32>
    %c8 = arith.constant 8 : index
    %c128_24 = arith.constant 128 : index
    %108 = vector.load %arg8[%c8, %c128_24] : memref<16x256xf32, #tpu.memory_space<vmem>>, vector<2x128xf32>
    tpu.vector_store %arg8[%c8, %c128_24], %107 {strides = array<i32>} : memref<16x256xf32, #tpu.memory_space<vmem>>, vector<2x128xf32>,
    %109 = vector.extract_strided_slice %5 {offsets = [8, 0], sizes = [2, 1024], strides = [1, 1]} : vector<16x2048xf32> to vector<2x1024xf32>
    %110 = vector.extract_strided_slice %5 {offsets = [6, 1024], sizes = [2, 1024], strides = [1, 1]} : vector<16x2048xf32> to vector<2x1024xf32>
    %111 = arith.addf %109, %110 : vector<2x1024xf32>
    %cst_25 = arith.constant dense<0.000000e+00> : vector<2x1024xf32>
    %112 = tpu.matmul %104, %6, %cst_25 {dimension_numbers = #tpu.dot_dimension_numbers<[1], [0], [0], [1], [0, 0, 1, 1], [], []>} : vector<2x256xf32>, vector<256x1024xf32>, vector<2x1024xf32> -> vector<2x1024xf32>
    %113 = arith.addf %111, %112 : vector<2x1024xf32>
    %114 = vector.extract_strided_slice %113 {offsets = [0, 0], sizes = [2, 768], strides = [1, 1]} : vector<2x1024xf32> to vector<2x768xf32>
    %115 = arith.negf %114 : vector<2x768xf32>
    %116 = math.exp %115 : vector<2x768xf32>
    %cst_26 = arith.constant 1.000000e+00 : f32
    %117 = vector.broadcast %cst_26 : f32 to vector<2x768xf32>
    %118 = arith.addf %117, %116 : vector<2x768xf32>
    %119 = arith.divf %117, %118 : vector<2x768xf32>
    %120 = vector.extract_strided_slice %113 {offsets = [0, 768], sizes = [2, 256], strides = [1, 1]} : vector<2x1024xf32> to vector<2x256xf32>
    %121 = math.tanh %120 : vector<2x256xf32>
    %122 = vector.extract_strided_slice %119 {offsets = [0, 256], sizes = [2, 256], strides = [1, 1]} : vector<2x768xf32> to vector<2x256xf32>
    %123 = arith.mulf %122, %101 : vector<2x256xf32>
    %124 = vector.extract_strided_slice %119 {offsets = [0, 0], sizes = [2, 256], strides = [1, 1]} : vector<2x768xf32> to vector<2x256xf32>
    %125 = arith.mulf %124, %121 : vector<2x256xf32>
    %126 = arith.addf %123, %125 : vector<2x256xf32>
    %127 = vector.extract_strided_slice %119 {offsets = [0, 512], sizes = [2, 256], strides = [1, 1]} : vector<2x768xf32> to vector<2x256xf32>
    %128 = math.tanh %126 : vector<2x256xf32>
    %129 = arith.mulf %127, %128 : vector<2x256xf32>
    %130 = vector.extract_strided_slice %129 {offsets = [0, 0], sizes = [2, 128], strides = [1, 1]} : vector<2x256xf32> to vector<2x128xf32>
    %c8_27 = arith.constant 8 : index
    %c0_28 = arith.constant 0 : index
    %131 = vector.load %arg8[%c8_27, %c0_28] : memref<16x256xf32, #tpu.memory_space<vmem>>, vector<2x128xf32>
    tpu.vector_store %arg8[%c8_27, %c0_28], %130 {strides = array<i32>} : memref<16x256xf32, #tpu.memory_space<vmem>>, vector<2x128xf32>,
    %132 = vector.extract_strided_slice %129 {offsets = [0, 128], sizes = [2, 128], strides = [1, 1]} : vector<2x256xf32> to vector<2x128xf32>
    %c6_29 = arith.constant 6 : index
    %c128_30 = arith.constant 128 : index
    %133 = vector.load %arg8[%c6_29, %c128_30] : memref<16x256xf32, #tpu.memory_space<vmem>>, vector<2x128xf32>
    tpu.vector_store %arg8[%c6_29, %c128_30], %132 {strides = array<i32>} : memref<16x256xf32, #tpu.memory_space<vmem>>, vector<2x128xf32>,
    %134 = vector.extract_strided_slice %5 {offsets = [10, 0], sizes = [2, 1024], strides = [1, 1]} : vector<16x2048xf32> to vector<2x1024xf32>
    %135 = vector.extract_strided_slice %5 {offsets = [4, 1024], sizes = [2, 1024], strides = [1, 1]} : vector<16x2048xf32> to vector<2x1024xf32>
    %136 = arith.addf %134, %135 : vector<2x1024xf32>
    %cst_31 = arith.constant dense<0.000000e+00> : vector<2x1024xf32>
    %137 = tpu.matmul %129, %6, %cst_31 {dimension_numbers = #tpu.dot_dimension_numbers<[1], [0], [0], [1], [0, 0, 1, 1], [], []>} : vector<2x256xf32>, vector<256x1024xf32>, vector<2x1024xf32> -> vector<2x1024xf32>
    %138 = arith.addf %136, %137 : vector<2x1024xf32>
    %139 = vector.extract_strided_slice %138 {offsets = [0, 0], sizes = [2, 768], strides = [1, 1]} : vector<2x1024xf32> to vector<2x768xf32>
    %140 = arith.negf %139 : vector<2x768xf32>
    %141 = math.exp %140 : vector<2x768xf32>
    %cst_32 = arith.constant 1.000000e+00 : f32
    %142 = vector.broadcast %cst_32 : f32 to vector<2x768xf32>
    %143 = arith.addf %142, %141 : vector<2x768xf32>
    %144 = arith.divf %142, %143 : vector<2x768xf32>
    %145 = vector.extract_strided_slice %138 {offsets = [0, 768], sizes = [2, 256], strides = [1, 1]} : vector<2x1024xf32> to vector<2x256xf32>
    %146 = math.tanh %145 : vector<2x256xf32>
    %147 = vector.extract_strided_slice %144 {offsets = [0, 256], sizes = [2, 256], strides = [1, 1]} : vector<2x768xf32> to vector<2x256xf32>
    %148 = arith.mulf %147, %126 : vector<2x256xf32>
    %149 = vector.extract_strided_slice %144 {offsets = [0, 0], sizes = [2, 256], strides = [1, 1]} : vector<2x768xf32> to vector<2x256xf32>
    %150 = arith.mulf %149, %146 : vector<2x256xf32>
    %151 = arith.addf %148, %150 : vector<2x256xf32>
    %152 = vector.extract_strided_slice %144 {offsets = [0, 512], sizes = [2, 256], strides = [1, 1]} : vector<2x768xf32> to vector<2x256xf32>
    %153 = math.tanh %151 : vector<2x256xf32>
    %154 = arith.mulf %152, %153 : vector<2x256xf32>
    %155 = vector.extract_strided_slice %154 {offsets = [0, 0], sizes = [2, 128], strides = [1, 1]} : vector<2x256xf32> to vector<2x128xf32>
    %c10_33 = arith.constant 10 : index
    %c0_34 = arith.constant 0 : index
    %156 = vector.load %arg8[%c10_33, %c0_34] : memref<16x256xf32, #tpu.memory_space<vmem>>, vector<2x128xf32>
    tpu.vector_store %arg8[%c10_33, %c0_34], %155 {strides = array<i32>} : memref<16x256xf32, #tpu.memory_space<vmem>>, vector<2x128xf32>,
    %157 = vector.extract_strided_slice %154 {offsets = [0, 128], sizes = [2, 128], strides = [1, 1]} : vector<2x256xf32> to vector<2x128xf32>
    %c4_35 = arith.constant 4 : index
    %c128_36 = arith.constant 128 : index
    %158 = vector.load %arg8[%c4_35, %c128_36] : memref<16x256xf32, #tpu.memory_space<vmem>>, vector<2x128xf32>
    tpu.vector_store %arg8[%c4_35, %c128_36], %157 {strides = array<i32>} : memref<16x256xf32, #tpu.memory_space<vmem>>, vector<2x128xf32>,
    %159 = vector.extract_strided_slice %5 {offsets = [12, 0], sizes = [2, 1024], strides = [1, 1]} : vector<16x2048xf32> to vector<2x1024xf32>
    %160 = vector.extract_strided_slice %5 {offsets = [2, 1024], sizes = [2, 1024], strides = [1, 1]} : vector<16x2048xf32> to vector<2x1024xf32>
    %161 = arith.addf %159, %160 : vector<2x1024xf32>
    %cst_37 = arith.constant dense<0.000000e+00> : vector<2x1024xf32>
    %162 = tpu.matmul %154, %6, %cst_37 {dimension_numbers = #tpu.dot_dimension_numbers<[1], [0], [0], [1], [0, 0, 1, 1], [], []>} : vector<2x256xf32>, vector<256x1024xf32>, vector<2x1024xf32> -> vector<2x1024xf32>
    %163 = arith.addf %161, %162 : vector<2x1024xf32>
    %164 = vector.extract_strided_slice %163 {offsets = [0, 0], sizes = [2, 768], strides = [1, 1]} : vector<2x1024xf32> to vector<2x768xf32>
    %165 = arith.negf %164 : vector<2x768xf32>
    %166 = math.exp %165 : vector<2x768xf32>
    %cst_38 = arith.constant 1.000000e+00 : f32
    %167 = vector.broadcast %cst_38 : f32 to vector<2x768xf32>
    %168 = arith.addf %167, %166 : vector<2x768xf32>
    %169 = arith.divf %167, %168 : vector<2x768xf32>
    %170 = vector.extract_strided_slice %163 {offsets = [0, 768], sizes = [2, 256], strides = [1, 1]} : vector<2x1024xf32> to vector<2x256xf32>
    %171 = math.tanh %170 : vector<2x256xf32>
    %172 = vector.extract_strided_slice %169 {offsets = [0, 256], sizes = [2, 256], strides = [1, 1]} : vector<2x768xf32> to vector<2x256xf32>
    %173 = arith.mulf %172, %151 : vector<2x256xf32>
    %174 = vector.extract_strided_slice %169 {offsets = [0, 0], sizes = [2, 256], strides = [1, 1]} : vector<2x768xf32> to vector<2x256xf32>
    %175 = arith.mulf %174, %171 : vector<2x256xf32>
    %176 = arith.addf %173, %175 : vector<2x256xf32>
    %177 = vector.extract_strided_slice %169 {offsets = [0, 512], sizes = [2, 256], strides = [1, 1]} : vector<2x768xf32> to vector<2x256xf32>
    %178 = math.tanh %176 : vector<2x256xf32>
    %179 = arith.mulf %177, %178 : vector<2x256xf32>
    %180 = vector.extract_strided_slice %179 {offsets = [0, 0], sizes = [2, 128], strides = [1, 1]} : vector<2x256xf32> to vector<2x128xf32>
    %c12_39 = arith.constant 12 : index
    %c0_40 = arith.constant 0 : index
    %181 = vector.load %arg8[%c12_39, %c0_40] : memref<16x256xf32, #tpu.memory_space<vmem>>, vector<2x128xf32>
    tpu.vector_store %arg8[%c12_39, %c0_40], %180 {strides = array<i32>} : memref<16x256xf32, #tpu.memory_space<vmem>>, vector<2x128xf32>,
    %182 = vector.extract_strided_slice %179 {offsets = [0, 128], sizes = [2, 128], strides = [1, 1]} : vector<2x256xf32> to vector<2x128xf32>
    %c2_41 = arith.constant 2 : index
    %c128_42 = arith.constant 128 : index
    %183 = vector.load %arg8[%c2_41, %c128_42] : memref<16x256xf32, #tpu.memory_space<vmem>>, vector<2x128xf32>
    tpu.vector_store %arg8[%c2_41, %c128_42], %182 {strides = array<i32>} : memref<16x256xf32, #tpu.memory_space<vmem>>, vector<2x128xf32>,
    %184 = vector.extract_strided_slice %5 {offsets = [14, 0], sizes = [2, 1024], strides = [1, 1]} : vector<16x2048xf32> to vector<2x1024xf32>
    %185 = vector.extract_strided_slice %5 {offsets = [0, 1024], sizes = [2, 1024], strides = [1, 1]} : vector<16x2048xf32> to vector<2x1024xf32>
    %186 = arith.addf %184, %185 : vector<2x1024xf32>
    %cst_43 = arith.constant dense<0.000000e+00> : vector<2x1024xf32>
    %187 = tpu.matmul %179, %6, %cst_43 {dimension_numbers = #tpu.dot_dimension_numbers<[1], [0], [0], [1], [0, 0, 1, 1], [], []>} : vector<2x256xf32>, vector<256x1024xf32>, vector<2x1024xf32> -> vector<2x1024xf32>
    %188 = arith.addf %186, %187 : vector<2x1024xf32>
    %189 = vector.extract_strided_slice %188 {offsets = [0, 0], sizes = [2, 768], strides = [1, 1]} : vector<2x1024xf32> to vector<2x768xf32>
    %190 = arith.negf %189 : vector<2x768xf32>
    %191 = math.exp %190 : vector<2x768xf32>
    %cst_44 = arith.constant 1.000000e+00 : f32
    %192 = vector.broadcast %cst_44 : f32 to vector<2x768xf32>
    %193 = arith.addf %192, %191 : vector<2x768xf32>
    %194 = arith.divf %192, %193 : vector<2x768xf32>
    %195 = vector.extract_strided_slice %188 {offsets = [0, 768], sizes = [2, 256], strides = [1, 1]} : vector<2x1024xf32> to vector<2x256xf32>
    %196 = math.tanh %195 : vector<2x256xf32>
    %197 = vector.extract_strided_slice %194 {offsets = [0, 256], sizes = [2, 256], strides = [1, 1]} : vector<2x768xf32> to vector<2x256xf32>
    %198 = arith.mulf %197, %176 : vector<2x256xf32>
    %199 = vector.extract_strided_slice %194 {offsets = [0, 0], sizes = [2, 256], strides = [1, 1]} : vector<2x768xf32> to vector<2x256xf32>
    %200 = arith.mulf %199, %196 : vector<2x256xf32>
    %201 = arith.addf %198, %200 : vector<2x256xf32>
    %202 = vector.extract_strided_slice %194 {offsets = [0, 512], sizes = [2, 256], strides = [1, 1]} : vector<2x768xf32> to vector<2x256xf32>
    %203 = math.tanh %201 : vector<2x256xf32>
    %204 = arith.mulf %202, %203 : vector<2x256xf32>
    %205 = vector.extract_strided_slice %204 {offsets = [0, 0], sizes = [2, 128], strides = [1, 1]} : vector<2x256xf32> to vector<2x128xf32>
    %c14_45 = arith.constant 14 : index
    %c0_46 = arith.constant 0 : index
    %206 = vector.load %arg8[%c14_45, %c0_46] : memref<16x256xf32, #tpu.memory_space<vmem>>, vector<2x128xf32>
    tpu.vector_store %arg8[%c14_45, %c0_46], %205 {strides = array<i32>} : memref<16x256xf32, #tpu.memory_space<vmem>>, vector<2x128xf32>,
    %207 = vector.extract_strided_slice %204 {offsets = [0, 128], sizes = [2, 128], strides = [1, 1]} : vector<2x256xf32> to vector<2x128xf32>
    %c0_47 = arith.constant 0 : index
    %c128_48 = arith.constant 128 : index
    %208 = vector.load %arg8[%c0_47, %c128_48] : memref<16x256xf32, #tpu.memory_space<vmem>>, vector<2x128xf32>
    tpu.vector_store %arg8[%c0_47, %c128_48], %207 {strides = array<i32>} : memref<16x256xf32, #tpu.memory_space<vmem>>, vector<2x128xf32>,
    %c0_49 = arith.constant 0 : index
    %c0_50 = arith.constant 0 : index
    %209 = vector.load %arg8[%c0_49, %c0_50] : memref<16x256xf32, #tpu.memory_space<vmem>>, vector<16x256xf32>
    %c0_51 = arith.constant 0 : index
    %c0_52 = arith.constant 0 : index
    %210 = vector.load %arg3[%c0_51, %c0_52] : memref<256x1152xf32, #tpu.memory_space<vmem>>, vector<256x1152xf32>
    %cst_53 = arith.constant dense<0.000000e+00> : vector<16x1152xf32>
    %211 = tpu.matmul %209, %210, %cst_53 {dimension_numbers = #tpu.dot_dimension_numbers<[1], [0], [0], [1], [0, 0, 1, 1], [], []>} : vector<16x256xf32>, vector<256x1152xf32>, vector<16x1152xf32> -> vector<16x1152xf32>
    %212 = vector.extract_strided_slice %211 {offsets = [0, 0], sizes = [14, 128], strides = [1, 1]} : vector<16x1152xf32> to vector<14x128xf32>
    %213 = vector.extract_strided_slice %211 {offsets = [2, 128], sizes = [14, 128], strides = [1, 1]} : vector<16x1152xf32> to vector<14x128xf32>
    %214 = arith.addf %212, %213 : vector<14x128xf32>
    %c0_54 = arith.constant 0 : index
    %c2048 = arith.constant 2048 : index
    %215 = vector.load %arg4[%c0_54, %c2048] : memref<1x2688xf32, #tpu.memory_space<vmem>>, vector<1x128xf32>
    %216 = vector.broadcast %215 : vector<1x128xf32> to vector<14x128xf32>
    %217 = arith.addf %214, %216 : vector<14x128xf32>
    %218 = vector.extract_strided_slice %217 {offsets = [0, 0], sizes = [14, 64], strides = [1, 1]} : vector<14x128xf32> to vector<14x64xf32>
    %cst_55 = arith.constant 0.000000e+00 : f32
    %219 = vector.broadcast %cst_55 : f32 to vector<14x64xf32>
    %220 = arith.maximumf %218, %219 : vector<14x64xf32>
    %221 = vector.extract_strided_slice %217 {offsets = [0, 64], sizes = [14, 64], strides = [1, 1]} : vector<14x128xf32> to vector<14x64xf32>
    %222 = math.tanh %221 : vector<14x64xf32>
    %223 = arith.mulf %220, %222 : vector<14x64xf32>
    %224 = vector.extract_strided_slice %223 {offsets = [0, 0], sizes = [2, 64], strides = [1, 1]} : vector<14x64xf32> to vector<2x64xf32>
    %225 = vector.extract_strided_slice %223 {offsets = [2, 0], sizes = [2, 64], strides = [1, 1]} : vector<14x64xf32> to vector<2x64xf32>
    %226 = arith.maximumf %224, %225 : vector<2x64xf32>
    %227 = vector.extract_strided_slice %223 {offsets = [4, 0], sizes = [2, 64], strides = [1, 1]} : vector<14x64xf32> to vector<2x64xf32>
    %228 = arith.maximumf %226, %227 : vector<2x64xf32>
    %229 = vector.extract_strided_slice %223 {offsets = [6, 0], sizes = [2, 64], strides = [1, 1]} : vector<14x64xf32> to vector<2x64xf32>
    %230 = arith.maximumf %228, %229 : vector<2x64xf32>
    %231 = vector.extract_strided_slice %223 {offsets = [8, 0], sizes = [2, 64], strides = [1, 1]} : vector<14x64xf32> to vector<2x64xf32>
    %232 = arith.maximumf %230, %231 : vector<2x64xf32>
    %233 = vector.extract_strided_slice %223 {offsets = [10, 0], sizes = [2, 64], strides = [1, 1]} : vector<14x64xf32> to vector<2x64xf32>
    %234 = arith.maximumf %232, %233 : vector<2x64xf32>
    %235 = vector.extract_strided_slice %223 {offsets = [12, 0], sizes = [2, 64], strides = [1, 1]} : vector<14x64xf32> to vector<2x64xf32>
    %236 = arith.maximumf %234, %235 : vector<2x64xf32>
    %237 = vector.extract_strided_slice %211 {offsets = [0, 256], sizes = [12, 128], strides = [1, 1]} : vector<16x1152xf32> to vector<12x128xf32>
    %238 = vector.extract_strided_slice %211 {offsets = [2, 384], sizes = [12, 128], strides = [1, 1]} : vector<16x1152xf32> to vector<12x128xf32>
    %239 = arith.addf %237, %238 : vector<12x128xf32>
    %240 = vector.extract_strided_slice %211 {offsets = [4, 512], sizes = [12, 128], strides = [1, 1]} : vector<16x1152xf32> to vector<12x128xf32>
    %241 = arith.addf %239, %240 : vector<12x128xf32>
    %c0_56 = arith.constant 0 : index
    %c2176 = arith.constant 2176 : index
    %242 = vector.load %arg4[%c0_56, %c2176] : memref<1x2688xf32, #tpu.memory_space<vmem>>, vector<1x128xf32>
    %243 = vector.broadcast %242 : vector<1x128xf32> to vector<12x128xf32>
    %244 = arith.addf %241, %243 : vector<12x128xf32>
    %245 = vector.extract_strided_slice %244 {offsets = [0, 0], sizes = [12, 64], strides = [1, 1]} : vector<12x128xf32> to vector<12x64xf32>
    %cst_57 = arith.constant 0.000000e+00 : f32
    %246 = vector.broadcast %cst_57 : f32 to vector<12x64xf32>
    %247 = arith.maximumf %245, %246 : vector<12x64xf32>
    %248 = vector.extract_strided_slice %244 {offsets = [0, 64], sizes = [12, 64], strides = [1, 1]} : vector<12x128xf32> to vector<12x64xf32>
    %249 = math.tanh %248 : vector<12x64xf32>
    %250 = arith.mulf %247, %249 : vector<12x64xf32>
    %251 = vector.extract_strided_slice %250 {offsets = [0, 0], sizes = [2, 64], strides = [1, 1]} : vector<12x64xf32> to vector<2x64xf32>
    %252 = vector.extract_strided_slice %250 {offsets = [2, 0], sizes = [2, 64], strides = [1, 1]} : vector<12x64xf32> to vector<2x64xf32>
    %253 = arith.maximumf %251, %252 : vector<2x64xf32>
    %254 = vector.extract_strided_slice %250 {offsets = [4, 0], sizes = [2, 64], strides = [1, 1]} : vector<12x64xf32> to vector<2x64xf32>
    %255 = arith.maximumf %253, %254 : vector<2x64xf32>
    %256 = vector.extract_strided_slice %250 {offsets = [6, 0], sizes = [2, 64], strides = [1, 1]} : vector<12x64xf32> to vector<2x64xf32>
    %257 = arith.maximumf %255, %256 : vector<2x64xf32>
    %258 = vector.extract_strided_slice %250 {offsets = [8, 0], sizes = [2, 64], strides = [1, 1]} : vector<12x64xf32> to vector<2x64xf32>
    %259 = arith.maximumf %257, %258 : vector<2x64xf32>
    %260 = vector.extract_strided_slice %250 {offsets = [10, 0], sizes = [2, 64], strides = [1, 1]} : vector<12x64xf32> to vector<2x64xf32>
    %261 = arith.maximumf %259, %260 : vector<2x64xf32>
    %262 = vector.extract_strided_slice %211 {offsets = [0, 640], sizes = [10, 128], strides = [1, 1]} : vector<16x1152xf32> to vector<10x128xf32>
    %263 = vector.extract_strided_slice %211 {offsets = [2, 768], sizes = [10, 128], strides = [1, 1]} : vector<16x1152xf32> to vector<10x128xf32>
    %264 = arith.addf %262, %263 : vector<10x128xf32>
    %265 = vector.extract_strided_slice %211 {offsets = [4, 896], sizes = [10, 128], strides = [1, 1]} : vector<16x1152xf32> to vector<10x128xf32>
    %266 = arith.addf %264, %265 : vector<10x128xf32>
    %267 = vector.extract_strided_slice %211 {offsets = [6, 1024], sizes = [10, 128], strides = [1, 1]} : vector<16x1152xf32> to vector<10x128xf32>
    %268 = arith.addf %266, %267 : vector<10x128xf32>
    %c0_58 = arith.constant 0 : index
    %c2304 = arith.constant 2304 : index
    %269 = vector.load %arg4[%c0_58, %c2304] : memref<1x2688xf32, #tpu.memory_space<vmem>>, vector<1x128xf32>
    %270 = vector.broadcast %269 : vector<1x128xf32> to vector<10x128xf32>
    %271 = arith.addf %268, %270 : vector<10x128xf32>
    %272 = vector.extract_strided_slice %271 {offsets = [0, 0], sizes = [10, 64], strides = [1, 1]} : vector<10x128xf32> to vector<10x64xf32>
    %cst_59 = arith.constant 0.000000e+00 : f32
    %273 = vector.broadcast %cst_59 : f32 to vector<10x64xf32>
    %274 = arith.maximumf %272, %273 : vector<10x64xf32>
    %275 = vector.extract_strided_slice %271 {offsets = [0, 64], sizes = [10, 64], strides = [1, 1]} : vector<10x128xf32> to vector<10x64xf32>
    %276 = math.tanh %275 : vector<10x64xf32>
    %277 = arith.mulf %274, %276 : vector<10x64xf32>
    %278 = vector.extract_strided_slice %277 {offsets = [0, 0], sizes = [2, 64], strides = [1, 1]} : vector<10x64xf32> to vector<2x64xf32>
    %279 = vector.extract_strided_slice %277 {offsets = [2, 0], sizes = [2, 64], strides = [1, 1]} : vector<10x64xf32> to vector<2x64xf32>
    %280 = arith.maximumf %278, %279 : vector<2x64xf32>
    %281 = vector.extract_strided_slice %277 {offsets = [4, 0], sizes = [2, 64], strides = [1, 1]} : vector<10x64xf32> to vector<2x64xf32>
    %282 = arith.maximumf %280, %281 : vector<2x64xf32>
    %283 = vector.extract_strided_slice %277 {offsets = [6, 0], sizes = [2, 64], strides = [1, 1]} : vector<10x64xf32> to vector<2x64xf32>
    %284 = arith.maximumf %282, %283 : vector<2x64xf32>
    %285 = vector.extract_strided_slice %277 {offsets = [8, 0], sizes = [2, 64], strides = [1, 1]} : vector<10x64xf32> to vector<2x64xf32>
    %286 = arith.maximumf %284, %285 : vector<2x64xf32>
    %287 = tpu.concatenate %236, %261, %286 in 1 : vector<2x64xf32>, vector<2x64xf32>, vector<2x64xf32> -> vector<2x192xf32>
    %c0_60 = arith.constant 0 : index
    %c0_61 = arith.constant 0 : index
    %288 = vector.load %arg5[%c0_60, %c0_61] : memref<192x32xf32, #tpu.memory_space<vmem>>, vector<192x32xf32>
    %cst_62 = arith.constant dense<0.000000e+00> : vector<2x32xf32>
    %289 = tpu.matmul %287, %288, %cst_62 {dimension_numbers = #tpu.dot_dimension_numbers<[1], [0], [0], [1], [0, 0, 1, 1], [], []>} : vector<2x192xf32>, vector<192x32xf32>, vector<2x32xf32> -> vector<2x32xf32>
    %c0_63 = arith.constant 0 : index
    %c2432 = arith.constant 2432 : index
    %290 = vector.load %arg4[%c0_63, %c2432] : memref<1x2688xf32, #tpu.memory_space<vmem>>, vector<1x32xf32>
    %291 = vector.broadcast %290 : vector<1x32xf32> to vector<2x32xf32>
    %292 = arith.addf %289, %291 : vector<2x32xf32>
    %c0_64 = arith.constant 0 : index
    %c0_65 = arith.constant 0 : index
    %293 = vector.load %arg6[%c0_64, %c0_65] : memref<32x8xf32, #tpu.memory_space<vmem>>, vector<32x8xf32>
    %cst_66 = arith.constant dense<0.000000e+00> : vector<2x8xf32>
    %294 = tpu.matmul %292, %293, %cst_66 {dimension_numbers = #tpu.dot_dimension_numbers<[1], [0], [0], [1], [0, 0, 1, 1], [], []>} : vector<2x32xf32>, vector<32x8xf32>, vector<2x8xf32> -> vector<2x8xf32>
    %c0_67 = arith.constant 0 : index
    %c2560 = arith.constant 2560 : index
    %295 = vector.load %arg4[%c0_67, %c2560] : memref<1x2688xf32, #tpu.memory_space<vmem>>, vector<1x8xf32>
    %296 = vector.broadcast %295 : vector<1x8xf32> to vector<2x8xf32>
    %297 = arith.addf %294, %296 : vector<2x8xf32>
    %c0_68 = arith.constant 0 : index
    %c0_69 = arith.constant 0 : index
    %298 = vector.load %arg7[%c0_68, %c0_69] : memref<2x8xf32, #tpu.memory_space<vmem>>, vector<2x8xf32>
    tpu.vector_store %arg7[%c0_68, %c0_69], %297 {strides = array<i32>} : memref<2x8xf32, #tpu.memory_space<vmem>>, vector<2x8xf32>,
    return
  }
}

</mosaic_0001>

<llo_original>
// kernel: tpu_custom_call.1
$region0: #{tpu_custom_call.1}
  #allocation0 [shape = 'u32[]', space=smem, size = 0x4, offset = 0x4, fixed_abs, tag = 'smem constant byte address 0x4 - core index']
  #allocation1 [shape = 'u32[72,128]{1,0:T(1,128)}', space=vmem, size = 0x9000, scoped, tag = 'internal scratch']
  #allocation2 [shape = 'f32[16,256]{1,0:T(8,128)}', space=vmem, size = 0x4000, scoped, tag = 'scratch operand']
  %s0 = inlined_call_operand.hbm [shape: f32[16,64], index: 0, kind: input, shape index: {}]
  %s1 = inlined_call_operand.hbm [shape: f32[64,2048], index: 1, kind: input, shape index: {}]
  %s2 = inlined_call_operand.hbm [shape: f32[256,1024], index: 2, kind: input, shape index: {}]
  %s3 = inlined_call_operand.hbm [shape: f32[256,1152], index: 3, kind: input, shape index: {}]
  %s4 = inlined_call_operand.hbm [shape: f32[1,2688], index: 4, kind: input, shape index: {}]
  %s5 = inlined_call_operand.vmem [shape: f32[192,32], index: 5, kind: input, shape index: {}]
  %s6 = inlined_call_operand.vmem [shape: f32[32,8], index: 6, kind: input, shape index: {}]
  %s7 = inlined_call_operand.hbm [shape: f32[2,8], index: 7, kind: output, shape index: {}]
  %s8 = sld [smem:[#allocation0]]
  $region58: #{tpu_custom_call.1} parent=0
    _
  %s10 = ssub.s32 1, %s8
  %s11 = scalar_select 0, %s10, %s8
  $region1: #{tpu_custom_call.1} parent=0
    #allocation3 [shape = 'u8[8192]{0}', space=vmem, size = 0x2000, scoped, tag = 'input window, operand 0, single buffered']
    #allocation4 [shape = 's32[1]{0}', space=sflag, size = 0x4, scoped, tag = 'scoped memory for tpu_custom_call.1']
    #allocation5 [shape = 's32[1]{0}', space=sflag, size = 0x4, scoped, tag = 'scoped memory for tpu_custom_call.1']
    #allocation6 [shape = 'u8[524288]{0}', space=vmem, size = 0x80000, scoped, tag = 'input window, operand 1, single buffered']
    #allocation7 [shape = 's32[1]{0}', space=sflag, size = 0x4, scoped, tag = 'scoped memory for tpu_custom_call.1']
    #allocation8 [shape = 'u8[1048576]{0}', space=vmem, size = 0x100000, scoped, tag = 'input window, operand 2, single buffered']
    #allocation9 [shape = 'u8[1179648]{0}', space=vmem, size = 0x120000, scoped, tag = 'input window, operand 3, single buffered']
    #allocation10 [shape = 's32[1]{0}', space=sflag, size = 0x4, scoped, tag = 'scoped memory for tpu_custom_call.1']
    #allocation11 [shape = 'u8[10752]{0}', space=vmem, size = 0x2c00, scoped, tag = 'input window, operand 4, single buffered']
    #allocation12 [shape = 'u8[1024]{0}', space=vmem, size = 0x400, scoped, tag = 'output window, operand 0, single buffered']
    %12 = vsyncpa [#allocation4], 0
    %13 = vsyncpa [#allocation7], 0
    %14 = vsyncpa [#allocation10], 0
    %15 = vsyncpa [#allocation5], 0
    // Predicated region
    $region2: #{tpu_custom_call.1} parent=1 // pred_check
      _
    $region3: #{tpu_custom_call.1} parent=1 // pred_check_branch
      %17 = sbr.rel (0) target = $region5
    $region4: #{tpu_custom_call.1} parent=1 // pred_region
      %19 = vsyncadd [#allocation4], 0
      %s20 = sshll.u32 %s0, 4
      %s21 = int_to_ptr.hbm [resolvable:$true] %s20
      %s22 = sshll.u32 [#allocation3], 4
      %s23 = int_to_ptr.vmem [resolvable:$true] %s22
      %28 = dma.hbm_to_vmem [thread:$0]  %s21, 256, %s23, [#allocation4], 128, 128, 8
    $region5: #{tpu_custom_call.1} parent=1 // pred_fallthru
      _
    // Predicated region
    $region6: #{tpu_custom_call.1} parent=1 // pred_check
      _
    $region7: #{tpu_custom_call.1} parent=1 // pred_check_branch
      %30 = sbr.rel (0) target = $region9
    $region8: #{tpu_custom_call.1} parent=1 // pred_region
      %32 = vsyncadd [#allocation7], 0
      %s33 = sshll.u32 %s1, 4
      %s34 = int_to_ptr.hbm [resolvable:$true] %s33
      %s35 = sshll.u32 [#allocation6], 4
      %s36 = int_to_ptr.vmem [resolvable:$true] %s35
      %41 = dma.hbm_to_vmem [thread:$0]  %s34, 16384, %s36, [#allocation7], 2048, 2048, 128
    $region9: #{tpu_custom_call.1} parent=1 // pred_fallthru
      _
    // Predicated region
    $region10: #{tpu_custom_call.1} parent=1 // pred_check
      _
    $region11: #{tpu_custom_call.1} parent=1 // pred_check_branch
      %43 = sbr.rel (0) target = $region13
    $region12: #{tpu_custom_call.1} parent=1 // pred_region
      %45 = vsyncadd [#allocation7], 0
      %s46 = sshll.u32 %s2, 4
      %s47 = int_to_ptr.hbm [resolvable:$true] %s46
      %s48 = sshll.u32 [#allocation8], 4
      %s49 = int_to_ptr.vmem [resolvable:$true] %s48
      %54 = dma.hbm_to_vmem [thread:$0]  %s47, 32768, %s49, [#allocation7], 1024, 1024, 64
    $region13: #{tpu_custom_call.1} parent=1 // pred_fallthru
      _
    // Predicated region
    $region14: #{tpu_custom_call.1} parent=1 // pred_check
      _
    $region15: #{tpu_custom_call.1} parent=1 // pred_check_branch
      %56 = sbr.rel (0) target = $region17
    $region16: #{tpu_custom_call.1} parent=1 // pred_region
      %58 = vsyncadd [#allocation10], 0
      %s59 = sshll.u32 %s3, 4
      %s60 = int_to_ptr.hbm [resolvable:$true] %s59
      %s61 = sshll.u32 [#allocation9], 4
      %s62 = int_to_ptr.vmem [resolvable:$true] %s61
      %67 = dma.hbm_to_vmem [thread:$0]  %s60, 36864, %s62, [#allocation10], 1152, 1152, 72
    $region17: #{tpu_custom_call.1} parent=1 // pred_fallthru
      _
    // Predicated region
    $region18: #{tpu_custom_call.1} parent=1 // pred_check
      _
    $region19: #{tpu_custom_call.1} parent=1 // pred_check_branch
      %69 = sbr.rel (0) target = $region21
    $region20: #{tpu_custom_call.1} parent=1 // pred_region
      %71 = vsyncadd [#allocation10], 0
      %s73 = sshll.u32 %s4, 4
      %s74 = int_to_ptr.hbm [resolvable:$true] %s73
      %s75 = sshll.u32 [#allocation11], 4
      %s76 = int_to_ptr.vmem [resolvable:$true] %s75
      %78 = dma.hbm_to_vmem [thread:$0]  %s74, 336, %s76, [#allocation10]
    $region21: #{tpu_custom_call.1} parent=1 // pred_fallthru
      _
    // Predicated region
    $region22: #{tpu_custom_call.1} parent=1 // pred_check
      _
    $region23: #{tpu_custom_call.1} parent=1 // pred_check_branch
      %80 = sbr.rel (0) target = $region25
    $region24: #{tpu_custom_call.1} parent=1 // pred_region
      _
    $region25: #{tpu_custom_call.1} parent=1 // pred_fallthru
      _
    // Predicated region
    $region26: #{tpu_custom_call.1} parent=1 // pred_check
      _
    $region27: #{tpu_custom_call.1} parent=1 // pred_check_branch
      %82 = sbr.rel (0) target = $region29
    $region28: #{tpu_custom_call.1} parent=1 // pred_region
      _
    $region29: #{tpu_custom_call.1} parent=1 // pred_fallthru
      _
    // Predicated region
    $region30: #{tpu_custom_call.1} parent=1 // pred_check
      _
    $region31: #{tpu_custom_call.1} parent=1 // pred_check_branch
      %84 = sbr.rel (0) target = $region33
    $region32: #{tpu_custom_call.1} parent=1 // pred_region
      %86 = dma.done [#allocation4], 256
    $region33: #{tpu_custom_call.1} parent=1 // pred_fallthru
      _
    // Predicated region
    $region34: #{tpu_custom_call.1} parent=1 // pred_check
      _
    $region35: #{tpu_custom_call.1} parent=1 // pred_check_branch
      %88 = sbr.rel (0) target = $region37
    $region36: #{tpu_custom_call.1} parent=1 // pred_region
      %90 = dma.done [#allocation7], 16384
    $region37: #{tpu_custom_call.1} parent=1 // pred_fallthru
      _
    // Predicated region
    $region38: #{tpu_custom_call.1} parent=1 // pred_check
      _
    $region39: #{tpu_custom_call.1} parent=1 // pred_check_branch
      %92 = sbr.rel (0) target = $region41
    $region40: #{tpu_custom_call.1} parent=1 // pred_region
      %94 = dma.done [#allocation7], 32768
    $region41: #{tpu_custom_call.1} parent=1 // pred_fallthru
      _
    // Predicated region
    $region42: #{tpu_custom_call.1} parent=1 // pred_check
      _
    $region43: #{tpu_custom_call.1} parent=1 // pred_check_branch
      %96 = sbr.rel (0) target = $region45
    $region44: #{tpu_custom_call.1} parent=1 // pred_region
      %98 = dma.done [#allocation10], 36864
    $region45: #{tpu_custom_call.1} parent=1 // pred_fallthru
      _
    // Predicated region
    $region46: #{tpu_custom_call.1} parent=1 // pred_check
      _
    $region47: #{tpu_custom_call.1} parent=1 // pred_check_branch
      %100 = sbr.rel (0) target = $region49
    $region48: #{tpu_custom_call.1} parent=1 // pred_region
      %102 = dma.done [#allocation10], 336
    $region49: #{tpu_custom_call.1} parent=1 // pred_fallthru
      _
    %v103 = vld [vmem:[#allocation3] sm:$0xff]
    %v104 = vld [vmem:[#allocation3 + $0x8] sm:$0xff]
    %v105 = vld [vmem:[#allocation6] sm:$0xff]
    %v106 = vld [vmem:[#allocation6 + $0x8] sm:$0xff]
    %v107 = vld [vmem:[#allocation6 + $0x10] sm:$0xff]
    %v108 = vld [vmem:[#allocation6 + $0x18] sm:$0xff]
    %v109 = vld [vmem:[#allocation6 + $0x20] sm:$0xff]
    %v110 = vld [vmem:[#allocation6 + $0x28] sm:$0xff]
    %v111 = vld [vmem:[#allocation6 + $0x30] sm:$0xff]
    %v112 = vld [vmem:[#allocation6 + $0x38] sm:$0xff]
    %v113 = vld [vmem:[#allocation6 + $0x40] sm:$0xff]
    %v114 = vld [vmem:[#allocation6 + $0x48] sm:$0xff]
    %v115 = vld [vmem:[#allocation6 + $0x50] sm:$0xff]
    %v116 = vld [vmem:[#allocation6 + $0x58] sm:$0xff]
    %v117 = vld [vmem:[#allocation6 + $0x60] sm:$0xff]
    %v118 = vld [vmem:[#allocation6 + $0x68] sm:$0xff]
    %v119 = vld [vmem:[#allocation6 + $0x70] sm:$0xff]
    %v120 = vld [vmem:[#allocation6 + $0x78] sm:$0xff]
    %v121 = vld [vmem:[#allocation6 + $0x80] sm:$0xff]
    %v122 = vld [vmem:[#allocation6 + $0x88] sm:$0xff]
    %v123 = vld [vmem:[#allocation6 + $0x90] sm:$0xff]
    %v124 = vld [vmem:[#allocation6 + $0x98] sm:$0xff]
    %v125 = vld [vmem:[#allocation6 + $0xa0] sm:$0xff]
    %v126 = vld [vmem:[#allocation6 + $0xa8] sm:$0xff]
    %v127 = vld [vmem:[#allocation6 + $0xb0] sm:$0xff]
    %v128 = vld [vmem:[#allocation6 + $0xb8] sm:$0xff]
    %v129 = vld [vmem:[#allocation6 + $0xc0] sm:$0xff]
    %v130 = vld [vmem:[#allocation6 + $0xc8] sm:$0xff]
    %v131 = vld [vmem:[#allocation6 + $0xd0] sm:$0xff]
    %v132 = vld [vmem:[#allocation6 + $0xd8] sm:$0xff]
    %v133 = vld [vmem:[#allocation6 + $0xe0] sm:$0xff]
    %v134 = vld [vmem:[#allocation6 + $0xe8] sm:$0xff]
    %v135 = vld [vmem:[#allocation6 + $0xf0] sm:$0xff]
    %v136 = vld [vmem:[#allocation6 + $0xf8] sm:$0xff]
    %v137 = vld [vmem:[#allocation6 + $0x100] sm:$0xff]
    %v138 = vld [vmem:[#allocation6 + $0x108] sm:$0xff]
    %v139 = vld [vmem:[#allocation6 + $0x110] sm:$0xff]
    %v140 = vld [vmem:[#allocation6 + $0x118] sm:$0xff]
    %v141 = vld [vmem:[#allocation6 + $0x120] sm:$0xff]
    %v142 = vld [vmem:[#allocation6 + $0x128] sm:$0xff]
    %v143 = vld [vmem:[#allocation6 + $0x130] sm:$0xff]
    %v144 = vld [vmem:[#allocation6 + $0x138] sm:$0xff]
    %v145 = vld [vmem:[#allocation6 + $0x140] sm:$0xff]
    %v146 = vld [vmem:[#allocation6 + $0x148] sm:$0xff]
    %v147 = vld [vmem:[#allocation6 + $0x150] sm:$0xff]
    %v148 = vld [vmem:[#allocation6 + $0x158] sm:$0xff]
    %v149 = vld [vmem:[#allocation6 + $0x160] sm:$0xff]
    %v150 = vld [vmem:[#allocation6 + $0x168] sm:$0xff]
    %v151 = vld [vmem:[#allocation6 + $0x170] sm:$0xff]
    %v152 = vld [vmem:[#allocation6 + $0x178] sm:$0xff]
    %v153 = vld [vmem:[#allocation6 + $0x180] sm:$0xff]
    %v154 = vld [vmem:[#allocation6 + $0x188] sm:$0xff]
    %v155 = vld [vmem:[#allocation6 + $0x190] sm:$0xff]
    %v156 = vld [vmem:[#allocation6 + $0x198] sm:$0xff]
    %v157 = vld [vmem:[#allocation6 + $0x1a0] sm:$0xff]
    %v158 = vld [vmem:[#allocation6 + $0x1a8] sm:$0xff]
    %v159 = vld [vmem:[#allocation6 + $0x1b0] sm:$0xff]
    %v160 = vld [vmem:[#allocation6 + $0x1b8] sm:$0xff]
    %v161 = vld [vmem:[#allocation6 + $0x1c0] sm:$0xff]
    %v162 = vld [vmem:[#allocation6 + $0x1c8] sm:$0xff]
    %v163 = vld [vmem:[#allocation6 + $0x1d0] sm:$0xff]
    %v164 = vld [vmem:[#allocation6 + $0x1d8] sm:$0xff]
    %v165 = vld [vmem:[#allocation6 + $0x1e0] sm:$0xff]
    %v166 = vld [vmem:[#allocation6 + $0x1e8] sm:$0xff]
    %v167 = vld [vmem:[#allocation6 + $0x1f0] sm:$0xff]
    %v168 = vld [vmem:[#allocation6 + $0x1f8] sm:$0xff]
    %v169 = vld [vmem:[#allocation6 + $0x200] sm:$0xff]
    %v170 = vld [vmem:[#allocation6 + $0x208] sm:$0xff]
    %v171 = vld [vmem:[#allocation6 + $0x210] sm:$0xff]
    %v172 = vld [vmem:[#allocation6 + $0x218] sm:$0xff]
    %v173 = vld [vmem:[#allocation6 + $0x220] sm:$0xff]
    %v174 = vld [vmem:[#allocation6 + $0x228] sm:$0xff]
    %v175 = vld [vmem:[#allocation6 + $0x230] sm:$0xff]
    %v176 = vld [vmem:[#allocation6 + $0x238] sm:$0xff]
    %v177 = vld [vmem:[#allocation6 + $0x240] sm:$0xff]
    %v178 = vld [vmem:[#allocation6 + $0x248] sm:$0xff]
    %v179 = vld [vmem:[#allocation6 + $0x250] sm:$0xff]
    %v180 = vld [vmem:[#allocation6 + $0x258] sm:$0xff]
    %v181 = vld [vmem:[#allocation6 + $0x260] sm:$0xff]
    %v182 = vld [vmem:[#allocation6 + $0x268] sm:$0xff]
    %v183 = vld [vmem:[#allocation6 + $0x270] sm:$0xff]
    %v184 = vld [vmem:[#allocation6 + $0x278] sm:$0xff]
    %v185 = vld [vmem:[#allocation6 + $0x280] sm:$0xff]
    %v186 = vld [vmem:[#allocation6 + $0x288] sm:$0xff]
    %v187 = vld [vmem:[#allocation6 + $0x290] sm:$0xff]
    %v188 = vld [vmem:[#allocation6 + $0x298] sm:$0xff]
    %v189 = vld [vmem:[#allocation6 + $0x2a0] sm:$0xff]
    %v190 = vld [vmem:[#allocation6 + $0x2a8] sm:$0xff]
    %v191 = vld [vmem:[#allocation6 + $0x2b0] sm:$0xff]
    %v192 = vld [vmem:[#allocation6 + $0x2b8] sm:$0xff]
    %v193 = vld [vmem:[#allocation6 + $0x2c0] sm:$0xff]
    %v194 = vld [vmem:[#allocation6 + $0x2c8] sm:$0xff]
    %v195 = vld [vmem:[#allocation6 + $0x2d0] sm:$0xff]
    %v196 = vld [vmem:[#allocation6 + $0x2d8] sm:$0xff]
    %v197 = vld [vmem:[#allocation6 + $0x2e0] sm:$0xff]
    %v198 = vld [vmem:[#allocation6 + $0x2e8] sm:$0xff]
    %v199 = vld [vmem:[#allocation6 + $0x2f0] sm:$0xff]
    %v200 = vld [vmem:[#allocation6 + $0x2f8] sm:$0xff]
    %v201 = vld [vmem:[#allocation6 + $0x300] sm:$0xff]
    %v202 = vld [vmem:[#allocation6 + $0x308] sm:$0xff]
    %v203 = vld [vmem:[#allocation6 + $0x310] sm:$0xff]
    %v204 = vld [vmem:[#allocation6 + $0x318] sm:$0xff]
    %v205 = vld [vmem:[#allocation6 + $0x320] sm:$0xff]
    %v206 = vld [vmem:[#allocation6 + $0x328] sm:$0xff]
    %v207 = vld [vmem:[#allocation6 + $0x330] sm:$0xff]
    %v208 = vld [vmem:[#allocation6 + $0x338] sm:$0xff]
    %v209 = vld [vmem:[#allocation6 + $0x340] sm:$0xff]
    %v210 = vld [vmem:[#allocation6 + $0x348] sm:$0xff]
    %v211 = vld [vmem:[#allocation6 + $0x350] sm:$0xff]
    %v212 = vld [vmem:[#allocation6 + $0x358] sm:$0xff]
    %v213 = vld [vmem:[#allocation6 + $0x360] sm:$0xff]
    %v214 = vld [vmem:[#allocation6 + $0x368] sm:$0xff]
    %v215 = vld [vmem:[#allocation6 + $0x370] sm:$0xff]
    %v216 = vld [vmem:[#allocation6 + $0x378] sm:$0xff]
    %v217 = vld [vmem:[#allocation6 + $0x380] sm:$0xff]
    %v218 = vld [vmem:[#allocation6 + $0x388] sm:$0xff]
    %v219 = vld [vmem:[#allocation6 + $0x390] sm:$0xff]
    %v220 = vld [vmem:[#allocation6 + $0x398] sm:$0xff]
    %v221 = vld [vmem:[#allocation6 + $0x3a0] sm:$0xff]
    %v222 = vld [vmem:[#allocation6 + $0x3a8] sm:$0xff]
    %v223 = vld [vmem:[#allocation6 + $0x3b0] sm:$0xff]
    %v224 = vld [vmem:[#allocation6 + $0x3b8] sm:$0xff]
    %v225 = vld [vmem:[#allocation6 + $0x3c0] sm:$0xff]
    %v226 = vld [vmem:[#allocation6 + $0x3c8] sm:$0xff]
    %v227 = vld [vmem:[#allocation6 + $0x3d0] sm:$0xff]
    %v228 = vld [vmem:[#allocation6 + $0x3d8] sm:$0xff]
    %v229 = vld [vmem:[#allocation6 + $0x3e0] sm:$0xff]
    %v230 = vld [vmem:[#allocation6 + $0x3e8] sm:$0xff]
    %v231 = vld [vmem:[#allocation6 + $0x3f0] sm:$0xff]
    %v232 = vld [vmem:[#allocation6 + $0x3f8] sm:$0xff]
    %v233 = vld [vmem:[#allocation11] sm:$0xff]
    %v234 = vld [vmem:[#allocation11 + $0x8] sm:$0xff]
    %v237 = vperm.slane %v233, 0
    %v238 = vperm.slane %v233, 1
    %v239 = vperm.slane %v233, 2
    %v240 = vperm.slane %v233, 3
    %v241 = vperm.slane %v233, 4
    %v242 = vperm.slane %v233, 5
    %v243 = vperm.slane %v233, 6
    %v244 = vperm.slane %v233, 7
    %v245 = vperm.slane %v234, 0
    %v246 = vperm.slane %v234, 1
    %v247 = vperm.slane %v234, 2
    %v248 = vperm.slane %v234, 3
    %v249 = vperm.slane %v234, 4
    %v250 = vperm.slane %v234, 5
    %v251 = vperm.slane %v234, 6
    %v252 = vperm.slane %v234, 7
    %vm269 = vcmask 523264
    %v271 = vsel %vm269, %v103, 0
    %v274 = vsel %vm269, %v104, 0
    %276 = vmatpush.msra.mxu0 0.0
    %277 = vmatpush.msra.mxu0 0.0
    %278 = vmatpush.msra.mxu0 0.0
    %279 = vmatpush.msra.mxu0 0.0
    %280 = vmatpush.msra.mxu0 0.0
    %281 = vmatpush.msra.mxu0 0.0
    %282 = vmatpush.msra.mxu0 0.0
    %283 = vmatpush.msra.mxu0 0.0
    %284 = vmatpush.msra.mxu0 %v217
    %285 = vmatpush.msra.mxu0 %v201
    %286 = vmatpush.msra.mxu0 %v185
    %287 = vmatpush.msra.mxu0 %v169
    %288 = vmatpush.msra.mxu0 %v153
    %289 = vmatpush.msra.mxu0 %v137
    %290 = vmatpush.msra.mxu0 %v121
    %291 = vmatpush.msra.mxu0 %v105
    %292 = vmatmul.f32.gmra.mxu0 %v271
    %v293 = vpop.f32.mrf.mxu0
    %v294 = vadd.f32 %v237, %v293
    %295 = vmatmul.f32.gmra.mxu0 %v274
    %v296 = vpop.f32.mrf.mxu0
    %v297 = vadd.f32 %v237, %v296
    %298 = vdwg.mxu0
    %299 = vmatpush.msra.mxu0 0.0
    %300 = vmatpush.msra.mxu0 0.0
    %301 = vmatpush.msra.mxu0 0.0
    %302 = vmatpush.msra.mxu0 0.0
    %303 = vmatpush.msra.mxu0 0.0
    %304 = vmatpush.msra.mxu0 0.0
    %305 = vmatpush.msra.mxu0 0.0
    %306 = vmatpush.msra.mxu0 0.0
    %307 = vmatpush.msra.mxu0 %v218
    %308 = vmatpush.msra.mxu0 %v202
    %309 = vmatpush.msra.mxu0 %v186
    %310 = vmatpush.msra.mxu0 %v170
    %311 = vmatpush.msra.mxu0 %v154
    %312 = vmatpush.msra.mxu0 %v138
    %313 = vmatpush.msra.mxu0 %v122
    %314 = vmatpush.msra.mxu0 %v106
    %315 = vmatmul.f32.gmra.mxu0 %v271
    %v316 = vpop.f32.mrf.mxu0
    %v317 = vadd.f32 %v238, %v316
    %318 = vmatmul.f32.gmra.mxu0 %v274
    %v319 = vpop.f32.mrf.mxu0
    %v320 = vadd.f32 %v238, %v319
    %321 = vdwg.mxu0
    %322 = vmatpush.msra.mxu0 0.0
    %323 = vmatpush.msra.mxu0 0.0
    %324 = vmatpush.msra.mxu0 0.0
    %325 = vmatpush.msra.mxu0 0.0
    %326 = vmatpush.msra.mxu0 0.0
    %327 = vmatpush.msra.mxu0 0.0
    %328 = vmatpush.msra.mxu0 0.0
    %329 = vmatpush.msra.mxu0 0.0
    %330 = vmatpush.msra.mxu0 %v219
    %331 = vmatpush.msra.mxu0 %v203
    %332 = vmatpush.msra.mxu0 %v187
    %333 = vmatpush.msra.mxu0 %v171
    %334 = vmatpush.msra.mxu0 %v155
    %335 = vmatpush.msra.mxu0 %v139
    %336 = vmatpush.msra.mxu0 %v123
    %337 = vmatpush.msra.mxu0 %v107
    %338 = vmatmul.f32.gmra.mxu0 %v271
    %v339 = vpop.f32.mrf.mxu0
    %v340 = vadd.f32 %v239, %v339
    %341 = vmatmul.f32.gmra.mxu0 %v274
    %v342 = vpop.f32.mrf.mxu0
    %v343 = vadd.f32 %v239, %v342
    %344 = vdwg.mxu0
    %345 = vmatpush.msra.mxu0 0.0
    %346 = vmatpush.msra.mxu0 0.0
    %347 = vmatpush.msra.mxu0 0.0
    %348 = vmatpush.msra.mxu0 0.0
    %349 = vmatpush.msra.mxu0 0.0
    %350 = vmatpush.msra.mxu0 0.0
    %351 = vmatpush.msra.mxu0 0.0
    %352 = vmatpush.msra.mxu0 0.0
    %353 = vmatpush.msra.mxu0 %v220
    %354 = vmatpush.msra.mxu0 %v204
    %355 = vmatpush.msra.mxu0 %v188
    %356 = vmatpush.msra.mxu0 %v172
    %357 = vmatpush.msra.mxu0 %v156
    %358 = vmatpush.msra.mxu0 %v140
    %359 = vmatpush.msra.mxu0 %v124
    %360 = vmatpush.msra.mxu0 %v108
    %361 = vmatmul.f32.gmra.mxu0 %v271
    %v362 = vpop.f32.mrf.mxu0
    %v363 = vadd.f32 %v240, %v362
    %364 = vmatmul.f32.gmra.mxu0 %v274
    %v365 = vpop.f32.mrf.mxu0
    %v366 = vadd.f32 %v240, %v365
    %367 = vdwg.mxu0
    %368 = vmatpush.msra.mxu0 0.0
    %369 = vmatpush.msra.mxu0 0.0
    %370 = vmatpush.msra.mxu0 0.0
    %371 = vmatpush.msra.mxu0 0.0
    %372 = vmatpush.msra.mxu0 0.0
    %373 = vmatpush.msra.mxu0 0.0
    %374 = vmatpush.msra.mxu0 0.0
    %375 = vmatpush.msra.mxu0 0.0
    %376 = vmatpush.msra.mxu0 %v221
    %377 = vmatpush.msra.mxu0 %v205
    %378 = vmatpush.msra.mxu0 %v189
    %379 = vmatpush.msra.mxu0 %v173
    %380 = vmatpush.msra.mxu0 %v157
    %381 = vmatpush.msra.mxu0 %v141
    %382 = vmatpush.msra.mxu0 %v125
    %383 = vmatpush.msra.mxu0 %v109
    %384 = vmatmul.f32.gmra.mxu0 %v271
    %v385 = vpop.f32.mrf.mxu0
    %v386 = vadd.f32 %v241, %v385
    %387 = vmatmul.f32.gmra.mxu0 %v274
    %v388 = vpop.f32.mrf.mxu0
    %v389 = vadd.f32 %v241, %v388
    %390 = vdwg.mxu0
    %391 = vmatpush.msra.mxu0 0.0
    %392 = vmatpush.msra.mxu0 0.0
    %393 = vmatpush.msra.mxu0 0.0
    %394 = vmatpush.msra.mxu0 0.0
    %395 = vmatpush.msra.mxu0 0.0
    %396 = vmatpush.msra.mxu0 0.0
    %397 = vmatpush.msra.mxu0 0.0
    %398 = vmatpush.msra.mxu0 0.0
    %399 = vmatpush.msra.mxu0 %v222
    %400 = vmatpush.msra.mxu0 %v206
    %401 = vmatpush.msra.mxu0 %v190
    %402 = vmatpush.msra.mxu0 %v174
    %403 = vmatpush.msra.mxu0 %v158
    %404 = vmatpush.msra.mxu0 %v142
    %405 = vmatpush.msra.mxu0 %v126
    %406 = vmatpush.msra.mxu0 %v110
    %407 = vmatmul.f32.gmra.mxu0 %v271
    %v408 = vpop.f32.mrf.mxu0
    %v409 = vadd.f32 %v242, %v408
    %410 = vmatmul.f32.gmra.mxu0 %v274
    %v411 = vpop.f32.mrf.mxu0
    %v412 = vadd.f32 %v242, %v411
    %413 = vdwg.mxu0
    %414 = vmatpush.msra.mxu0 0.0
    %415 = vmatpush.msra.mxu0 0.0
    %416 = vmatpush.msra.mxu0 0.0
    %417 = vmatpush.msra.mxu0 0.0
    %418 = vmatpush.msra.mxu0 0.0
    %419 = vmatpush.msra.mxu0 0.0
    %420 = vmatpush.msra.mxu0 0.0
    %421 = vmatpush.msra.mxu0 0.0
    %422 = vmatpush.msra.mxu0 %v223
    %423 = vmatpush.msra.mxu0 %v207
    %424 = vmatpush.msra.mxu0 %v191
    %425 = vmatpush.msra.mxu0 %v175
    %426 = vmatpush.msra.mxu0 %v159
    %427 = vmatpush.msra.mxu0 %v143
    %428 = vmatpush.msra.mxu0 %v127
    %429 = vmatpush.msra.mxu0 %v111
    %430 = vmatmul.f32.gmra.mxu0 %v271
    %v431 = vpop.f32.mrf.mxu0
    %v432 = vadd.f32 %v243, %v431
    %433 = vmatmul.f32.gmra.mxu0 %v274
    %v434 = vpop.f32.mrf.mxu0
    %v435 = vadd.f32 %v243, %v434
    %436 = vdwg.mxu0
    %437 = vmatpush.msra.mxu0 0.0
    %438 = vmatpush.msra.mxu0 0.0
    %439 = vmatpush.msra.mxu0 0.0
    %440 = vmatpush.msra.mxu0 0.0
    %441 = vmatpush.msra.mxu0 0.0
    %442 = vmatpush.msra.mxu0 0.0
    %443 = vmatpush.msra.mxu0 0.0
    %444 = vmatpush.msra.mxu0 0.0
    %445 = vmatpush.msra.mxu0 %v224
    %446 = vmatpush.msra.mxu0 %v208
    %447 = vmatpush.msra.mxu0 %v192
    %448 = vmatpush.msra.mxu0 %v176
    %449 = vmatpush.msra.mxu0 %v160
    %450 = vmatpush.msra.mxu0 %v144
    %451 = vmatpush.msra.mxu0 %v128
    %452 = vmatpush.msra.mxu0 %v112
    %453 = vmatmul.f32.gmra.mxu0 %v271
    %v454 = vpop.f32.mrf.mxu0
    %v455 = vadd.f32 %v244, %v454
    %456 = vmatmul.f32.gmra.mxu0 %v274
    %v457 = vpop.f32.mrf.mxu0
    %v458 = vadd.f32 %v244, %v457
    %459 = vdwg.mxu0
    %460 = vmatpush.msra.mxu0 0.0
    %461 = vmatpush.msra.mxu0 0.0
    %462 = vmatpush.msra.mxu0 0.0
    %463 = vmatpush.msra.mxu0 0.0
    %464 = vmatpush.msra.mxu0 0.0
    %465 = vmatpush.msra.mxu0 0.0
    %466 = vmatpush.msra.mxu0 0.0
    %467 = vmatpush.msra.mxu0 0.0
    %468 = vmatpush.msra.mxu0 %v225
    %469 = vmatpush.msra.mxu0 %v209
    %470 = vmatpush.msra.mxu0 %v193
    %471 = vmatpush.msra.mxu0 %v177
    %472 = vmatpush.msra.mxu0 %v161
    %473 = vmatpush.msra.mxu0 %v145
    %474 = vmatpush.msra.mxu0 %v129
    %475 = vmatpush.msra.mxu0 %v113
    %476 = vmatmul.f32.gmra.mxu0 %v271
    %v477 = vpop.f32.mrf.mxu0
    %v478 = vadd.f32 %v245, %v477
    %479 = vmatmul.f32.gmra.mxu0 %v274
    %v480 = vpop.f32.mrf.mxu0
    %v481 = vadd.f32 %v245, %v480
    %482 = vdwg.mxu0
    %483 = vmatpush.msra.mxu0 0.0
    %484 = vmatpush.msra.mxu0 0.0
    %485 = vmatpush.msra.mxu0 0.0
    %486 = vmatpush.msra.mxu0 0.0
    %487 = vmatpush.msra.mxu0 0.0
    %488 = vmatpush.msra.mxu0 0.0
    %489 = vmatpush.msra.mxu0 0.0
    %490 = vmatpush.msra.mxu0 0.0
    %491 = vmatpush.msra.mxu0 %v226
    %492 = vmatpush.msra.mxu0 %v210
    %493 = vmatpush.msra.mxu0 %v194
    %494 = vmatpush.msra.mxu0 %v178
    %495 = vmatpush.msra.mxu0 %v162
    %496 = vmatpush.msra.mxu0 %v146
    %497 = vmatpush.msra.mxu0 %v130
    %498 = vmatpush.msra.mxu0 %v114
    %499 = vmatmul.f32.gmra.mxu0 %v271
    %v500 = vpop.f32.mrf.mxu0
    %v501 = vadd.f32 %v246, %v500
    %502 = vmatmul.f32.gmra.mxu0 %v274
    %v503 = vpop.f32.mrf.mxu0
    %v504 = vadd.f32 %v246, %v503
    %505 = vdwg.mxu0
    %506 = vmatpush.msra.mxu0 0.0
    %507 = vmatpush.msra.mxu0 0.0
    %508 = vmatpush.msra.mxu0 0.0
    %509 = vmatpush.msra.mxu0 0.0
    %510 = vmatpush.msra.mxu0 0.0
    %511 = vmatpush.msra.mxu0 0.0
    %512 = vmatpush.msra.mxu0 0.0
    %513 = vmatpush.msra.mxu0 0.0
    %514 = vmatpush.msra.mxu0 %v227
    %515 = vmatpush.msra.mxu0 %v211
    %516 = vmatpush.msra.mxu0 %v195
    %517 = vmatpush.msra.mxu0 %v179
    %518 = vmatpush.msra.mxu0 %v163
    %519 = vmatpush.msra.mxu0 %v147
    %520 = vmatpush.msra.mxu0 %v131
    %521 = vmatpush.msra.mxu0 %v115
    %522 = vmatmul.f32.gmra.mxu0 %v271
    %v523 = vpop.f32.mrf.mxu0
    %v524 = vadd.f32 %v247, %v523
    %525 = vmatmul.f32.gmra.mxu0 %v274
    %v526 = vpop.f32.mrf.mxu0
    %v527 = vadd.f32 %v247, %v526
    %528 = vdwg.mxu0
    %529 = vmatpush.msra.mxu0 0.0
    %530 = vmatpush.msra.mxu0 0.0
    %531 = vmatpush.msra.mxu0 0.0
    %532 = vmatpush.msra.mxu0 0.0
    %533 = vmatpush.msra.mxu0 0.0
    %534 = vmatpush.msra.mxu0 0.0
    %535 = vmatpush.msra.mxu0 0.0
    %536 = vmatpush.msra.mxu0 0.0
    %537 = vmatpush.msra.mxu0 %v228
    %538 = vmatpush.msra.mxu0 %v212
    %539 = vmatpush.msra.mxu0 %v196
    %540 = vmatpush.msra.mxu0 %v180
    %541 = vmatpush.msra.mxu0 %v164
    %542 = vmatpush.msra.mxu0 %v148
    %543 = vmatpush.msra.mxu0 %v132
    %544 = vmatpush.msra.mxu0 %v116
    %545 = vmatmul.f32.gmra.mxu0 %v271
    %v546 = vpop.f32.mrf.mxu0
    %v547 = vadd.f32 %v248, %v546
    %548 = vmatmul.f32.gmra.mxu0 %v274
    %v549 = vpop.f32.mrf.mxu0
    %v550 = vadd.f32 %v248, %v549
    %551 = vdwg.mxu0
    %552 = vmatpush.msra.mxu0 0.0
    %553 = vmatpush.msra.mxu0 0.0
    %554 = vmatpush.msra.mxu0 0.0
    %555 = vmatpush.msra.mxu0 0.0
    %556 = vmatpush.msra.mxu0 0.0
    %557 = vmatpush.msra.mxu0 0.0
    %558 = vmatpush.msra.mxu0 0.0
    %559 = vmatpush.msra.mxu0 0.0
    %560 = vmatpush.msra.mxu0 %v229
    %561 = vmatpush.msra.mxu0 %v213
    %562 = vmatpush.msra.mxu0 %v197
    %563 = vmatpush.msra.mxu0 %v181
    %564 = vmatpush.msra.mxu0 %v165
    %565 = vmatpush.msra.mxu0 %v149
    %566 = vmatpush.msra.mxu0 %v133
    %567 = vmatpush.msra.mxu0 %v117
    %568 = vmatmul.f32.gmra.mxu0 %v271
    %v569 = vpop.f32.mrf.mxu0
    %v570 = vadd.f32 %v249, %v569
    %571 = vmatmul.f32.gmra.mxu0 %v274
    %v572 = vpop.f32.mrf.mxu0
    %v573 = vadd.f32 %v249, %v572
    %574 = vdwg.mxu0
    %575 = vmatpush.msra.mxu0 0.0
    %576 = vmatpush.msra.mxu0 0.0
    %577 = vmatpush.msra.mxu0 0.0
    %578 = vmatpush.msra.mxu0 0.0
    %579 = vmatpush.msra.mxu0 0.0
    %580 = vmatpush.msra.mxu0 0.0
    %581 = vmatpush.msra.mxu0 0.0
    %582 = vmatpush.msra.mxu0 0.0
    %583 = vmatpush.msra.mxu0 %v230
    %584 = vmatpush.msra.mxu0 %v214
    %585 = vmatpush.msra.mxu0 %v198
    %586 = vmatpush.msra.mxu0 %v182
    %587 = vmatpush.msra.mxu0 %v166
    %588 = vmatpush.msra.mxu0 %v150
    %589 = vmatpush.msra.mxu0 %v134
    %590 = vmatpush.msra.mxu0 %v118
    %591 = vmatmul.f32.gmra.mxu0 %v271
    %v592 = vpop.f32.mrf.mxu0
    %v593 = vadd.f32 %v250, %v592
    %594 = vmatmul.f32.gmra.mxu0 %v274
    %v595 = vpop.f32.mrf.mxu0
    %v596 = vadd.f32 %v250, %v595
    %597 = vdwg.mxu0
    %598 = vmatpush.msra.mxu0 0.0
    %599 = vmatpush.msra.mxu0 0.0
    %600 = vmatpush.msra.mxu0 0.0
    %601 = vmatpush.msra.mxu0 0.0
    %602 = vmatpush.msra.mxu0 0.0
    %603 = vmatpush.msra.mxu0 0.0
    %604 = vmatpush.msra.mxu0 0.0
    %605 = vmatpush.msra.mxu0 0.0
    %606 = vmatpush.msra.mxu0 %v231
    %607 = vmatpush.msra.mxu0 %v215
    %608 = vmatpush.msra.mxu0 %v199
    %609 = vmatpush.msra.mxu0 %v183
    %610 = vmatpush.msra.mxu0 %v167
    %611 = vmatpush.msra.mxu0 %v151
    %612 = vmatpush.msra.mxu0 %v135
    %613 = vmatpush.msra.mxu0 %v119
    %614 = vmatmul.f32.gmra.mxu0 %v271
    %v615 = vpop.f32.mrf.mxu0
    %v616 = vadd.f32 %v251, %v615
    %617 = vmatmul.f32.gmra.mxu0 %v274
    %v618 = vpop.f32.mrf.mxu0
    %v619 = vadd.f32 %v251, %v618
    %620 = vdwg.mxu0
    %621 = vmatpush.msra.mxu0 0.0
    %622 = vmatpush.msra.mxu0 0.0
    %623 = vmatpush.msra.mxu0 0.0
    %624 = vmatpush.msra.mxu0 0.0
    %625 = vmatpush.msra.mxu0 0.0
    %626 = vmatpush.msra.mxu0 0.0
    %627 = vmatpush.msra.mxu0 0.0
    %628 = vmatpush.msra.mxu0 0.0
    %629 = vmatpush.msra.mxu0 %v232
    %630 = vmatpush.msra.mxu0 %v216
    %631 = vmatpush.msra.mxu0 %v200
    %632 = vmatpush.msra.mxu0 %v184
    %633 = vmatpush.msra.mxu0 %v168
    %634 = vmatpush.msra.mxu0 %v152
    %635 = vmatpush.msra.mxu0 %v136
    %636 = vmatpush.msra.mxu0 %v120
    %637 = vmatmul.f32.gmra.mxu0 %v271
    %v638 = vpop.f32.mrf.mxu0
    %v639 = vadd.f32 %v252, %v638
    %640 = vmatmul.f32.gmra.mxu0 %v274
    %v641 = vpop.f32.mrf.mxu0
    %v642 = vadd.f32 %v252, %v641
    %643 = vdwg.mxu0
    %v644 = vld [vmem:[#allocation8] sm:$0xff]
    %v645 = vld [vmem:[#allocation8 + $0x8] sm:$0xff]
    %v646 = vld [vmem:[#allocation8 + $0x10] sm:$0xff]
    %v647 = vld [vmem:[#allocation8 + $0x18] sm:$0xff]
    %v648 = vld [vmem:[#allocation8 + $0x20] sm:$0xff]
    %v649 = vld [vmem:[#allocation8 + $0x28] sm:$0xff]
    %v650 = vld [vmem:[#allocation8 + $0x30] sm:$0xff]
    %v651 = vld [vmem:[#allocation8 + $0x38] sm:$0xff]
    %v652 = vld [vmem:[#allocation8 + $0x40] sm:$0xff]
    %v653 = vld [vmem:[#allocation8 + $0x48] sm:$0xff]
    %v654 = vld [vmem:[#allocation8 + $0x50] sm:$0xff]
    %v655 = vld [vmem:[#allocation8 + $0x58] sm:$0xff]
    %v656 = vld [vmem:[#allocation8 + $0x60] sm:$0xff]
    %v657 = vld [vmem:[#allocation8 + $0x68] sm:$0xff]
    %v658 = vld [vmem:[#allocation8 + $0x70] sm:$0xff]
    %v659 = vld [vmem:[#allocation8 + $0x78] sm:$0xff]
    %v660 = vld [vmem:[#allocation8 + $0x80] sm:$0xff]
    %v661 = vld [vmem:[#allocation8 + $0x88] sm:$0xff]
    %v662 = vld [vmem:[#allocation8 + $0x90] sm:$0xff]
    %v663 = vld [vmem:[#allocation8 + $0x98] sm:$0xff]
    %v664 = vld [vmem:[#allocation8 + $0xa0] sm:$0xff]
    %v665 = vld [vmem:[#allocation8 + $0xa8] sm:$0xff]
    %v666 = vld [vmem:[#allocation8 + $0xb0] sm:$0xff]
    %v667 = vld [vmem:[#allocation8 + $0xb8] sm:$0xff]
    %v668 = vld [vmem:[#allocation8 + $0xc0] sm:$0xff]
    %v669 = vld [vmem:[#allocation8 + $0xc8] sm:$0xff]
    %v670 = vld [vmem:[#allocation8 + $0xd0] sm:$0xff]
    %v671 = vld [vmem:[#allocation8 + $0xd8] sm:$0xff]
    %v672 = vld [vmem:[#allocation8 + $0xe0] sm:$0xff]
    %v673 = vld [vmem:[#allocation8 + $0xe8] sm:$0xff]
    %v674 = vld [vmem:[#allocation8 + $0xf0] sm:$0xff]
    %v675 = vld [vmem:[#allocation8 + $0xf8] sm:$0xff]
    %v676 = vld [vmem:[#allocation8 + $0x100] sm:$0xff]
    %v677 = vld [vmem:[#allocation8 + $0x108] sm:$0xff]
    %v678 = vld [vmem:[#allocation8 + $0x110] sm:$0xff]
    %v679 = vld [vmem:[#allocation8 + $0x118] sm:$0xff]
    %v680 = vld [vmem:[#allocation8 + $0x120] sm:$0xff]
    %v681 = vld [vmem:[#allocation8 + $0x128] sm:$0xff]
    %v682 = vld [vmem:[#allocation8 + $0x130] sm:$0xff]
    %v683 = vld [vmem:[#allocation8 + $0x138] sm:$0xff]
    %v684 = vld [vmem:[#allocation8 + $0x140] sm:$0xff]
    %v685 = vld [vmem:[#allocation8 + $0x148] sm:$0xff]
    %v686 = vld [vmem:[#allocation8 + $0x150] sm:$0xff]
    %v687 = vld [vmem:[#allocation8 + $0x158] sm:$0xff]
    %v688 = vld [vmem:[#allocation8 + $0x160] sm:$0xff]
    %v689 = vld [vmem:[#allocation8 + $0x168] sm:$0xff]
    %v690 = vld [vmem:[#allocation8 + $0x170] sm:$0xff]
    %v691 = vld [vmem:[#allocation8 + $0x178] sm:$0xff]
    %v692 = vld [vmem:[#allocation8 + $0x180] sm:$0xff]
    %v693 = vld [vmem:[#allocation8 + $0x188] sm:$0xff]
    %v694 = vld [vmem:[#allocation8 + $0x190] sm:$0xff]
    %v695 = vld [vmem:[#allocation8 + $0x198] sm:$0xff]
    %v696 = vld [vmem:[#allocation8 + $0x1a0] sm:$0xff]
    %v697 = vld [vmem:[#allocation8 + $0x1a8] sm:$0xff]
    %v698 = vld [vmem:[#allocation8 + $0x1b0] sm:$0xff]
    %v699 = vld [vmem:[#allocation8 + $0x1b8] sm:$0xff]
    %v700 = vld [vmem:[#allocation8 + $0x1c0] sm:$0xff]
    %v701 = vld [vmem:[#allocation8 + $0x1c8] sm:$0xff]
    %v702 = vld [vmem:[#allocation8 + $0x1d0] sm:$0xff]
    %v703 = vld [vmem:[#allocation8 + $0x1d8] sm:$0xff]
    %v704 = vld [vmem:[#allocation8 + $0x1e0] sm:$0xff]
    %v705 = vld [vmem:[#allocation8 + $0x1e8] sm:$0xff]
    %v706 = vld [vmem:[#allocation8 + $0x1f0] sm:$0xff]
    %v707 = vld [vmem:[#allocation8 + $0x1f8] sm:$0xff]
    %v708 = vld [vmem:[#allocation8 + $0x200] sm:$0xff]
    %v709 = vld [vmem:[#allocation8 + $0x208] sm:$0xff]
    %v710 = vld [vmem:[#allocation8 + $0x210] sm:$0xff]
    %v711 = vld [vmem:[#allocation8 + $0x218] sm:$0xff]
    %v712 = vld [vmem:[#allocation8 + $0x220] sm:$0xff]
    %v713 = vld [vmem:[#allocation8 + $0x228] sm:$0xff]
    %v714 = vld [vmem:[#allocation8 + $0x230] sm:$0xff]
    %v715 = vld [vmem:[#allocation8 + $0x238] sm:$0xff]
    %v716 = vld [vmem:[#allocation8 + $0x240] sm:$0xff]
    %v717 = vld [vmem:[#allocation8 + $0x248] sm:$0xff]
    %v718 = vld [vmem:[#allocation8 + $0x250] sm:$0xff]
    %v719 = vld [vmem:[#allocation8 + $0x258] sm:$0xff]
    %v720 = vld [vmem:[#allocation8 + $0x260] sm:$0xff]
    %v721 = vld [vmem:[#allocation8 + $0x268] sm:$0xff]
    %v722 = vld [vmem:[#allocation8 + $0x270] sm:$0xff]
    %v723 = vld [vmem:[#allocation8 + $0x278] sm:$0xff]
    %v724 = vld [vmem:[#allocation8 + $0x280] sm:$0xff]
    %v725 = vld [vmem:[#allocation8 + $0x288] sm:$0xff]
    %v726 = vld [vmem:[#allocation8 + $0x290] sm:$0xff]
    %v727 = vld [vmem:[#allocation8 + $0x298] sm:$0xff]
    %v728 = vld [vmem:[#allocation8 + $0x2a0] sm:$0xff]
    %v729 = vld [vmem:[#allocation8 + $0x2a8] sm:$0xff]
    %v730 = vld [vmem:[#allocation8 + $0x2b0] sm:$0xff]
    %v731 = vld [vmem:[#allocation8 + $0x2b8] sm:$0xff]
    %v732 = vld [vmem:[#allocation8 + $0x2c0] sm:$0xff]
    %v733 = vld [vmem:[#allocation8 + $0x2c8] sm:$0xff]
    %v734 = vld [vmem:[#allocation8 + $0x2d0] sm:$0xff]
    %v735 = vld [vmem:[#allocation8 + $0x2d8] sm:$0xff]
    %v736 = vld [vmem:[#allocation8 + $0x2e0] sm:$0xff]
    %v737 = vld [vmem:[#allocation8 + $0x2e8] sm:$0xff]
    %v738 = vld [vmem:[#allocation8 + $0x2f0] sm:$0xff]
    %v739 = vld [vmem:[#allocation8 + $0x2f8] sm:$0xff]
    %v740 = vld [vmem:[#allocation8 + $0x300] sm:$0xff]
    %v741 = vld [vmem:[#allocation8 + $0x308] sm:$0xff]
    %v742 = vld [vmem:[#allocation8 + $0x310] sm:$0xff]
    %v743 = vld [vmem:[#allocation8 + $0x318] sm:$0xff]
    %v744 = vld [vmem:[#allocation8 + $0x320] sm:$0xff]
    %v745 = vld [vmem:[#allocation8 + $0x328] sm:$0xff]
    %v746 = vld [vmem:[#allocation8 + $0x330] sm:$0xff]
    %v747 = vld [vmem:[#allocation8 + $0x338] sm:$0xff]
    %v748 = vld [vmem:[#allocation8 + $0x340] sm:$0xff]
    %v749 = vld [vmem:[#allocation8 + $0x348] sm:$0xff]
    %v750 = vld [vmem:[#allocation8 + $0x350] sm:$0xff]
    %v751 = vld [vmem:[#allocation8 + $0x358] sm:$0xff]
    %v752 = vld [vmem:[#allocation8 + $0x360] sm:$0xff]
    %v753 = vld [vmem:[#allocation8 + $0x368] sm:$0xff]
    %v754 = vld [vmem:[#allocation8 + $0x370] sm:$0xff]
    %v755 = vld [vmem:[#allocation8 + $0x378] sm:$0xff]
    %v756 = vld [vmem:[#allocation8 + $0x380] sm:$0xff]
    %v757 = vld [vmem:[#allocation8 + $0x388] sm:$0xff]
    %v758 = vld [vmem:[#allocation8 + $0x390] sm:$0xff]
    %v759 = vld [vmem:[#allocation8 + $0x398] sm:$0xff]
    %v760 = vld [vmem:[#allocation8 + $0x3a0] sm:$0xff]
    %v761 = vld [vmem:[#allocation8 + $0x3a8] sm:$0xff]
    %v762 = vld [vmem:[#allocation8 + $0x3b0] sm:$0xff]
    %v763 = vld [vmem:[#allocation8 + $0x3b8] sm:$0xff]
    %v764 = vld [vmem:[#allocation8 + $0x3c0] sm:$0xff]
    %v765 = vld [vmem:[#allocation8 + $0x3c8] sm:$0xff]
    %v766 = vld [vmem:[#allocation8 + $0x3d0] sm:$0xff]
    %v767 = vld [vmem:[#allocation8 + $0x3d8] sm:$0xff]
    %v768 = vld [vmem:[#allocation8 + $0x3e0] sm:$0xff]
    %v769 = vld [vmem:[#allocation8 + $0x3e8] sm:$0xff]
    %v770 = vld [vmem:[#allocation8 + $0x3f0] sm:$0xff]
    %v771 = vld [vmem:[#allocation8 + $0x3f8] sm:$0xff]
    %v772 = vld [vmem:[#allocation8 + $0x400] sm:$0xff]
    %v773 = vld [vmem:[#allocation8 + $0x408] sm:$0xff]
    %v774 = vld [vmem:[#allocation8 + $0x410] sm:$0xff]
    %v775 = vld [vmem:[#allocation8 + $0x418] sm:$0xff]
    %v776 = vld [vmem:[#allocation8 + $0x420] sm:$0xff]
    %v777 = vld [vmem:[#allocation8 + $0x428] sm:$0xff]
    %v778 = vld [vmem:[#allocation8 + $0x430] sm:$0xff]
    %v779 = vld [vmem:[#allocation8 + $0x438] sm:$0xff]
    %v780 = vld [vmem:[#allocation8 + $0x440] sm:$0xff]
    %v781 = vld [vmem:[#allocation8 + $0x448] sm:$0xff]
    %v782 = vld [vmem:[#allocation8 + $0x450] sm:$0xff]
    %v783 = vld [vmem:[#allocation8 + $0x458] sm:$0xff]
    %v784 = vld [vmem:[#allocation8 + $0x460] sm:$0xff]
    %v785 = vld [vmem:[#allocation8 + $0x468] sm:$0xff]
    %v786 = vld [vmem:[#allocation8 + $0x470] sm:$0xff]
    %v787 = vld [vmem:[#allocation8 + $0x478] sm:$0xff]
    %v788 = vld [vmem:[#allocation8 + $0x480] sm:$0xff]
    %v789 = vld [vmem:[#allocation8 + $0x488] sm:$0xff]
    %v790 = vld [vmem:[#allocation8 + $0x490] sm:$0xff]
    %v791 = vld [vmem:[#allocation8 + $0x498] sm:$0xff]
    %v792 = vld [vmem:[#allocation8 + $0x4a0] sm:$0xff]
    %v793 = vld [vmem:[#allocation8 + $0x4a8] sm:$0xff]
    %v794 = vld [vmem:[#allocation8 + $0x4b0] sm:$0xff]
    %v795 = vld [vmem:[#allocation8 + $0x4b8] sm:$0xff]
    %v796 = vld [vmem:[#allocation8 + $0x4c0] sm:$0xff]
    %v797 = vld [vmem:[#allocation8 + $0x4c8] sm:$0xff]
    %v798 = vld [vmem:[#allocation8 + $0x4d0] sm:$0xff]
    %v799 = vld [vmem:[#allocation8 + $0x4d8] sm:$0xff]
    %v800 = vld [vmem:[#allocation8 + $0x4e0] sm:$0xff]
    %v801 = vld [vmem:[#allocation8 + $0x4e8] sm:$0xff]
    %v802 = vld [vmem:[#allocation8 + $0x4f0] sm:$0xff]
    %v803 = vld [vmem:[#allocation8 + $0x4f8] sm:$0xff]
    %v804 = vld [vmem:[#allocation8 + $0x500] sm:$0xff]
    %v805 = vld [vmem:[#allocation8 + $0x508] sm:$0xff]
    %v806 = vld [vmem:[#allocation8 + $0x510] sm:$0xff]
    %v807 = vld [vmem:[#allocation8 + $0x518] sm:$0xff]
    %v808 = vld [vmem:[#allocation8 + $0x520] sm:$0xff]
    %v809 = vld [vmem:[#allocation8 + $0x528] sm:$0xff]
    %v810 = vld [vmem:[#allocation8 + $0x530] sm:$0xff]
    %v811 = vld [vmem:[#allocation8 + $0x538] sm:$0xff]
    %v812 = vld [vmem:[#allocation8 + $0x540] sm:$0xff]
    %v813 = vld [vmem:[#allocation8 + $0x548] sm:$0xff]
    %v814 = vld [vmem:[#allocation8 + $0x550] sm:$0xff]
    %v815 = vld [vmem:[#allocation8 + $0x558] sm:$0xff]
    %v816 = vld [vmem:[#allocation8 + $0x560] sm:$0xff]
    %v817 = vld [vmem:[#allocation8 + $0x568] sm:$0xff]
    %v818 = vld [vmem:[#allocation8 + $0x570] sm:$0xff]
    %v819 = vld [vmem:[#allocation8 + $0x578] sm:$0xff]
    %v820 = vld [vmem:[#allocation8 + $0x580] sm:$0xff]
    %v821 = vld [vmem:[#allocation8 + $0x588] sm:$0xff]
    %v822 = vld [vmem:[#allocation8 + $0x590] sm:$0xff]
    %v823 = vld [vmem:[#allocation8 + $0x598] sm:$0xff]
    %v824 = vld [vmem:[#allocation8 + $0x5a0] sm:$0xff]
    %v825 = vld [vmem:[#allocation8 + $0x5a8] sm:$0xff]
    %v826 = vld [vmem:[#allocation8 + $0x5b0] sm:$0xff]
    %v827 = vld [vmem:[#allocation8 + $0x5b8] sm:$0xff]
    %v828 = vld [vmem:[#allocation8 + $0x5c0] sm:$0xff]
    %v829 = vld [vmem:[#allocation8 + $0x5c8] sm:$0xff]
    %v830 = vld [vmem:[#allocation8 + $0x5d0] sm:$0xff]
    %v831 = vld [vmem:[#allocation8 + $0x5d8] sm:$0xff]
    %v832 = vld [vmem:[#allocation8 + $0x5e0] sm:$0xff]
    %v833 = vld [vmem:[#allocation8 + $0x5e8] sm:$0xff]
    %v834 = vld [vmem:[#allocation8 + $0x5f0] sm:$0xff]
    %v835 = vld [vmem:[#allocation8 + $0x5f8] sm:$0xff]
    %v836 = vld [vmem:[#allocation8 + $0x600] sm:$0xff]
    %v837 = vld [vmem:[#allocation8 + $0x608] sm:$0xff]
    %v838 = vld [vmem:[#allocation8 + $0x610] sm:$0xff]
    %v839 = vld [vmem:[#allocation8 + $0x618] sm:$0xff]
    %v840 = vld [vmem:[#allocation8 + $0x620] sm:$0xff]
    %v841 = vld [vmem:[#allocation8 + $0x628] sm:$0xff]
    %v842 = vld [vmem:[#allocation8 + $0x630] sm:$0xff]
    %v843 = vld [vmem:[#allocation8 + $0x638] sm:$0xff]
    %v844 = vld [vmem:[#allocation8 + $0x640] sm:$0xff]
    %v845 = vld [vmem:[#allocation8 + $0x648] sm:$0xff]
    %v846 = vld [vmem:[#allocation8 + $0x650] sm:$0xff]
    %v847 = vld [vmem:[#allocation8 + $0x658] sm:$0xff]
    %v848 = vld [vmem:[#allocation8 + $0x660] sm:$0xff]
    %v849 = vld [vmem:[#allocation8 + $0x668] sm:$0xff]
    %v850 = vld [vmem:[#allocation8 + $0x670] sm:$0xff]
    %v851 = vld [vmem:[#allocation8 + $0x678] sm:$0xff]
    %v852 = vld [vmem:[#allocation8 + $0x680] sm:$0xff]
    %v853 = vld [vmem:[#allocation8 + $0x688] sm:$0xff]
    %v854 = vld [vmem:[#allocation8 + $0x690] sm:$0xff]
    %v855 = vld [vmem:[#allocation8 + $0x698] sm:$0xff]
    %v856 = vld [vmem:[#allocation8 + $0x6a0] sm:$0xff]
    %v857 = vld [vmem:[#allocation8 + $0x6a8] sm:$0xff]
    %v858 = vld [vmem:[#allocation8 + $0x6b0] sm:$0xff]
    %v859 = vld [vmem:[#allocation8 + $0x6b8] sm:$0xff]
    %v860 = vld [vmem:[#allocation8 + $0x6c0] sm:$0xff]
    %v861 = vld [vmem:[#allocation8 + $0x6c8] sm:$0xff]
    %v862 = vld [vmem:[#allocation8 + $0x6d0] sm:$0xff]
    %v863 = vld [vmem:[#allocation8 + $0x6d8] sm:$0xff]
    %v864 = vld [vmem:[#allocation8 + $0x6e0] sm:$0xff]
    %v865 = vld [vmem:[#allocation8 + $0x6e8] sm:$0xff]
    %v866 = vld [vmem:[#allocation8 + $0x6f0] sm:$0xff]
    %v867 = vld [vmem:[#allocation8 + $0x6f8] sm:$0xff]
    %v868 = vld [vmem:[#allocation8 + $0x700] sm:$0xff]
    %v869 = vld [vmem:[#allocation8 + $0x708] sm:$0xff]
    %v870 = vld [vmem:[#allocation8 + $0x710] sm:$0xff]
    %v871 = vld [vmem:[#allocation8 + $0x718] sm:$0xff]
    %v872 = vld [vmem:[#allocation8 + $0x720] sm:$0xff]
    %v873 = vld [vmem:[#allocation8 + $0x728] sm:$0xff]
    %v874 = vld [vmem:[#allocation8 + $0x730] sm:$0xff]
    %v875 = vld [vmem:[#allocation8 + $0x738] sm:$0xff]
    %v876 = vld [vmem:[#allocation8 + $0x740] sm:$0xff]
    %v877 = vld [vmem:[#allocation8 + $0x748] sm:$0xff]
    %v878 = vld [vmem:[#allocation8 + $0x750] sm:$0xff]
    %v879 = vld [vmem:[#allocation8 + $0x758] sm:$0xff]
    %v880 = vld [vmem:[#allocation8 + $0x760] sm:$0xff]
    %v881 = vld [vmem:[#allocation8 + $0x768] sm:$0xff]
    %v882 = vld [vmem:[#allocation8 + $0x770] sm:$0xff]
    %v883 = vld [vmem:[#allocation8 + $0x778] sm:$0xff]
    %v884 = vld [vmem:[#allocation8 + $0x780] sm:$0xff]
    %v885 = vld [vmem:[#allocation8 + $0x788] sm:$0xff]
    %v886 = vld [vmem:[#allocation8 + $0x790] sm:$0xff]
    %v887 = vld [vmem:[#allocation8 + $0x798] sm:$0xff]
    %v888 = vld [vmem:[#allocation8 + $0x7a0] sm:$0xff]
    %v889 = vld [vmem:[#allocation8 + $0x7a8] sm:$0xff]
    %v890 = vld [vmem:[#allocation8 + $0x7b0] sm:$0xff]
    %v891 = vld [vmem:[#allocation8 + $0x7b8] sm:$0xff]
    %v892 = vld [vmem:[#allocation8 + $0x7c0] sm:$0xff]
    %v893 = vld [vmem:[#allocation8 + $0x7c8] sm:$0xff]
    %v894 = vld [vmem:[#allocation8 + $0x7d0] sm:$0xff]
    %v895 = vld [vmem:[#allocation8 + $0x7d8] sm:$0xff]
    %v896 = vld [vmem:[#allocation8 + $0x7e0] sm:$0xff]
    %v897 = vld [vmem:[#allocation8 + $0x7e8] sm:$0xff]
    %v898 = vld [vmem:[#allocation8 + $0x7f0] sm:$0xff]
    %v899 = vld [vmem:[#allocation8 + $0x7f8] sm:$0xff]
    %v908 = vrot.slane %v481, 6
    %v909 = vrot.slane %v504, 6
    %v910 = vrot.slane %v527, 6
    %v911 = vrot.slane %v550, 6
    %v912 = vrot.slane %v573, 6
    %v913 = vrot.slane %v596, 6
    %v914 = vrot.slane %v619, 6
    %v915 = vrot.slane %v642, 6
    %v924 = vadd.f32 %v294, %v908
    %v925 = vadd.f32 %v317, %v909
    %v926 = vadd.f32 %v340, %v910
    %v927 = vadd.f32 %v363, %v911
    %v928 = vadd.f32 %v386, %v912
    %v929 = vadd.f32 %v409, %v913
    %v930 = vadd.f32 %v432, %v914
    %v931 = vadd.f32 %v455, %v915
    %932 = vmatpush.msra.mxu0 %v764
    %933 = vmatpush.msra.mxu0 %v756
    %934 = vmatpush.msra.mxu0 %v748
    %935 = vmatpush.msra.mxu0 %v740
    %936 = vmatpush.msra.mxu0 %v732
    %937 = vmatpush.msra.mxu0 %v724
    %938 = vmatpush.msra.mxu0 %v716
    %939 = vmatpush.msra.mxu0 %v708
    %940 = vmatpush.msra.mxu0 %v700
    %941 = vmatpush.msra.mxu0 %v692
    %942 = vmatpush.msra.mxu0 %v684
    %943 = vmatpush.msra.mxu0 %v676
    %944 = vmatpush.msra.mxu0 %v668
    %945 = vmatpush.msra.mxu0 %v660
    %946 = vmatpush.msra.mxu0 %v652
    %947 = vmatpush.msra.mxu0 %v644
    %948 = vmatmul.f32.gmra.mxu0 0.0
    %v949 = vpop.f32.mrf.mxu0
    %v950 = vadd.f32 0.0, %v949
    %951 = vdwg.mxu0
    %952 = vmatpush.msra.mxu0 %v892
    %953 = vmatpush.msra.mxu0 %v884
    %954 = vmatpush.msra.mxu0 %v876
    %955 = vmatpush.msra.mxu0 %v868
    %956 = vmatpush.msra.mxu0 %v860
    %957 = vmatpush.msra.mxu0 %v852
    %958 = vmatpush.msra.mxu0 %v844
    %959 = vmatpush.msra.mxu0 %v836
    %960 = vmatpush.msra.mxu0 %v828
    %961 = vmatpush.msra.mxu0 %v820
    %962 = vmatpush.msra.mxu0 %v812
    %963 = vmatpush.msra.mxu0 %v804
    %964 = vmatpush.msra.mxu0 %v796
    %965 = vmatpush.msra.mxu0 %v788
    %966 = vmatpush.msra.mxu0 %v780
    %967 = vmatpush.msra.mxu0 %v772
    %968 = vmatmul.f32.gmra.mxu0 0.0
    %v969 = vpop.f32.mrf.mxu0
    %v970 = vadd.f32 %v950, %v969
    %971 = vdwg.mxu0
    %972 = vmatpush.msra.mxu0 %v765
    %973 = vmatpush.msra.mxu0 %v757
    %974 = vmatpush.msra.mxu0 %v749
    %975 = vmatpush.msra.mxu0 %v741
    %976 = vmatpush.msra.mxu0 %v733
    %977 = vmatpush.msra.mxu0 %v725
    %978 = vmatpush.msra.mxu0 %v717
    %979 = vmatpush.msra.mxu0 %v709
    %980 = vmatpush.msra.mxu0 %v701
    %981 = vmatpush.msra.mxu0 %v693
    %982 = vmatpush.msra.mxu0 %v685
    %983 = vmatpush.msra.mxu0 %v677
    %984 = vmatpush.msra.mxu0 %v669
    %985 = vmatpush.msra.mxu0 %v661
    %986 = vmatpush.msra.mxu0 %v653
    %987 = vmatpush.msra.mxu0 %v645
    %988 = vmatmul.f32.gmra.mxu0 0.0
    %v989 = vpop.f32.mrf.mxu0
    %v990 = vadd.f32 0.0, %v989
    %991 = vdwg.mxu0
    %992 = vmatpush.msra.mxu0 %v893
    %993 = vmatpush.msra.mxu0 %v885
    %994 = vmatpush.msra.mxu0 %v877
    %995 = vmatpush.msra.mxu0 %v869
    %996 = vmatpush.msra.mxu0 %v861
    %997 = vmatpush.msra.mxu0 %v853
    %998 = vmatpush.msra.mxu0 %v845
    %999 = vmatpush.msra.mxu0 %v837
    %1000 = vmatpush.msra.mxu0 %v829
    %1001 = vmatpush.msra.mxu0 %v821
    %1002 = vmatpush.msra.mxu0 %v813
    %1003 = vmatpush.msra.mxu0 %v805
    %1004 = vmatpush.msra.mxu0 %v797
    %1005 = vmatpush.msra.mxu0 %v789
    %1006 = vmatpush.msra.mxu0 %v781
    %1007 = vmatpush.msra.mxu0 %v773
    %1008 = vmatmul.f32.gmra.mxu0 0.0
    %v1009 = vpop.f32.mrf.mxu0
    %v1010 = vadd.f32 %v990, %v1009
    %1011 = vdwg.mxu0
    %1012 = vmatpush.msra.mxu0 %v766
    %1013 = vmatpush.msra.mxu0 %v758
    %1014 = vmatpush.msra.mxu0 %v750
    %1015 = vmatpush.msra.mxu0 %v742
    %1016 = vmatpush.msra.mxu0 %v734
    %1017 = vmatpush.msra.mxu0 %v726
    %1018 = vmatpush.msra.mxu0 %v718
    %1019 = vmatpush.msra.mxu0 %v710
    %1020 = vmatpush.msra.mxu0 %v702
    %1021 = vmatpush.msra.mxu0 %v694
    %1022 = vmatpush.msra.mxu0 %v686
    %1023 = vmatpush.msra.mxu0 %v678
    %1024 = vmatpush.msra.mxu0 %v670
    %1025 = vmatpush.msra.mxu0 %v662
    %1026 = vmatpush.msra.mxu0 %v654
    %1027 = vmatpush.msra.mxu0 %v646
    %1028 = vmatmul.f32.gmra.mxu0 0.0
    %v1029 = vpop.f32.mrf.mxu0
    %v1030 = vadd.f32 0.0, %v1029
    %1031 = vdwg.mxu0
    %1032 = vmatpush.msra.mxu0 %v894
    %1033 = vmatpush.msra.mxu0 %v886
    %1034 = vmatpush.msra.mxu0 %v878
    %1035 = vmatpush.msra.mxu0 %v870
    %1036 = vmatpush.msra.mxu0 %v862
    %1037 = vmatpush.msra.mxu0 %v854
    %1038 = vmatpush.msra.mxu0 %v846
    %1039 = vmatpush.msra.mxu0 %v838
    %1040 = vmatpush.msra.mxu0 %v830
    %1041 = vmatpush.msra.mxu0 %v822
    %1042 = vmatpush.msra.mxu0 %v814
    %1043 = vmatpush.msra.mxu0 %v806
    %1044 = vmatpush.msra.mxu0 %v798
    %1045 = vmatpush.msra.mxu0 %v790
    %1046 = vmatpush.msra.mxu0 %v782
    %1047 = vmatpush.msra.mxu0 %v774
    %1048 = vmatmul.f32.gmra.mxu0 0.0
    %v1049 = vpop.f32.mrf.mxu0
    %v1050 = vadd.f32 %v1030, %v1049
    %1051 = vdwg.mxu0
    %1052 = vmatpush.msra.mxu0 %v767
    %1053 = vmatpush.msra.mxu0 %v759
    %1054 = vmatpush.msra.mxu0 %v751
    %1055 = vmatpush.msra.mxu0 %v743
    %1056 = vmatpush.msra.mxu0 %v735
    %1057 = vmatpush.msra.mxu0 %v727
    %1058 = vmatpush.msra.mxu0 %v719
    %1059 = vmatpush.msra.mxu0 %v711
    %1060 = vmatpush.msra.mxu0 %v703
    %1061 = vmatpush.msra.mxu0 %v695
    %1062 = vmatpush.msra.mxu0 %v687
    %1063 = vmatpush.msra.mxu0 %v679
    %1064 = vmatpush.msra.mxu0 %v671
    %1065 = vmatpush.msra.mxu0 %v663
    %1066 = vmatpush.msra.mxu0 %v655
    %1067 = vmatpush.msra.mxu0 %v647
    %1068 = vmatmul.f32.gmra.mxu0 0.0
    %v1069 = vpop.f32.mrf.mxu0
    %v1070 = vadd.f32 0.0, %v1069
    %1071 = vdwg.mxu0
    %1072 = vmatpush.msra.mxu0 %v895
    %1073 = vmatpush.msra.mxu0 %v887
    %1074 = vmatpush.msra.mxu0 %v879
    %1075 = vmatpush.msra.mxu0 %v871
    %1076 = vmatpush.msra.mxu0 %v863
    %1077 = vmatpush.msra.mxu0 %v855
    %1078 = vmatpush.msra.mxu0 %v847
    %1079 = vmatpush.msra.mxu0 %v839
    %1080 = vmatpush.msra.mxu0 %v831
    %1081 = vmatpush.msra.mxu0 %v823
    %1082 = vmatpush.msra.mxu0 %v815
    %1083 = vmatpush.msra.mxu0 %v807
    %1084 = vmatpush.msra.mxu0 %v799
    %1085 = vmatpush.msra.mxu0 %v791
    %1086 = vmatpush.msra.mxu0 %v783
    %1087 = vmatpush.msra.mxu0 %v775
    %1088 = vmatmul.f32.gmra.mxu0 0.0
    %v1089 = vpop.f32.mrf.mxu0
    %v1090 = vadd.f32 %v1070, %v1089
    %1091 = vdwg.mxu0
    %1092 = vmatpush.msra.mxu0 %v768
    %1093 = vmatpush.msra.mxu0 %v760
    %1094 = vmatpush.msra.mxu0 %v752
    %1095 = vmatpush.msra.mxu0 %v744
    %1096 = vmatpush.msra.mxu0 %v736
    %1097 = vmatpush.msra.mxu0 %v728
    %1098 = vmatpush.msra.mxu0 %v720
    %1099 = vmatpush.msra.mxu0 %v712
    %1100 = vmatpush.msra.mxu0 %v704
    %1101 = vmatpush.msra.mxu0 %v696
    %1102 = vmatpush.msra.mxu0 %v688
    %1103 = vmatpush.msra.mxu0 %v680
    %1104 = vmatpush.msra.mxu0 %v672
    %1105 = vmatpush.msra.mxu0 %v664
    %1106 = vmatpush.msra.mxu0 %v656
    %1107 = vmatpush.msra.mxu0 %v648
    %1108 = vmatmul.f32.gmra.mxu0 0.0
    %v1109 = vpop.f32.mrf.mxu0
    %v1110 = vadd.f32 0.0, %v1109
    %1111 = vdwg.mxu0
    %1112 = vmatpush.msra.mxu0 %v896
    %1113 = vmatpush.msra.mxu0 %v888
    %1114 = vmatpush.msra.mxu0 %v880
    %1115 = vmatpush.msra.mxu0 %v872
    %1116 = vmatpush.msra.mxu0 %v864
    %1117 = vmatpush.msra.mxu0 %v856
    %1118 = vmatpush.msra.mxu0 %v848
    %1119 = vmatpush.msra.mxu0 %v840
    %1120 = vmatpush.msra.mxu0 %v832
    %1121 = vmatpush.msra.mxu0 %v824
    %1122 = vmatpush.msra.mxu0 %v816
    %1123 = vmatpush.msra.mxu0 %v808
    %1124 = vmatpush.msra.mxu0 %v800
    %1125 = vmatpush.msra.mxu0 %v792
    %1126 = vmatpush.msra.mxu0 %v784
    %1127 = vmatpush.msra.mxu0 %v776
    %1128 = vmatmul.f32.gmra.mxu0 0.0
    %v1129 = vpop.f32.mrf.mxu0
    %v1130 = vadd.f32 %v1110, %v1129
    %1131 = vdwg.mxu0
    %1132 = vmatpush.msra.mxu0 %v769
    %1133 = vmatpush.msra.mxu0 %v761
    %1134 = vmatpush.msra.mxu0 %v753
    %1135 = vmatpush.msra.mxu0 %v745
    %1136 = vmatpush.msra.mxu0 %v737
    %1137 = vmatpush.msra.mxu0 %v729
    %1138 = vmatpush.msra.mxu0 %v721
    %1139 = vmatpush.msra.mxu0 %v713
    %1140 = vmatpush.msra.mxu0 %v705
    %1141 = vmatpush.msra.mxu0 %v697
    %1142 = vmatpush.msra.mxu0 %v689
    %1143 = vmatpush.msra.mxu0 %v681
    %1144 = vmatpush.msra.mxu0 %v673
    %1145 = vmatpush.msra.mxu0 %v665
    %1146 = vmatpush.msra.mxu0 %v657
    %1147 = vmatpush.msra.mxu0 %v649
    %1148 = vmatmul.f32.gmra.mxu0 0.0
    %v1149 = vpop.f32.mrf.mxu0
    %v1150 = vadd.f32 0.0, %v1149
    %1151 = vdwg.mxu0
    %1152 = vmatpush.msra.mxu0 %v897
    %1153 = vmatpush.msra.mxu0 %v889
    %1154 = vmatpush.msra.mxu0 %v881
    %1155 = vmatpush.msra.mxu0 %v873
    %1156 = vmatpush.msra.mxu0 %v865
    %1157 = vmatpush.msra.mxu0 %v857
    %1158 = vmatpush.msra.mxu0 %v849
    %1159 = vmatpush.msra.mxu0 %v841
    %1160 = vmatpush.msra.mxu0 %v833
    %1161 = vmatpush.msra.mxu0 %v825
    %1162 = vmatpush.msra.mxu0 %v817
    %1163 = vmatpush.msra.mxu0 %v809
    %1164 = vmatpush.msra.mxu0 %v801
    %1165 = vmatpush.msra.mxu0 %v793
    %1166 = vmatpush.msra.mxu0 %v785
    %1167 = vmatpush.msra.mxu0 %v777
    %1168 = vmatmul.f32.gmra.mxu0 0.0
    %v1169 = vpop.f32.mrf.mxu0
    %v1170 = vadd.f32 %v1150, %v1169
    %1171 = vdwg.mxu0
    %1172 = vmatpush.msra.mxu0 %v770
    %1173 = vmatpush.msra.mxu0 %v762
    %1174 = vmatpush.msra.mxu0 %v754
    %1175 = vmatpush.msra.mxu0 %v746
    %1176 = vmatpush.msra.mxu0 %v738
    %1177 = vmatpush.msra.mxu0 %v730
    %1178 = vmatpush.msra.mxu0 %v722
    %1179 = vmatpush.msra.mxu0 %v714
    %1180 = vmatpush.msra.mxu0 %v706
    %1181 = vmatpush.msra.mxu0 %v698
    %1182 = vmatpush.msra.mxu0 %v690
    %1183 = vmatpush.msra.mxu0 %v682
    %1184 = vmatpush.msra.mxu0 %v674
    %1185 = vmatpush.msra.mxu0 %v666
    %1186 = vmatpush.msra.mxu0 %v658
    %1187 = vmatpush.msra.mxu0 %v650
    %1188 = vmatmul.f32.gmra.mxu0 0.0
    %v1189 = vpop.f32.mrf.mxu0
    %v1190 = vadd.f32 0.0, %v1189
    %1191 = vdwg.mxu0
    %1192 = vmatpush.msra.mxu0 %v898
    %1193 = vmatpush.msra.mxu0 %v890
    %1194 = vmatpush.msra.mxu0 %v882
    %1195 = vmatpush.msra.mxu0 %v874
    %1196 = vmatpush.msra.mxu0 %v866
    %1197 = vmatpush.msra.mxu0 %v858
    %1198 = vmatpush.msra.mxu0 %v850
    %1199 = vmatpush.msra.mxu0 %v842
    %1200 = vmatpush.msra.mxu0 %v834
    %1201 = vmatpush.msra.mxu0 %v826
    %1202 = vmatpush.msra.mxu0 %v818
    %1203 = vmatpush.msra.mxu0 %v810
    %1204 = vmatpush.msra.mxu0 %v802
    %1205 = vmatpush.msra.mxu0 %v794
    %1206 = vmatpush.msra.mxu0 %v786
    %1207 = vmatpush.msra.mxu0 %v778
    %1208 = vmatmul.f32.gmra.mxu0 0.0
    %v1209 = vpop.f32.mrf.mxu0
    %v1210 = vadd.f32 %v1190, %v1209
    %1211 = vdwg.mxu0
    %1212 = vmatpush.msra.mxu0 %v771
    %1213 = vmatpush.msra.mxu0 %v763
    %1214 = vmatpush.msra.mxu0 %v755
    %1215 = vmatpush.msra.mxu0 %v747
    %1216 = vmatpush.msra.mxu0 %v739
    %1217 = vmatpush.msra.mxu0 %v731
    %1218 = vmatpush.msra.mxu0 %v723
    %1219 = vmatpush.msra.mxu0 %v715
    %1220 = vmatpush.msra.mxu0 %v707
    %1221 = vmatpush.msra.mxu0 %v699
    %1222 = vmatpush.msra.mxu0 %v691
    %1223 = vmatpush.msra.mxu0 %v683
    %1224 = vmatpush.msra.mxu0 %v675
    %1225 = vmatpush.msra.mxu0 %v667
    %1226 = vmatpush.msra.mxu0 %v659
    %1227 = vmatpush.msra.mxu0 %v651
    %1228 = vmatmul.f32.gmra.mxu0 0.0
    %v1229 = vpop.f32.mrf.mxu0
    %v1230 = vadd.f32 0.0, %v1229
    %1231 = vdwg.mxu0
    %1232 = vmatpush.msra.mxu0 %v899
    %1233 = vmatpush.msra.mxu0 %v891
    %1234 = vmatpush.msra.mxu0 %v883
    %1235 = vmatpush.msra.mxu0 %v875
    %1236 = vmatpush.msra.mxu0 %v867
    %1237 = vmatpush.msra.mxu0 %v859
    %1238 = vmatpush.msra.mxu0 %v851
    %1239 = vmatpush.msra.mxu0 %v843
    %1240 = vmatpush.msra.mxu0 %v835
    %1241 = vmatpush.msra.mxu0 %v827
    %1242 = vmatpush.msra.mxu0 %v819
    %1243 = vmatpush.msra.mxu0 %v811
    %1244 = vmatpush.msra.mxu0 %v803
    %1245 = vmatpush.msra.mxu0 %v795
    %1246 = vmatpush.msra.mxu0 %v787
    %1247 = vmatpush.msra.mxu0 %v779
    %1248 = vmatmul.f32.gmra.mxu0 0.0
    %v1249 = vpop.f32.mrf.mxu0
    %v1250 = vadd.f32 %v1230, %v1249
    %1251 = vdwg.mxu0
    %v1252 = vadd.f32 %v924, %v970
    %v1253 = vadd.f32 %v925, %v1010
    %v1254 = vadd.f32 %v926, %v1050
    %v1255 = vadd.f32 %v927, %v1090
    %v1256 = vadd.f32 %v928, %v1130
    %v1257 = vadd.f32 %v929, %v1170
    %v1258 = vadd.f32 %v930, %v1210
    %v1259 = vadd.f32 %v931, %v1250
    %v1260 = vxor.u32 %v1252, 2147483648
    %v1261 = vxor.u32 %v1253, 2147483648
    %v1262 = vxor.u32 %v1254, 2147483648
    %v1263 = vxor.u32 %v1255, 2147483648
    %v1264 = vxor.u32 %v1256, 2147483648
    %v1265 = vxor.u32 %v1257, 2147483648
    %v1266 = vmul.f32 %v1260, 1.442695
    %v1267 = vpow.pop %v1266
    %v1268 = vmul.f32 %v1261, 1.442695
    %v1269 = vpow.pop %v1268
    %v1270 = vmul.f32 %v1262, 1.442695
    %v1271 = vpow.pop %v1270
    %v1272 = vmul.f32 %v1263, 1.442695
    %v1273 = vpow.pop %v1272
    %v1274 = vmul.f32 %v1264, 1.442695
    %v1275 = vpow.pop %v1274
    %v1276 = vmul.f32 %v1265, 1.442695
    %v1277 = vpow.pop %v1276
    %v1278 = vadd.f32 %v1267, 1.0
    %v1279 = vadd.f32 %v1269, 1.0
    %v1280 = vadd.f32 %v1271, 1.0
    %v1281 = vadd.f32 %v1273, 1.0
    %v1282 = vadd.f32 %v1275, 1.0
    %v1283 = vadd.f32 %v1277, 1.0
    %v1284 = vrcp.pop %v1278
    %v1285 = vmul.f32 %v1278, %v1284
    %v1286 = vsub.f32 1.0, %v1285
    %v1287 = vmul.f32 %v1284, %v1286
    %v1288 = vadd.f32 %v1284, %v1287
    %vm1289 = vweird.f32 %v1278
    %vm1290 = vweird.f32 %v1284
    %vm1291 = vmor %vm1289, %vm1290
    %v1292 = vsel %vm1291, %v1284, %v1288
    %v1293 = vand.u32 2147483647, %v1278
    %vm1294 = vcmp.eq.f32.partialorder %v1293, 8.507059e+37
    %v1295 = vand.u32 %v1278, 2147483648
    %v1296 = vor.u32 1.1754944e-38, %v1295
    %v1297 = vsel %vm1294, %v1296, %v1292
    %v1298 = vmul.f32 1.0, %v1297
    %v1299 = vrcp.pop %v1279
    %v1300 = vmul.f32 %v1279, %v1299
    %v1301 = vsub.f32 1.0, %v1300
    %v1302 = vmul.f32 %v1299, %v1301
    %v1303 = vadd.f32 %v1299, %v1302
    %vm1304 = vweird.f32 %v1279
    %vm1305 = vweird.f32 %v1299
    %vm1306 = vmor %vm1304, %vm1305
    %v1307 = vsel %vm1306, %v1299, %v1303
    %v1308 = vand.u32 2147483647, %v1279
    %vm1309 = vcmp.eq.f32.partialorder %v1308, 8.507059e+37
    %v1310 = vand.u32 %v1279, 2147483648
    %v1311 = vor.u32 1.1754944e-38, %v1310
    %v1312 = vsel %vm1309, %v1311, %v1307
    %v1313 = vmul.f32 1.0, %v1312
    %v1314 = vrcp.pop %v1280
    %v1315 = vmul.f32 %v1280, %v1314
    %v1316 = vsub.f32 1.0, %v1315
    %v1317 = vmul.f32 %v1314, %v1316
    %v1318 = vadd.f32 %v1314, %v1317
    %vm1319 = vweird.f32 %v1280
    %vm1320 = vweird.f32 %v1314
    %vm1321 = vmor %vm1319, %vm1320
    %v1322 = vsel %vm1321, %v1314, %v1318
    %v1323 = vand.u32 2147483647, %v1280
    %vm1324 = vcmp.eq.f32.partialorder %v1323, 8.507059e+37
    %v1325 = vand.u32 %v1280, 2147483648
    %v1326 = vor.u32 1.1754944e-38, %v1325
    %v1327 = vsel %vm1324, %v1326, %v1322
    %v1328 = vmul.f32 1.0, %v1327
    %v1329 = vrcp.pop %v1281
    %v1330 = vmul.f32 %v1281, %v1329
    %v1331 = vsub.f32 1.0, %v1330
    %v1332 = vmul.f32 %v1329, %v1331
    %v1333 = vadd.f32 %v1329, %v1332
    %vm1334 = vweird.f32 %v1281
    %vm1335 = vweird.f32 %v1329
    %vm1336 = vmor %vm1334, %vm1335
    %v1337 = vsel %vm1336, %v1329, %v1333
    %v1338 = vand.u32 2147483647, %v1281
    %vm1339 = vcmp.eq.f32.partialorder %v1338, 8.507059e+37
    %v1340 = vand.u32 %v1281, 2147483648
    %v1341 = vor.u32 1.1754944e-38, %v1340
    %v1342 = vsel %vm1339, %v1341, %v1337
    %v1343 = vmul.f32 1.0, %v1342
    %v1344 = vrcp.pop %v1282
    %v1345 = vmul.f32 %v1282, %v1344
    %v1346 = vsub.f32 1.0, %v1345
    %v1347 = vmul.f32 %v1344, %v1346
    %v1348 = vadd.f32 %v1344, %v1347
    %vm1349 = vweird.f32 %v1282
    %vm1350 = vweird.f32 %v1344
    %vm1351 = vmor %vm1349, %vm1350
    %v1352 = vsel %vm1351, %v1344, %v1348
    %v1353 = vand.u32 2147483647, %v1282
    %vm1354 = vcmp.eq.f32.partialorder %v1353, 8.507059e+37
    %v1355 = vand.u32 %v1282, 2147483648
    %v1356 = vor.u32 1.1754944e-38, %v1355
    %v1357 = vsel %vm1354, %v1356, %v1352
    %v1358 = vmul.f32 1.0, %v1357
    %v1359 = vrcp.pop %v1283
    %v1360 = vmul.f32 %v1283, %v1359
    %v1361 = vsub.f32 1.0, %v1360
    %v1362 = vmul.f32 %v1359, %v1361
    %v1363 = vadd.f32 %v1359, %v1362
    %vm1364 = vweird.f32 %v1283
    %vm1365 = vweird.f32 %v1359
    %vm1366 = vmor %vm1364, %vm1365
    %v1367 = vsel %vm1366, %v1359, %v1363
    %v1368 = vand.u32 2147483647, %v1283
    %vm1369 = vcmp.eq.f32.partialorder %v1368, 8.507059e+37
    %v1370 = vand.u32 %v1283, 2147483648
    %v1371 = vor.u32 1.1754944e-38, %v1370
    %v1372 = vsel %vm1369, %v1371, %v1367
    %v1373 = vmul.f32 1.0, %v1372
    %v1374 = vtanh.pop %v1258
    %v1375 = vtanh.pop %v1259
    %v1376 = vmul.f32 %v1328, 0.0
    %v1377 = vmul.f32 %v1343, 0.0
    %v1378 = vmul.f32 %v1298, %v1374
    %v1379 = vmul.f32 %v1313, %v1375
    %v1380 = vadd.f32 %v1376, %v1378
    %v1381 = vadd.f32 %v1377, %v1379
    %v1382 = vtanh.pop %v1380
    %v1383 = vtanh.pop %v1381
    %v1384 = vmul.f32 %v1358, %v1382
    %v1385 = vmul.f32 %v1373, %v1383
    %1386 = vst [vmem:[#allocation2] sm:$0x3] %v1384
    %v1388 = vrot.slane %v1385, 2
    %1390 = vst [vmem:[#allocation2 + $0x18] sm:$0xc0] %v1388
    %v1391 = vrot.slane %v481, 2
    %v1392 = vrot.slane %v504, 2
    %v1393 = vrot.slane %v527, 2
    %v1394 = vrot.slane %v550, 2
    %v1395 = vrot.slane %v573, 2
    %v1396 = vrot.slane %v596, 2
    %v1397 = vrot.slane %v619, 2
    %v1398 = vrot.slane %v642, 2
    %v1407 = vadd.f32 %v294, %v1391
    %v1408 = vadd.f32 %v317, %v1392
    %v1409 = vadd.f32 %v340, %v1393
    %v1410 = vadd.f32 %v363, %v1394
    %v1411 = vadd.f32 %v386, %v1395
    %v1412 = vadd.f32 %v409, %v1396
    %v1413 = vadd.f32 %v432, %v1397
    %v1414 = vadd.f32 %v455, %v1398
    %1415 = vmatpush.msra.mxu0 %v764
    %1416 = vmatpush.msra.mxu0 %v756
    %1417 = vmatpush.msra.mxu0 %v748
    %1418 = vmatpush.msra.mxu0 %v740
    %1419 = vmatpush.msra.mxu0 %v732
    %1420 = vmatpush.msra.mxu0 %v724
    %1421 = vmatpush.msra.mxu0 %v716
    %1422 = vmatpush.msra.mxu0 %v708
    %1423 = vmatpush.msra.mxu0 %v700
    %1424 = vmatpush.msra.mxu0 %v692
    %1425 = vmatpush.msra.mxu0 %v684
    %1426 = vmatpush.msra.mxu0 %v676
    %1427 = vmatpush.msra.mxu0 %v668
    %1428 = vmatpush.msra.mxu0 %v660
    %1429 = vmatpush.msra.mxu0 %v652
    %1430 = vmatpush.msra.mxu0 %v644
    %1431 = vmatmul.f32.gmra.mxu0 %v1384
    %v1432 = vpop.f32.mrf.mxu0
    %v1433 = vadd.f32 0.0, %v1432
    %1434 = vdwg.mxu0
    %1435 = vmatpush.msra.mxu0 %v892
    %1436 = vmatpush.msra.mxu0 %v884
    %1437 = vmatpush.msra.mxu0 %v876
    %1438 = vmatpush.msra.mxu0 %v868
    %1439 = vmatpush.msra.mxu0 %v860
    %1440 = vmatpush.msra.mxu0 %v852
    %1441 = vmatpush.msra.mxu0 %v844
    %1442 = vmatpush.msra.mxu0 %v836
    %1443 = vmatpush.msra.mxu0 %v828
    %1444 = vmatpush.msra.mxu0 %v820
    %1445 = vmatpush.msra.mxu0 %v812
    %1446 = vmatpush.msra.mxu0 %v804
    %1447 = vmatpush.msra.mxu0 %v796
    %1448 = vmatpush.msra.mxu0 %v788
    %1449 = vmatpush.msra.mxu0 %v780
    %1450 = vmatpush.msra.mxu0 %v772
    %1451 = vmatmul.f32.gmra.mxu0 %v1385
    %v1452 = vpop.f32.mrf.mxu0
    %v1453 = vadd.f32 %v1433, %v1452
    %1454 = vdwg.mxu0
    %1455 = vmatpush.msra.mxu0 %v765
    %1456 = vmatpush.msra.mxu0 %v757
    %1457 = vmatpush.msra.mxu0 %v749
    %1458 = vmatpush.msra.mxu0 %v741
    %1459 = vmatpush.msra.mxu0 %v733
    %1460 = vmatpush.msra.mxu0 %v725
    %1461 = vmatpush.msra.mxu0 %v717
    %1462 = vmatpush.msra.mxu0 %v709
    %1463 = vmatpush.msra.mxu0 %v701
    %1464 = vmatpush.msra.mxu0 %v693
    %1465 = vmatpush.msra.mxu0 %v685
    %1466 = vmatpush.msra.mxu0 %v677
    %1467 = vmatpush.msra.mxu0 %v669
    %1468 = vmatpush.msra.mxu0 %v661
    %1469 = vmatpush.msra.mxu0 %v653
    %1470 = vmatpush.msra.mxu0 %v645
    %1471 = vmatmul.f32.gmra.mxu0 %v1384
    %v1472 = vpop.f32.mrf.mxu0
    %v1473 = vadd.f32 0.0, %v1472
    %1474 = vdwg.mxu0
    %1475 = vmatpush.msra.mxu0 %v893
    %1476 = vmatpush.msra.mxu0 %v885
    %1477 = vmatpush.msra.mxu0 %v877
    %1478 = vmatpush.msra.mxu0 %v869
    %1479 = vmatpush.msra.mxu0 %v861
    %1480 = vmatpush.msra.mxu0 %v853
    %1481 = vmatpush.msra.mxu0 %v845
    %1482 = vmatpush.msra.mxu0 %v837
    %1483 = vmatpush.msra.mxu0 %v829
    %1484 = vmatpush.msra.mxu0 %v821
    %1485 = vmatpush.msra.mxu0 %v813
    %1486 = vmatpush.msra.mxu0 %v805
    %1487 = vmatpush.msra.mxu0 %v797
    %1488 = vmatpush.msra.mxu0 %v789
    %1489 = vmatpush.msra.mxu0 %v781
    %1490 = vmatpush.msra.mxu0 %v773
    %1491 = vmatmul.f32.gmra.mxu0 %v1385
    %v1492 = vpop.f32.mrf.mxu0
    %v1493 = vadd.f32 %v1473, %v1492
    %1494 = vdwg.mxu0
    %1495 = vmatpush.msra.mxu0 %v766
    %1496 = vmatpush.msra.mxu0 %v758
    %1497 = vmatpush.msra.mxu0 %v750
    %1498 = vmatpush.msra.mxu0 %v742
    %1499 = vmatpush.msra.mxu0 %v734
    %1500 = vmatpush.msra.mxu0 %v726
    %1501 = vmatpush.msra.mxu0 %v718
    %1502 = vmatpush.msra.mxu0 %v710
    %1503 = vmatpush.msra.mxu0 %v702
    %1504 = vmatpush.msra.mxu0 %v694
    %1505 = vmatpush.msra.mxu0 %v686
    %1506 = vmatpush.msra.mxu0 %v678
    %1507 = vmatpush.msra.mxu0 %v670
    %1508 = vmatpush.msra.mxu0 %v662
    %1509 = vmatpush.msra.mxu0 %v654
    %1510 = vmatpush.msra.mxu0 %v646
    %1511 = vmatmul.f32.gmra.mxu0 %v1384
    %v1512 = vpop.f32.mrf.mxu0
    %v1513 = vadd.f32 0.0, %v1512
    %1514 = vdwg.mxu0
    %1515 = vmatpush.msra.mxu0 %v894
    %1516 = vmatpush.msra.mxu0 %v886
    %1517 = vmatpush.msra.mxu0 %v878
    %1518 = vmatpush.msra.mxu0 %v870
    %1519 = vmatpush.msra.mxu0 %v862
    %1520 = vmatpush.msra.mxu0 %v854
    %1521 = vmatpush.msra.mxu0 %v846
    %1522 = vmatpush.msra.mxu0 %v838
    %1523 = vmatpush.msra.mxu0 %v830
    %1524 = vmatpush.msra.mxu0 %v822
    %1525 = vmatpush.msra.mxu0 %v814
    %1526 = vmatpush.msra.mxu0 %v806
    %1527 = vmatpush.msra.mxu0 %v798
    %1528 = vmatpush.msra.mxu0 %v790
    %1529 = vmatpush.msra.mxu0 %v782
    %1530 = vmatpush.msra.mxu0 %v774
    %1531 = vmatmul.f32.gmra.mxu0 %v1385
    %v1532 = vpop.f32.mrf.mxu0
    %v1533 = vadd.f32 %v1513, %v1532
    %1534 = vdwg.mxu0
    %1535 = vmatpush.msra.mxu0 %v767
    %1536 = vmatpush.msra.mxu0 %v759
    %1537 = vmatpush.msra.mxu0 %v751
    %1538 = vmatpush.msra.mxu0 %v743
    %1539 = vmatpush.msra.mxu0 %v735
    %1540 = vmatpush.msra.mxu0 %v727
    %1541 = vmatpush.msra.mxu0 %v719
    %1542 = vmatpush.msra.mxu0 %v711
    %1543 = vmatpush.msra.mxu0 %v703
    %1544 = vmatpush.msra.mxu0 %v695
    %1545 = vmatpush.msra.mxu0 %v687
    %1546 = vmatpush.msra.mxu0 %v679
    %1547 = vmatpush.msra.mxu0 %v671
    %1548 = vmatpush.msra.mxu0 %v663
    %1549 = vmatpush.msra.mxu0 %v655
    %1550 = vmatpush.msra.mxu0 %v647
    %1551 = vmatmul.f32.gmra.mxu0 %v1384
    %v1552 = vpop.f32.mrf.mxu0
    %v1553 = vadd.f32 0.0, %v1552
    %1554 = vdwg.mxu0
    %1555 = vmatpush.msra.mxu0 %v895
    %1556 = vmatpush.msra.mxu0 %v887
    %1557 = vmatpush.msra.mxu0 %v879
    %1558 = vmatpush.msra.mxu0 %v871
    %1559 = vmatpush.msra.mxu0 %v863
    %1560 = vmatpush.msra.mxu0 %v855
    %1561 = vmatpush.msra.mxu0 %v847
    %1562 = vmatpush.msra.mxu0 %v839
    %1563 = vmatpush.msra.mxu0 %v831
    %1564 = vmatpush.msra.mxu0 %v823
    %1565 = vmatpush.msra.mxu0 %v815
    %1566 = vmatpush.msra.mxu0 %v807
    %1567 = vmatpush.msra.mxu0 %v799
    %1568 = vmatpush.msra.mxu0 %v791
    %1569 = vmatpush.msra.mxu0 %v783
    %1570 = vmatpush.msra.mxu0 %v775
    %1571 = vmatmul.f32.gmra.mxu0 %v1385
    %v1572 = vpop.f32.mrf.mxu0
    %v1573 = vadd.f32 %v1553, %v1572
    %1574 = vdwg.mxu0
    %1575 = vmatpush.msra.mxu0 %v768
    %1576 = vmatpush.msra.mxu0 %v760
    %1577 = vmatpush.msra.mxu0 %v752
    %1578 = vmatpush.msra.mxu0 %v744
    %1579 = vmatpush.msra.mxu0 %v736
    %1580 = vmatpush.msra.mxu0 %v728
    %1581 = vmatpush.msra.mxu0 %v720
    %1582 = vmatpush.msra.mxu0 %v712
    %1583 = vmatpush.msra.mxu0 %v704
    %1584 = vmatpush.msra.mxu0 %v696
    %1585 = vmatpush.msra.mxu0 %v688
    %1586 = vmatpush.msra.mxu0 %v680
    %1587 = vmatpush.msra.mxu0 %v672
    %1588 = vmatpush.msra.mxu0 %v664
    %1589 = vmatpush.msra.mxu0 %v656
    %1590 = vmatpush.msra.mxu0 %v648
    %1591 = vmatmul.f32.gmra.mxu0 %v1384
    %v1592 = vpop.f32.mrf.mxu0
    %v1593 = vadd.f32 0.0, %v1592
    %1594 = vdwg.mxu0
    %1595 = vmatpush.msra.mxu0 %v896
    %1596 = vmatpush.msra.mxu0 %v888
    %1597 = vmatpush.msra.mxu0 %v880
    %1598 = vmatpush.msra.mxu0 %v872
    %1599 = vmatpush.msra.mxu0 %v864
    %1600 = vmatpush.msra.mxu0 %v856
    %1601 = vmatpush.msra.mxu0 %v848
    %1602 = vmatpush.msra.mxu0 %v840
    %1603 = vmatpush.msra.mxu0 %v832
    %1604 = vmatpush.msra.mxu0 %v824
    %1605 = vmatpush.msra.mxu0 %v816
    %1606 = vmatpush.msra.mxu0 %v808
    %1607 = vmatpush.msra.mxu0 %v800
    %1608 = vmatpush.msra.mxu0 %v792
    %1609 = vmatpush.msra.mxu0 %v784
    %1610 = vmatpush.msra.mxu0 %v776
    %1611 = vmatmul.f32.gmra.mxu0 %v1385
    %v1612 = vpop.f32.mrf.mxu0
    %v1613 = vadd.f32 %v1593, %v1612
    %1614 = vdwg.mxu0
    %1615 = vmatpush.msra.mxu0 %v769
    %1616 = vmatpush.msra.mxu0 %v761
    %1617 = vmatpush.msra.mxu0 %v753
    %1618 = vmatpush.msra.mxu0 %v745
    %1619 = vmatpush.msra.mxu0 %v737
    %1620 = vmatpush.msra.mxu0 %v729
    %1621 = vmatpush.msra.mxu0 %v721
    %1622 = vmatpush.msra.mxu0 %v713
    %1623 = vmatpush.msra.mxu0 %v705
    %1624 = vmatpush.msra.mxu0 %v697
    %1625 = vmatpush.msra.mxu0 %v689
    %1626 = vmatpush.msra.mxu0 %v681
    %1627 = vmatpush.msra.mxu0 %v673
    %1628 = vmatpush.msra.mxu0 %v665
    %1629 = vmatpush.msra.mxu0 %v657
    %1630 = vmatpush.msra.mxu0 %v649
    %1631 = vmatmul.f32.gmra.mxu0 %v1384
    %v1632 = vpop.f32.mrf.mxu0
    %v1633 = vadd.f32 0.0, %v1632
    %1634 = vdwg.mxu0
    %1635 = vmatpush.msra.mxu0 %v897
    %1636 = vmatpush.msra.mxu0 %v889
    %1637 = vmatpush.msra.mxu0 %v881
    %1638 = vmatpush.msra.mxu0 %v873
    %1639 = vmatpush.msra.mxu0 %v865
    %1640 = vmatpush.msra.mxu0 %v857
    %1641 = vmatpush.msra.mxu0 %v849
    %1642 = vmatpush.msra.mxu0 %v841
    %1643 = vmatpush.msra.mxu0 %v833
    %1644 = vmatpush.msra.mxu0 %v825
    %1645 = vmatpush.msra.mxu0 %v817
    %1646 = vmatpush.msra.mxu0 %v809
    %1647 = vmatpush.msra.mxu0 %v801
    %1648 = vmatpush.msra.mxu0 %v793
    %1649 = vmatpush.msra.mxu0 %v785
    %1650 = vmatpush.msra.mxu0 %v777
    %1651 = vmatmul.f32.gmra.mxu0 %v1385
    %v1652 = vpop.f32.mrf.mxu0
    %v1653 = vadd.f32 %v1633, %v1652
    %1654 = vdwg.mxu0
    %1655 = vmatpush.msra.mxu0 %v770
    %1656 = vmatpush.msra.mxu0 %v762
    %1657 = vmatpush.msra.mxu0 %v754
    %1658 = vmatpush.msra.mxu0 %v746
    %1659 = vmatpush.msra.mxu0 %v738
    %1660 = vmatpush.msra.mxu0 %v730
    %1661 = vmatpush.msra.mxu0 %v722
    %1662 = vmatpush.msra.mxu0 %v714
    %1663 = vmatpush.msra.mxu0 %v706
    %1664 = vmatpush.msra.mxu0 %v698
    %1665 = vmatpush.msra.mxu0 %v690
    %1666 = vmatpush.msra.mxu0 %v682
    %1667 = vmatpush.msra.mxu0 %v674
    %1668 = vmatpush.msra.mxu0 %v666
    %1669 = vmatpush.msra.mxu0 %v658
    %1670 = vmatpush.msra.mxu0 %v650
    %1671 = vmatmul.f32.gmra.mxu0 %v1384
    %v1672 = vpop.f32.mrf.mxu0
    %v1673 = vadd.f32 0.0, %v1672
    %1674 = vdwg.mxu0
    %1675 = vmatpush.msra.mxu0 %v898
    %1676 = vmatpush.msra.mxu0 %v890
    %1677 = vmatpush.msra.mxu0 %v882
    %1678 = vmatpush.msra.mxu0 %v874
    %1679 = vmatpush.msra.mxu0 %v866
    %1680 = vmatpush.msra.mxu0 %v858
    %1681 = vmatpush.msra.mxu0 %v850
    %1682 = vmatpush.msra.mxu0 %v842
    %1683 = vmatpush.msra.mxu0 %v834
    %1684 = vmatpush.msra.mxu0 %v826
    %1685 = vmatpush.msra.mxu0 %v818
    %1686 = vmatpush.msra.mxu0 %v810
    %1687 = vmatpush.msra.mxu0 %v802
    %1688 = vmatpush.msra.mxu0 %v794
    %1689 = vmatpush.msra.mxu0 %v786
    %1690 = vmatpush.msra.mxu0 %v778
    %1691 = vmatmul.f32.gmra.mxu0 %v1385
    %v1692 = vpop.f32.mrf.mxu0
    %v1693 = vadd.f32 %v1673, %v1692
    %1694 = vdwg.mxu0
    %1695 = vmatpush.msra.mxu0 %v771
    %1696 = vmatpush.msra.mxu0 %v763
    %1697 = vmatpush.msra.mxu0 %v755
    %1698 = vmatpush.msra.mxu0 %v747
    %1699 = vmatpush.msra.mxu0 %v739
    %1700 = vmatpush.msra.mxu0 %v731
    %1701 = vmatpush.msra.mxu0 %v723
    %1702 = vmatpush.msra.mxu0 %v715
    %1703 = vmatpush.msra.mxu0 %v707
    %1704 = vmatpush.msra.mxu0 %v699
    %1705 = vmatpush.msra.mxu0 %v691
    %1706 = vmatpush.msra.mxu0 %v683
    %1707 = vmatpush.msra.mxu0 %v675
    %1708 = vmatpush.msra.mxu0 %v667
    %1709 = vmatpush.msra.mxu0 %v659
    %1710 = vmatpush.msra.mxu0 %v651
    %1711 = vmatmul.f32.gmra.mxu0 %v1384
    %v1712 = vpop.f32.mrf.mxu0
    %v1713 = vadd.f32 0.0, %v1712
    %1714 = vdwg.mxu0
    %1715 = vmatpush.msra.mxu0 %v899
    %1716 = vmatpush.msra.mxu0 %v891
    %1717 = vmatpush.msra.mxu0 %v883
    %1718 = vmatpush.msra.mxu0 %v875
    %1719 = vmatpush.msra.mxu0 %v867
    %1720 = vmatpush.msra.mxu0 %v859
    %1721 = vmatpush.msra.mxu0 %v851
    %1722 = vmatpush.msra.mxu0 %v843
    %1723 = vmatpush.msra.mxu0 %v835
    %1724 = vmatpush.msra.mxu0 %v827
    %1725 = vmatpush.msra.mxu0 %v819
    %1726 = vmatpush.msra.mxu0 %v811
    %1727 = vmatpush.msra.mxu0 %v803
    %1728 = vmatpush.msra.mxu0 %v795
    %1729 = vmatpush.msra.mxu0 %v787
    %1730 = vmatpush.msra.mxu0 %v779
    %1731 = vmatmul.f32.gmra.mxu0 %v1385
    %v1732 = vpop.f32.mrf.mxu0
    %v1733 = vadd.f32 %v1713, %v1732
    %1734 = vdwg.mxu0
    %v1743 = vrot.slane %v1453, 6
    %v1744 = vrot.slane %v1493, 6
    %v1745 = vrot.slane %v1533, 6
    %v1746 = vrot.slane %v1573, 6
    %v1747 = vrot.slane %v1613, 6
    %v1748 = vrot.slane %v1653, 6
    %v1749 = vrot.slane %v1693, 6
    %v1750 = vrot.slane %v1733, 6
    %v1759 = vadd.f32 %v1407, %v1743
    %v1760 = vadd.f32 %v1408, %v1744
    %v1761 = vadd.f32 %v1409, %v1745
    %v1762 = vadd.f32 %v1410, %v1746
    %v1763 = vadd.f32 %v1411, %v1747
    %v1764 = vadd.f32 %v1412, %v1748
    %v1765 = vadd.f32 %v1413, %v1749
    %v1766 = vadd.f32 %v1414, %v1750
    %v1767 = vxor.u32 %v1759, 2147483648
    %v1768 = vxor.u32 %v1760, 2147483648
    %v1769 = vxor.u32 %v1761, 2147483648
    %v1770 = vxor.u32 %v1762, 2147483648
    %v1771 = vxor.u32 %v1763, 2147483648
    %v1772 = vxor.u32 %v1764, 2147483648
    %v1773 = vmul.f32 %v1767, 1.442695
    %v1774 = vpow.pop %v1773
    %v1775 = vmul.f32 %v1768, 1.442695
    %v1776 = vpow.pop %v1775
    %v1777 = vmul.f32 %v1769, 1.442695
    %v1778 = vpow.pop %v1777
    %v1779 = vmul.f32 %v1770, 1.442695
    %v1780 = vpow.pop %v1779
    %v1781 = vmul.f32 %v1771, 1.442695
    %v1782 = vpow.pop %v1781
    %v1783 = vmul.f32 %v1772, 1.442695
    %v1784 = vpow.pop %v1783
    %v1785 = vadd.f32 %v1774, 1.0
    %v1786 = vadd.f32 %v1776, 1.0
    %v1787 = vadd.f32 %v1778, 1.0
    %v1788 = vadd.f32 %v1780, 1.0
    %v1789 = vadd.f32 %v1782, 1.0
    %v1790 = vadd.f32 %v1784, 1.0
    %v1791 = vrcp.pop %v1785
    %v1792 = vmul.f32 %v1785, %v1791
    %v1793 = vsub.f32 1.0, %v1792
    %v1794 = vmul.f32 %v1791, %v1793
    %v1795 = vadd.f32 %v1791, %v1794
    %vm1796 = vweird.f32 %v1785
    %vm1797 = vweird.f32 %v1791
    %vm1798 = vmor %vm1796, %vm1797
    %v1799 = vsel %vm1798, %v1791, %v1795
    %v1800 = vand.u32 2147483647, %v1785
    %vm1801 = vcmp.eq.f32.partialorder %v1800, 8.507059e+37
    %v1802 = vand.u32 %v1785, 2147483648
    %v1803 = vor.u32 1.1754944e-38, %v1802
    %v1804 = vsel %vm1801, %v1803, %v1799
    %v1805 = vmul.f32 1.0, %v1804
    %v1806 = vrcp.pop %v1786
    %v1807 = vmul.f32 %v1786, %v1806
    %v1808 = vsub.f32 1.0, %v1807
    %v1809 = vmul.f32 %v1806, %v1808
    %v1810 = vadd.f32 %v1806, %v1809
    %vm1811 = vweird.f32 %v1786
    %vm1812 = vweird.f32 %v1806
    %vm1813 = vmor %vm1811, %vm1812
    %v1814 = vsel %vm1813, %v1806, %v1810
    %v1815 = vand.u32 2147483647, %v1786
    %vm1816 = vcmp.eq.f32.partialorder %v1815, 8.507059e+37
    %v1817 = vand.u32 %v1786, 2147483648
    %v1818 = vor.u32 1.1754944e-38, %v1817
    %v1819 = vsel %vm1816, %v1818, %v1814
    %v1820 = vmul.f32 1.0, %v1819
    %v1821 = vrcp.pop %v1787
    %v1822 = vmul.f32 %v1787, %v1821
    %v1823 = vsub.f32 1.0, %v1822
    %v1824 = vmul.f32 %v1821, %v1823
    %v1825 = vadd.f32 %v1821, %v1824
    %vm1826 = vweird.f32 %v1787
    %vm1827 = vweird.f32 %v1821
    %vm1828 = vmor %vm1826, %vm1827
    %v1829 = vsel %vm1828, %v1821, %v1825
    %v1830 = vand.u32 2147483647, %v1787
    %vm1831 = vcmp.eq.f32.partialorder %v1830, 8.507059e+37
    %v1832 = vand.u32 %v1787, 2147483648
    %v1833 = vor.u32 1.1754944e-38, %v1832
    %v1834 = vsel %vm1831, %v1833, %v1829
    %v1835 = vmul.f32 1.0, %v1834
    %v1836 = vrcp.pop %v1788
    %v1837 = vmul.f32 %v1788, %v1836
    %v1838 = vsub.f32 1.0, %v1837
    %v1839 = vmul.f32 %v1836, %v1838
    %v1840 = vadd.f32 %v1836, %v1839
    %vm1841 = vweird.f32 %v1788
    %vm1842 = vweird.f32 %v1836
    %vm1843 = vmor %vm1841, %vm1842
    %v1844 = vsel %vm1843, %v1836, %v1840
    %v1845 = vand.u32 2147483647, %v1788
    %vm1846 = vcmp.eq.f32.partialorder %v1845, 8.507059e+37
    %v1847 = vand.u32 %v1788, 2147483648
    %v1848 = vor.u32 1.1754944e-38, %v1847
    %v1849 = vsel %vm1846, %v1848, %v1844
    %v1850 = vmul.f32 1.0, %v1849
    %v1851 = vrcp.pop %v1789
    %v1852 = vmul.f32 %v1789, %v1851
    %v1853 = vsub.f32 1.0, %v1852
    %v1854 = vmul.f32 %v1851, %v1853
    %v1855 = vadd.f32 %v1851, %v1854
    %vm1856 = vweird.f32 %v1789
    %vm1857 = vweird.f32 %v1851
    %vm1858 = vmor %vm1856, %vm1857
    %v1859 = vsel %vm1858, %v1851, %v1855
    %v1860 = vand.u32 2147483647, %v1789
    %vm1861 = vcmp.eq.f32.partialorder %v1860, 8.507059e+37
    %v1862 = vand.u32 %v1789, 2147483648
    %v1863 = vor.u32 1.1754944e-38, %v1862
    %v1864 = vsel %vm1861, %v1863, %v1859
    %v1865 = vmul.f32 1.0, %v1864
    %v1866 = vrcp.pop %v1790
    %v1867 = vmul.f32 %v1790, %v1866
    %v1868 = vsub.f32 1.0, %v1867
    %v1869 = vmul.f32 %v1866, %v1868
    %v1870 = vadd.f32 %v1866, %v1869
    %vm1871 = vweird.f32 %v1790
    %vm1872 = vweird.f32 %v1866
    %vm1873 = vmor %vm1871, %vm1872
    %v1874 = vsel %vm1873, %v1866, %v1870
    %v1875 = vand.u32 2147483647, %v1790
    %vm1876 = vcmp.eq.f32.partialorder %v1875, 8.507059e+37
    %v1877 = vand.u32 %v1790, 2147483648
    %v1878 = vor.u32 1.1754944e-38, %v1877
    %v1879 = vsel %vm1876, %v1878, %v1874
    %v1880 = vmul.f32 1.0, %v1879
    %v1881 = vtanh.pop %v1765
    %v1882 = vtanh.pop %v1766
    %v1885 = vrot.slane %v1380, 6
    %v1886 = vrot.slane %v1381, 6
    %v1889 = vmul.f32 %v1835, %v1885
    %v1890 = vmul.f32 %v1850, %v1886
    %v1891 = vmul.f32 %v1805, %v1881
    %v1892 = vmul.f32 %v1820, %v1882
    %v1893 = vadd.f32 %v1889, %v1891
    %v1894 = vadd.f32 %v1890, %v1892
    %v1895 = vtanh.pop %v1893
    %v1896 = vtanh.pop %v1894
    %v1897 = vmul.f32 %v1865, %v1895
    %v1898 = vmul.f32 %v1880, %v1896
    %1899 = vst [vmem:[#allocation2] sm:$0xc] %v1897
    %v1901 = vrot.slane %v1898, 6
    %1903 = vst [vmem:[#allocation2 + $0x18] sm:$0x30] %v1901
    %v1905 = vrot.slane %v1897, 2
    %v1906 = vrot.slane %v1898, 2
    %1909 = vmatpush.msra.mxu0 %v764
    %1910 = vmatpush.msra.mxu0 %v756
    %1911 = vmatpush.msra.mxu0 %v748
    %1912 = vmatpush.msra.mxu0 %v740
    %1913 = vmatpush.msra.mxu0 %v732
    %1914 = vmatpush.msra.mxu0 %v724
    %1915 = vmatpush.msra.mxu0 %v716
    %1916 = vmatpush.msra.mxu0 %v708
    %1917 = vmatpush.msra.mxu0 %v700
    %1918 = vmatpush.msra.mxu0 %v692
    %1919 = vmatpush.msra.mxu0 %v684
    %1920 = vmatpush.msra.mxu0 %v676
    %1921 = vmatpush.msra.mxu0 %v668
    %1922 = vmatpush.msra.mxu0 %v660
    %1923 = vmatpush.msra.mxu0 %v652
    %1924 = vmatpush.msra.mxu0 %v644
    %1925 = vmatmul.f32.gmra.mxu0 %v1905
    %v1926 = vpop.f32.mrf.mxu0
    %v1927 = vadd.f32 0.0, %v1926
    %1928 = vdwg.mxu0
    %1929 = vmatpush.msra.mxu0 %v892
    %1930 = vmatpush.msra.mxu0 %v884
    %1931 = vmatpush.msra.mxu0 %v876
    %1932 = vmatpush.msra.mxu0 %v868
    %1933 = vmatpush.msra.mxu0 %v860
    %1934 = vmatpush.msra.mxu0 %v852
    %1935 = vmatpush.msra.mxu0 %v844
    %1936 = vmatpush.msra.mxu0 %v836
    %1937 = vmatpush.msra.mxu0 %v828
    %1938 = vmatpush.msra.mxu0 %v820
    %1939 = vmatpush.msra.mxu0 %v812
    %1940 = vmatpush.msra.mxu0 %v804
    %1941 = vmatpush.msra.mxu0 %v796
    %1942 = vmatpush.msra.mxu0 %v788
    %1943 = vmatpush.msra.mxu0 %v780
    %1944 = vmatpush.msra.mxu0 %v772
    %1945 = vmatmul.f32.gmra.mxu0 %v1906
    %v1946 = vpop.f32.mrf.mxu0
    %v1947 = vadd.f32 %v1927, %v1946
    %1948 = vdwg.mxu0
    %1949 = vmatpush.msra.mxu0 %v765
    %1950 = vmatpush.msra.mxu0 %v757
    %1951 = vmatpush.msra.mxu0 %v749
    %1952 = vmatpush.msra.mxu0 %v741
    %1953 = vmatpush.msra.mxu0 %v733
    %1954 = vmatpush.msra.mxu0 %v725
    %1955 = vmatpush.msra.mxu0 %v717
    %1956 = vmatpush.msra.mxu0 %v709
    %1957 = vmatpush.msra.mxu0 %v701
    %1958 = vmatpush.msra.mxu0 %v693
    %1959 = vmatpush.msra.mxu0 %v685
    %1960 = vmatpush.msra.mxu0 %v677
    %1961 = vmatpush.msra.mxu0 %v669
    %1962 = vmatpush.msra.mxu0 %v661
    %1963 = vmatpush.msra.mxu0 %v653
    %1964 = vmatpush.msra.mxu0 %v645
    %1965 = vmatmul.f32.gmra.mxu0 %v1905
    %v1966 = vpop.f32.mrf.mxu0
    %v1967 = vadd.f32 0.0, %v1966
    %1968 = vdwg.mxu0
    %1969 = vmatpush.msra.mxu0 %v893
    %1970 = vmatpush.msra.mxu0 %v885
    %1971 = vmatpush.msra.mxu0 %v877
    %1972 = vmatpush.msra.mxu0 %v869
    %1973 = vmatpush.msra.mxu0 %v861
    %1974 = vmatpush.msra.mxu0 %v853
    %1975 = vmatpush.msra.mxu0 %v845
    %1976 = vmatpush.msra.mxu0 %v837
    %1977 = vmatpush.msra.mxu0 %v829
    %1978 = vmatpush.msra.mxu0 %v821
    %1979 = vmatpush.msra.mxu0 %v813
    %1980 = vmatpush.msra.mxu0 %v805
    %1981 = vmatpush.msra.mxu0 %v797
    %1982 = vmatpush.msra.mxu0 %v789
    %1983 = vmatpush.msra.mxu0 %v781
    %1984 = vmatpush.msra.mxu0 %v773
    %1985 = vmatmul.f32.gmra.mxu0 %v1906
    %v1986 = vpop.f32.mrf.mxu0
    %v1987 = vadd.f32 %v1967, %v1986
    %1988 = vdwg.mxu0
    %1989 = vmatpush.msra.mxu0 %v766
    %1990 = vmatpush.msra.mxu0 %v758
    %1991 = vmatpush.msra.mxu0 %v750
    %1992 = vmatpush.msra.mxu0 %v742
    %1993 = vmatpush.msra.mxu0 %v734
    %1994 = vmatpush.msra.mxu0 %v726
    %1995 = vmatpush.msra.mxu0 %v718
    %1996 = vmatpush.msra.mxu0 %v710
    %1997 = vmatpush.msra.mxu0 %v702
    %1998 = vmatpush.msra.mxu0 %v694
    %1999 = vmatpush.msra.mxu0 %v686
    %2000 = vmatpush.msra.mxu0 %v678
    %2001 = vmatpush.msra.mxu0 %v670
    %2002 = vmatpush.msra.mxu0 %v662
    %2003 = vmatpush.msra.mxu0 %v654
    %2004 = vmatpush.msra.mxu0 %v646
    %2005 = vmatmul.f32.gmra.mxu0 %v1905
    %v2006 = vpop.f32.mrf.mxu0
    %v2007 = vadd.f32 0.0, %v2006
    %2008 = vdwg.mxu0
    %2009 = vmatpush.msra.mxu0 %v894
    %2010 = vmatpush.msra.mxu0 %v886
    %2011 = vmatpush.msra.mxu0 %v878
    %2012 = vmatpush.msra.mxu0 %v870
    %2013 = vmatpush.msra.mxu0 %v862
    %2014 = vmatpush.msra.mxu0 %v854
    %2015 = vmatpush.msra.mxu0 %v846
    %2016 = vmatpush.msra.mxu0 %v838
    %2017 = vmatpush.msra.mxu0 %v830
    %2018 = vmatpush.msra.mxu0 %v822
    %2019 = vmatpush.msra.mxu0 %v814
    %2020 = vmatpush.msra.mxu0 %v806
    %2021 = vmatpush.msra.mxu0 %v798
    %2022 = vmatpush.msra.mxu0 %v790
    %2023 = vmatpush.msra.mxu0 %v782
    %2024 = vmatpush.msra.mxu0 %v774
    %2025 = vmatmul.f32.gmra.mxu0 %v1906
    %v2026 = vpop.f32.mrf.mxu0
    %v2027 = vadd.f32 %v2007, %v2026
    %2028 = vdwg.mxu0
    %2029 = vmatpush.msra.mxu0 %v767
    %2030 = vmatpush.msra.mxu0 %v759
    %2031 = vmatpush.msra.mxu0 %v751
    %2032 = vmatpush.msra.mxu0 %v743
    %2033 = vmatpush.msra.mxu0 %v735
    %2034 = vmatpush.msra.mxu0 %v727
    %2035 = vmatpush.msra.mxu0 %v719
    %2036 = vmatpush.msra.mxu0 %v711
    %2037 = vmatpush.msra.mxu0 %v703
    %2038 = vmatpush.msra.mxu0 %v695
    %2039 = vmatpush.msra.mxu0 %v687
    %2040 = vmatpush.msra.mxu0 %v679
    %2041 = vmatpush.msra.mxu0 %v671
    %2042 = vmatpush.msra.mxu0 %v663
    %2043 = vmatpush.msra.mxu0 %v655
    %2044 = vmatpush.msra.mxu0 %v647
    %2045 = vmatmul.f32.gmra.mxu0 %v1905
    %v2046 = vpop.f32.mrf.mxu0
    %v2047 = vadd.f32 0.0, %v2046
    %2048 = vdwg.mxu0
    %2049 = vmatpush.msra.mxu0 %v895
    %2050 = vmatpush.msra.mxu0 %v887
    %2051 = vmatpush.msra.mxu0 %v879
    %2052 = vmatpush.msra.mxu0 %v871
    %2053 = vmatpush.msra.mxu0 %v863
    %2054 = vmatpush.msra.mxu0 %v855
    %2055 = vmatpush.msra.mxu0 %v847
    %2056 = vmatpush.msra.mxu0 %v839
    %2057 = vmatpush.msra.mxu0 %v831
    %2058 = vmatpush.msra.mxu0 %v823
    %2059 = vmatpush.msra.mxu0 %v815
    %2060 = vmatpush.msra.mxu0 %v807
    %2061 = vmatpush.msra.mxu0 %v799
    %2062 = vmatpush.msra.mxu0 %v791
    %2063 = vmatpush.msra.mxu0 %v783
    %2064 = vmatpush.msra.mxu0 %v775
    %2065 = vmatmul.f32.gmra.mxu0 %v1906
    %v2066 = vpop.f32.mrf.mxu0
    %v2067 = vadd.f32 %v2047, %v2066
    %2068 = vdwg.mxu0
    %2069 = vmatpush.msra.mxu0 %v768
    %2070 = vmatpush.msra.mxu0 %v760
    %2071 = vmatpush.msra.mxu0 %v752
    %2072 = vmatpush.msra.mxu0 %v744
    %2073 = vmatpush.msra.mxu0 %v736
    %2074 = vmatpush.msra.mxu0 %v728
    %2075 = vmatpush.msra.mxu0 %v720
    %2076 = vmatpush.msra.mxu0 %v712
    %2077 = vmatpush.msra.mxu0 %v704
    %2078 = vmatpush.msra.mxu0 %v696
    %2079 = vmatpush.msra.mxu0 %v688
    %2080 = vmatpush.msra.mxu0 %v680
    %2081 = vmatpush.msra.mxu0 %v672
    %2082 = vmatpush.msra.mxu0 %v664
    %2083 = vmatpush.msra.mxu0 %v656
    %2084 = vmatpush.msra.mxu0 %v648
    %2085 = vmatmul.f32.gmra.mxu0 %v1905
    %v2086 = vpop.f32.mrf.mxu0
    %v2087 = vadd.f32 0.0, %v2086
    %2088 = vdwg.mxu0
    %2089 = vmatpush.msra.mxu0 %v896
    %2090 = vmatpush.msra.mxu0 %v888
    %2091 = vmatpush.msra.mxu0 %v880
    %2092 = vmatpush.msra.mxu0 %v872
    %2093 = vmatpush.msra.mxu0 %v864
    %2094 = vmatpush.msra.mxu0 %v856
    %2095 = vmatpush.msra.mxu0 %v848
    %2096 = vmatpush.msra.mxu0 %v840
    %2097 = vmatpush.msra.mxu0 %v832
    %2098 = vmatpush.msra.mxu0 %v824
    %2099 = vmatpush.msra.mxu0 %v816
    %2100 = vmatpush.msra.mxu0 %v808
    %2101 = vmatpush.msra.mxu0 %v800
    %2102 = vmatpush.msra.mxu0 %v792
    %2103 = vmatpush.msra.mxu0 %v784
    %2104 = vmatpush.msra.mxu0 %v776
    %2105 = vmatmul.f32.gmra.mxu0 %v1906
    %v2106 = vpop.f32.mrf.mxu0
    %v2107 = vadd.f32 %v2087, %v2106
    %2108 = vdwg.mxu0
    %2109 = vmatpush.msra.mxu0 %v769
    %2110 = vmatpush.msra.mxu0 %v761
    %2111 = vmatpush.msra.mxu0 %v753
    %2112 = vmatpush.msra.mxu0 %v745
    %2113 = vmatpush.msra.mxu0 %v737
    %2114 = vmatpush.msra.mxu0 %v729
    %2115 = vmatpush.msra.mxu0 %v721
    %2116 = vmatpush.msra.mxu0 %v713
    %2117 = vmatpush.msra.mxu0 %v705
    %2118 = vmatpush.msra.mxu0 %v697
    %2119 = vmatpush.msra.mxu0 %v689
    %2120 = vmatpush.msra.mxu0 %v681
    %2121 = vmatpush.msra.mxu0 %v673
    %2122 = vmatpush.msra.mxu0 %v665
    %2123 = vmatpush.msra.mxu0 %v657
    %2124 = vmatpush.msra.mxu0 %v649
    %2125 = vmatmul.f32.gmra.mxu0 %v1905
    %v2126 = vpop.f32.mrf.mxu0
    %v2127 = vadd.f32 0.0, %v2126
    %2128 = vdwg.mxu0
    %2129 = vmatpush.msra.mxu0 %v897
    %2130 = vmatpush.msra.mxu0 %v889
    %2131 = vmatpush.msra.mxu0 %v881
    %2132 = vmatpush.msra.mxu0 %v873
    %2133 = vmatpush.msra.mxu0 %v865
    %2134 = vmatpush.msra.mxu0 %v857
    %2135 = vmatpush.msra.mxu0 %v849
    %2136 = vmatpush.msra.mxu0 %v841
    %2137 = vmatpush.msra.mxu0 %v833
    %2138 = vmatpush.msra.mxu0 %v825
    %2139 = vmatpush.msra.mxu0 %v817
    %2140 = vmatpush.msra.mxu0 %v809
    %2141 = vmatpush.msra.mxu0 %v801
    %2142 = vmatpush.msra.mxu0 %v793
    %2143 = vmatpush.msra.mxu0 %v785
    %2144 = vmatpush.msra.mxu0 %v777
    %2145 = vmatmul.f32.gmra.mxu0 %v1906
    %v2146 = vpop.f32.mrf.mxu0
    %v2147 = vadd.f32 %v2127, %v2146
    %2148 = vdwg.mxu0
    %2149 = vmatpush.msra.mxu0 %v770
    %2150 = vmatpush.msra.mxu0 %v762
    %2151 = vmatpush.msra.mxu0 %v754
    %2152 = vmatpush.msra.mxu0 %v746
    %2153 = vmatpush.msra.mxu0 %v738
    %2154 = vmatpush.msra.mxu0 %v730
    %2155 = vmatpush.msra.mxu0 %v722
    %2156 = vmatpush.msra.mxu0 %v714
    %2157 = vmatpush.msra.mxu0 %v706
    %2158 = vmatpush.msra.mxu0 %v698
    %2159 = vmatpush.msra.mxu0 %v690
    %2160 = vmatpush.msra.mxu0 %v682
    %2161 = vmatpush.msra.mxu0 %v674
    %2162 = vmatpush.msra.mxu0 %v666
    %2163 = vmatpush.msra.mxu0 %v658
    %2164 = vmatpush.msra.mxu0 %v650
    %2165 = vmatmul.f32.gmra.mxu0 %v1905
    %v2166 = vpop.f32.mrf.mxu0
    %v2167 = vadd.f32 0.0, %v2166
    %2168 = vdwg.mxu0
    %2169 = vmatpush.msra.mxu0 %v898
    %2170 = vmatpush.msra.mxu0 %v890
    %2171 = vmatpush.msra.mxu0 %v882
    %2172 = vmatpush.msra.mxu0 %v874
    %2173 = vmatpush.msra.mxu0 %v866
    %2174 = vmatpush.msra.mxu0 %v858
    %2175 = vmatpush.msra.mxu0 %v850
    %2176 = vmatpush.msra.mxu0 %v842
    %2177 = vmatpush.msra.mxu0 %v834
    %2178 = vmatpush.msra.mxu0 %v826
    %2179 = vmatpush.msra.mxu0 %v818
    %2180 = vmatpush.msra.mxu0 %v810
    %2181 = vmatpush.msra.mxu0 %v802
    %2182 = vmatpush.msra.mxu0 %v794
    %2183 = vmatpush.msra.mxu0 %v786
    %2184 = vmatpush.msra.mxu0 %v778
    %2185 = vmatmul.f32.gmra.mxu0 %v1906
    %v2186 = vpop.f32.mrf.mxu0
    %v2187 = vadd.f32 %v2167, %v2186
    %2188 = vdwg.mxu0
    %2189 = vmatpush.msra.mxu0 %v771
    %2190 = vmatpush.msra.mxu0 %v763
    %2191 = vmatpush.msra.mxu0 %v755
    %2192 = vmatpush.msra.mxu0 %v747
    %2193 = vmatpush.msra.mxu0 %v739
    %2194 = vmatpush.msra.mxu0 %v731
    %2195 = vmatpush.msra.mxu0 %v723
    %2196 = vmatpush.msra.mxu0 %v715
    %2197 = vmatpush.msra.mxu0 %v707
    %2198 = vmatpush.msra.mxu0 %v699
    %2199 = vmatpush.msra.mxu0 %v691
    %2200 = vmatpush.msra.mxu0 %v683
    %2201 = vmatpush.msra.mxu0 %v675
    %2202 = vmatpush.msra.mxu0 %v667
    %2203 = vmatpush.msra.mxu0 %v659
    %2204 = vmatpush.msra.mxu0 %v651
    %2205 = vmatmul.f32.gmra.mxu0 %v1905
    %v2206 = vpop.f32.mrf.mxu0
    %v2207 = vadd.f32 0.0, %v2206
    %2208 = vdwg.mxu0
    %2209 = vmatpush.msra.mxu0 %v899
    %2210 = vmatpush.msra.mxu0 %v891
    %2211 = vmatpush.msra.mxu0 %v883
    %2212 = vmatpush.msra.mxu0 %v875
    %2213 = vmatpush.msra.mxu0 %v867
    %2214 = vmatpush.msra.mxu0 %v859
    %2215 = vmatpush.msra.mxu0 %v851
    %2216 = vmatpush.msra.mxu0 %v843
    %2217 = vmatpush.msra.mxu0 %v835
    %2218 = vmatpush.msra.mxu0 %v827
    %2219 = vmatpush.msra.mxu0 %v819
    %2220 = vmatpush.msra.mxu0 %v811
    %2221 = vmatpush.msra.mxu0 %v803
    %2222 = vmatpush.msra.mxu0 %v795
    %2223 = vmatpush.msra.mxu0 %v787
    %2224 = vmatpush.msra.mxu0 %v779
    %2225 = vmatmul.f32.gmra.mxu0 %v1906
    %v2226 = vpop.f32.mrf.mxu0
    %v2227 = vadd.f32 %v2207, %v2226
    %2228 = vdwg.mxu0
    %v2237 = vrot.slane %v1947, 4
    %v2238 = vrot.slane %v1987, 4
    %v2239 = vrot.slane %v2027, 4
    %v2240 = vrot.slane %v2067, 4
    %v2241 = vrot.slane %v2107, 4
    %v2242 = vrot.slane %v2147, 4
    %v2243 = vrot.slane %v2187, 4
    %v2244 = vrot.slane %v2227, 4
    %v2253 = vadd.f32 %v924, %v2237
    %v2254 = vadd.f32 %v925, %v2238
    %v2255 = vadd.f32 %v926, %v2239
    %v2256 = vadd.f32 %v927, %v2240
    %v2257 = vadd.f32 %v928, %v2241
    %v2258 = vadd.f32 %v929, %v2242
    %v2259 = vadd.f32 %v930, %v2243
    %v2260 = vadd.f32 %v931, %v2244
    %v2261 = vxor.u32 %v2253, 2147483648
    %v2262 = vxor.u32 %v2254, 2147483648
    %v2263 = vxor.u32 %v2255, 2147483648
    %v2264 = vxor.u32 %v2256, 2147483648
    %v2265 = vxor.u32 %v2257, 2147483648
    %v2266 = vxor.u32 %v2258, 2147483648
    %v2267 = vmul.f32 %v2261, 1.442695
    %v2268 = vpow.pop %v2267
    %v2269 = vmul.f32 %v2262, 1.442695
    %v2270 = vpow.pop %v2269
    %v2271 = vmul.f32 %v2263, 1.442695
    %v2272 = vpow.pop %v2271
    %v2273 = vmul.f32 %v2264, 1.442695
    %v2274 = vpow.pop %v2273
    %v2275 = vmul.f32 %v2265, 1.442695
    %v2276 = vpow.pop %v2275
    %v2277 = vmul.f32 %v2266, 1.442695
    %v2278 = vpow.pop %v2277
    %v2279 = vadd.f32 %v2268, 1.0
    %v2280 = vadd.f32 %v2270, 1.0
    %v2281 = vadd.f32 %v2272, 1.0
    %v2282 = vadd.f32 %v2274, 1.0
    %v2283 = vadd.f32 %v2276, 1.0
    %v2284 = vadd.f32 %v2278, 1.0
    %v2285 = vrcp.pop %v2279
    %v2286 = vmul.f32 %v2279, %v2285
    %v2287 = vsub.f32 1.0, %v2286
    %v2288 = vmul.f32 %v2285, %v2287
    %v2289 = vadd.f32 %v2285, %v2288
    %vm2290 = vweird.f32 %v2279
    %vm2291 = vweird.f32 %v2285
    %vm2292 = vmor %vm2290, %vm2291
    %v2293 = vsel %vm2292, %v2285, %v2289
    %v2294 = vand.u32 2147483647, %v2279
    %vm2295 = vcmp.eq.f32.partialorder %v2294, 8.507059e+37
    %v2296 = vand.u32 %v2279, 2147483648
    %v2297 = vor.u32 1.1754944e-38, %v2296
    %v2298 = vsel %vm2295, %v2297, %v2293
    %v2299 = vmul.f32 1.0, %v2298
    %v2300 = vrcp.pop %v2280
    %v2301 = vmul.f32 %v2280, %v2300
    %v2302 = vsub.f32 1.0, %v2301
    %v2303 = vmul.f32 %v2300, %v2302
    %v2304 = vadd.f32 %v2300, %v2303
    %vm2305 = vweird.f32 %v2280
    %vm2306 = vweird.f32 %v2300
    %vm2307 = vmor %vm2305, %vm2306
    %v2308 = vsel %vm2307, %v2300, %v2304
    %v2309 = vand.u32 2147483647, %v2280
    %vm2310 = vcmp.eq.f32.partialorder %v2309, 8.507059e+37
    %v2311 = vand.u32 %v2280, 2147483648
    %v2312 = vor.u32 1.1754944e-38, %v2311
    %v2313 = vsel %vm2310, %v2312, %v2308
    %v2314 = vmul.f32 1.0, %v2313
    %v2315 = vrcp.pop %v2281
    %v2316 = vmul.f32 %v2281, %v2315
    %v2317 = vsub.f32 1.0, %v2316
    %v2318 = vmul.f32 %v2315, %v2317
    %v2319 = vadd.f32 %v2315, %v2318
    %vm2320 = vweird.f32 %v2281
    %vm2321 = vweird.f32 %v2315
    %vm2322 = vmor %vm2320, %vm2321
    %v2323 = vsel %vm2322, %v2315, %v2319
    %v2324 = vand.u32 2147483647, %v2281
    %vm2325 = vcmp.eq.f32.partialorder %v2324, 8.507059e+37
    %v2326 = vand.u32 %v2281, 2147483648
    %v2327 = vor.u32 1.1754944e-38, %v2326
    %v2328 = vsel %vm2325, %v2327, %v2323
    %v2329 = vmul.f32 1.0, %v2328
    %v2330 = vrcp.pop %v2282
    %v2331 = vmul.f32 %v2282, %v2330
    %v2332 = vsub.f32 1.0, %v2331
    %v2333 = vmul.f32 %v2330, %v2332
    %v2334 = vadd.f32 %v2330, %v2333
    %vm2335 = vweird.f32 %v2282
    %vm2336 = vweird.f32 %v2330
    %vm2337 = vmor %vm2335, %vm2336
    %v2338 = vsel %vm2337, %v2330, %v2334
    %v2339 = vand.u32 2147483647, %v2282
    %vm2340 = vcmp.eq.f32.partialorder %v2339, 8.507059e+37
    %v2341 = vand.u32 %v2282, 2147483648
    %v2342 = vor.u32 1.1754944e-38, %v2341
    %v2343 = vsel %vm2340, %v2342, %v2338
    %v2344 = vmul.f32 1.0, %v2343
    %v2345 = vrcp.pop %v2283
    %v2346 = vmul.f32 %v2283, %v2345
    %v2347 = vsub.f32 1.0, %v2346
    %v2348 = vmul.f32 %v2345, %v2347
    %v2349 = vadd.f32 %v2345, %v2348
    %vm2350 = vweird.f32 %v2283
    %vm2351 = vweird.f32 %v2345
    %vm2352 = vmor %vm2350, %vm2351
    %v2353 = vsel %vm2352, %v2345, %v2349
    %v2354 = vand.u32 2147483647, %v2283
    %vm2355 = vcmp.eq.f32.partialorder %v2354, 8.507059e+37
    %v2356 = vand.u32 %v2283, 2147483648
    %v2357 = vor.u32 1.1754944e-38, %v2356
    %v2358 = vsel %vm2355, %v2357, %v2353
    %v2359 = vmul.f32 1.0, %v2358
    %v2360 = vrcp.pop %v2284
    %v2361 = vmul.f32 %v2284, %v2360
    %v2362 = vsub.f32 1.0, %v2361
    %v2363 = vmul.f32 %v2360, %v2362
    %v2364 = vadd.f32 %v2360, %v2363
    %vm2365 = vweird.f32 %v2284
    %vm2366 = vweird.f32 %v2360
    %vm2367 = vmor %vm2365, %vm2366
    %v2368 = vsel %vm2367, %v2360, %v2364
    %v2369 = vand.u32 2147483647, %v2284
    %vm2370 = vcmp.eq.f32.partialorder %v2369, 8.507059e+37
    %v2371 = vand.u32 %v2284, 2147483648
    %v2372 = vor.u32 1.1754944e-38, %v2371
    %v2373 = vsel %vm2370, %v2372, %v2368
    %v2374 = vmul.f32 1.0, %v2373
    %v2375 = vtanh.pop %v2259
    %v2376 = vtanh.pop %v2260
    %v2379 = vrot.slane %v1893, 6
    %v2380 = vrot.slane %v1894, 6
    %v2383 = vmul.f32 %v2329, %v2379
    %v2384 = vmul.f32 %v2344, %v2380
    %v2385 = vmul.f32 %v2299, %v2375
    %v2386 = vmul.f32 %v2314, %v2376
    %v2387 = vadd.f32 %v2383, %v2385
    %v2388 = vadd.f32 %v2384, %v2386
    %v2389 = vtanh.pop %v2387
    %v2390 = vtanh.pop %v2388
    %v2391 = vmul.f32 %v2359, %v2389
    %v2392 = vmul.f32 %v2374, %v2390
    %2393 = vst [vmem:[#allocation2] sm:$0x30] %v2391
    %v2395 = vrot.slane %v2392, 2
    %2397 = vst [vmem:[#allocation2 + $0x18] sm:$0xc] %v2395
    %v2399 = vrot.slane %v2391, 4
    %v2400 = vrot.slane %v2392, 4
    %2403 = vmatpush.msra.mxu0 %v764
    %2404 = vmatpush.msra.mxu0 %v756
    %2405 = vmatpush.msra.mxu0 %v748
    %2406 = vmatpush.msra.mxu0 %v740
    %2407 = vmatpush.msra.mxu0 %v732
    %2408 = vmatpush.msra.mxu0 %v724
    %2409 = vmatpush.msra.mxu0 %v716
    %2410 = vmatpush.msra.mxu0 %v708
    %2411 = vmatpush.msra.mxu0 %v700
    %2412 = vmatpush.msra.mxu0 %v692
    %2413 = vmatpush.msra.mxu0 %v684
    %2414 = vmatpush.msra.mxu0 %v676
    %2415 = vmatpush.msra.mxu0 %v668
    %2416 = vmatpush.msra.mxu0 %v660
    %2417 = vmatpush.msra.mxu0 %v652
    %2418 = vmatpush.msra.mxu0 %v644
    %2419 = vmatmul.f32.gmra.mxu0 %v2399
    %v2420 = vpop.f32.mrf.mxu0
    %v2421 = vadd.f32 0.0, %v2420
    %2422 = vdwg.mxu0
    %2423 = vmatpush.msra.mxu0 %v892
    %2424 = vmatpush.msra.mxu0 %v884
    %2425 = vmatpush.msra.mxu0 %v876
    %2426 = vmatpush.msra.mxu0 %v868
    %2427 = vmatpush.msra.mxu0 %v860
    %2428 = vmatpush.msra.mxu0 %v852
    %2429 = vmatpush.msra.mxu0 %v844
    %2430 = vmatpush.msra.mxu0 %v836
    %2431 = vmatpush.msra.mxu0 %v828
    %2432 = vmatpush.msra.mxu0 %v820
    %2433 = vmatpush.msra.mxu0 %v812
    %2434 = vmatpush.msra.mxu0 %v804
    %2435 = vmatpush.msra.mxu0 %v796
    %2436 = vmatpush.msra.mxu0 %v788
    %2437 = vmatpush.msra.mxu0 %v780
    %2438 = vmatpush.msra.mxu0 %v772
    %2439 = vmatmul.f32.gmra.mxu0 %v2400
    %v2440 = vpop.f32.mrf.mxu0
    %v2441 = vadd.f32 %v2421, %v2440
    %2442 = vdwg.mxu0
    %2443 = vmatpush.msra.mxu0 %v765
    %2444 = vmatpush.msra.mxu0 %v757
    %2445 = vmatpush.msra.mxu0 %v749
    %2446 = vmatpush.msra.mxu0 %v741
    %2447 = vmatpush.msra.mxu0 %v733
    %2448 = vmatpush.msra.mxu0 %v725
    %2449 = vmatpush.msra.mxu0 %v717
    %2450 = vmatpush.msra.mxu0 %v709
    %2451 = vmatpush.msra.mxu0 %v701
    %2452 = vmatpush.msra.mxu0 %v693
    %2453 = vmatpush.msra.mxu0 %v685
    %2454 = vmatpush.msra.mxu0 %v677
    %2455 = vmatpush.msra.mxu0 %v669
    %2456 = vmatpush.msra.mxu0 %v661
    %2457 = vmatpush.msra.mxu0 %v653
    %2458 = vmatpush.msra.mxu0 %v645
    %2459 = vmatmul.f32.gmra.mxu0 %v2399
    %v2460 = vpop.f32.mrf.mxu0
    %v2461 = vadd.f32 0.0, %v2460
    %2462 = vdwg.mxu0
    %2463 = vmatpush.msra.mxu0 %v893
    %2464 = vmatpush.msra.mxu0 %v885
    %2465 = vmatpush.msra.mxu0 %v877
    %2466 = vmatpush.msra.mxu0 %v869
    %2467 = vmatpush.msra.mxu0 %v861
    %2468 = vmatpush.msra.mxu0 %v853
    %2469 = vmatpush.msra.mxu0 %v845
    %2470 = vmatpush.msra.mxu0 %v837
    %2471 = vmatpush.msra.mxu0 %v829
    %2472 = vmatpush.msra.mxu0 %v821
    %2473 = vmatpush.msra.mxu0 %v813
    %2474 = vmatpush.msra.mxu0 %v805
    %2475 = vmatpush.msra.mxu0 %v797
    %2476 = vmatpush.msra.mxu0 %v789
    %2477 = vmatpush.msra.mxu0 %v781
    %2478 = vmatpush.msra.mxu0 %v773
    %2479 = vmatmul.f32.gmra.mxu0 %v2400
    %v2480 = vpop.f32.mrf.mxu0
    %v2481 = vadd.f32 %v2461, %v2480
    %2482 = vdwg.mxu0
    %2483 = vmatpush.msra.mxu0 %v766
    %2484 = vmatpush.msra.mxu0 %v758
    %2485 = vmatpush.msra.mxu0 %v750
    %2486 = vmatpush.msra.mxu0 %v742
    %2487 = vmatpush.msra.mxu0 %v734
    %2488 = vmatpush.msra.mxu0 %v726
    %2489 = vmatpush.msra.mxu0 %v718
    %2490 = vmatpush.msra.mxu0 %v710
    %2491 = vmatpush.msra.mxu0 %v702
    %2492 = vmatpush.msra.mxu0 %v694
    %2493 = vmatpush.msra.mxu0 %v686
    %2494 = vmatpush.msra.mxu0 %v678
    %2495 = vmatpush.msra.mxu0 %v670
    %2496 = vmatpush.msra.mxu0 %v662
    %2497 = vmatpush.msra.mxu0 %v654
    %2498 = vmatpush.msra.mxu0 %v646
    %2499 = vmatmul.f32.gmra.mxu0 %v2399
    %v2500 = vpop.f32.mrf.mxu0
    %v2501 = vadd.f32 0.0, %v2500
    %2502 = vdwg.mxu0
    %2503 = vmatpush.msra.mxu0 %v894
    %2504 = vmatpush.msra.mxu0 %v886
    %2505 = vmatpush.msra.mxu0 %v878
    %2506 = vmatpush.msra.mxu0 %v870
    %2507 = vmatpush.msra.mxu0 %v862
    %2508 = vmatpush.msra.mxu0 %v854
    %2509 = vmatpush.msra.mxu0 %v846
    %2510 = vmatpush.msra.mxu0 %v838
    %2511 = vmatpush.msra.mxu0 %v830
    %2512 = vmatpush.msra.mxu0 %v822
    %2513 = vmatpush.msra.mxu0 %v814
    %2514 = vmatpush.msra.mxu0 %v806
    %2515 = vmatpush.msra.mxu0 %v798
    %2516 = vmatpush.msra.mxu0 %v790
    %2517 = vmatpush.msra.mxu0 %v782
    %2518 = vmatpush.msra.mxu0 %v774
    %2519 = vmatmul.f32.gmra.mxu0 %v2400
    %v2520 = vpop.f32.mrf.mxu0
    %v2521 = vadd.f32 %v2501, %v2520
    %2522 = vdwg.mxu0
    %2523 = vmatpush.msra.mxu0 %v767
    %2524 = vmatpush.msra.mxu0 %v759
    %2525 = vmatpush.msra.mxu0 %v751
    %2526 = vmatpush.msra.mxu0 %v743
    %2527 = vmatpush.msra.mxu0 %v735
    %2528 = vmatpush.msra.mxu0 %v727
    %2529 = vmatpush.msra.mxu0 %v719
    %2530 = vmatpush.msra.mxu0 %v711
    %2531 = vmatpush.msra.mxu0 %v703
    %2532 = vmatpush.msra.mxu0 %v695
    %2533 = vmatpush.msra.mxu0 %v687
    %2534 = vmatpush.msra.mxu0 %v679
    %2535 = vmatpush.msra.mxu0 %v671
    %2536 = vmatpush.msra.mxu0 %v663
    %2537 = vmatpush.msra.mxu0 %v655
    %2538 = vmatpush.msra.mxu0 %v647
    %2539 = vmatmul.f32.gmra.mxu0 %v2399
    %v2540 = vpop.f32.mrf.mxu0
    %v2541 = vadd.f32 0.0, %v2540
    %2542 = vdwg.mxu0
    %2543 = vmatpush.msra.mxu0 %v895
    %2544 = vmatpush.msra.mxu0 %v887
    %2545 = vmatpush.msra.mxu0 %v879
    %2546 = vmatpush.msra.mxu0 %v871
    %2547 = vmatpush.msra.mxu0 %v863
    %2548 = vmatpush.msra.mxu0 %v855
    %2549 = vmatpush.msra.mxu0 %v847
    %2550 = vmatpush.msra.mxu0 %v839
    %2551 = vmatpush.msra.mxu0 %v831
    %2552 = vmatpush.msra.mxu0 %v823
    %2553 = vmatpush.msra.mxu0 %v815
    %2554 = vmatpush.msra.mxu0 %v807
    %2555 = vmatpush.msra.mxu0 %v799
    %2556 = vmatpush.msra.mxu0 %v791
    %2557 = vmatpush.msra.mxu0 %v783
    %2558 = vmatpush.msra.mxu0 %v775
    %2559 = vmatmul.f32.gmra.mxu0 %v2400
    %v2560 = vpop.f32.mrf.mxu0
    %v2561 = vadd.f32 %v2541, %v2560
    %2562 = vdwg.mxu0
    %2563 = vmatpush.msra.mxu0 %v768
    %2564 = vmatpush.msra.mxu0 %v760
    %2565 = vmatpush.msra.mxu0 %v752
    %2566 = vmatpush.msra.mxu0 %v744
    %2567 = vmatpush.msra.mxu0 %v736
    %2568 = vmatpush.msra.mxu0 %v728
    %2569 = vmatpush.msra.mxu0 %v720
    %2570 = vmatpush.msra.mxu0 %v712
    %2571 = vmatpush.msra.mxu0 %v704
    %2572 = vmatpush.msra.mxu0 %v696
    %2573 = vmatpush.msra.mxu0 %v688
    %2574 = vmatpush.msra.mxu0 %v680
    %2575 = vmatpush.msra.mxu0 %v672
    %2576 = vmatpush.msra.mxu0 %v664
    %2577 = vmatpush.msra.mxu0 %v656
    %2578 = vmatpush.msra.mxu0 %v648
    %2579 = vmatmul.f32.gmra.mxu0 %v2399
    %v2580 = vpop.f32.mrf.mxu0
    %v2581 = vadd.f32 0.0, %v2580
    %2582 = vdwg.mxu0
    %2583 = vmatpush.msra.mxu0 %v896
    %2584 = vmatpush.msra.mxu0 %v888
    %2585 = vmatpush.msra.mxu0 %v880
    %2586 = vmatpush.msra.mxu0 %v872
    %2587 = vmatpush.msra.mxu0 %v864
    %2588 = vmatpush.msra.mxu0 %v856
    %2589 = vmatpush.msra.mxu0 %v848
    %2590 = vmatpush.msra.mxu0 %v840
    %2591 = vmatpush.msra.mxu0 %v832
    %2592 = vmatpush.msra.mxu0 %v824
    %2593 = vmatpush.msra.mxu0 %v816
    %2594 = vmatpush.msra.mxu0 %v808
    %2595 = vmatpush.msra.mxu0 %v800
    %2596 = vmatpush.msra.mxu0 %v792
    %2597 = vmatpush.msra.mxu0 %v784
    %2598 = vmatpush.msra.mxu0 %v776
    %2599 = vmatmul.f32.gmra.mxu0 %v2400
    %v2600 = vpop.f32.mrf.mxu0
    %v2601 = vadd.f32 %v2581, %v2600
    %2602 = vdwg.mxu0
    %2603 = vmatpush.msra.mxu0 %v769
    %2604 = vmatpush.msra.mxu0 %v761
    %2605 = vmatpush.msra.mxu0 %v753
    %2606 = vmatpush.msra.mxu0 %v745
    %2607 = vmatpush.msra.mxu0 %v737
    %2608 = vmatpush.msra.mxu0 %v729
    %2609 = vmatpush.msra.mxu0 %v721
    %2610 = vmatpush.msra.mxu0 %v713
    %2611 = vmatpush.msra.mxu0 %v705
    %2612 = vmatpush.msra.mxu0 %v697
    %2613 = vmatpush.msra.mxu0 %v689
    %2614 = vmatpush.msra.mxu0 %v681
    %2615 = vmatpush.msra.mxu0 %v673
    %2616 = vmatpush.msra.mxu0 %v665
    %2617 = vmatpush.msra.mxu0 %v657
    %2618 = vmatpush.msra.mxu0 %v649
    %2619 = vmatmul.f32.gmra.mxu0 %v2399
    %v2620 = vpop.f32.mrf.mxu0
    %v2621 = vadd.f32 0.0, %v2620
    %2622 = vdwg.mxu0
    %2623 = vmatpush.msra.mxu0 %v897
    %2624 = vmatpush.msra.mxu0 %v889
    %2625 = vmatpush.msra.mxu0 %v881
    %2626 = vmatpush.msra.mxu0 %v873
    %2627 = vmatpush.msra.mxu0 %v865
    %2628 = vmatpush.msra.mxu0 %v857
    %2629 = vmatpush.msra.mxu0 %v849
    %2630 = vmatpush.msra.mxu0 %v841
    %2631 = vmatpush.msra.mxu0 %v833
    %2632 = vmatpush.msra.mxu0 %v825
    %2633 = vmatpush.msra.mxu0 %v817
    %2634 = vmatpush.msra.mxu0 %v809
    %2635 = vmatpush.msra.mxu0 %v801
    %2636 = vmatpush.msra.mxu0 %v793
    %2637 = vmatpush.msra.mxu0 %v785
    %2638 = vmatpush.msra.mxu0 %v777
    %2639 = vmatmul.f32.gmra.mxu0 %v2400
    %v2640 = vpop.f32.mrf.mxu0
    %v2641 = vadd.f32 %v2621, %v2640
    %2642 = vdwg.mxu0
    %2643 = vmatpush.msra.mxu0 %v770
    %2644 = vmatpush.msra.mxu0 %v762
    %2645 = vmatpush.msra.mxu0 %v754
    %2646 = vmatpush.msra.mxu0 %v746
    %2647 = vmatpush.msra.mxu0 %v738
    %2648 = vmatpush.msra.mxu0 %v730
    %2649 = vmatpush.msra.mxu0 %v722
    %2650 = vmatpush.msra.mxu0 %v714
    %2651 = vmatpush.msra.mxu0 %v706
    %2652 = vmatpush.msra.mxu0 %v698
    %2653 = vmatpush.msra.mxu0 %v690
    %2654 = vmatpush.msra.mxu0 %v682
    %2655 = vmatpush.msra.mxu0 %v674
    %2656 = vmatpush.msra.mxu0 %v666
    %2657 = vmatpush.msra.mxu0 %v658
    %2658 = vmatpush.msra.mxu0 %v650
    %2659 = vmatmul.f32.gmra.mxu0 %v2399
    %v2660 = vpop.f32.mrf.mxu0
    %v2661 = vadd.f32 0.0, %v2660
    %2662 = vdwg.mxu0
    %2663 = vmatpush.msra.mxu0 %v898
    %2664 = vmatpush.msra.mxu0 %v890
    %2665 = vmatpush.msra.mxu0 %v882
    %2666 = vmatpush.msra.mxu0 %v874
    %2667 = vmatpush.msra.mxu0 %v866
    %2668 = vmatpush.msra.mxu0 %v858
    %2669 = vmatpush.msra.mxu0 %v850
    %2670 = vmatpush.msra.mxu0 %v842
    %2671 = vmatpush.msra.mxu0 %v834
    %2672 = vmatpush.msra.mxu0 %v826
    %2673 = vmatpush.msra.mxu0 %v818
    %2674 = vmatpush.msra.mxu0 %v810
    %2675 = vmatpush.msra.mxu0 %v802
    %2676 = vmatpush.msra.mxu0 %v794
    %2677 = vmatpush.msra.mxu0 %v786
    %2678 = vmatpush.msra.mxu0 %v778
    %2679 = vmatmul.f32.gmra.mxu0 %v2400
    %v2680 = vpop.f32.mrf.mxu0
    %v2681 = vadd.f32 %v2661, %v2680
    %2682 = vdwg.mxu0
    %2683 = vmatpush.msra.mxu0 %v771
    %2684 = vmatpush.msra.mxu0 %v763
    %2685 = vmatpush.msra.mxu0 %v755
    %2686 = vmatpush.msra.mxu0 %v747
    %2687 = vmatpush.msra.mxu0 %v739
    %2688 = vmatpush.msra.mxu0 %v731
    %2689 = vmatpush.msra.mxu0 %v723
    %2690 = vmatpush.msra.mxu0 %v715
    %2691 = vmatpush.msra.mxu0 %v707
    %2692 = vmatpush.msra.mxu0 %v699
    %2693 = vmatpush.msra.mxu0 %v691
    %2694 = vmatpush.msra.mxu0 %v683
    %2695 = vmatpush.msra.mxu0 %v675
    %2696 = vmatpush.msra.mxu0 %v667
    %2697 = vmatpush.msra.mxu0 %v659
    %2698 = vmatpush.msra.mxu0 %v651
    %2699 = vmatmul.f32.gmra.mxu0 %v2399
    %v2700 = vpop.f32.mrf.mxu0
    %v2701 = vadd.f32 0.0, %v2700
    %2702 = vdwg.mxu0
    %2703 = vmatpush.msra.mxu0 %v899
    %2704 = vmatpush.msra.mxu0 %v891
    %2705 = vmatpush.msra.mxu0 %v883
    %2706 = vmatpush.msra.mxu0 %v875
    %2707 = vmatpush.msra.mxu0 %v867
    %2708 = vmatpush.msra.mxu0 %v859
    %2709 = vmatpush.msra.mxu0 %v851
    %2710 = vmatpush.msra.mxu0 %v843
    %2711 = vmatpush.msra.mxu0 %v835
    %2712 = vmatpush.msra.mxu0 %v827
    %2713 = vmatpush.msra.mxu0 %v819
    %2714 = vmatpush.msra.mxu0 %v811
    %2715 = vmatpush.msra.mxu0 %v803
    %2716 = vmatpush.msra.mxu0 %v795
    %2717 = vmatpush.msra.mxu0 %v787
    %2718 = vmatpush.msra.mxu0 %v779
    %2719 = vmatmul.f32.gmra.mxu0 %v2400
    %v2720 = vpop.f32.mrf.mxu0
    %v2721 = vadd.f32 %v2701, %v2720
    %2722 = vdwg.mxu0
    %v2731 = vrot.slane %v2441, 2
    %v2732 = vrot.slane %v2481, 2
    %v2733 = vrot.slane %v2521, 2
    %v2734 = vrot.slane %v2561, 2
    %v2735 = vrot.slane %v2601, 2
    %v2736 = vrot.slane %v2641, 2
    %v2737 = vrot.slane %v2681, 2
    %v2738 = vrot.slane %v2721, 2
    %v2747 = vadd.f32 %v1407, %v2731
    %v2748 = vadd.f32 %v1408, %v2732
    %v2749 = vadd.f32 %v1409, %v2733
    %v2750 = vadd.f32 %v1410, %v2734
    %v2751 = vadd.f32 %v1411, %v2735
    %v2752 = vadd.f32 %v1412, %v2736
    %v2753 = vadd.f32 %v1413, %v2737
    %v2754 = vadd.f32 %v1414, %v2738
    %v2755 = vxor.u32 %v2747, 2147483648
    %v2756 = vxor.u32 %v2748, 2147483648
    %v2757 = vxor.u32 %v2749, 2147483648
    %v2758 = vxor.u32 %v2750, 2147483648
    %v2759 = vxor.u32 %v2751, 2147483648
    %v2760 = vxor.u32 %v2752, 2147483648
    %v2761 = vmul.f32 %v2755, 1.442695
    %v2762 = vpow.pop %v2761
    %v2763 = vmul.f32 %v2756, 1.442695
    %v2764 = vpow.pop %v2763
    %v2765 = vmul.f32 %v2757, 1.442695
    %v2766 = vpow.pop %v2765
    %v2767 = vmul.f32 %v2758, 1.442695
    %v2768 = vpow.pop %v2767
    %v2769 = vmul.f32 %v2759, 1.442695
    %v2770 = vpow.pop %v2769
    %v2771 = vmul.f32 %v2760, 1.442695
    %v2772 = vpow.pop %v2771
    %v2773 = vadd.f32 %v2762, 1.0
    %v2774 = vadd.f32 %v2764, 1.0
    %v2775 = vadd.f32 %v2766, 1.0
    %v2776 = vadd.f32 %v2768, 1.0
    %v2777 = vadd.f32 %v2770, 1.0
    %v2778 = vadd.f32 %v2772, 1.0
    %v2779 = vrcp.pop %v2773
    %v2780 = vmul.f32 %v2773, %v2779
    %v2781 = vsub.f32 1.0, %v2780
    %v2782 = vmul.f32 %v2779, %v2781
    %v2783 = vadd.f32 %v2779, %v2782
    %vm2784 = vweird.f32 %v2773
    %vm2785 = vweird.f32 %v2779
    %vm2786 = vmor %vm2784, %vm2785
    %v2787 = vsel %vm2786, %v2779, %v2783
    %v2788 = vand.u32 2147483647, %v2773
    %vm2789 = vcmp.eq.f32.partialorder %v2788, 8.507059e+37
    %v2790 = vand.u32 %v2773, 2147483648
    %v2791 = vor.u32 1.1754944e-38, %v2790
    %v2792 = vsel %vm2789, %v2791, %v2787
    %v2793 = vmul.f32 1.0, %v2792
    %v2794 = vrcp.pop %v2774
    %v2795 = vmul.f32 %v2774, %v2794
    %v2796 = vsub.f32 1.0, %v2795
    %v2797 = vmul.f32 %v2794, %v2796
    %v2798 = vadd.f32 %v2794, %v2797
    %vm2799 = vweird.f32 %v2774
    %vm2800 = vweird.f32 %v2794
    %vm2801 = vmor %vm2799, %vm2800
    %v2802 = vsel %vm2801, %v2794, %v2798
    %v2803 = vand.u32 2147483647, %v2774
    %vm2804 = vcmp.eq.f32.partialorder %v2803, 8.507059e+37
    %v2805 = vand.u32 %v2774, 2147483648
    %v2806 = vor.u32 1.1754944e-38, %v2805
    %v2807 = vsel %vm2804, %v2806, %v2802
    %v2808 = vmul.f32 1.0, %v2807
    %v2809 = vrcp.pop %v2775
    %v2810 = vmul.f32 %v2775, %v2809
    %v2811 = vsub.f32 1.0, %v2810
    %v2812 = vmul.f32 %v2809, %v2811
    %v2813 = vadd.f32 %v2809, %v2812
    %vm2814 = vweird.f32 %v2775
    %vm2815 = vweird.f32 %v2809
    %vm2816 = vmor %vm2814, %vm2815
    %v2817 = vsel %vm2816, %v2809, %v2813
    %v2818 = vand.u32 2147483647, %v2775
    %vm2819 = vcmp.eq.f32.partialorder %v2818, 8.507059e+37
    %v2820 = vand.u32 %v2775, 2147483648
    %v2821 = vor.u32 1.1754944e-38, %v2820
    %v2822 = vsel %vm2819, %v2821, %v2817
    %v2823 = vmul.f32 1.0, %v2822
    %v2824 = vrcp.pop %v2776
    %v2825 = vmul.f32 %v2776, %v2824
    %v2826 = vsub.f32 1.0, %v2825
    %v2827 = vmul.f32 %v2824, %v2826
    %v2828 = vadd.f32 %v2824, %v2827
    %vm2829 = vweird.f32 %v2776
    %vm2830 = vweird.f32 %v2824
    %vm2831 = vmor %vm2829, %vm2830
    %v2832 = vsel %vm2831, %v2824, %v2828
    %v2833 = vand.u32 2147483647, %v2776
    %vm2834 = vcmp.eq.f32.partialorder %v2833, 8.507059e+37
    %v2835 = vand.u32 %v2776, 2147483648
    %v2836 = vor.u32 1.1754944e-38, %v2835
    %v2837 = vsel %vm2834, %v2836, %v2832
    %v2838 = vmul.f32 1.0, %v2837
    %v2839 = vrcp.pop %v2777
    %v2840 = vmul.f32 %v2777, %v2839
    %v2841 = vsub.f32 1.0, %v2840
    %v2842 = vmul.f32 %v2839, %v2841
    %v2843 = vadd.f32 %v2839, %v2842
    %vm2844 = vweird.f32 %v2777
    %vm2845 = vweird.f32 %v2839
    %vm2846 = vmor %vm2844, %vm2845
    %v2847 = vsel %vm2846, %v2839, %v2843
    %v2848 = vand.u32 2147483647, %v2777
    %vm2849 = vcmp.eq.f32.partialorder %v2848, 8.507059e+37
    %v2850 = vand.u32 %v2777, 2147483648
    %v2851 = vor.u32 1.1754944e-38, %v2850
    %v2852 = vsel %vm2849, %v2851, %v2847
    %v2853 = vmul.f32 1.0, %v2852
    %v2854 = vrcp.pop %v2778
    %v2855 = vmul.f32 %v2778, %v2854
    %v2856 = vsub.f32 1.0, %v2855
    %v2857 = vmul.f32 %v2854, %v2856
    %v2858 = vadd.f32 %v2854, %v2857
    %vm2859 = vweird.f32 %v2778
    %vm2860 = vweird.f32 %v2854
    %vm2861 = vmor %vm2859, %vm2860
    %v2862 = vsel %vm2861, %v2854, %v2858
    %v2863 = vand.u32 2147483647, %v2778
    %vm2864 = vcmp.eq.f32.partialorder %v2863, 8.507059e+37
    %v2865 = vand.u32 %v2778, 2147483648
    %v2866 = vor.u32 1.1754944e-38, %v2865
    %v2867 = vsel %vm2864, %v2866, %v2862
    %v2868 = vmul.f32 1.0, %v2867
    %v2869 = vtanh.pop %v2753
    %v2870 = vtanh.pop %v2754
    %v2873 = vrot.slane %v2387, 6
    %v2874 = vrot.slane %v2388, 6
    %v2877 = vmul.f32 %v2823, %v2873
    %v2878 = vmul.f32 %v2838, %v2874
    %v2879 = vmul.f32 %v2793, %v2869
    %v2880 = vmul.f32 %v2808, %v2870
    %v2881 = vadd.f32 %v2877, %v2879
    %v2882 = vadd.f32 %v2878, %v2880
    %v2883 = vtanh.pop %v2881
    %v2884 = vtanh.pop %v2882
    %v2885 = vmul.f32 %v2853, %v2883
    %v2886 = vmul.f32 %v2868, %v2884
    %2887 = vst [vmem:[#allocation2] sm:$0xc0] %v2885
    %v2889 = vrot.slane %v2886, 6
    %2891 = vst [vmem:[#allocation2 + $0x18] sm:$0x3] %v2889
    %v2900 = vrot.slane %v478, 6
    %v2901 = vrot.slane %v501, 6
    %v2902 = vrot.slane %v524, 6
    %v2903 = vrot.slane %v547, 6
    %v2904 = vrot.slane %v570, 6
    %v2905 = vrot.slane %v593, 6
    %v2906 = vrot.slane %v616, 6
    %v2907 = vrot.slane %v639, 6
    %v2916 = vadd.f32 %v297, %v2900
    %v2917 = vadd.f32 %v320, %v2901
    %v2918 = vadd.f32 %v343, %v2902
    %v2919 = vadd.f32 %v366, %v2903
    %v2920 = vadd.f32 %v389, %v2904
    %v2921 = vadd.f32 %v412, %v2905
    %v2922 = vadd.f32 %v435, %v2906
    %v2923 = vadd.f32 %v458, %v2907
    %v2925 = vrot.slane %v2885, 6
    %2927 = vmatpush.msra.mxu0 %v764
    %2928 = vmatpush.msra.mxu0 %v756
    %2929 = vmatpush.msra.mxu0 %v748
    %2930 = vmatpush.msra.mxu0 %v740
    %2931 = vmatpush.msra.mxu0 %v732
    %2932 = vmatpush.msra.mxu0 %v724
    %2933 = vmatpush.msra.mxu0 %v716
    %2934 = vmatpush.msra.mxu0 %v708
    %2935 = vmatpush.msra.mxu0 %v700
    %2936 = vmatpush.msra.mxu0 %v692
    %2937 = vmatpush.msra.mxu0 %v684
    %2938 = vmatpush.msra.mxu0 %v676
    %2939 = vmatpush.msra.mxu0 %v668
    %2940 = vmatpush.msra.mxu0 %v660
    %2941 = vmatpush.msra.mxu0 %v652
    %2942 = vmatpush.msra.mxu0 %v644
    %2943 = vmatmul.f32.gmra.mxu0 %v2925
    %v2944 = vpop.f32.mrf.mxu0
    %v2945 = vadd.f32 0.0, %v2944
    %2946 = vdwg.mxu0
    %2947 = vmatpush.msra.mxu0 %v892
    %2948 = vmatpush.msra.mxu0 %v884
    %2949 = vmatpush.msra.mxu0 %v876
    %2950 = vmatpush.msra.mxu0 %v868
    %2951 = vmatpush.msra.mxu0 %v860
    %2952 = vmatpush.msra.mxu0 %v852
    %2953 = vmatpush.msra.mxu0 %v844
    %2954 = vmatpush.msra.mxu0 %v836
    %2955 = vmatpush.msra.mxu0 %v828
    %2956 = vmatpush.msra.mxu0 %v820
    %2957 = vmatpush.msra.mxu0 %v812
    %2958 = vmatpush.msra.mxu0 %v804
    %2959 = vmatpush.msra.mxu0 %v796
    %2960 = vmatpush.msra.mxu0 %v788
    %2961 = vmatpush.msra.mxu0 %v780
    %2962 = vmatpush.msra.mxu0 %v772
    %2963 = vmatmul.f32.gmra.mxu0 %v2889
    %v2964 = vpop.f32.mrf.mxu0
    %v2965 = vadd.f32 %v2945, %v2964
    %2966 = vdwg.mxu0
    %2967 = vmatpush.msra.mxu0 %v765
    %2968 = vmatpush.msra.mxu0 %v757
    %2969 = vmatpush.msra.mxu0 %v749
    %2970 = vmatpush.msra.mxu0 %v741
    %2971 = vmatpush.msra.mxu0 %v733
    %2972 = vmatpush.msra.mxu0 %v725
    %2973 = vmatpush.msra.mxu0 %v717
    %2974 = vmatpush.msra.mxu0 %v709
    %2975 = vmatpush.msra.mxu0 %v701
    %2976 = vmatpush.msra.mxu0 %v693
    %2977 = vmatpush.msra.mxu0 %v685
    %2978 = vmatpush.msra.mxu0 %v677
    %2979 = vmatpush.msra.mxu0 %v669
    %2980 = vmatpush.msra.mxu0 %v661
    %2981 = vmatpush.msra.mxu0 %v653
    %2982 = vmatpush.msra.mxu0 %v645
    %2983 = vmatmul.f32.gmra.mxu0 %v2925
    %v2984 = vpop.f32.mrf.mxu0
    %v2985 = vadd.f32 0.0, %v2984
    %2986 = vdwg.mxu0
    %2987 = vmatpush.msra.mxu0 %v893
    %2988 = vmatpush.msra.mxu0 %v885
    %2989 = vmatpush.msra.mxu0 %v877
    %2990 = vmatpush.msra.mxu0 %v869
    %2991 = vmatpush.msra.mxu0 %v861
    %2992 = vmatpush.msra.mxu0 %v853
    %2993 = vmatpush.msra.mxu0 %v845
    %2994 = vmatpush.msra.mxu0 %v837
    %2995 = vmatpush.msra.mxu0 %v829
    %2996 = vmatpush.msra.mxu0 %v821
    %2997 = vmatpush.msra.mxu0 %v813
    %2998 = vmatpush.msra.mxu0 %v805
    %2999 = vmatpush.msra.mxu0 %v797
    %3000 = vmatpush.msra.mxu0 %v789
    %3001 = vmatpush.msra.mxu0 %v781
    %3002 = vmatpush.msra.mxu0 %v773
    %3003 = vmatmul.f32.gmra.mxu0 %v2889
    %v3004 = vpop.f32.mrf.mxu0
    %v3005 = vadd.f32 %v2985, %v3004
    %3006 = vdwg.mxu0
    %3007 = vmatpush.msra.mxu0 %v766
    %3008 = vmatpush.msra.mxu0 %v758
    %3009 = vmatpush.msra.mxu0 %v750
    %3010 = vmatpush.msra.mxu0 %v742
    %3011 = vmatpush.msra.mxu0 %v734
    %3012 = vmatpush.msra.mxu0 %v726
    %3013 = vmatpush.msra.mxu0 %v718
    %3014 = vmatpush.msra.mxu0 %v710
    %3015 = vmatpush.msra.mxu0 %v702
    %3016 = vmatpush.msra.mxu0 %v694
    %3017 = vmatpush.msra.mxu0 %v686
    %3018 = vmatpush.msra.mxu0 %v678
    %3019 = vmatpush.msra.mxu0 %v670
    %3020 = vmatpush.msra.mxu0 %v662
    %3021 = vmatpush.msra.mxu0 %v654
    %3022 = vmatpush.msra.mxu0 %v646
    %3023 = vmatmul.f32.gmra.mxu0 %v2925
    %v3024 = vpop.f32.mrf.mxu0
    %v3025 = vadd.f32 0.0, %v3024
    %3026 = vdwg.mxu0
    %3027 = vmatpush.msra.mxu0 %v894
    %3028 = vmatpush.msra.mxu0 %v886
    %3029 = vmatpush.msra.mxu0 %v878
    %3030 = vmatpush.msra.mxu0 %v870
    %3031 = vmatpush.msra.mxu0 %v862
    %3032 = vmatpush.msra.mxu0 %v854
    %3033 = vmatpush.msra.mxu0 %v846
    %3034 = vmatpush.msra.mxu0 %v838
    %3035 = vmatpush.msra.mxu0 %v830
    %3036 = vmatpush.msra.mxu0 %v822
    %3037 = vmatpush.msra.mxu0 %v814
    %3038 = vmatpush.msra.mxu0 %v806
    %3039 = vmatpush.msra.mxu0 %v798
    %3040 = vmatpush.msra.mxu0 %v790
    %3041 = vmatpush.msra.mxu0 %v782
    %3042 = vmatpush.msra.mxu0 %v774
    %3043 = vmatmul.f32.gmra.mxu0 %v2889
    %v3044 = vpop.f32.mrf.mxu0
    %v3045 = vadd.f32 %v3025, %v3044
    %3046 = vdwg.mxu0
    %3047 = vmatpush.msra.mxu0 %v767
    %3048 = vmatpush.msra.mxu0 %v759
    %3049 = vmatpush.msra.mxu0 %v751
    %3050 = vmatpush.msra.mxu0 %v743
    %3051 = vmatpush.msra.mxu0 %v735
    %3052 = vmatpush.msra.mxu0 %v727
    %3053 = vmatpush.msra.mxu0 %v719
    %3054 = vmatpush.msra.mxu0 %v711
    %3055 = vmatpush.msra.mxu0 %v703
    %3056 = vmatpush.msra.mxu0 %v695
    %3057 = vmatpush.msra.mxu0 %v687
    %3058 = vmatpush.msra.mxu0 %v679
    %3059 = vmatpush.msra.mxu0 %v671
    %3060 = vmatpush.msra.mxu0 %v663
    %3061 = vmatpush.msra.mxu0 %v655
    %3062 = vmatpush.msra.mxu0 %v647
    %3063 = vmatmul.f32.gmra.mxu0 %v2925
    %v3064 = vpop.f32.mrf.mxu0
    %v3065 = vadd.f32 0.0, %v3064
    %3066 = vdwg.mxu0
    %3067 = vmatpush.msra.mxu0 %v895
    %3068 = vmatpush.msra.mxu0 %v887
    %3069 = vmatpush.msra.mxu0 %v879
    %3070 = vmatpush.msra.mxu0 %v871
    %3071 = vmatpush.msra.mxu0 %v863
    %3072 = vmatpush.msra.mxu0 %v855
    %3073 = vmatpush.msra.mxu0 %v847
    %3074 = vmatpush.msra.mxu0 %v839
    %3075 = vmatpush.msra.mxu0 %v831
    %3076 = vmatpush.msra.mxu0 %v823
    %3077 = vmatpush.msra.mxu0 %v815
    %3078 = vmatpush.msra.mxu0 %v807
    %3079 = vmatpush.msra.mxu0 %v799
    %3080 = vmatpush.msra.mxu0 %v791
    %3081 = vmatpush.msra.mxu0 %v783
    %3082 = vmatpush.msra.mxu0 %v775
    %3083 = vmatmul.f32.gmra.mxu0 %v2889
    %v3084 = vpop.f32.mrf.mxu0
    %v3085 = vadd.f32 %v3065, %v3084
    %3086 = vdwg.mxu0
    %3087 = vmatpush.msra.mxu0 %v768
    %3088 = vmatpush.msra.mxu0 %v760
    %3089 = vmatpush.msra.mxu0 %v752
    %3090 = vmatpush.msra.mxu0 %v744
    %3091 = vmatpush.msra.mxu0 %v736
    %3092 = vmatpush.msra.mxu0 %v728
    %3093 = vmatpush.msra.mxu0 %v720
    %3094 = vmatpush.msra.mxu0 %v712
    %3095 = vmatpush.msra.mxu0 %v704
    %3096 = vmatpush.msra.mxu0 %v696
    %3097 = vmatpush.msra.mxu0 %v688
    %3098 = vmatpush.msra.mxu0 %v680
    %3099 = vmatpush.msra.mxu0 %v672
    %3100 = vmatpush.msra.mxu0 %v664
    %3101 = vmatpush.msra.mxu0 %v656
    %3102 = vmatpush.msra.mxu0 %v648
    %3103 = vmatmul.f32.gmra.mxu0 %v2925
    %v3104 = vpop.f32.mrf.mxu0
    %v3105 = vadd.f32 0.0, %v3104
    %3106 = vdwg.mxu0
    %3107 = vmatpush.msra.mxu0 %v896
    %3108 = vmatpush.msra.mxu0 %v888
    %3109 = vmatpush.msra.mxu0 %v880
    %3110 = vmatpush.msra.mxu0 %v872
    %3111 = vmatpush.msra.mxu0 %v864
    %3112 = vmatpush.msra.mxu0 %v856
    %3113 = vmatpush.msra.mxu0 %v848
    %3114 = vmatpush.msra.mxu0 %v840
    %3115 = vmatpush.msra.mxu0 %v832
    %3116 = vmatpush.msra.mxu0 %v824
    %3117 = vmatpush.msra.mxu0 %v816
    %3118 = vmatpush.msra.mxu0 %v808
    %3119 = vmatpush.msra.mxu0 %v800
    %3120 = vmatpush.msra.mxu0 %v792
    %3121 = vmatpush.msra.mxu0 %v784
    %3122 = vmatpush.msra.mxu0 %v776
    %3123 = vmatmul.f32.gmra.mxu0 %v2889
    %v3124 = vpop.f32.mrf.mxu0
    %v3125 = vadd.f32 %v3105, %v3124
    %3126 = vdwg.mxu0
    %3127 = vmatpush.msra.mxu0 %v769
    %3128 = vmatpush.msra.mxu0 %v761
    %3129 = vmatpush.msra.mxu0 %v753
    %3130 = vmatpush.msra.mxu0 %v745
    %3131 = vmatpush.msra.mxu0 %v737
    %3132 = vmatpush.msra.mxu0 %v729
    %3133 = vmatpush.msra.mxu0 %v721
    %3134 = vmatpush.msra.mxu0 %v713
    %3135 = vmatpush.msra.mxu0 %v705
    %3136 = vmatpush.msra.mxu0 %v697
    %3137 = vmatpush.msra.mxu0 %v689
    %3138 = vmatpush.msra.mxu0 %v681
    %3139 = vmatpush.msra.mxu0 %v673
    %3140 = vmatpush.msra.mxu0 %v665
    %3141 = vmatpush.msra.mxu0 %v657
    %3142 = vmatpush.msra.mxu0 %v649
    %3143 = vmatmul.f32.gmra.mxu0 %v2925
    %v3144 = vpop.f32.mrf.mxu0
    %v3145 = vadd.f32 0.0, %v3144
    %3146 = vdwg.mxu0
    %3147 = vmatpush.msra.mxu0 %v897
    %3148 = vmatpush.msra.mxu0 %v889
    %3149 = vmatpush.msra.mxu0 %v881
    %3150 = vmatpush.msra.mxu0 %v873
    %3151 = vmatpush.msra.mxu0 %v865
    %3152 = vmatpush.msra.mxu0 %v857
    %3153 = vmatpush.msra.mxu0 %v849
    %3154 = vmatpush.msra.mxu0 %v841
    %3155 = vmatpush.msra.mxu0 %v833
    %3156 = vmatpush.msra.mxu0 %v825
    %3157 = vmatpush.msra.mxu0 %v817
    %3158 = vmatpush.msra.mxu0 %v809
    %3159 = vmatpush.msra.mxu0 %v801
    %3160 = vmatpush.msra.mxu0 %v793
    %3161 = vmatpush.msra.mxu0 %v785
    %3162 = vmatpush.msra.mxu0 %v777
    %3163 = vmatmul.f32.gmra.mxu0 %v2889
    %v3164 = vpop.f32.mrf.mxu0
    %v3165 = vadd.f32 %v3145, %v3164
    %3166 = vdwg.mxu0
    %3167 = vmatpush.msra.mxu0 %v770
    %3168 = vmatpush.msra.mxu0 %v762
    %3169 = vmatpush.msra.mxu0 %v754
    %3170 = vmatpush.msra.mxu0 %v746
    %3171 = vmatpush.msra.mxu0 %v738
    %3172 = vmatpush.msra.mxu0 %v730
    %3173 = vmatpush.msra.mxu0 %v722
    %3174 = vmatpush.msra.mxu0 %v714
    %3175 = vmatpush.msra.mxu0 %v706
    %3176 = vmatpush.msra.mxu0 %v698
    %3177 = vmatpush.msra.mxu0 %v690
    %3178 = vmatpush.msra.mxu0 %v682
    %3179 = vmatpush.msra.mxu0 %v674
    %3180 = vmatpush.msra.mxu0 %v666
    %3181 = vmatpush.msra.mxu0 %v658
    %3182 = vmatpush.msra.mxu0 %v650
    %3183 = vmatmul.f32.gmra.mxu0 %v2925
    %v3184 = vpop.f32.mrf.mxu0
    %v3185 = vadd.f32 0.0, %v3184
    %3186 = vdwg.mxu0
    %3187 = vmatpush.msra.mxu0 %v898
    %3188 = vmatpush.msra.mxu0 %v890
    %3189 = vmatpush.msra.mxu0 %v882
    %3190 = vmatpush.msra.mxu0 %v874
    %3191 = vmatpush.msra.mxu0 %v866
    %3192 = vmatpush.msra.mxu0 %v858
    %3193 = vmatpush.msra.mxu0 %v850
    %3194 = vmatpush.msra.mxu0 %v842
    %3195 = vmatpush.msra.mxu0 %v834
    %3196 = vmatpush.msra.mxu0 %v826
    %3197 = vmatpush.msra.mxu0 %v818
    %3198 = vmatpush.msra.mxu0 %v810
    %3199 = vmatpush.msra.mxu0 %v802
    %3200 = vmatpush.msra.mxu0 %v794
    %3201 = vmatpush.msra.mxu0 %v786
    %3202 = vmatpush.msra.mxu0 %v778
    %3203 = vmatmul.f32.gmra.mxu0 %v2889
    %v3204 = vpop.f32.mrf.mxu0
    %v3205 = vadd.f32 %v3185, %v3204
    %3206 = vdwg.mxu0
    %3207 = vmatpush.msra.mxu0 %v771
    %3208 = vmatpush.msra.mxu0 %v763
    %3209 = vmatpush.msra.mxu0 %v755
    %3210 = vmatpush.msra.mxu0 %v747
    %3211 = vmatpush.msra.mxu0 %v739
    %3212 = vmatpush.msra.mxu0 %v731
    %3213 = vmatpush.msra.mxu0 %v723
    %3214 = vmatpush.msra.mxu0 %v715
    %3215 = vmatpush.msra.mxu0 %v707
    %3216 = vmatpush.msra.mxu0 %v699
    %3217 = vmatpush.msra.mxu0 %v691
    %3218 = vmatpush.msra.mxu0 %v683
    %3219 = vmatpush.msra.mxu0 %v675
    %3220 = vmatpush.msra.mxu0 %v667
    %3221 = vmatpush.msra.mxu0 %v659
    %3222 = vmatpush.msra.mxu0 %v651
    %3223 = vmatmul.f32.gmra.mxu0 %v2925
    %v3224 = vpop.f32.mrf.mxu0
    %v3225 = vadd.f32 0.0, %v3224
    %3226 = vdwg.mxu0
    %3227 = vmatpush.msra.mxu0 %v899
    %3228 = vmatpush.msra.mxu0 %v891
    %3229 = vmatpush.msra.mxu0 %v883
    %3230 = vmatpush.msra.mxu0 %v875
    %3231 = vmatpush.msra.mxu0 %v867
    %3232 = vmatpush.msra.mxu0 %v859
    %3233 = vmatpush.msra.mxu0 %v851
    %3234 = vmatpush.msra.mxu0 %v843
    %3235 = vmatpush.msra.mxu0 %v835
    %3236 = vmatpush.msra.mxu0 %v827
    %3237 = vmatpush.msra.mxu0 %v819
    %3238 = vmatpush.msra.mxu0 %v811
    %3239 = vmatpush.msra.mxu0 %v803
    %3240 = vmatpush.msra.mxu0 %v795
    %3241 = vmatpush.msra.mxu0 %v787
    %3242 = vmatpush.msra.mxu0 %v779
    %3243 = vmatmul.f32.gmra.mxu0 %v2889
    %v3244 = vpop.f32.mrf.mxu0
    %v3245 = vadd.f32 %v3225, %v3244
    %3246 = vdwg.mxu0
    %v3247 = vadd.f32 %v2916, %v2965
    %v3248 = vadd.f32 %v2917, %v3005
    %v3249 = vadd.f32 %v2918, %v3045
    %v3250 = vadd.f32 %v2919, %v3085
    %v3251 = vadd.f32 %v2920, %v3125
    %v3252 = vadd.f32 %v2921, %v3165
    %v3253 = vadd.f32 %v2922, %v3205
    %v3254 = vadd.f32 %v2923, %v3245
    %v3255 = vxor.u32 %v3247, 2147483648
    %v3256 = vxor.u32 %v3248, 2147483648
    %v3257 = vxor.u32 %v3249, 2147483648
    %v3258 = vxor.u32 %v3250, 2147483648
    %v3259 = vxor.u32 %v3251, 2147483648
    %v3260 = vxor.u32 %v3252, 2147483648
    %v3261 = vmul.f32 %v3255, 1.442695
    %v3262 = vpow.pop %v3261
    %v3263 = vmul.f32 %v3256, 1.442695
    %v3264 = vpow.pop %v3263
    %v3265 = vmul.f32 %v3257, 1.442695
    %v3266 = vpow.pop %v3265
    %v3267 = vmul.f32 %v3258, 1.442695
    %v3268 = vpow.pop %v3267
    %v3269 = vmul.f32 %v3259, 1.442695
    %v3270 = vpow.pop %v3269
    %v3271 = vmul.f32 %v3260, 1.442695
    %v3272 = vpow.pop %v3271
    %v3273 = vadd.f32 %v3262, 1.0
    %v3274 = vadd.f32 %v3264, 1.0
    %v3275 = vadd.f32 %v3266, 1.0
    %v3276 = vadd.f32 %v3268, 1.0
    %v3277 = vadd.f32 %v3270, 1.0
    %v3278 = vadd.f32 %v3272, 1.0
    %v3279 = vrcp.pop %v3273
    %v3280 = vmul.f32 %v3273, %v3279
    %v3281 = vsub.f32 1.0, %v3280
    %v3282 = vmul.f32 %v3279, %v3281
    %v3283 = vadd.f32 %v3279, %v3282
    %vm3284 = vweird.f32 %v3273
    %vm3285 = vweird.f32 %v3279
    %vm3286 = vmor %vm3284, %vm3285
    %v3287 = vsel %vm3286, %v3279, %v3283
    %v3288 = vand.u32 2147483647, %v3273
    %vm3289 = vcmp.eq.f32.partialorder %v3288, 8.507059e+37
    %v3290 = vand.u32 %v3273, 2147483648
    %v3291 = vor.u32 1.1754944e-38, %v3290
    %v3292 = vsel %vm3289, %v3291, %v3287
    %v3293 = vmul.f32 1.0, %v3292
    %v3294 = vrcp.pop %v3274
    %v3295 = vmul.f32 %v3274, %v3294
    %v3296 = vsub.f32 1.0, %v3295
    %v3297 = vmul.f32 %v3294, %v3296
    %v3298 = vadd.f32 %v3294, %v3297
    %vm3299 = vweird.f32 %v3274
    %vm3300 = vweird.f32 %v3294
    %vm3301 = vmor %vm3299, %vm3300
    %v3302 = vsel %vm3301, %v3294, %v3298
    %v3303 = vand.u32 2147483647, %v3274
    %vm3304 = vcmp.eq.f32.partialorder %v3303, 8.507059e+37
    %v3305 = vand.u32 %v3274, 2147483648
    %v3306 = vor.u32 1.1754944e-38, %v3305
    %v3307 = vsel %vm3304, %v3306, %v3302
    %v3308 = vmul.f32 1.0, %v3307
    %v3309 = vrcp.pop %v3275
    %v3310 = vmul.f32 %v3275, %v3309
    %v3311 = vsub.f32 1.0, %v3310
    %v3312 = vmul.f32 %v3309, %v3311
    %v3313 = vadd.f32 %v3309, %v3312
    %vm3314 = vweird.f32 %v3275
    %vm3315 = vweird.f32 %v3309
    %vm3316 = vmor %vm3314, %vm3315
    %v3317 = vsel %vm3316, %v3309, %v3313
    %v3318 = vand.u32 2147483647, %v3275
    %vm3319 = vcmp.eq.f32.partialorder %v3318, 8.507059e+37
    %v3320 = vand.u32 %v3275, 2147483648
    %v3321 = vor.u32 1.1754944e-38, %v3320
    %v3322 = vsel %vm3319, %v3321, %v3317
    %v3323 = vmul.f32 1.0, %v3322
    %v3324 = vrcp.pop %v3276
    %v3325 = vmul.f32 %v3276, %v3324
    %v3326 = vsub.f32 1.0, %v3325
    %v3327 = vmul.f32 %v3324, %v3326
    %v3328 = vadd.f32 %v3324, %v3327
    %vm3329 = vweird.f32 %v3276
    %vm3330 = vweird.f32 %v3324
    %vm3331 = vmor %vm3329, %vm3330
    %v3332 = vsel %vm3331, %v3324, %v3328
    %v3333 = vand.u32 2147483647, %v3276
    %vm3334 = vcmp.eq.f32.partialorder %v3333, 8.507059e+37
    %v3335 = vand.u32 %v3276, 2147483648
    %v3336 = vor.u32 1.1754944e-38, %v3335
    %v3337 = vsel %vm3334, %v3336, %v3332
    %v3338 = vmul.f32 1.0, %v3337
    %v3339 = vrcp.pop %v3277
    %v3340 = vmul.f32 %v3277, %v3339
    %v3341 = vsub.f32 1.0, %v3340
    %v3342 = vmul.f32 %v3339, %v3341
    %v3343 = vadd.f32 %v3339, %v3342
    %vm3344 = vweird.f32 %v3277
    %vm3345 = vweird.f32 %v3339
    %vm3346 = vmor %vm3344, %vm3345
    %v3347 = vsel %vm3346, %v3339, %v3343
    %v3348 = vand.u32 2147483647, %v3277
    %vm3349 = vcmp.eq.f32.partialorder %v3348, 8.507059e+37
    %v3350 = vand.u32 %v3277, 2147483648
    %v3351 = vor.u32 1.1754944e-38, %v3350
    %v3352 = vsel %vm3349, %v3351, %v3347
    %v3353 = vmul.f32 1.0, %v3352
    %v3354 = vrcp.pop %v3278
    %v3355 = vmul.f32 %v3278, %v3354
    %v3356 = vsub.f32 1.0, %v3355
    %v3357 = vmul.f32 %v3354, %v3356
    %v3358 = vadd.f32 %v3354, %v3357
    %vm3359 = vweird.f32 %v3278
    %vm3360 = vweird.f32 %v3354
    %vm3361 = vmor %vm3359, %vm3360
    %v3362 = vsel %vm3361, %v3354, %v3358
    %v3363 = vand.u32 2147483647, %v3278
    %vm3364 = vcmp.eq.f32.partialorder %v3363, 8.507059e+37
    %v3365 = vand.u32 %v3278, 2147483648
    %v3366 = vor.u32 1.1754944e-38, %v3365
    %v3367 = vsel %vm3364, %v3366, %v3362
    %v3368 = vmul.f32 1.0, %v3367
    %v3369 = vtanh.pop %v3253
    %v3370 = vtanh.pop %v3254
    %v3373 = vrot.slane %v2881, 6
    %v3374 = vrot.slane %v2882, 6
    %v3377 = vmul.f32 %v3323, %v3373
    %v3378 = vmul.f32 %v3338, %v3374
    %v3379 = vmul.f32 %v3293, %v3369
    %v3380 = vmul.f32 %v3308, %v3370
    %v3381 = vadd.f32 %v3377, %v3379
    %v3382 = vadd.f32 %v3378, %v3380
    %v3383 = vtanh.pop %v3381
    %v3384 = vtanh.pop %v3382
    %v3385 = vmul.f32 %v3353, %v3383
    %v3386 = vmul.f32 %v3368, %v3384
    %3387 = vst [vmem:[#allocation2 + $0x10] sm:$0x3] %v3385
    %v3389 = vrot.slane %v3386, 2
    %3391 = vst [vmem:[#allocation2 + $0x8] sm:$0xc0] %v3389
    %v3392 = vrot.slane %v478, 2
    %v3393 = vrot.slane %v501, 2
    %v3394 = vrot.slane %v524, 2
    %v3395 = vrot.slane %v547, 2
    %v3396 = vrot.slane %v570, 2
    %v3397 = vrot.slane %v593, 2
    %v3398 = vrot.slane %v616, 2
    %v3399 = vrot.slane %v639, 2
    %v3408 = vadd.f32 %v297, %v3392
    %v3409 = vadd.f32 %v320, %v3393
    %v3410 = vadd.f32 %v343, %v3394
    %v3411 = vadd.f32 %v366, %v3395
    %v3412 = vadd.f32 %v389, %v3396
    %v3413 = vadd.f32 %v412, %v3397
    %v3414 = vadd.f32 %v435, %v3398
    %v3415 = vadd.f32 %v458, %v3399
    %3416 = vmatpush.msra.mxu0 %v764
    %3417 = vmatpush.msra.mxu0 %v756
    %3418 = vmatpush.msra.mxu0 %v748
    %3419 = vmatpush.msra.mxu0 %v740
    %3420 = vmatpush.msra.mxu0 %v732
    %3421 = vmatpush.msra.mxu0 %v724
    %3422 = vmatpush.msra.mxu0 %v716
    %3423 = vmatpush.msra.mxu0 %v708
    %3424 = vmatpush.msra.mxu0 %v700
    %3425 = vmatpush.msra.mxu0 %v692
    %3426 = vmatpush.msra.mxu0 %v684
    %3427 = vmatpush.msra.mxu0 %v676
    %3428 = vmatpush.msra.mxu0 %v668
    %3429 = vmatpush.msra.mxu0 %v660
    %3430 = vmatpush.msra.mxu0 %v652
    %3431 = vmatpush.msra.mxu0 %v644
    %3432 = vmatmul.f32.gmra.mxu0 %v3385
    %v3433 = vpop.f32.mrf.mxu0
    %v3434 = vadd.f32 0.0, %v3433
    %3435 = vdwg.mxu0
    %3436 = vmatpush.msra.mxu0 %v892
    %3437 = vmatpush.msra.mxu0 %v884
    %3438 = vmatpush.msra.mxu0 %v876
    %3439 = vmatpush.msra.mxu0 %v868
    %3440 = vmatpush.msra.mxu0 %v860
    %3441 = vmatpush.msra.mxu0 %v852
    %3442 = vmatpush.msra.mxu0 %v844
    %3443 = vmatpush.msra.mxu0 %v836
    %3444 = vmatpush.msra.mxu0 %v828
    %3445 = vmatpush.msra.mxu0 %v820
    %3446 = vmatpush.msra.mxu0 %v812
    %3447 = vmatpush.msra.mxu0 %v804
    %3448 = vmatpush.msra.mxu0 %v796
    %3449 = vmatpush.msra.mxu0 %v788
    %3450 = vmatpush.msra.mxu0 %v780
    %3451 = vmatpush.msra.mxu0 %v772
    %3452 = vmatmul.f32.gmra.mxu0 %v3386
    %v3453 = vpop.f32.mrf.mxu0
    %v3454 = vadd.f32 %v3434, %v3453
    %3455 = vdwg.mxu0
    %3456 = vmatpush.msra.mxu0 %v765
    %3457 = vmatpush.msra.mxu0 %v757
    %3458 = vmatpush.msra.mxu0 %v749
    %3459 = vmatpush.msra.mxu0 %v741
    %3460 = vmatpush.msra.mxu0 %v733
    %3461 = vmatpush.msra.mxu0 %v725
    %3462 = vmatpush.msra.mxu0 %v717
    %3463 = vmatpush.msra.mxu0 %v709
    %3464 = vmatpush.msra.mxu0 %v701
    %3465 = vmatpush.msra.mxu0 %v693
    %3466 = vmatpush.msra.mxu0 %v685
    %3467 = vmatpush.msra.mxu0 %v677
    %3468 = vmatpush.msra.mxu0 %v669
    %3469 = vmatpush.msra.mxu0 %v661
    %3470 = vmatpush.msra.mxu0 %v653
    %3471 = vmatpush.msra.mxu0 %v645
    %3472 = vmatmul.f32.gmra.mxu0 %v3385
    %v3473 = vpop.f32.mrf.mxu0
    %v3474 = vadd.f32 0.0, %v3473
    %3475 = vdwg.mxu0
    %3476 = vmatpush.msra.mxu0 %v893
    %3477 = vmatpush.msra.mxu0 %v885
    %3478 = vmatpush.msra.mxu0 %v877
    %3479 = vmatpush.msra.mxu0 %v869
    %3480 = vmatpush.msra.mxu0 %v861
    %3481 = vmatpush.msra.mxu0 %v853
    %3482 = vmatpush.msra.mxu0 %v845
    %3483 = vmatpush.msra.mxu0 %v837
    %3484 = vmatpush.msra.mxu0 %v829
    %3485 = vmatpush.msra.mxu0 %v821
    %3486 = vmatpush.msra.mxu0 %v813
    %3487 = vmatpush.msra.mxu0 %v805
    %3488 = vmatpush.msra.mxu0 %v797
    %3489 = vmatpush.msra.mxu0 %v789
    %3490 = vmatpush.msra.mxu0 %v781
    %3491 = vmatpush.msra.mxu0 %v773
    %3492 = vmatmul.f32.gmra.mxu0 %v3386
    %v3493 = vpop.f32.mrf.mxu0
    %v3494 = vadd.f32 %v3474, %v3493
    %3495 = vdwg.mxu0
    %3496 = vmatpush.msra.mxu0 %v766
    %3497 = vmatpush.msra.mxu0 %v758
    %3498 = vmatpush.msra.mxu0 %v750
    %3499 = vmatpush.msra.mxu0 %v742
    %3500 = vmatpush.msra.mxu0 %v734
    %3501 = vmatpush.msra.mxu0 %v726
    %3502 = vmatpush.msra.mxu0 %v718
    %3503 = vmatpush.msra.mxu0 %v710
    %3504 = vmatpush.msra.mxu0 %v702
    %3505 = vmatpush.msra.mxu0 %v694
    %3506 = vmatpush.msra.mxu0 %v686
    %3507 = vmatpush.msra.mxu0 %v678
    %3508 = vmatpush.msra.mxu0 %v670
    %3509 = vmatpush.msra.mxu0 %v662
    %3510 = vmatpush.msra.mxu0 %v654
    %3511 = vmatpush.msra.mxu0 %v646
    %3512 = vmatmul.f32.gmra.mxu0 %v3385
    %v3513 = vpop.f32.mrf.mxu0
    %v3514 = vadd.f32 0.0, %v3513
    %3515 = vdwg.mxu0
    %3516 = vmatpush.msra.mxu0 %v894
    %3517 = vmatpush.msra.mxu0 %v886
    %3518 = vmatpush.msra.mxu0 %v878
    %3519 = vmatpush.msra.mxu0 %v870
    %3520 = vmatpush.msra.mxu0 %v862
    %3521 = vmatpush.msra.mxu0 %v854
    %3522 = vmatpush.msra.mxu0 %v846
    %3523 = vmatpush.msra.mxu0 %v838
    %3524 = vmatpush.msra.mxu0 %v830
    %3525 = vmatpush.msra.mxu0 %v822
    %3526 = vmatpush.msra.mxu0 %v814
    %3527 = vmatpush.msra.mxu0 %v806
    %3528 = vmatpush.msra.mxu0 %v798
    %3529 = vmatpush.msra.mxu0 %v790
    %3530 = vmatpush.msra.mxu0 %v782
    %3531 = vmatpush.msra.mxu0 %v774
    %3532 = vmatmul.f32.gmra.mxu0 %v3386
    %v3533 = vpop.f32.mrf.mxu0
    %v3534 = vadd.f32 %v3514, %v3533
    %3535 = vdwg.mxu0
    %3536 = vmatpush.msra.mxu0 %v767
    %3537 = vmatpush.msra.mxu0 %v759
    %3538 = vmatpush.msra.mxu0 %v751
    %3539 = vmatpush.msra.mxu0 %v743
    %3540 = vmatpush.msra.mxu0 %v735
    %3541 = vmatpush.msra.mxu0 %v727
    %3542 = vmatpush.msra.mxu0 %v719
    %3543 = vmatpush.msra.mxu0 %v711
    %3544 = vmatpush.msra.mxu0 %v703
    %3545 = vmatpush.msra.mxu0 %v695
    %3546 = vmatpush.msra.mxu0 %v687
    %3547 = vmatpush.msra.mxu0 %v679
    %3548 = vmatpush.msra.mxu0 %v671
    %3549 = vmatpush.msra.mxu0 %v663
    %3550 = vmatpush.msra.mxu0 %v655
    %3551 = vmatpush.msra.mxu0 %v647
    %3552 = vmatmul.f32.gmra.mxu0 %v3385
    %v3553 = vpop.f32.mrf.mxu0
    %v3554 = vadd.f32 0.0, %v3553
    %3555 = vdwg.mxu0
    %3556 = vmatpush.msra.mxu0 %v895
    %3557 = vmatpush.msra.mxu0 %v887
    %3558 = vmatpush.msra.mxu0 %v879
    %3559 = vmatpush.msra.mxu0 %v871
    %3560 = vmatpush.msra.mxu0 %v863
    %3561 = vmatpush.msra.mxu0 %v855
    %3562 = vmatpush.msra.mxu0 %v847
    %3563 = vmatpush.msra.mxu0 %v839
    %3564 = vmatpush.msra.mxu0 %v831
    %3565 = vmatpush.msra.mxu0 %v823
    %3566 = vmatpush.msra.mxu0 %v815
    %3567 = vmatpush.msra.mxu0 %v807
    %3568 = vmatpush.msra.mxu0 %v799
    %3569 = vmatpush.msra.mxu0 %v791
    %3570 = vmatpush.msra.mxu0 %v783
    %3571 = vmatpush.msra.mxu0 %v775
    %3572 = vmatmul.f32.gmra.mxu0 %v3386
    %v3573 = vpop.f32.mrf.mxu0
    %v3574 = vadd.f32 %v3554, %v3573
    %3575 = vdwg.mxu0
    %3576 = vmatpush.msra.mxu0 %v768
    %3577 = vmatpush.msra.mxu0 %v760
    %3578 = vmatpush.msra.mxu0 %v752
    %3579 = vmatpush.msra.mxu0 %v744
    %3580 = vmatpush.msra.mxu0 %v736
    %3581 = vmatpush.msra.mxu0 %v728
    %3582 = vmatpush.msra.mxu0 %v720
    %3583 = vmatpush.msra.mxu0 %v712
    %3584 = vmatpush.msra.mxu0 %v704
    %3585 = vmatpush.msra.mxu0 %v696
    %3586 = vmatpush.msra.mxu0 %v688
    %3587 = vmatpush.msra.mxu0 %v680
    %3588 = vmatpush.msra.mxu0 %v672
    %3589 = vmatpush.msra.mxu0 %v664
    %3590 = vmatpush.msra.mxu0 %v656
    %3591 = vmatpush.msra.mxu0 %v648
    %3592 = vmatmul.f32.gmra.mxu0 %v3385
    %v3593 = vpop.f32.mrf.mxu0
    %v3594 = vadd.f32 0.0, %v3593
    %3595 = vdwg.mxu0
    %3596 = vmatpush.msra.mxu0 %v896
    %3597 = vmatpush.msra.mxu0 %v888
    %3598 = vmatpush.msra.mxu0 %v880
    %3599 = vmatpush.msra.mxu0 %v872
    %3600 = vmatpush.msra.mxu0 %v864
    %3601 = vmatpush.msra.mxu0 %v856
    %3602 = vmatpush.msra.mxu0 %v848
    %3603 = vmatpush.msra.mxu0 %v840
    %3604 = vmatpush.msra.mxu0 %v832
    %3605 = vmatpush.msra.mxu0 %v824
    %3606 = vmatpush.msra.mxu0 %v816
    %3607 = vmatpush.msra.mxu0 %v808
    %3608 = vmatpush.msra.mxu0 %v800
    %3609 = vmatpush.msra.mxu0 %v792
    %3610 = vmatpush.msra.mxu0 %v784
    %3611 = vmatpush.msra.mxu0 %v776
    %3612 = vmatmul.f32.gmra.mxu0 %v3386
    %v3613 = vpop.f32.mrf.mxu0
    %v3614 = vadd.f32 %v3594, %v3613
    %3615 = vdwg.mxu0
    %3616 = vmatpush.msra.mxu0 %v769
    %3617 = vmatpush.msra.mxu0 %v761
    %3618 = vmatpush.msra.mxu0 %v753
    %3619 = vmatpush.msra.mxu0 %v745
    %3620 = vmatpush.msra.mxu0 %v737
    %3621 = vmatpush.msra.mxu0 %v729
    %3622 = vmatpush.msra.mxu0 %v721
    %3623 = vmatpush.msra.mxu0 %v713
    %3624 = vmatpush.msra.mxu0 %v705
    %3625 = vmatpush.msra.mxu0 %v697
    %3626 = vmatpush.msra.mxu0 %v689
    %3627 = vmatpush.msra.mxu0 %v681
    %3628 = vmatpush.msra.mxu0 %v673
    %3629 = vmatpush.msra.mxu0 %v665
    %3630 = vmatpush.msra.mxu0 %v657
    %3631 = vmatpush.msra.mxu0 %v649
    %3632 = vmatmul.f32.gmra.mxu0 %v3385
    %v3633 = vpop.f32.mrf.mxu0
    %v3634 = vadd.f32 0.0, %v3633
    %3635 = vdwg.mxu0
    %3636 = vmatpush.msra.mxu0 %v897
    %3637 = vmatpush.msra.mxu0 %v889
    %3638 = vmatpush.msra.mxu0 %v881
    %3639 = vmatpush.msra.mxu0 %v873
    %3640 = vmatpush.msra.mxu0 %v865
    %3641 = vmatpush.msra.mxu0 %v857
    %3642 = vmatpush.msra.mxu0 %v849
    %3643 = vmatpush.msra.mxu0 %v841
    %3644 = vmatpush.msra.mxu0 %v833
    %3645 = vmatpush.msra.mxu0 %v825
    %3646 = vmatpush.msra.mxu0 %v817
    %3647 = vmatpush.msra.mxu0 %v809
    %3648 = vmatpush.msra.mxu0 %v801
    %3649 = vmatpush.msra.mxu0 %v793
    %3650 = vmatpush.msra.mxu0 %v785
    %3651 = vmatpush.msra.mxu0 %v777
    %3652 = vmatmul.f32.gmra.mxu0 %v3386
    %v3653 = vpop.f32.mrf.mxu0
    %v3654 = vadd.f32 %v3634, %v3653
    %3655 = vdwg.mxu0
    %3656 = vmatpush.msra.mxu0 %v770
    %3657 = vmatpush.msra.mxu0 %v762
    %3658 = vmatpush.msra.mxu0 %v754
    %3659 = vmatpush.msra.mxu0 %v746
    %3660 = vmatpush.msra.mxu0 %v738
    %3661 = vmatpush.msra.mxu0 %v730
    %3662 = vmatpush.msra.mxu0 %v722
    %3663 = vmatpush.msra.mxu0 %v714
    %3664 = vmatpush.msra.mxu0 %v706
    %3665 = vmatpush.msra.mxu0 %v698
    %3666 = vmatpush.msra.mxu0 %v690
    %3667 = vmatpush.msra.mxu0 %v682
    %3668 = vmatpush.msra.mxu0 %v674
    %3669 = vmatpush.msra.mxu0 %v666
    %3670 = vmatpush.msra.mxu0 %v658
    %3671 = vmatpush.msra.mxu0 %v650
    %3672 = vmatmul.f32.gmra.mxu0 %v3385
    %v3673 = vpop.f32.mrf.mxu0
    %v3674 = vadd.f32 0.0, %v3673
    %3675 = vdwg.mxu0
    %3676 = vmatpush.msra.mxu0 %v898
    %3677 = vmatpush.msra.mxu0 %v890
    %3678 = vmatpush.msra.mxu0 %v882
    %3679 = vmatpush.msra.mxu0 %v874
    %3680 = vmatpush.msra.mxu0 %v866
    %3681 = vmatpush.msra.mxu0 %v858
    %3682 = vmatpush.msra.mxu0 %v850
    %3683 = vmatpush.msra.mxu0 %v842
    %3684 = vmatpush.msra.mxu0 %v834
    %3685 = vmatpush.msra.mxu0 %v826
    %3686 = vmatpush.msra.mxu0 %v818
    %3687 = vmatpush.msra.mxu0 %v810
    %3688 = vmatpush.msra.mxu0 %v802
    %3689 = vmatpush.msra.mxu0 %v794
    %3690 = vmatpush.msra.mxu0 %v786
    %3691 = vmatpush.msra.mxu0 %v778
    %3692 = vmatmul.f32.gmra.mxu0 %v3386
    %v3693 = vpop.f32.mrf.mxu0
    %v3694 = vadd.f32 %v3674, %v3693
    %3695 = vdwg.mxu0
    %3696 = vmatpush.msra.mxu0 %v771
    %3697 = vmatpush.msra.mxu0 %v763
    %3698 = vmatpush.msra.mxu0 %v755
    %3699 = vmatpush.msra.mxu0 %v747
    %3700 = vmatpush.msra.mxu0 %v739
    %3701 = vmatpush.msra.mxu0 %v731
    %3702 = vmatpush.msra.mxu0 %v723
    %3703 = vmatpush.msra.mxu0 %v715
    %3704 = vmatpush.msra.mxu0 %v707
    %3705 = vmatpush.msra.mxu0 %v699
    %3706 = vmatpush.msra.mxu0 %v691
    %3707 = vmatpush.msra.mxu0 %v683
    %3708 = vmatpush.msra.mxu0 %v675
    %3709 = vmatpush.msra.mxu0 %v667
    %3710 = vmatpush.msra.mxu0 %v659
    %3711 = vmatpush.msra.mxu0 %v651
    %3712 = vmatmul.f32.gmra.mxu0 %v3385
    %v3713 = vpop.f32.mrf.mxu0
    %v3714 = vadd.f32 0.0, %v3713
    %3715 = vdwg.mxu0
    %3716 = vmatpush.msra.mxu0 %v899
    %3717 = vmatpush.msra.mxu0 %v891
    %3718 = vmatpush.msra.mxu0 %v883
    %3719 = vmatpush.msra.mxu0 %v875
    %3720 = vmatpush.msra.mxu0 %v867
    %3721 = vmatpush.msra.mxu0 %v859
    %3722 = vmatpush.msra.mxu0 %v851
    %3723 = vmatpush.msra.mxu0 %v843
    %3724 = vmatpush.msra.mxu0 %v835
    %3725 = vmatpush.msra.mxu0 %v827
    %3726 = vmatpush.msra.mxu0 %v819
    %3727 = vmatpush.msra.mxu0 %v811
    %3728 = vmatpush.msra.mxu0 %v803
    %3729 = vmatpush.msra.mxu0 %v795
    %3730 = vmatpush.msra.mxu0 %v787
    %3731 = vmatpush.msra.mxu0 %v779
    %3732 = vmatmul.f32.gmra.mxu0 %v3386
    %v3733 = vpop.f32.mrf.mxu0
    %v3734 = vadd.f32 %v3714, %v3733
    %3735 = vdwg.mxu0
    %v3744 = vrot.slane %v3454, 6
    %v3745 = vrot.slane %v3494, 6
    %v3746 = vrot.slane %v3534, 6
    %v3747 = vrot.slane %v3574, 6
    %v3748 = vrot.slane %v3614, 6
    %v3749 = vrot.slane %v3654, 6
    %v3750 = vrot.slane %v3694, 6
    %v3751 = vrot.slane %v3734, 6
    %v3760 = vadd.f32 %v3408, %v3744
    %v3761 = vadd.f32 %v3409, %v3745
    %v3762 = vadd.f32 %v3410, %v3746
    %v3763 = vadd.f32 %v3411, %v3747
    %v3764 = vadd.f32 %v3412, %v3748
    %v3765 = vadd.f32 %v3413, %v3749
    %v3766 = vadd.f32 %v3414, %v3750
    %v3767 = vadd.f32 %v3415, %v3751
    %v3768 = vxor.u32 %v3760, 2147483648
    %v3769 = vxor.u32 %v3761, 2147483648
    %v3770 = vxor.u32 %v3762, 2147483648
    %v3771 = vxor.u32 %v3763, 2147483648
    %v3772 = vxor.u32 %v3764, 2147483648
    %v3773 = vxor.u32 %v3765, 2147483648
    %v3774 = vmul.f32 %v3768, 1.442695
    %v3775 = vpow.pop %v3774
    %v3776 = vmul.f32 %v3769, 1.442695
    %v3777 = vpow.pop %v3776
    %v3778 = vmul.f32 %v3770, 1.442695
    %v3779 = vpow.pop %v3778
    %v3780 = vmul.f32 %v3771, 1.442695
    %v3781 = vpow.pop %v3780
    %v3782 = vmul.f32 %v3772, 1.442695
    %v3783 = vpow.pop %v3782
    %v3784 = vmul.f32 %v3773, 1.442695
    %v3785 = vpow.pop %v3784
    %v3786 = vadd.f32 %v3775, 1.0
    %v3787 = vadd.f32 %v3777, 1.0
    %v3788 = vadd.f32 %v3779, 1.0
    %v3789 = vadd.f32 %v3781, 1.0
    %v3790 = vadd.f32 %v3783, 1.0
    %v3791 = vadd.f32 %v3785, 1.0
    %v3792 = vrcp.pop %v3786
    %v3793 = vmul.f32 %v3786, %v3792
    %v3794 = vsub.f32 1.0, %v3793
    %v3795 = vmul.f32 %v3792, %v3794
    %v3796 = vadd.f32 %v3792, %v3795
    %vm3797 = vweird.f32 %v3786
    %vm3798 = vweird.f32 %v3792
    %vm3799 = vmor %vm3797, %vm3798
    %v3800 = vsel %vm3799, %v3792, %v3796
    %v3801 = vand.u32 2147483647, %v3786
    %vm3802 = vcmp.eq.f32.partialorder %v3801, 8.507059e+37
    %v3803 = vand.u32 %v3786, 2147483648
    %v3804 = vor.u32 1.1754944e-38, %v3803
    %v3805 = vsel %vm3802, %v3804, %v3800
    %v3806 = vmul.f32 1.0, %v3805
    %v3807 = vrcp.pop %v3787
    %v3808 = vmul.f32 %v3787, %v3807
    %v3809 = vsub.f32 1.0, %v3808
    %v3810 = vmul.f32 %v3807, %v3809
    %v3811 = vadd.f32 %v3807, %v3810
    %vm3812 = vweird.f32 %v3787
    %vm3813 = vweird.f32 %v3807
    %vm3814 = vmor %vm3812, %vm3813
    %v3815 = vsel %vm3814, %v3807, %v3811
    %v3816 = vand.u32 2147483647, %v3787
    %vm3817 = vcmp.eq.f32.partialorder %v3816, 8.507059e+37
    %v3818 = vand.u32 %v3787, 2147483648
    %v3819 = vor.u32 1.1754944e-38, %v3818
    %v3820 = vsel %vm3817, %v3819, %v3815
    %v3821 = vmul.f32 1.0, %v3820
    %v3822 = vrcp.pop %v3788
    %v3823 = vmul.f32 %v3788, %v3822
    %v3824 = vsub.f32 1.0, %v3823
    %v3825 = vmul.f32 %v3822, %v3824
    %v3826 = vadd.f32 %v3822, %v3825
    %vm3827 = vweird.f32 %v3788
    %vm3828 = vweird.f32 %v3822
    %vm3829 = vmor %vm3827, %vm3828
    %v3830 = vsel %vm3829, %v3822, %v3826
    %v3831 = vand.u32 2147483647, %v3788
    %vm3832 = vcmp.eq.f32.partialorder %v3831, 8.507059e+37
    %v3833 = vand.u32 %v3788, 2147483648
    %v3834 = vor.u32 1.1754944e-38, %v3833
    %v3835 = vsel %vm3832, %v3834, %v3830
    %v3836 = vmul.f32 1.0, %v3835
    %v3837 = vrcp.pop %v3789
    %v3838 = vmul.f32 %v3789, %v3837
    %v3839 = vsub.f32 1.0, %v3838
    %v3840 = vmul.f32 %v3837, %v3839
    %v3841 = vadd.f32 %v3837, %v3840
    %vm3842 = vweird.f32 %v3789
    %vm3843 = vweird.f32 %v3837
    %vm3844 = vmor %vm3842, %vm3843
    %v3845 = vsel %vm3844, %v3837, %v3841
    %v3846 = vand.u32 2147483647, %v3789
    %vm3847 = vcmp.eq.f32.partialorder %v3846, 8.507059e+37
    %v3848 = vand.u32 %v3789, 2147483648
    %v3849 = vor.u32 1.1754944e-38, %v3848
    %v3850 = vsel %vm3847, %v3849, %v3845
    %v3851 = vmul.f32 1.0, %v3850
    %v3852 = vrcp.pop %v3790
    %v3853 = vmul.f32 %v3790, %v3852
    %v3854 = vsub.f32 1.0, %v3853
    %v3855 = vmul.f32 %v3852, %v3854
    %v3856 = vadd.f32 %v3852, %v3855
    %vm3857 = vweird.f32 %v3790
    %vm3858 = vweird.f32 %v3852
    %vm3859 = vmor %vm3857, %vm3858
    %v3860 = vsel %vm3859, %v3852, %v3856
    %v3861 = vand.u32 2147483647, %v3790
    %vm3862 = vcmp.eq.f32.partialorder %v3861, 8.507059e+37
    %v3863 = vand.u32 %v3790, 2147483648
    %v3864 = vor.u32 1.1754944e-38, %v3863
    %v3865 = vsel %vm3862, %v3864, %v3860
    %v3866 = vmul.f32 1.0, %v3865
    %v3867 = vrcp.pop %v3791
    %v3868 = vmul.f32 %v3791, %v3867
    %v3869 = vsub.f32 1.0, %v3868
    %v3870 = vmul.f32 %v3867, %v3869
    %v3871 = vadd.f32 %v3867, %v3870
    %vm3872 = vweird.f32 %v3791
    %vm3873 = vweird.f32 %v3867
    %vm3874 = vmor %vm3872, %vm3873
    %v3875 = vsel %vm3874, %v3867, %v3871
    %v3876 = vand.u32 2147483647, %v3791
    %vm3877 = vcmp.eq.f32.partialorder %v3876, 8.507059e+37
    %v3878 = vand.u32 %v3791, 2147483648
    %v3879 = vor.u32 1.1754944e-38, %v3878
    %v3880 = vsel %vm3877, %v3879, %v3875
    %v3881 = vmul.f32 1.0, %v3880
    %v3882 = vtanh.pop %v3766
    %v3883 = vtanh.pop %v3767
    %v3886 = vrot.slane %v3381, 6
    %v3887 = vrot.slane %v3382, 6
    %v3890 = vmul.f32 %v3836, %v3886
    %v3891 = vmul.f32 %v3851, %v3887
    %v3892 = vmul.f32 %v3806, %v3882
    %v3893 = vmul.f32 %v3821, %v3883
    %v3894 = vadd.f32 %v3890, %v3892
    %v3895 = vadd.f32 %v3891, %v3893
    %v3896 = vtanh.pop %v3894
    %v3897 = vtanh.pop %v3895
    %v3898 = vmul.f32 %v3866, %v3896
    %v3899 = vmul.f32 %v3881, %v3897
    %3900 = vst [vmem:[#allocation2 + $0x10] sm:$0xc] %v3898
    %v3902 = vrot.slane %v3899, 6
    %3904 = vst [vmem:[#allocation2 + $0x8] sm:$0x30] %v3902
    %v3906 = vrot.slane %v3898, 2
    %v3907 = vrot.slane %v3899, 2
    %3910 = vmatpush.msra.mxu0 %v764
    %3911 = vmatpush.msra.mxu0 %v756
    %3912 = vmatpush.msra.mxu0 %v748
    %3913 = vmatpush.msra.mxu0 %v740
    %3914 = vmatpush.msra.mxu0 %v732
    %3915 = vmatpush.msra.mxu0 %v724
    %3916 = vmatpush.msra.mxu0 %v716
    %3917 = vmatpush.msra.mxu0 %v708
    %3918 = vmatpush.msra.mxu0 %v700
    %3919 = vmatpush.msra.mxu0 %v692
    %3920 = vmatpush.msra.mxu0 %v684
    %3921 = vmatpush.msra.mxu0 %v676
    %3922 = vmatpush.msra.mxu0 %v668
    %3923 = vmatpush.msra.mxu0 %v660
    %3924 = vmatpush.msra.mxu0 %v652
    %3925 = vmatpush.msra.mxu0 %v644
    %3926 = vmatmul.f32.gmra.mxu0 %v3906
    %v3927 = vpop.f32.mrf.mxu0
    %v3928 = vadd.f32 0.0, %v3927
    %3929 = vdwg.mxu0
    %3930 = vmatpush.msra.mxu0 %v892
    %3931 = vmatpush.msra.mxu0 %v884
    %3932 = vmatpush.msra.mxu0 %v876
    %3933 = vmatpush.msra.mxu0 %v868
    %3934 = vmatpush.msra.mxu0 %v860
    %3935 = vmatpush.msra.mxu0 %v852
    %3936 = vmatpush.msra.mxu0 %v844
    %3937 = vmatpush.msra.mxu0 %v836
    %3938 = vmatpush.msra.mxu0 %v828
    %3939 = vmatpush.msra.mxu0 %v820
    %3940 = vmatpush.msra.mxu0 %v812
    %3941 = vmatpush.msra.mxu0 %v804
    %3942 = vmatpush.msra.mxu0 %v796
    %3943 = vmatpush.msra.mxu0 %v788
    %3944 = vmatpush.msra.mxu0 %v780
    %3945 = vmatpush.msra.mxu0 %v772
    %3946 = vmatmul.f32.gmra.mxu0 %v3907
    %v3947 = vpop.f32.mrf.mxu0
    %v3948 = vadd.f32 %v3928, %v3947
    %3949 = vdwg.mxu0
    %3950 = vmatpush.msra.mxu0 %v765
    %3951 = vmatpush.msra.mxu0 %v757
    %3952 = vmatpush.msra.mxu0 %v749
    %3953 = vmatpush.msra.mxu0 %v741
    %3954 = vmatpush.msra.mxu0 %v733
    %3955 = vmatpush.msra.mxu0 %v725
    %3956 = vmatpush.msra.mxu0 %v717
    %3957 = vmatpush.msra.mxu0 %v709
    %3958 = vmatpush.msra.mxu0 %v701
    %3959 = vmatpush.msra.mxu0 %v693
    %3960 = vmatpush.msra.mxu0 %v685
    %3961 = vmatpush.msra.mxu0 %v677
    %3962 = vmatpush.msra.mxu0 %v669
    %3963 = vmatpush.msra.mxu0 %v661
    %3964 = vmatpush.msra.mxu0 %v653
    %3965 = vmatpush.msra.mxu0 %v645
    %3966 = vmatmul.f32.gmra.mxu0 %v3906
    %v3967 = vpop.f32.mrf.mxu0
    %v3968 = vadd.f32 0.0, %v3967
    %3969 = vdwg.mxu0
    %3970 = vmatpush.msra.mxu0 %v893
    %3971 = vmatpush.msra.mxu0 %v885
    %3972 = vmatpush.msra.mxu0 %v877
    %3973 = vmatpush.msra.mxu0 %v869
    %3974 = vmatpush.msra.mxu0 %v861
    %3975 = vmatpush.msra.mxu0 %v853
    %3976 = vmatpush.msra.mxu0 %v845
    %3977 = vmatpush.msra.mxu0 %v837
    %3978 = vmatpush.msra.mxu0 %v829
    %3979 = vmatpush.msra.mxu0 %v821
    %3980 = vmatpush.msra.mxu0 %v813
    %3981 = vmatpush.msra.mxu0 %v805
    %3982 = vmatpush.msra.mxu0 %v797
    %3983 = vmatpush.msra.mxu0 %v789
    %3984 = vmatpush.msra.mxu0 %v781
    %3985 = vmatpush.msra.mxu0 %v773
    %3986 = vmatmul.f32.gmra.mxu0 %v3907
    %v3987 = vpop.f32.mrf.mxu0
    %v3988 = vadd.f32 %v3968, %v3987
    %3989 = vdwg.mxu0
    %3990 = vmatpush.msra.mxu0 %v766
    %3991 = vmatpush.msra.mxu0 %v758
    %3992 = vmatpush.msra.mxu0 %v750
    %3993 = vmatpush.msra.mxu0 %v742
    %3994 = vmatpush.msra.mxu0 %v734
    %3995 = vmatpush.msra.mxu0 %v726
    %3996 = vmatpush.msra.mxu0 %v718
    %3997 = vmatpush.msra.mxu0 %v710
    %3998 = vmatpush.msra.mxu0 %v702
    %3999 = vmatpush.msra.mxu0 %v694
    %4000 = vmatpush.msra.mxu0 %v686
    %4001 = vmatpush.msra.mxu0 %v678
    %4002 = vmatpush.msra.mxu0 %v670
    %4003 = vmatpush.msra.mxu0 %v662
    %4004 = vmatpush.msra.mxu0 %v654
    %4005 = vmatpush.msra.mxu0 %v646
    %4006 = vmatmul.f32.gmra.mxu0 %v3906
    %v4007 = vpop.f32.mrf.mxu0
    %v4008 = vadd.f32 0.0, %v4007
    %4009 = vdwg.mxu0
    %4010 = vmatpush.msra.mxu0 %v894
    %4011 = vmatpush.msra.mxu0 %v886
    %4012 = vmatpush.msra.mxu0 %v878
    %4013 = vmatpush.msra.mxu0 %v870
    %4014 = vmatpush.msra.mxu0 %v862
    %4015 = vmatpush.msra.mxu0 %v854
    %4016 = vmatpush.msra.mxu0 %v846
    %4017 = vmatpush.msra.mxu0 %v838
    %4018 = vmatpush.msra.mxu0 %v830
    %4019 = vmatpush.msra.mxu0 %v822
    %4020 = vmatpush.msra.mxu0 %v814
    %4021 = vmatpush.msra.mxu0 %v806
    %4022 = vmatpush.msra.mxu0 %v798
    %4023 = vmatpush.msra.mxu0 %v790
    %4024 = vmatpush.msra.mxu0 %v782
    %4025 = vmatpush.msra.mxu0 %v774
    %4026 = vmatmul.f32.gmra.mxu0 %v3907
    %v4027 = vpop.f32.mrf.mxu0
    %v4028 = vadd.f32 %v4008, %v4027
    %4029 = vdwg.mxu0
    %4030 = vmatpush.msra.mxu0 %v767
    %4031 = vmatpush.msra.mxu0 %v759
    %4032 = vmatpush.msra.mxu0 %v751
    %4033 = vmatpush.msra.mxu0 %v743
    %4034 = vmatpush.msra.mxu0 %v735
    %4035 = vmatpush.msra.mxu0 %v727
    %4036 = vmatpush.msra.mxu0 %v719
    %4037 = vmatpush.msra.mxu0 %v711
    %4038 = vmatpush.msra.mxu0 %v703
    %4039 = vmatpush.msra.mxu0 %v695
    %4040 = vmatpush.msra.mxu0 %v687
    %4041 = vmatpush.msra.mxu0 %v679
    %4042 = vmatpush.msra.mxu0 %v671
    %4043 = vmatpush.msra.mxu0 %v663
    %4044 = vmatpush.msra.mxu0 %v655
    %4045 = vmatpush.msra.mxu0 %v647
    %4046 = vmatmul.f32.gmra.mxu0 %v3906
    %v4047 = vpop.f32.mrf.mxu0
    %v4048 = vadd.f32 0.0, %v4047
    %4049 = vdwg.mxu0
    %4050 = vmatpush.msra.mxu0 %v895
    %4051 = vmatpush.msra.mxu0 %v887
    %4052 = vmatpush.msra.mxu0 %v879
    %4053 = vmatpush.msra.mxu0 %v871
    %4054 = vmatpush.msra.mxu0 %v863
    %4055 = vmatpush.msra.mxu0 %v855
    %4056 = vmatpush.msra.mxu0 %v847
    %4057 = vmatpush.msra.mxu0 %v839
    %4058 = vmatpush.msra.mxu0 %v831
    %4059 = vmatpush.msra.mxu0 %v823
    %4060 = vmatpush.msra.mxu0 %v815
    %4061 = vmatpush.msra.mxu0 %v807
    %4062 = vmatpush.msra.mxu0 %v799
    %4063 = vmatpush.msra.mxu0 %v791
    %4064 = vmatpush.msra.mxu0 %v783
    %4065 = vmatpush.msra.mxu0 %v775
    %4066 = vmatmul.f32.gmra.mxu0 %v3907
    %v4067 = vpop.f32.mrf.mxu0
    %v4068 = vadd.f32 %v4048, %v4067
    %4069 = vdwg.mxu0
    %4070 = vmatpush.msra.mxu0 %v768
    %4071 = vmatpush.msra.mxu0 %v760
    %4072 = vmatpush.msra.mxu0 %v752
    %4073 = vmatpush.msra.mxu0 %v744
    %4074 = vmatpush.msra.mxu0 %v736
    %4075 = vmatpush.msra.mxu0 %v728
    %4076 = vmatpush.msra.mxu0 %v720
    %4077 = vmatpush.msra.mxu0 %v712
    %4078 = vmatpush.msra.mxu0 %v704
    %4079 = vmatpush.msra.mxu0 %v696
    %4080 = vmatpush.msra.mxu0 %v688
    %4081 = vmatpush.msra.mxu0 %v680
    %4082 = vmatpush.msra.mxu0 %v672
    %4083 = vmatpush.msra.mxu0 %v664
    %4084 = vmatpush.msra.mxu0 %v656
    %4085 = vmatpush.msra.mxu0 %v648
    %4086 = vmatmul.f32.gmra.mxu0 %v3906
    %v4087 = vpop.f32.mrf.mxu0
    %v4088 = vadd.f32 0.0, %v4087
    %4089 = vdwg.mxu0
    %4090 = vmatpush.msra.mxu0 %v896
    %4091 = vmatpush.msra.mxu0 %v888
    %4092 = vmatpush.msra.mxu0 %v880
    %4093 = vmatpush.msra.mxu0 %v872
    %4094 = vmatpush.msra.mxu0 %v864
    %4095 = vmatpush.msra.mxu0 %v856
    %4096 = vmatpush.msra.mxu0 %v848
    %4097 = vmatpush.msra.mxu0 %v840
    %4098 = vmatpush.msra.mxu0 %v832
    %4099 = vmatpush.msra.mxu0 %v824
    %4100 = vmatpush.msra.mxu0 %v816
    %4101 = vmatpush.msra.mxu0 %v808
    %4102 = vmatpush.msra.mxu0 %v800
    %4103 = vmatpush.msra.mxu0 %v792
    %4104 = vmatpush.msra.mxu0 %v784
    %4105 = vmatpush.msra.mxu0 %v776
    %4106 = vmatmul.f32.gmra.mxu0 %v3907
    %v4107 = vpop.f32.mrf.mxu0
    %v4108 = vadd.f32 %v4088, %v4107
    %4109 = vdwg.mxu0
    %4110 = vmatpush.msra.mxu0 %v769
    %4111 = vmatpush.msra.mxu0 %v761
    %4112 = vmatpush.msra.mxu0 %v753
    %4113 = vmatpush.msra.mxu0 %v745
    %4114 = vmatpush.msra.mxu0 %v737
    %4115 = vmatpush.msra.mxu0 %v729
    %4116 = vmatpush.msra.mxu0 %v721
    %4117 = vmatpush.msra.mxu0 %v713
    %4118 = vmatpush.msra.mxu0 %v705
    %4119 = vmatpush.msra.mxu0 %v697
    %4120 = vmatpush.msra.mxu0 %v689
    %4121 = vmatpush.msra.mxu0 %v681
    %4122 = vmatpush.msra.mxu0 %v673
    %4123 = vmatpush.msra.mxu0 %v665
    %4124 = vmatpush.msra.mxu0 %v657
    %4125 = vmatpush.msra.mxu0 %v649
    %4126 = vmatmul.f32.gmra.mxu0 %v3906
    %v4127 = vpop.f32.mrf.mxu0
    %v4128 = vadd.f32 0.0, %v4127
    %4129 = vdwg.mxu0
    %4130 = vmatpush.msra.mxu0 %v897
    %4131 = vmatpush.msra.mxu0 %v889
    %4132 = vmatpush.msra.mxu0 %v881
    %4133 = vmatpush.msra.mxu0 %v873
    %4134 = vmatpush.msra.mxu0 %v865
    %4135 = vmatpush.msra.mxu0 %v857
    %4136 = vmatpush.msra.mxu0 %v849
    %4137 = vmatpush.msra.mxu0 %v841
    %4138 = vmatpush.msra.mxu0 %v833
    %4139 = vmatpush.msra.mxu0 %v825
    %4140 = vmatpush.msra.mxu0 %v817
    %4141 = vmatpush.msra.mxu0 %v809
    %4142 = vmatpush.msra.mxu0 %v801
    %4143 = vmatpush.msra.mxu0 %v793
    %4144 = vmatpush.msra.mxu0 %v785
    %4145 = vmatpush.msra.mxu0 %v777
    %4146 = vmatmul.f32.gmra.mxu0 %v3907
    %v4147 = vpop.f32.mrf.mxu0
    %v4148 = vadd.f32 %v4128, %v4147
    %4149 = vdwg.mxu0
    %4150 = vmatpush.msra.mxu0 %v770
    %4151 = vmatpush.msra.mxu0 %v762
    %4152 = vmatpush.msra.mxu0 %v754
    %4153 = vmatpush.msra.mxu0 %v746
    %4154 = vmatpush.msra.mxu0 %v738
    %4155 = vmatpush.msra.mxu0 %v730
    %4156 = vmatpush.msra.mxu0 %v722
    %4157 = vmatpush.msra.mxu0 %v714
    %4158 = vmatpush.msra.mxu0 %v706
    %4159 = vmatpush.msra.mxu0 %v698
    %4160 = vmatpush.msra.mxu0 %v690
    %4161 = vmatpush.msra.mxu0 %v682
    %4162 = vmatpush.msra.mxu0 %v674
    %4163 = vmatpush.msra.mxu0 %v666
    %4164 = vmatpush.msra.mxu0 %v658
    %4165 = vmatpush.msra.mxu0 %v650
    %4166 = vmatmul.f32.gmra.mxu0 %v3906
    %v4167 = vpop.f32.mrf.mxu0
    %v4168 = vadd.f32 0.0, %v4167
    %4169 = vdwg.mxu0
    %4170 = vmatpush.msra.mxu0 %v898
    %4171 = vmatpush.msra.mxu0 %v890
    %4172 = vmatpush.msra.mxu0 %v882
    %4173 = vmatpush.msra.mxu0 %v874
    %4174 = vmatpush.msra.mxu0 %v866
    %4175 = vmatpush.msra.mxu0 %v858
    %4176 = vmatpush.msra.mxu0 %v850
    %4177 = vmatpush.msra.mxu0 %v842
    %4178 = vmatpush.msra.mxu0 %v834
    %4179 = vmatpush.msra.mxu0 %v826
    %4180 = vmatpush.msra.mxu0 %v818
    %4181 = vmatpush.msra.mxu0 %v810
    %4182 = vmatpush.msra.mxu0 %v802
    %4183 = vmatpush.msra.mxu0 %v794
    %4184 = vmatpush.msra.mxu0 %v786
    %4185 = vmatpush.msra.mxu0 %v778
    %4186 = vmatmul.f32.gmra.mxu0 %v3907
    %v4187 = vpop.f32.mrf.mxu0
    %v4188 = vadd.f32 %v4168, %v4187
    %4189 = vdwg.mxu0
    %4190 = vmatpush.msra.mxu0 %v771
    %4191 = vmatpush.msra.mxu0 %v763
    %4192 = vmatpush.msra.mxu0 %v755
    %4193 = vmatpush.msra.mxu0 %v747
    %4194 = vmatpush.msra.mxu0 %v739
    %4195 = vmatpush.msra.mxu0 %v731
    %4196 = vmatpush.msra.mxu0 %v723
    %4197 = vmatpush.msra.mxu0 %v715
    %4198 = vmatpush.msra.mxu0 %v707
    %4199 = vmatpush.msra.mxu0 %v699
    %4200 = vmatpush.msra.mxu0 %v691
    %4201 = vmatpush.msra.mxu0 %v683
    %4202 = vmatpush.msra.mxu0 %v675
    %4203 = vmatpush.msra.mxu0 %v667
    %4204 = vmatpush.msra.mxu0 %v659
    %4205 = vmatpush.msra.mxu0 %v651
    %4206 = vmatmul.f32.gmra.mxu0 %v3906
    %v4207 = vpop.f32.mrf.mxu0
    %v4208 = vadd.f32 0.0, %v4207
    %4209 = vdwg.mxu0
    %4210 = vmatpush.msra.mxu0 %v899
    %4211 = vmatpush.msra.mxu0 %v891
    %4212 = vmatpush.msra.mxu0 %v883
    %4213 = vmatpush.msra.mxu0 %v875
    %4214 = vmatpush.msra.mxu0 %v867
    %4215 = vmatpush.msra.mxu0 %v859
    %4216 = vmatpush.msra.mxu0 %v851
    %4217 = vmatpush.msra.mxu0 %v843
    %4218 = vmatpush.msra.mxu0 %v835
    %4219 = vmatpush.msra.mxu0 %v827
    %4220 = vmatpush.msra.mxu0 %v819
    %4221 = vmatpush.msra.mxu0 %v811
    %4222 = vmatpush.msra.mxu0 %v803
    %4223 = vmatpush.msra.mxu0 %v795
    %4224 = vmatpush.msra.mxu0 %v787
    %4225 = vmatpush.msra.mxu0 %v779
    %4226 = vmatmul.f32.gmra.mxu0 %v3907
    %v4227 = vpop.f32.mrf.mxu0
    %v4228 = vadd.f32 %v4208, %v4227
    %4229 = vdwg.mxu0
    %v4238 = vrot.slane %v3948, 4
    %v4239 = vrot.slane %v3988, 4
    %v4240 = vrot.slane %v4028, 4
    %v4241 = vrot.slane %v4068, 4
    %v4242 = vrot.slane %v4108, 4
    %v4243 = vrot.slane %v4148, 4
    %v4244 = vrot.slane %v4188, 4
    %v4245 = vrot.slane %v4228, 4
    %v4254 = vadd.f32 %v2916, %v4238
    %v4255 = vadd.f32 %v2917, %v4239
    %v4256 = vadd.f32 %v2918, %v4240
    %v4257 = vadd.f32 %v2919, %v4241
    %v4258 = vadd.f32 %v2920, %v4242
    %v4259 = vadd.f32 %v2921, %v4243
    %v4260 = vadd.f32 %v2922, %v4244
    %v4261 = vadd.f32 %v2923, %v4245
    %v4262 = vxor.u32 %v4254, 2147483648
    %v4263 = vxor.u32 %v4255, 2147483648
    %v4264 = vxor.u32 %v4256, 2147483648
    %v4265 = vxor.u32 %v4257, 2147483648
    %v4266 = vxor.u32 %v4258, 2147483648
    %v4267 = vxor.u32 %v4259, 2147483648
    %v4268 = vmul.f32 %v4262, 1.442695
    %v4269 = vpow.pop %v4268
    %v4270 = vmul.f32 %v4263, 1.442695
    %v4271 = vpow.pop %v4270
    %v4272 = vmul.f32 %v4264, 1.442695
    %v4273 = vpow.pop %v4272
    %v4274 = vmul.f32 %v4265, 1.442695
    %v4275 = vpow.pop %v4274
    %v4276 = vmul.f32 %v4266, 1.442695
    %v4277 = vpow.pop %v4276
    %v4278 = vmul.f32 %v4267, 1.442695
    %v4279 = vpow.pop %v4278
    %v4280 = vadd.f32 %v4269, 1.0
    %v4281 = vadd.f32 %v4271, 1.0
    %v4282 = vadd.f32 %v4273, 1.0
    %v4283 = vadd.f32 %v4275, 1.0
    %v4284 = vadd.f32 %v4277, 1.0
    %v4285 = vadd.f32 %v4279, 1.0
    %v4286 = vrcp.pop %v4280
    %v4287 = vmul.f32 %v4280, %v4286
    %v4288 = vsub.f32 1.0, %v4287
    %v4289 = vmul.f32 %v4286, %v4288
    %v4290 = vadd.f32 %v4286, %v4289
    %vm4291 = vweird.f32 %v4280
    %vm4292 = vweird.f32 %v4286
    %vm4293 = vmor %vm4291, %vm4292
    %v4294 = vsel %vm4293, %v4286, %v4290
    %v4295 = vand.u32 2147483647, %v4280
    %vm4296 = vcmp.eq.f32.partialorder %v4295, 8.507059e+37
    %v4297 = vand.u32 %v4280, 2147483648
    %v4298 = vor.u32 1.1754944e-38, %v4297
    %v4299 = vsel %vm4296, %v4298, %v4294
    %v4300 = vmul.f32 1.0, %v4299
    %v4301 = vrcp.pop %v4281
    %v4302 = vmul.f32 %v4281, %v4301
    %v4303 = vsub.f32 1.0, %v4302
    %v4304 = vmul.f32 %v4301, %v4303
    %v4305 = vadd.f32 %v4301, %v4304
    %vm4306 = vweird.f32 %v4281
    %vm4307 = vweird.f32 %v4301
    %vm4308 = vmor %vm4306, %vm4307
    %v4309 = vsel %vm4308, %v4301, %v4305
    %v4310 = vand.u32 2147483647, %v4281
    %vm4311 = vcmp.eq.f32.partialorder %v4310, 8.507059e+37
    %v4312 = vand.u32 %v4281, 2147483648
    %v4313 = vor.u32 1.1754944e-38, %v4312
    %v4314 = vsel %vm4311, %v4313, %v4309
    %v4315 = vmul.f32 1.0, %v4314
    %v4316 = vrcp.pop %v4282
    %v4317 = vmul.f32 %v4282, %v4316
    %v4318 = vsub.f32 1.0, %v4317
    %v4319 = vmul.f32 %v4316, %v4318
    %v4320 = vadd.f32 %v4316, %v4319
    %vm4321 = vweird.f32 %v4282
    %vm4322 = vweird.f32 %v4316
    %vm4323 = vmor %vm4321, %vm4322
    %v4324 = vsel %vm4323, %v4316, %v4320
    %v4325 = vand.u32 2147483647, %v4282
    %vm4326 = vcmp.eq.f32.partialorder %v4325, 8.507059e+37
    %v4327 = vand.u32 %v4282, 2147483648
    %v4328 = vor.u32 1.1754944e-38, %v4327
    %v4329 = vsel %vm4326, %v4328, %v4324
    %v4330 = vmul.f32 1.0, %v4329
    %v4331 = vrcp.pop %v4283
    %v4332 = vmul.f32 %v4283, %v4331
    %v4333 = vsub.f32 1.0, %v4332
    %v4334 = vmul.f32 %v4331, %v4333
    %v4335 = vadd.f32 %v4331, %v4334
    %vm4336 = vweird.f32 %v4283
    %vm4337 = vweird.f32 %v4331
    %vm4338 = vmor %vm4336, %vm4337
    %v4339 = vsel %vm4338, %v4331, %v4335
    %v4340 = vand.u32 2147483647, %v4283
    %vm4341 = vcmp.eq.f32.partialorder %v4340, 8.507059e+37
    %v4342 = vand.u32 %v4283, 2147483648
    %v4343 = vor.u32 1.1754944e-38, %v4342
    %v4344 = vsel %vm4341, %v4343, %v4339
    %v4345 = vmul.f32 1.0, %v4344
    %v4346 = vrcp.pop %v4284
    %v4347 = vmul.f32 %v4284, %v4346
    %v4348 = vsub.f32 1.0, %v4347
    %v4349 = vmul.f32 %v4346, %v4348
    %v4350 = vadd.f32 %v4346, %v4349
    %vm4351 = vweird.f32 %v4284
    %vm4352 = vweird.f32 %v4346
    %vm4353 = vmor %vm4351, %vm4352
    %v4354 = vsel %vm4353, %v4346, %v4350
    %v4355 = vand.u32 2147483647, %v4284
    %vm4356 = vcmp.eq.f32.partialorder %v4355, 8.507059e+37
    %v4357 = vand.u32 %v4284, 2147483648
    %v4358 = vor.u32 1.1754944e-38, %v4357
    %v4359 = vsel %vm4356, %v4358, %v4354
    %v4360 = vmul.f32 1.0, %v4359
    %v4361 = vrcp.pop %v4285
    %v4362 = vmul.f32 %v4285, %v4361
    %v4363 = vsub.f32 1.0, %v4362
    %v4364 = vmul.f32 %v4361, %v4363
    %v4365 = vadd.f32 %v4361, %v4364
    %vm4366 = vweird.f32 %v4285
    %vm4367 = vweird.f32 %v4361
    %vm4368 = vmor %vm4366, %vm4367
    %v4369 = vsel %vm4368, %v4361, %v4365
    %v4370 = vand.u32 2147483647, %v4285
    %vm4371 = vcmp.eq.f32.partialorder %v4370, 8.507059e+37
    %v4372 = vand.u32 %v4285, 2147483648
    %v4373 = vor.u32 1.1754944e-38, %v4372
    %v4374 = vsel %vm4371, %v4373, %v4369
    %v4375 = vmul.f32 1.0, %v4374
    %v4376 = vtanh.pop %v4260
    %v4377 = vtanh.pop %v4261
    %v4380 = vrot.slane %v3894, 6
    %v4381 = vrot.slane %v3895, 6
    %v4384 = vmul.f32 %v4330, %v4380
    %v4385 = vmul.f32 %v4345, %v4381
    %v4386 = vmul.f32 %v4300, %v4376
    %v4387 = vmul.f32 %v4315, %v4377
    %v4388 = vadd.f32 %v4384, %v4386
    %v4389 = vadd.f32 %v4385, %v4387
    %v4390 = vtanh.pop %v4388
    %v4391 = vtanh.pop %v4389
    %v4392 = vmul.f32 %v4360, %v4390
    %v4393 = vmul.f32 %v4375, %v4391
    %4394 = vst [vmem:[#allocation2 + $0x10] sm:$0x30] %v4392
    %v4396 = vrot.slane %v4393, 2
    %4398 = vst [vmem:[#allocation2 + $0x8] sm:$0xc] %v4396
    %v4400 = vrot.slane %v4392, 4
    %v4401 = vrot.slane %v4393, 4
    %4404 = vmatpush.msra.mxu0 %v764
    %4405 = vmatpush.msra.mxu0 %v756
    %4406 = vmatpush.msra.mxu0 %v748
    %4407 = vmatpush.msra.mxu0 %v740
    %4408 = vmatpush.msra.mxu0 %v732
    %4409 = vmatpush.msra.mxu0 %v724
    %4410 = vmatpush.msra.mxu0 %v716
    %4411 = vmatpush.msra.mxu0 %v708
    %4412 = vmatpush.msra.mxu0 %v700
    %4413 = vmatpush.msra.mxu0 %v692
    %4414 = vmatpush.msra.mxu0 %v684
    %4415 = vmatpush.msra.mxu0 %v676
    %4416 = vmatpush.msra.mxu0 %v668
    %4417 = vmatpush.msra.mxu0 %v660
    %4418 = vmatpush.msra.mxu0 %v652
    %4419 = vmatpush.msra.mxu0 %v644
    %4420 = vmatmul.f32.gmra.mxu0 %v4400
    %v4421 = vpop.f32.mrf.mxu0
    %v4422 = vadd.f32 0.0, %v4421
    %4423 = vdwg.mxu0
    %4424 = vmatpush.msra.mxu0 %v892
    %4425 = vmatpush.msra.mxu0 %v884
    %4426 = vmatpush.msra.mxu0 %v876
    %4427 = vmatpush.msra.mxu0 %v868
    %4428 = vmatpush.msra.mxu0 %v860
    %4429 = vmatpush.msra.mxu0 %v852
    %4430 = vmatpush.msra.mxu0 %v844
    %4431 = vmatpush.msra.mxu0 %v836
    %4432 = vmatpush.msra.mxu0 %v828
    %4433 = vmatpush.msra.mxu0 %v820
    %4434 = vmatpush.msra.mxu0 %v812
    %4435 = vmatpush.msra.mxu0 %v804
    %4436 = vmatpush.msra.mxu0 %v796
    %4437 = vmatpush.msra.mxu0 %v788
    %4438 = vmatpush.msra.mxu0 %v780
    %4439 = vmatpush.msra.mxu0 %v772
    %4440 = vmatmul.f32.gmra.mxu0 %v4401
    %v4441 = vpop.f32.mrf.mxu0
    %v4442 = vadd.f32 %v4422, %v4441
    %4443 = vdwg.mxu0
    %4444 = vmatpush.msra.mxu0 %v765
    %4445 = vmatpush.msra.mxu0 %v757
    %4446 = vmatpush.msra.mxu0 %v749
    %4447 = vmatpush.msra.mxu0 %v741
    %4448 = vmatpush.msra.mxu0 %v733
    %4449 = vmatpush.msra.mxu0 %v725
    %4450 = vmatpush.msra.mxu0 %v717
    %4451 = vmatpush.msra.mxu0 %v709
    %4452 = vmatpush.msra.mxu0 %v701
    %4453 = vmatpush.msra.mxu0 %v693
    %4454 = vmatpush.msra.mxu0 %v685
    %4455 = vmatpush.msra.mxu0 %v677
    %4456 = vmatpush.msra.mxu0 %v669
    %4457 = vmatpush.msra.mxu0 %v661
    %4458 = vmatpush.msra.mxu0 %v653
    %4459 = vmatpush.msra.mxu0 %v645
    %4460 = vmatmul.f32.gmra.mxu0 %v4400
    %v4461 = vpop.f32.mrf.mxu0
    %v4462 = vadd.f32 0.0, %v4461
    %4463 = vdwg.mxu0
    %4464 = vmatpush.msra.mxu0 %v893
    %4465 = vmatpush.msra.mxu0 %v885
    %4466 = vmatpush.msra.mxu0 %v877
    %4467 = vmatpush.msra.mxu0 %v869
    %4468 = vmatpush.msra.mxu0 %v861
    %4469 = vmatpush.msra.mxu0 %v853
    %4470 = vmatpush.msra.mxu0 %v845
    %4471 = vmatpush.msra.mxu0 %v837
    %4472 = vmatpush.msra.mxu0 %v829
    %4473 = vmatpush.msra.mxu0 %v821
    %4474 = vmatpush.msra.mxu0 %v813
    %4475 = vmatpush.msra.mxu0 %v805
    %4476 = vmatpush.msra.mxu0 %v797
    %4477 = vmatpush.msra.mxu0 %v789
    %4478 = vmatpush.msra.mxu0 %v781
    %4479 = vmatpush.msra.mxu0 %v773
    %4480 = vmatmul.f32.gmra.mxu0 %v4401
    %v4481 = vpop.f32.mrf.mxu0
    %v4482 = vadd.f32 %v4462, %v4481
    %4483 = vdwg.mxu0
    %4484 = vmatpush.msra.mxu0 %v766
    %4485 = vmatpush.msra.mxu0 %v758
    %4486 = vmatpush.msra.mxu0 %v750
    %4487 = vmatpush.msra.mxu0 %v742
    %4488 = vmatpush.msra.mxu0 %v734
    %4489 = vmatpush.msra.mxu0 %v726
    %4490 = vmatpush.msra.mxu0 %v718
    %4491 = vmatpush.msra.mxu0 %v710
    %4492 = vmatpush.msra.mxu0 %v702
    %4493 = vmatpush.msra.mxu0 %v694
    %4494 = vmatpush.msra.mxu0 %v686
    %4495 = vmatpush.msra.mxu0 %v678
    %4496 = vmatpush.msra.mxu0 %v670
    %4497 = vmatpush.msra.mxu0 %v662
    %4498 = vmatpush.msra.mxu0 %v654
    %4499 = vmatpush.msra.mxu0 %v646
    %4500 = vmatmul.f32.gmra.mxu0 %v4400
    %v4501 = vpop.f32.mrf.mxu0
    %v4502 = vadd.f32 0.0, %v4501
    %4503 = vdwg.mxu0
    %4504 = vmatpush.msra.mxu0 %v894
    %4505 = vmatpush.msra.mxu0 %v886
    %4506 = vmatpush.msra.mxu0 %v878
    %4507 = vmatpush.msra.mxu0 %v870
    %4508 = vmatpush.msra.mxu0 %v862
    %4509 = vmatpush.msra.mxu0 %v854
    %4510 = vmatpush.msra.mxu0 %v846
    %4511 = vmatpush.msra.mxu0 %v838
    %4512 = vmatpush.msra.mxu0 %v830
    %4513 = vmatpush.msra.mxu0 %v822
    %4514 = vmatpush.msra.mxu0 %v814
    %4515 = vmatpush.msra.mxu0 %v806
    %4516 = vmatpush.msra.mxu0 %v798
    %4517 = vmatpush.msra.mxu0 %v790
    %4518 = vmatpush.msra.mxu0 %v782
    %4519 = vmatpush.msra.mxu0 %v774
    %4520 = vmatmul.f32.gmra.mxu0 %v4401
    %v4521 = vpop.f32.mrf.mxu0
    %v4522 = vadd.f32 %v4502, %v4521
    %4523 = vdwg.mxu0
    %4524 = vmatpush.msra.mxu0 %v767
    %4525 = vmatpush.msra.mxu0 %v759
    %4526 = vmatpush.msra.mxu0 %v751
    %4527 = vmatpush.msra.mxu0 %v743
    %4528 = vmatpush.msra.mxu0 %v735
    %4529 = vmatpush.msra.mxu0 %v727
    %4530 = vmatpush.msra.mxu0 %v719
    %4531 = vmatpush.msra.mxu0 %v711
    %4532 = vmatpush.msra.mxu0 %v703
    %4533 = vmatpush.msra.mxu0 %v695
    %4534 = vmatpush.msra.mxu0 %v687
    %4535 = vmatpush.msra.mxu0 %v679
    %4536 = vmatpush.msra.mxu0 %v671
    %4537 = vmatpush.msra.mxu0 %v663
    %4538 = vmatpush.msra.mxu0 %v655
    %4539 = vmatpush.msra.mxu0 %v647
    %4540 = vmatmul.f32.gmra.mxu0 %v4400
    %v4541 = vpop.f32.mrf.mxu0
    %v4542 = vadd.f32 0.0, %v4541
    %4543 = vdwg.mxu0
    %4544 = vmatpush.msra.mxu0 %v895
    %4545 = vmatpush.msra.mxu0 %v887
    %4546 = vmatpush.msra.mxu0 %v879
    %4547 = vmatpush.msra.mxu0 %v871
    %4548 = vmatpush.msra.mxu0 %v863
    %4549 = vmatpush.msra.mxu0 %v855
    %4550 = vmatpush.msra.mxu0 %v847
    %4551 = vmatpush.msra.mxu0 %v839
    %4552 = vmatpush.msra.mxu0 %v831
    %4553 = vmatpush.msra.mxu0 %v823
    %4554 = vmatpush.msra.mxu0 %v815
    %4555 = vmatpush.msra.mxu0 %v807
    %4556 = vmatpush.msra.mxu0 %v799
    %4557 = vmatpush.msra.mxu0 %v791
    %4558 = vmatpush.msra.mxu0 %v783
    %4559 = vmatpush.msra.mxu0 %v775
    %4560 = vmatmul.f32.gmra.mxu0 %v4401
    %v4561 = vpop.f32.mrf.mxu0
    %v4562 = vadd.f32 %v4542, %v4561
    %4563 = vdwg.mxu0
    %4564 = vmatpush.msra.mxu0 %v768
    %4565 = vmatpush.msra.mxu0 %v760
    %4566 = vmatpush.msra.mxu0 %v752
    %4567 = vmatpush.msra.mxu0 %v744
    %4568 = vmatpush.msra.mxu0 %v736
    %4569 = vmatpush.msra.mxu0 %v728
    %4570 = vmatpush.msra.mxu0 %v720
    %4571 = vmatpush.msra.mxu0 %v712
    %4572 = vmatpush.msra.mxu0 %v704
    %4573 = vmatpush.msra.mxu0 %v696
    %4574 = vmatpush.msra.mxu0 %v688
    %4575 = vmatpush.msra.mxu0 %v680
    %4576 = vmatpush.msra.mxu0 %v672
    %4577 = vmatpush.msra.mxu0 %v664
    %4578 = vmatpush.msra.mxu0 %v656
    %4579 = vmatpush.msra.mxu0 %v648
    %4580 = vmatmul.f32.gmra.mxu0 %v4400
    %v4581 = vpop.f32.mrf.mxu0
    %v4582 = vadd.f32 0.0, %v4581
    %4583 = vdwg.mxu0
    %4584 = vmatpush.msra.mxu0 %v896
    %4585 = vmatpush.msra.mxu0 %v888
    %4586 = vmatpush.msra.mxu0 %v880
    %4587 = vmatpush.msra.mxu0 %v872
    %4588 = vmatpush.msra.mxu0 %v864
    %4589 = vmatpush.msra.mxu0 %v856
    %4590 = vmatpush.msra.mxu0 %v848
    %4591 = vmatpush.msra.mxu0 %v840
    %4592 = vmatpush.msra.mxu0 %v832
    %4593 = vmatpush.msra.mxu0 %v824
    %4594 = vmatpush.msra.mxu0 %v816
    %4595 = vmatpush.msra.mxu0 %v808
    %4596 = vmatpush.msra.mxu0 %v800
    %4597 = vmatpush.msra.mxu0 %v792
    %4598 = vmatpush.msra.mxu0 %v784
    %4599 = vmatpush.msra.mxu0 %v776
    %4600 = vmatmul.f32.gmra.mxu0 %v4401
    %v4601 = vpop.f32.mrf.mxu0
    %v4602 = vadd.f32 %v4582, %v4601
    %4603 = vdwg.mxu0
    %4604 = vmatpush.msra.mxu0 %v769
    %4605 = vmatpush.msra.mxu0 %v761
    %4606 = vmatpush.msra.mxu0 %v753
    %4607 = vmatpush.msra.mxu0 %v745
    %4608 = vmatpush.msra.mxu0 %v737
    %4609 = vmatpush.msra.mxu0 %v729
    %4610 = vmatpush.msra.mxu0 %v721
    %4611 = vmatpush.msra.mxu0 %v713
    %4612 = vmatpush.msra.mxu0 %v705
    %4613 = vmatpush.msra.mxu0 %v697
    %4614 = vmatpush.msra.mxu0 %v689
    %4615 = vmatpush.msra.mxu0 %v681
    %4616 = vmatpush.msra.mxu0 %v673
    %4617 = vmatpush.msra.mxu0 %v665
    %4618 = vmatpush.msra.mxu0 %v657
    %4619 = vmatpush.msra.mxu0 %v649
    %4620 = vmatmul.f32.gmra.mxu0 %v4400
    %v4621 = vpop.f32.mrf.mxu0
    %v4622 = vadd.f32 0.0, %v4621
    %4623 = vdwg.mxu0
    %4624 = vmatpush.msra.mxu0 %v897
    %4625 = vmatpush.msra.mxu0 %v889
    %4626 = vmatpush.msra.mxu0 %v881
    %4627 = vmatpush.msra.mxu0 %v873
    %4628 = vmatpush.msra.mxu0 %v865
    %4629 = vmatpush.msra.mxu0 %v857
    %4630 = vmatpush.msra.mxu0 %v849
    %4631 = vmatpush.msra.mxu0 %v841
    %4632 = vmatpush.msra.mxu0 %v833
    %4633 = vmatpush.msra.mxu0 %v825
    %4634 = vmatpush.msra.mxu0 %v817
    %4635 = vmatpush.msra.mxu0 %v809
    %4636 = vmatpush.msra.mxu0 %v801
    %4637 = vmatpush.msra.mxu0 %v793
    %4638 = vmatpush.msra.mxu0 %v785
    %4639 = vmatpush.msra.mxu0 %v777
    %4640 = vmatmul.f32.gmra.mxu0 %v4401
    %v4641 = vpop.f32.mrf.mxu0
    %v4642 = vadd.f32 %v4622, %v4641
    %4643 = vdwg.mxu0
    %4644 = vmatpush.msra.mxu0 %v770
    %4645 = vmatpush.msra.mxu0 %v762
    %4646 = vmatpush.msra.mxu0 %v754
    %4647 = vmatpush.msra.mxu0 %v746
    %4648 = vmatpush.msra.mxu0 %v738
    %4649 = vmatpush.msra.mxu0 %v730
    %4650 = vmatpush.msra.mxu0 %v722
    %4651 = vmatpush.msra.mxu0 %v714
    %4652 = vmatpush.msra.mxu0 %v706
    %4653 = vmatpush.msra.mxu0 %v698
    %4654 = vmatpush.msra.mxu0 %v690
    %4655 = vmatpush.msra.mxu0 %v682
    %4656 = vmatpush.msra.mxu0 %v674
    %4657 = vmatpush.msra.mxu0 %v666
    %4658 = vmatpush.msra.mxu0 %v658
    %4659 = vmatpush.msra.mxu0 %v650
    %4660 = vmatmul.f32.gmra.mxu0 %v4400
    %v4661 = vpop.f32.mrf.mxu0
    %v4662 = vadd.f32 0.0, %v4661
    %4663 = vdwg.mxu0
    %4664 = vmatpush.msra.mxu0 %v898
    %4665 = vmatpush.msra.mxu0 %v890
    %4666 = vmatpush.msra.mxu0 %v882
    %4667 = vmatpush.msra.mxu0 %v874
    %4668 = vmatpush.msra.mxu0 %v866
    %4669 = vmatpush.msra.mxu0 %v858
    %4670 = vmatpush.msra.mxu0 %v850
    %4671 = vmatpush.msra.mxu0 %v842
    %4672 = vmatpush.msra.mxu0 %v834
    %4673 = vmatpush.msra.mxu0 %v826
    %4674 = vmatpush.msra.mxu0 %v818
    %4675 = vmatpush.msra.mxu0 %v810
    %4676 = vmatpush.msra.mxu0 %v802
    %4677 = vmatpush.msra.mxu0 %v794
    %4678 = vmatpush.msra.mxu0 %v786
    %4679 = vmatpush.msra.mxu0 %v778
    %4680 = vmatmul.f32.gmra.mxu0 %v4401
    %v4681 = vpop.f32.mrf.mxu0
    %v4682 = vadd.f32 %v4662, %v4681
    %4683 = vdwg.mxu0
    %4684 = vmatpush.msra.mxu0 %v771
    %4685 = vmatpush.msra.mxu0 %v763
    %4686 = vmatpush.msra.mxu0 %v755
    %4687 = vmatpush.msra.mxu0 %v747
    %4688 = vmatpush.msra.mxu0 %v739
    %4689 = vmatpush.msra.mxu0 %v731
    %4690 = vmatpush.msra.mxu0 %v723
    %4691 = vmatpush.msra.mxu0 %v715
    %4692 = vmatpush.msra.mxu0 %v707
    %4693 = vmatpush.msra.mxu0 %v699
    %4694 = vmatpush.msra.mxu0 %v691
    %4695 = vmatpush.msra.mxu0 %v683
    %4696 = vmatpush.msra.mxu0 %v675
    %4697 = vmatpush.msra.mxu0 %v667
    %4698 = vmatpush.msra.mxu0 %v659
    %4699 = vmatpush.msra.mxu0 %v651
    %4700 = vmatmul.f32.gmra.mxu0 %v4400
    %v4701 = vpop.f32.mrf.mxu0
    %v4702 = vadd.f32 0.0, %v4701
    %4703 = vdwg.mxu0
    %4704 = vmatpush.msra.mxu0 %v899
    %4705 = vmatpush.msra.mxu0 %v891
    %4706 = vmatpush.msra.mxu0 %v883
    %4707 = vmatpush.msra.mxu0 %v875
    %4708 = vmatpush.msra.mxu0 %v867
    %4709 = vmatpush.msra.mxu0 %v859
    %4710 = vmatpush.msra.mxu0 %v851
    %4711 = vmatpush.msra.mxu0 %v843
    %4712 = vmatpush.msra.mxu0 %v835
    %4713 = vmatpush.msra.mxu0 %v827
    %4714 = vmatpush.msra.mxu0 %v819
    %4715 = vmatpush.msra.mxu0 %v811
    %4716 = vmatpush.msra.mxu0 %v803
    %4717 = vmatpush.msra.mxu0 %v795
    %4718 = vmatpush.msra.mxu0 %v787
    %4719 = vmatpush.msra.mxu0 %v779
    %4720 = vmatmul.f32.gmra.mxu0 %v4401
    %v4721 = vpop.f32.mrf.mxu0
    %v4722 = vadd.f32 %v4702, %v4721
    %4723 = vdwg.mxu0
    %v4732 = vrot.slane %v4442, 2
    %v4733 = vrot.slane %v4482, 2
    %v4734 = vrot.slane %v4522, 2
    %v4735 = vrot.slane %v4562, 2
    %v4736 = vrot.slane %v4602, 2
    %v4737 = vrot.slane %v4642, 2
    %v4738 = vrot.slane %v4682, 2
    %v4739 = vrot.slane %v4722, 2
    %v4748 = vadd.f32 %v3408, %v4732
    %v4749 = vadd.f32 %v3409, %v4733
    %v4750 = vadd.f32 %v3410, %v4734
    %v4751 = vadd.f32 %v3411, %v4735
    %v4752 = vadd.f32 %v3412, %v4736
    %v4753 = vadd.f32 %v3413, %v4737
    %v4754 = vadd.f32 %v3414, %v4738
    %v4755 = vadd.f32 %v3415, %v4739
    %v4756 = vxor.u32 %v4748, 2147483648
    %v4757 = vxor.u32 %v4749, 2147483648
    %v4758 = vxor.u32 %v4750, 2147483648
    %v4759 = vxor.u32 %v4751, 2147483648
    %v4760 = vxor.u32 %v4752, 2147483648
    %v4761 = vxor.u32 %v4753, 2147483648
    %v4762 = vmul.f32 %v4756, 1.442695
    %v4763 = vpow.pop %v4762
    %v4764 = vmul.f32 %v4757, 1.442695
    %v4765 = vpow.pop %v4764
    %v4766 = vmul.f32 %v4758, 1.442695
    %v4767 = vpow.pop %v4766
    %v4768 = vmul.f32 %v4759, 1.442695
    %v4769 = vpow.pop %v4768
    %v4770 = vmul.f32 %v4760, 1.442695
    %v4771 = vpow.pop %v4770
    %v4772 = vmul.f32 %v4761, 1.442695
    %v4773 = vpow.pop %v4772
    %v4774 = vadd.f32 %v4763, 1.0
    %v4775 = vadd.f32 %v4765, 1.0
    %v4776 = vadd.f32 %v4767, 1.0
    %v4777 = vadd.f32 %v4769, 1.0
    %v4778 = vadd.f32 %v4771, 1.0
    %v4779 = vadd.f32 %v4773, 1.0
    %v4780 = vrcp.pop %v4774
    %v4781 = vmul.f32 %v4774, %v4780
    %v4782 = vsub.f32 1.0, %v4781
    %v4783 = vmul.f32 %v4780, %v4782
    %v4784 = vadd.f32 %v4780, %v4783
    %vm4785 = vweird.f32 %v4774
    %vm4786 = vweird.f32 %v4780
    %vm4787 = vmor %vm4785, %vm4786
    %v4788 = vsel %vm4787, %v4780, %v4784
    %v4789 = vand.u32 2147483647, %v4774
    %vm4790 = vcmp.eq.f32.partialorder %v4789, 8.507059e+37
    %v4791 = vand.u32 %v4774, 2147483648
    %v4792 = vor.u32 1.1754944e-38, %v4791
    %v4793 = vsel %vm4790, %v4792, %v4788
    %v4794 = vmul.f32 1.0, %v4793
    %v4795 = vrcp.pop %v4775
    %v4796 = vmul.f32 %v4775, %v4795
    %v4797 = vsub.f32 1.0, %v4796
    %v4798 = vmul.f32 %v4795, %v4797
    %v4799 = vadd.f32 %v4795, %v4798
    %vm4800 = vweird.f32 %v4775
    %vm4801 = vweird.f32 %v4795
    %vm4802 = vmor %vm4800, %vm4801
    %v4803 = vsel %vm4802, %v4795, %v4799
    %v4804 = vand.u32 2147483647, %v4775
    %vm4805 = vcmp.eq.f32.partialorder %v4804, 8.507059e+37
    %v4806 = vand.u32 %v4775, 2147483648
    %v4807 = vor.u32 1.1754944e-38, %v4806
    %v4808 = vsel %vm4805, %v4807, %v4803
    %v4809 = vmul.f32 1.0, %v4808
    %v4810 = vrcp.pop %v4776
    %v4811 = vmul.f32 %v4776, %v4810
    %v4812 = vsub.f32 1.0, %v4811
    %v4813 = vmul.f32 %v4810, %v4812
    %v4814 = vadd.f32 %v4810, %v4813
    %vm4815 = vweird.f32 %v4776
    %vm4816 = vweird.f32 %v4810
    %vm4817 = vmor %vm4815, %vm4816
    %v4818 = vsel %vm4817, %v4810, %v4814
    %v4819 = vand.u32 2147483647, %v4776
    %vm4820 = vcmp.eq.f32.partialorder %v4819, 8.507059e+37
    %v4821 = vand.u32 %v4776, 2147483648
    %v4822 = vor.u32 1.1754944e-38, %v4821
    %v4823 = vsel %vm4820, %v4822, %v4818
    %v4824 = vmul.f32 1.0, %v4823
    %v4825 = vrcp.pop %v4777
    %v4826 = vmul.f32 %v4777, %v4825
    %v4827 = vsub.f32 1.0, %v4826
    %v4828 = vmul.f32 %v4825, %v4827
    %v4829 = vadd.f32 %v4825, %v4828
    %vm4830 = vweird.f32 %v4777
    %vm4831 = vweird.f32 %v4825
    %vm4832 = vmor %vm4830, %vm4831
    %v4833 = vsel %vm4832, %v4825, %v4829
    %v4834 = vand.u32 2147483647, %v4777
    %vm4835 = vcmp.eq.f32.partialorder %v4834, 8.507059e+37
    %v4836 = vand.u32 %v4777, 2147483648
    %v4837 = vor.u32 1.1754944e-38, %v4836
    %v4838 = vsel %vm4835, %v4837, %v4833
    %v4839 = vmul.f32 1.0, %v4838
    %v4840 = vrcp.pop %v4778
    %v4841 = vmul.f32 %v4778, %v4840
    %v4842 = vsub.f32 1.0, %v4841
    %v4843 = vmul.f32 %v4840, %v4842
    %v4844 = vadd.f32 %v4840, %v4843
    %vm4845 = vweird.f32 %v4778
    %vm4846 = vweird.f32 %v4840
    %vm4847 = vmor %vm4845, %vm4846
    %v4848 = vsel %vm4847, %v4840, %v4844
    %v4849 = vand.u32 2147483647, %v4778
    %vm4850 = vcmp.eq.f32.partialorder %v4849, 8.507059e+37
    %v4851 = vand.u32 %v4778, 2147483648
    %v4852 = vor.u32 1.1754944e-38, %v4851
    %v4853 = vsel %vm4850, %v4852, %v4848
    %v4854 = vmul.f32 1.0, %v4853
    %v4855 = vrcp.pop %v4779
    %v4856 = vmul.f32 %v4779, %v4855
    %v4857 = vsub.f32 1.0, %v4856
    %v4858 = vmul.f32 %v4855, %v4857
    %v4859 = vadd.f32 %v4855, %v4858
    %vm4860 = vweird.f32 %v4779
    %vm4861 = vweird.f32 %v4855
    %vm4862 = vmor %vm4860, %vm4861
    %v4863 = vsel %vm4862, %v4855, %v4859
    %v4864 = vand.u32 2147483647, %v4779
    %vm4865 = vcmp.eq.f32.partialorder %v4864, 8.507059e+37
    %v4866 = vand.u32 %v4779, 2147483648
    %v4867 = vor.u32 1.1754944e-38, %v4866
    %v4868 = vsel %vm4865, %v4867, %v4863
    %v4869 = vmul.f32 1.0, %v4868
    %v4870 = vtanh.pop %v4754
    %v4871 = vtanh.pop %v4755
    %v4874 = vrot.slane %v4388, 6
    %v4875 = vrot.slane %v4389, 6
    %v4878 = vmul.f32 %v4824, %v4874
    %v4879 = vmul.f32 %v4839, %v4875
    %v4880 = vmul.f32 %v4794, %v4870
    %v4881 = vmul.f32 %v4809, %v4871
    %v4882 = vadd.f32 %v4878, %v4880
    %v4883 = vadd.f32 %v4879, %v4881
    %v4884 = vtanh.pop %v4882
    %v4885 = vtanh.pop %v4883
    %v4886 = vmul.f32 %v4854, %v4884
    %v4887 = vmul.f32 %v4869, %v4885
    %4888 = vst [vmem:[#allocation2 + $0x10] sm:$0xc0] %v4886
    %v4890 = vrot.slane %v4887, 6
    %4892 = vst [vmem:[#allocation2 + $0x8] sm:$0x3] %v4890
    %v4893 = vld [vmem:[#allocation2] sm:$0xff]
    %v4894 = vld [vmem:[#allocation2 + $0x8] sm:$0xff]
    %v4895 = vld [vmem:[#allocation2 + $0x10] sm:$0xff]
    %v4896 = vld [vmem:[#allocation2 + $0x18] sm:$0xff]
    %v4897 = vld [vmem:[#allocation9] sm:$0xff]
    %v4898 = vld [vmem:[#allocation9 + $0x8] sm:$0xff]
    %v4899 = vld [vmem:[#allocation9 + $0x10] sm:$0xff]
    %v4900 = vld [vmem:[#allocation9 + $0x18] sm:$0xff]
    %v4901 = vld [vmem:[#allocation9 + $0x20] sm:$0xff]
    %v4902 = vld [vmem:[#allocation9 + $0x28] sm:$0xff]
    %v4903 = vld [vmem:[#allocation9 + $0x30] sm:$0xff]
    %v4904 = vld [vmem:[#allocation9 + $0x38] sm:$0xff]
    %v4905 = vld [vmem:[#allocation9 + $0x40] sm:$0xff]
    %v4906 = vld [vmem:[#allocation9 + $0x48] sm:$0xff]
    %v4907 = vld [vmem:[#allocation9 + $0x50] sm:$0xff]
    %v4908 = vld [vmem:[#allocation9 + $0x58] sm:$0xff]
    %v4909 = vld [vmem:[#allocation9 + $0x60] sm:$0xff]
    %v4910 = vld [vmem:[#allocation9 + $0x68] sm:$0xff]
    %v4911 = vld [vmem:[#allocation9 + $0x70] sm:$0xff]
    %v4912 = vld [vmem:[#allocation9 + $0x78] sm:$0xff]
    %v4913 = vld [vmem:[#allocation9 + $0x80] sm:$0xff]
    %v4914 = vld [vmem:[#allocation9 + $0x88] sm:$0xff]
    %v4915 = vld [vmem:[#allocation9 + $0x90] sm:$0xff]
    %v4916 = vld [vmem:[#allocation9 + $0x98] sm:$0xff]
    %v4917 = vld [vmem:[#allocation9 + $0xa0] sm:$0xff]
    %v4918 = vld [vmem:[#allocation9 + $0xa8] sm:$0xff]
    %v4919 = vld [vmem:[#allocation9 + $0xb0] sm:$0xff]
    %v4920 = vld [vmem:[#allocation9 + $0xb8] sm:$0xff]
    %v4921 = vld [vmem:[#allocation9 + $0xc0] sm:$0xff]
    %v4922 = vld [vmem:[#allocation9 + $0xc8] sm:$0xff]
    %v4923 = vld [vmem:[#allocation9 + $0xd0] sm:$0xff]
    %v4924 = vld [vmem:[#allocation9 + $0xd8] sm:$0xff]
    %v4925 = vld [vmem:[#allocation9 + $0xe0] sm:$0xff]
    %v4926 = vld [vmem:[#allocation9 + $0xe8] sm:$0xff]
    %v4927 = vld [vmem:[#allocation9 + $0xf0] sm:$0xff]
    %v4928 = vld [vmem:[#allocation9 + $0xf8] sm:$0xff]
    %v4929 = vld [vmem:[#allocation9 + $0x100] sm:$0xff]
    %v4930 = vld [vmem:[#allocation9 + $0x108] sm:$0xff]
    %v4931 = vld [vmem:[#allocation9 + $0x110] sm:$0xff]
    %v4932 = vld [vmem:[#allocation9 + $0x118] sm:$0xff]
    %v4933 = vld [vmem:[#allocation9 + $0x120] sm:$0xff]
    %v4934 = vld [vmem:[#allocation9 + $0x128] sm:$0xff]
    %v4935 = vld [vmem:[#allocation9 + $0x130] sm:$0xff]
    %v4936 = vld [vmem:[#allocation9 + $0x138] sm:$0xff]
    %v4937 = vld [vmem:[#allocation9 + $0x140] sm:$0xff]
    %v4938 = vld [vmem:[#allocation9 + $0x148] sm:$0xff]
    %v4939 = vld [vmem:[#allocation9 + $0x150] sm:$0xff]
    %v4940 = vld [vmem:[#allocation9 + $0x158] sm:$0xff]
    %v4941 = vld [vmem:[#allocation9 + $0x160] sm:$0xff]
    %v4942 = vld [vmem:[#allocation9 + $0x168] sm:$0xff]
    %v4943 = vld [vmem:[#allocation9 + $0x170] sm:$0xff]
    %v4944 = vld [vmem:[#allocation9 + $0x178] sm:$0xff]
    %v4945 = vld [vmem:[#allocation9 + $0x180] sm:$0xff]
    %v4946 = vld [vmem:[#allocation9 + $0x188] sm:$0xff]
    %v4947 = vld [vmem:[#allocation9 + $0x190] sm:$0xff]
    %v4948 = vld [vmem:[#allocation9 + $0x198] sm:$0xff]
    %v4949 = vld [vmem:[#allocation9 + $0x1a0] sm:$0xff]
    %v4950 = vld [vmem:[#allocation9 + $0x1a8] sm:$0xff]
    %v4951 = vld [vmem:[#allocation9 + $0x1b0] sm:$0xff]
    %v4952 = vld [vmem:[#allocation9 + $0x1b8] sm:$0xff]
    %v4953 = vld [vmem:[#allocation9 + $0x1c0] sm:$0xff]
    %v4954 = vld [vmem:[#allocation9 + $0x1c8] sm:$0xff]
    %v4955 = vld [vmem:[#allocation9 + $0x1d0] sm:$0xff]
    %v4956 = vld [vmem:[#allocation9 + $0x1d8] sm:$0xff]
    %v4957 = vld [vmem:[#allocation9 + $0x1e0] sm:$0xff]
    %v4958 = vld [vmem:[#allocation9 + $0x1e8] sm:$0xff]
    %v4959 = vld [vmem:[#allocation9 + $0x1f0] sm:$0xff]
    %v4960 = vld [vmem:[#allocation9 + $0x1f8] sm:$0xff]
    %v4961 = vld [vmem:[#allocation9 + $0x200] sm:$0xff]
    %v4962 = vld [vmem:[#allocation9 + $0x208] sm:$0xff]
    %v4963 = vld [vmem:[#allocation9 + $0x210] sm:$0xff]
    %v4964 = vld [vmem:[#allocation9 + $0x218] sm:$0xff]
    %v4965 = vld [vmem:[#allocation9 + $0x220] sm:$0xff]
    %v4966 = vld [vmem:[#allocation9 + $0x228] sm:$0xff]
    %v4967 = vld [vmem:[#allocation9 + $0x230] sm:$0xff]
    %v4968 = vld [vmem:[#allocation9 + $0x238] sm:$0xff]
    %v4969 = vld [vmem:[#allocation9 + $0x240] sm:$0xff]
    %v4970 = vld [vmem:[#allocation9 + $0x248] sm:$0xff]
    %v4971 = vld [vmem:[#allocation9 + $0x250] sm:$0xff]
    %v4972 = vld [vmem:[#allocation9 + $0x258] sm:$0xff]
    %v4973 = vld [vmem:[#allocation9 + $0x260] sm:$0xff]
    %v4974 = vld [vmem:[#allocation9 + $0x268] sm:$0xff]
    %v4975 = vld [vmem:[#allocation9 + $0x270] sm:$0xff]
    %v4976 = vld [vmem:[#allocation9 + $0x278] sm:$0xff]
    %v4977 = vld [vmem:[#allocation9 + $0x280] sm:$0xff]
    %v4978 = vld [vmem:[#allocation9 + $0x288] sm:$0xff]
    %v4979 = vld [vmem:[#allocation9 + $0x290] sm:$0xff]
    %v4980 = vld [vmem:[#allocation9 + $0x298] sm:$0xff]
    %v4981 = vld [vmem:[#allocation9 + $0x2a0] sm:$0xff]
    %v4982 = vld [vmem:[#allocation9 + $0x2a8] sm:$0xff]
    %v4983 = vld [vmem:[#allocation9 + $0x2b0] sm:$0xff]
    %v4984 = vld [vmem:[#allocation9 + $0x2b8] sm:$0xff]
    %v4985 = vld [vmem:[#allocation9 + $0x2c0] sm:$0xff]
    %v4986 = vld [vmem:[#allocation9 + $0x2c8] sm:$0xff]
    %v4987 = vld [vmem:[#allocation9 + $0x2d0] sm:$0xff]
    %v4988 = vld [vmem:[#allocation9 + $0x2d8] sm:$0xff]
    %v4989 = vld [vmem:[#allocation9 + $0x2e0] sm:$0xff]
    %v4990 = vld [vmem:[#allocation9 + $0x2e8] sm:$0xff]
    %v4991 = vld [vmem:[#allocation9 + $0x2f0] sm:$0xff]
    %v4992 = vld [vmem:[#allocation9 + $0x2f8] sm:$0xff]
    %v4993 = vld [vmem:[#allocation9 + $0x300] sm:$0xff]
    %v4994 = vld [vmem:[#allocation9 + $0x308] sm:$0xff]
    %v4995 = vld [vmem:[#allocation9 + $0x310] sm:$0xff]
    %v4996 = vld [vmem:[#allocation9 + $0x318] sm:$0xff]
    %v4997 = vld [vmem:[#allocation9 + $0x320] sm:$0xff]
    %v4998 = vld [vmem:[#allocation9 + $0x328] sm:$0xff]
    %v4999 = vld [vmem:[#allocation9 + $0x330] sm:$0xff]
    %v5000 = vld [vmem:[#allocation9 + $0x338] sm:$0xff]
    %v5001 = vld [vmem:[#allocation9 + $0x340] sm:$0xff]
    %v5002 = vld [vmem:[#allocation9 + $0x348] sm:$0xff]
    %v5003 = vld [vmem:[#allocation9 + $0x350] sm:$0xff]
    %v5004 = vld [vmem:[#allocation9 + $0x358] sm:$0xff]
    %v5005 = vld [vmem:[#allocation9 + $0x360] sm:$0xff]
    %v5006 = vld [vmem:[#allocation9 + $0x368] sm:$0xff]
    %v5007 = vld [vmem:[#allocation9 + $0x370] sm:$0xff]
    %v5008 = vld [vmem:[#allocation9 + $0x378] sm:$0xff]
    %v5009 = vld [vmem:[#allocation9 + $0x380] sm:$0xff]
    %v5010 = vld [vmem:[#allocation9 + $0x388] sm:$0xff]
    %v5011 = vld [vmem:[#allocation9 + $0x390] sm:$0xff]
    %v5012 = vld [vmem:[#allocation9 + $0x398] sm:$0xff]
    %v5013 = vld [vmem:[#allocation9 + $0x3a0] sm:$0xff]
    %v5014 = vld [vmem:[#allocation9 + $0x3a8] sm:$0xff]
    %v5015 = vld [vmem:[#allocation9 + $0x3b0] sm:$0xff]
    %v5016 = vld [vmem:[#allocation9 + $0x3b8] sm:$0xff]
    %v5017 = vld [vmem:[#allocation9 + $0x3c0] sm:$0xff]
    %v5018 = vld [vmem:[#allocation9 + $0x3c8] sm:$0xff]
    %v5019 = vld [vmem:[#allocation9 + $0x3d0] sm:$0xff]
    %v5020 = vld [vmem:[#allocation9 + $0x3d8] sm:$0xff]
    %v5021 = vld [vmem:[#allocation9 + $0x3e0] sm:$0xff]
    %v5022 = vld [vmem:[#allocation9 + $0x3e8] sm:$0xff]
    %v5023 = vld [vmem:[#allocation9 + $0x3f0] sm:$0xff]
    %v5024 = vld [vmem:[#allocation9 + $0x3f8] sm:$0xff]
    %v5025 = vld [vmem:[#allocation9 + $0x400] sm:$0xff]
    %v5026 = vld [vmem:[#allocation9 + $0x408] sm:$0xff]
    %v5027 = vld [vmem:[#allocation9 + $0x410] sm:$0xff]
    %v5028 = vld [vmem:[#allocation9 + $0x418] sm:$0xff]
    %v5029 = vld [vmem:[#allocation9 + $0x420] sm:$0xff]
    %v5030 = vld [vmem:[#allocation9 + $0x428] sm:$0xff]
    %v5031 = vld [vmem:[#allocation9 + $0x430] sm:$0xff]
    %v5032 = vld [vmem:[#allocation9 + $0x438] sm:$0xff]
    %v5033 = vld [vmem:[#allocation9 + $0x440] sm:$0xff]
    %v5034 = vld [vmem:[#allocation9 + $0x448] sm:$0xff]
    %v5035 = vld [vmem:[#allocation9 + $0x450] sm:$0xff]
    %v5036 = vld [vmem:[#allocation9 + $0x458] sm:$0xff]
    %v5037 = vld [vmem:[#allocation9 + $0x460] sm:$0xff]
    %v5038 = vld [vmem:[#allocation9 + $0x468] sm:$0xff]
    %v5039 = vld [vmem:[#allocation9 + $0x470] sm:$0xff]
    %v5040 = vld [vmem:[#allocation9 + $0x478] sm:$0xff]
    %v5041 = vld [vmem:[#allocation9 + $0x480] sm:$0xff]
    %v5042 = vld [vmem:[#allocation9 + $0x488] sm:$0xff]
    %v5043 = vld [vmem:[#allocation9 + $0x490] sm:$0xff]
    %v5044 = vld [vmem:[#allocation9 + $0x498] sm:$0xff]
    %v5045 = vld [vmem:[#allocation9 + $0x4a0] sm:$0xff]
    %v5046 = vld [vmem:[#allocation9 + $0x4a8] sm:$0xff]
    %v5047 = vld [vmem:[#allocation9 + $0x4b0] sm:$0xff]
    %v5048 = vld [vmem:[#allocation9 + $0x4b8] sm:$0xff]
    %v5049 = vld [vmem:[#allocation9 + $0x4c0] sm:$0xff]
    %v5050 = vld [vmem:[#allocation9 + $0x4c8] sm:$0xff]
    %v5051 = vld [vmem:[#allocation9 + $0x4d0] sm:$0xff]
    %v5052 = vld [vmem:[#allocation9 + $0x4d8] sm:$0xff]
    %v5053 = vld [vmem:[#allocation9 + $0x4e0] sm:$0xff]
    %v5054 = vld [vmem:[#allocation9 + $0x4e8] sm:$0xff]
    %v5055 = vld [vmem:[#allocation9 + $0x4f0] sm:$0xff]
    %v5056 = vld [vmem:[#allocation9 + $0x4f8] sm:$0xff]
    %v5057 = vld [vmem:[#allocation9 + $0x500] sm:$0xff]
    %v5058 = vld [vmem:[#allocation9 + $0x508] sm:$0xff]
    %v5059 = vld [vmem:[#allocation9 + $0x510] sm:$0xff]
    %v5060 = vld [vmem:[#allocation9 + $0x518] sm:$0xff]
    %v5061 = vld [vmem:[#allocation9 + $0x520] sm:$0xff]
    %v5062 = vld [vmem:[#allocation9 + $0x528] sm:$0xff]
    %v5063 = vld [vmem:[#allocation9 + $0x530] sm:$0xff]
    %v5064 = vld [vmem:[#allocation9 + $0x538] sm:$0xff]
    %v5065 = vld [vmem:[#allocation9 + $0x540] sm:$0xff]
    %v5066 = vld [vmem:[#allocation9 + $0x548] sm:$0xff]
    %v5067 = vld [vmem:[#allocation9 + $0x550] sm:$0xff]
    %v5068 = vld [vmem:[#allocation9 + $0x558] sm:$0xff]
    %v5069 = vld [vmem:[#allocation9 + $0x560] sm:$0xff]
    %v5070 = vld [vmem:[#allocation9 + $0x568] sm:$0xff]
    %v5071 = vld [vmem:[#allocation9 + $0x570] sm:$0xff]
    %v5072 = vld [vmem:[#allocation9 + $0x578] sm:$0xff]
    %v5073 = vld [vmem:[#allocation9 + $0x580] sm:$0xff]
    %v5074 = vld [vmem:[#allocation9 + $0x588] sm:$0xff]
    %v5075 = vld [vmem:[#allocation9 + $0x590] sm:$0xff]
    %v5076 = vld [vmem:[#allocation9 + $0x598] sm:$0xff]
    %v5077 = vld [vmem:[#allocation9 + $0x5a0] sm:$0xff]
    %v5078 = vld [vmem:[#allocation9 + $0x5a8] sm:$0xff]
    %v5079 = vld [vmem:[#allocation9 + $0x5b0] sm:$0xff]
    %v5080 = vld [vmem:[#allocation9 + $0x5b8] sm:$0xff]
    %v5081 = vld [vmem:[#allocation9 + $0x5c0] sm:$0xff]
    %v5082 = vld [vmem:[#allocation9 + $0x5c8] sm:$0xff]
    %v5083 = vld [vmem:[#allocation9 + $0x5d0] sm:$0xff]
    %v5084 = vld [vmem:[#allocation9 + $0x5d8] sm:$0xff]
    %v5085 = vld [vmem:[#allocation9 + $0x5e0] sm:$0xff]
    %v5086 = vld [vmem:[#allocation9 + $0x5e8] sm:$0xff]
    %v5087 = vld [vmem:[#allocation9 + $0x5f0] sm:$0xff]
    %v5088 = vld [vmem:[#allocation9 + $0x5f8] sm:$0xff]
    %v5089 = vld [vmem:[#allocation9 + $0x600] sm:$0xff]
    %v5090 = vld [vmem:[#allocation9 + $0x608] sm:$0xff]
    %v5091 = vld [vmem:[#allocation9 + $0x610] sm:$0xff]
    %v5092 = vld [vmem:[#allocation9 + $0x618] sm:$0xff]
    %v5093 = vld [vmem:[#allocation9 + $0x620] sm:$0xff]
    %v5094 = vld [vmem:[#allocation9 + $0x628] sm:$0xff]
    %v5095 = vld [vmem:[#allocation9 + $0x630] sm:$0xff]
    %v5096 = vld [vmem:[#allocation9 + $0x638] sm:$0xff]
    %v5097 = vld [vmem:[#allocation9 + $0x640] sm:$0xff]
    %v5098 = vld [vmem:[#allocation9 + $0x648] sm:$0xff]
    %v5099 = vld [vmem:[#allocation9 + $0x650] sm:$0xff]
    %v5100 = vld [vmem:[#allocation9 + $0x658] sm:$0xff]
    %v5101 = vld [vmem:[#allocation9 + $0x660] sm:$0xff]
    %v5102 = vld [vmem:[#allocation9 + $0x668] sm:$0xff]
    %v5103 = vld [vmem:[#allocation9 + $0x670] sm:$0xff]
    %v5104 = vld [vmem:[#allocation9 + $0x678] sm:$0xff]
    %v5105 = vld [vmem:[#allocation9 + $0x680] sm:$0xff]
    %v5106 = vld [vmem:[#allocation9 + $0x688] sm:$0xff]
    %v5107 = vld [vmem:[#allocation9 + $0x690] sm:$0xff]
    %v5108 = vld [vmem:[#allocation9 + $0x698] sm:$0xff]
    %v5109 = vld [vmem:[#allocation9 + $0x6a0] sm:$0xff]
    %v5110 = vld [vmem:[#allocation9 + $0x6a8] sm:$0xff]
    %v5111 = vld [vmem:[#allocation9 + $0x6b0] sm:$0xff]
    %v5112 = vld [vmem:[#allocation9 + $0x6b8] sm:$0xff]
    %v5113 = vld [vmem:[#allocation9 + $0x6c0] sm:$0xff]
    %v5114 = vld [vmem:[#allocation9 + $0x6c8] sm:$0xff]
    %v5115 = vld [vmem:[#allocation9 + $0x6d0] sm:$0xff]
    %v5116 = vld [vmem:[#allocation9 + $0x6d8] sm:$0xff]
    %v5117 = vld [vmem:[#allocation9 + $0x6e0] sm:$0xff]
    %v5118 = vld [vmem:[#allocation9 + $0x6e8] sm:$0xff]
    %v5119 = vld [vmem:[#allocation9 + $0x6f0] sm:$0xff]
    %v5120 = vld [vmem:[#allocation9 + $0x6f8] sm:$0xff]
    %v5121 = vld [vmem:[#allocation9 + $0x700] sm:$0xff]
    %v5122 = vld [vmem:[#allocation9 + $0x708] sm:$0xff]
    %v5123 = vld [vmem:[#allocation9 + $0x710] sm:$0xff]
    %v5124 = vld [vmem:[#allocation9 + $0x718] sm:$0xff]
    %v5125 = vld [vmem:[#allocation9 + $0x720] sm:$0xff]
    %v5126 = vld [vmem:[#allocation9 + $0x728] sm:$0xff]
    %v5127 = vld [vmem:[#allocation9 + $0x730] sm:$0xff]
    %v5128 = vld [vmem:[#allocation9 + $0x738] sm:$0xff]
    %v5129 = vld [vmem:[#allocation9 + $0x740] sm:$0xff]
    %v5130 = vld [vmem:[#allocation9 + $0x748] sm:$0xff]
    %v5131 = vld [vmem:[#allocation9 + $0x750] sm:$0xff]
    %v5132 = vld [vmem:[#allocation9 + $0x758] sm:$0xff]
    %v5133 = vld [vmem:[#allocation9 + $0x760] sm:$0xff]
    %v5134 = vld [vmem:[#allocation9 + $0x768] sm:$0xff]
    %v5135 = vld [vmem:[#allocation9 + $0x770] sm:$0xff]
    %v5136 = vld [vmem:[#allocation9 + $0x778] sm:$0xff]
    %v5137 = vld [vmem:[#allocation9 + $0x780] sm:$0xff]
    %v5138 = vld [vmem:[#allocation9 + $0x788] sm:$0xff]
    %v5139 = vld [vmem:[#allocation9 + $0x790] sm:$0xff]
    %v5140 = vld [vmem:[#allocation9 + $0x798] sm:$0xff]
    %v5141 = vld [vmem:[#allocation9 + $0x7a0] sm:$0xff]
    %v5142 = vld [vmem:[#allocation9 + $0x7a8] sm:$0xff]
    %v5143 = vld [vmem:[#allocation9 + $0x7b0] sm:$0xff]
    %v5144 = vld [vmem:[#allocation9 + $0x7b8] sm:$0xff]
    %v5145 = vld [vmem:[#allocation9 + $0x7c0] sm:$0xff]
    %v5146 = vld [vmem:[#allocation9 + $0x7c8] sm:$0xff]
    %v5147 = vld [vmem:[#allocation9 + $0x7d0] sm:$0xff]
    %v5148 = vld [vmem:[#allocation9 + $0x7d8] sm:$0xff]
    %v5149 = vld [vmem:[#allocation9 + $0x7e0] sm:$0xff]
    %v5150 = vld [vmem:[#allocation9 + $0x7e8] sm:$0xff]
    %v5151 = vld [vmem:[#allocation9 + $0x7f0] sm:$0xff]
    %v5152 = vld [vmem:[#allocation9 + $0x7f8] sm:$0xff]
    %v5153 = vld [vmem:[#allocation9 + $0x800] sm:$0xff]
    %v5154 = vld [vmem:[#allocation9 + $0x808] sm:$0xff]
    %v5155 = vld [vmem:[#allocation9 + $0x810] sm:$0xff]
    %v5156 = vld [vmem:[#allocation9 + $0x818] sm:$0xff]
    %v5157 = vld [vmem:[#allocation9 + $0x820] sm:$0xff]
    %v5158 = vld [vmem:[#allocation9 + $0x828] sm:$0xff]
    %v5159 = vld [vmem:[#allocation9 + $0x830] sm:$0xff]
    %v5160 = vld [vmem:[#allocation9 + $0x838] sm:$0xff]
    %v5161 = vld [vmem:[#allocation9 + $0x840] sm:$0xff]
    %v5162 = vld [vmem:[#allocation9 + $0x848] sm:$0xff]
    %v5163 = vld [vmem:[#allocation9 + $0x850] sm:$0xff]
    %v5164 = vld [vmem:[#allocation9 + $0x858] sm:$0xff]
    %v5165 = vld [vmem:[#allocation9 + $0x860] sm:$0xff]
    %v5166 = vld [vmem:[#allocation9 + $0x868] sm:$0xff]
    %v5167 = vld [vmem:[#allocation9 + $0x870] sm:$0xff]
    %v5168 = vld [vmem:[#allocation9 + $0x878] sm:$0xff]
    %v5169 = vld [vmem:[#allocation9 + $0x880] sm:$0xff]
    %v5170 = vld [vmem:[#allocation9 + $0x888] sm:$0xff]
    %v5171 = vld [vmem:[#allocation9 + $0x890] sm:$0xff]
    %v5172 = vld [vmem:[#allocation9 + $0x898] sm:$0xff]
    %v5173 = vld [vmem:[#allocation9 + $0x8a0] sm:$0xff]
    %v5174 = vld [vmem:[#allocation9 + $0x8a8] sm:$0xff]
    %v5175 = vld [vmem:[#allocation9 + $0x8b0] sm:$0xff]
    %v5176 = vld [vmem:[#allocation9 + $0x8b8] sm:$0xff]
    %v5177 = vld [vmem:[#allocation9 + $0x8c0] sm:$0xff]
    %v5178 = vld [vmem:[#allocation9 + $0x8c8] sm:$0xff]
    %v5179 = vld [vmem:[#allocation9 + $0x8d0] sm:$0xff]
    %v5180 = vld [vmem:[#allocation9 + $0x8d8] sm:$0xff]
    %v5181 = vld [vmem:[#allocation9 + $0x8e0] sm:$0xff]
    %v5182 = vld [vmem:[#allocation9 + $0x8e8] sm:$0xff]
    %v5183 = vld [vmem:[#allocation9 + $0x8f0] sm:$0xff]
    %v5184 = vld [vmem:[#allocation9 + $0x8f8] sm:$0xff]
    %5185 = vmatpush.msra.mxu0 %v5032
    %5186 = vmatpush.msra.mxu0 %v5023
    %5187 = vmatpush.msra.mxu0 %v5014
    %5188 = vmatpush.msra.mxu0 %v5005
    %5189 = vmatpush.msra.mxu0 %v4996
    %5190 = vmatpush.msra.mxu0 %v4987
    %5191 = vmatpush.msra.mxu0 %v4978
    %5192 = vmatpush.msra.mxu0 %v4969
    %5193 = vmatpush.msra.mxu0 %v4960
    %5194 = vmatpush.msra.mxu0 %v4951
    %5195 = vmatpush.msra.mxu0 %v4942
    %5196 = vmatpush.msra.mxu0 %v4933
    %5197 = vmatpush.msra.mxu0 %v4924
    %5198 = vmatpush.msra.mxu0 %v4915
    %5199 = vmatpush.msra.mxu0 %v4906
    %5200 = vmatpush.msra.mxu0 %v4897
    %5201 = vmatmul.f32.gmra.mxu0 %v4893
    %v5202 = vpop.f32.mrf.mxu0
    %v5203 = vadd.f32 0.0, %v5202
    %5204 = vmatmul.f32.gmra.mxu0 %v4895
    %v5205 = vpop.f32.mrf.mxu0
    %v5206 = vadd.f32 0.0, %v5205
    %5207 = vdwg.mxu0
    %5208 = vmatpush.msra.mxu0 %v5176
    %5209 = vmatpush.msra.mxu0 %v5167
    %5210 = vmatpush.msra.mxu0 %v5158
    %5211 = vmatpush.msra.mxu0 %v5149
    %5212 = vmatpush.msra.mxu0 %v5140
    %5213 = vmatpush.msra.mxu0 %v5131
    %5214 = vmatpush.msra.mxu0 %v5122
    %5215 = vmatpush.msra.mxu0 %v5113
    %5216 = vmatpush.msra.mxu0 %v5104
    %5217 = vmatpush.msra.mxu0 %v5095
    %5218 = vmatpush.msra.mxu0 %v5086
    %5219 = vmatpush.msra.mxu0 %v5077
    %5220 = vmatpush.msra.mxu0 %v5068
    %5221 = vmatpush.msra.mxu0 %v5059
    %5222 = vmatpush.msra.mxu0 %v5050
    %5223 = vmatpush.msra.mxu0 %v5041
    %5224 = vmatmul.f32.gmra.mxu0 %v4894
    %v5225 = vpop.f32.mrf.mxu0
    %v5226 = vadd.f32 %v5203, %v5225
    %5227 = vmatmul.f32.gmra.mxu0 %v4896
    %v5228 = vpop.f32.mrf.mxu0
    %v5229 = vadd.f32 %v5206, %v5228
    %5230 = vdwg.mxu0
    %5231 = vmatpush.msra.mxu0 %v5033
    %5232 = vmatpush.msra.mxu0 %v5024
    %5233 = vmatpush.msra.mxu0 %v5015
    %5234 = vmatpush.msra.mxu0 %v5006
    %5235 = vmatpush.msra.mxu0 %v4997
    %5236 = vmatpush.msra.mxu0 %v4988
    %5237 = vmatpush.msra.mxu0 %v4979
    %5238 = vmatpush.msra.mxu0 %v4970
    %5239 = vmatpush.msra.mxu0 %v4961
    %5240 = vmatpush.msra.mxu0 %v4952
    %5241 = vmatpush.msra.mxu0 %v4943
    %5242 = vmatpush.msra.mxu0 %v4934
    %5243 = vmatpush.msra.mxu0 %v4925
    %5244 = vmatpush.msra.mxu0 %v4916
    %5245 = vmatpush.msra.mxu0 %v4907
    %5246 = vmatpush.msra.mxu0 %v4898
    %5247 = vmatmul.f32.gmra.mxu0 %v4893
    %v5248 = vpop.f32.mrf.mxu0
    %v5249 = vadd.f32 0.0, %v5248
    %5250 = vmatmul.f32.gmra.mxu0 %v4895
    %v5251 = vpop.f32.mrf.mxu0
    %v5252 = vadd.f32 0.0, %v5251
    %5253 = vdwg.mxu0
    %5254 = vmatpush.msra.mxu0 %v5177
    %5255 = vmatpush.msra.mxu0 %v5168
    %5256 = vmatpush.msra.mxu0 %v5159
    %5257 = vmatpush.msra.mxu0 %v5150
    %5258 = vmatpush.msra.mxu0 %v5141
    %5259 = vmatpush.msra.mxu0 %v5132
    %5260 = vmatpush.msra.mxu0 %v5123
    %5261 = vmatpush.msra.mxu0 %v5114
    %5262 = vmatpush.msra.mxu0 %v5105
    %5263 = vmatpush.msra.mxu0 %v5096
    %5264 = vmatpush.msra.mxu0 %v5087
    %5265 = vmatpush.msra.mxu0 %v5078
    %5266 = vmatpush.msra.mxu0 %v5069
    %5267 = vmatpush.msra.mxu0 %v5060
    %5268 = vmatpush.msra.mxu0 %v5051
    %5269 = vmatpush.msra.mxu0 %v5042
    %5270 = vmatmul.f32.gmra.mxu0 %v4894
    %v5271 = vpop.f32.mrf.mxu0
    %v5272 = vadd.f32 %v5249, %v5271
    %5273 = vmatmul.f32.gmra.mxu0 %v4896
    %v5274 = vpop.f32.mrf.mxu0
    %v5275 = vadd.f32 %v5252, %v5274
    %5276 = vdwg.mxu0
    %5277 = vmatpush.msra.mxu0 %v5034
    %5278 = vmatpush.msra.mxu0 %v5025
    %5279 = vmatpush.msra.mxu0 %v5016
    %5280 = vmatpush.msra.mxu0 %v5007
    %5281 = vmatpush.msra.mxu0 %v4998
    %5282 = vmatpush.msra.mxu0 %v4989
    %5283 = vmatpush.msra.mxu0 %v4980
    %5284 = vmatpush.msra.mxu0 %v4971
    %5285 = vmatpush.msra.mxu0 %v4962
    %5286 = vmatpush.msra.mxu0 %v4953
    %5287 = vmatpush.msra.mxu0 %v4944
    %5288 = vmatpush.msra.mxu0 %v4935
    %5289 = vmatpush.msra.mxu0 %v4926
    %5290 = vmatpush.msra.mxu0 %v4917
    %5291 = vmatpush.msra.mxu0 %v4908
    %5292 = vmatpush.msra.mxu0 %v4899
    %5293 = vmatmul.f32.gmra.mxu0 %v4893
    %v5294 = vpop.f32.mrf.mxu0
    %v5295 = vadd.f32 0.0, %v5294
    %5296 = vmatmul.f32.gmra.mxu0 %v4895
    %v5297 = vpop.f32.mrf.mxu0
    %v5298 = vadd.f32 0.0, %v5297
    %5299 = vdwg.mxu0
    %5300 = vmatpush.msra.mxu0 %v5178
    %5301 = vmatpush.msra.mxu0 %v5169
    %5302 = vmatpush.msra.mxu0 %v5160
    %5303 = vmatpush.msra.mxu0 %v5151
    %5304 = vmatpush.msra.mxu0 %v5142
    %5305 = vmatpush.msra.mxu0 %v5133
    %5306 = vmatpush.msra.mxu0 %v5124
    %5307 = vmatpush.msra.mxu0 %v5115
    %5308 = vmatpush.msra.mxu0 %v5106
    %5309 = vmatpush.msra.mxu0 %v5097
    %5310 = vmatpush.msra.mxu0 %v5088
    %5311 = vmatpush.msra.mxu0 %v5079
    %5312 = vmatpush.msra.mxu0 %v5070
    %5313 = vmatpush.msra.mxu0 %v5061
    %5314 = vmatpush.msra.mxu0 %v5052
    %5315 = vmatpush.msra.mxu0 %v5043
    %5316 = vmatmul.f32.gmra.mxu0 %v4894
    %v5317 = vpop.f32.mrf.mxu0
    %v5318 = vadd.f32 %v5295, %v5317
    %5319 = vmatmul.f32.gmra.mxu0 %v4896
    %v5320 = vpop.f32.mrf.mxu0
    %v5321 = vadd.f32 %v5298, %v5320
    %5322 = vdwg.mxu0
    %5323 = vmatpush.msra.mxu0 %v5035
    %5324 = vmatpush.msra.mxu0 %v5026
    %5325 = vmatpush.msra.mxu0 %v5017
    %5326 = vmatpush.msra.mxu0 %v5008
    %5327 = vmatpush.msra.mxu0 %v4999
    %5328 = vmatpush.msra.mxu0 %v4990
    %5329 = vmatpush.msra.mxu0 %v4981
    %5330 = vmatpush.msra.mxu0 %v4972
    %5331 = vmatpush.msra.mxu0 %v4963
    %5332 = vmatpush.msra.mxu0 %v4954
    %5333 = vmatpush.msra.mxu0 %v4945
    %5334 = vmatpush.msra.mxu0 %v4936
    %5335 = vmatpush.msra.mxu0 %v4927
    %5336 = vmatpush.msra.mxu0 %v4918
    %5337 = vmatpush.msra.mxu0 %v4909
    %5338 = vmatpush.msra.mxu0 %v4900
    %5339 = vmatmul.f32.gmra.mxu0 %v4893
    %v5340 = vpop.f32.mrf.mxu0
    %v5341 = vadd.f32 0.0, %v5340
    %5342 = vmatmul.f32.gmra.mxu0 %v4895
    %v5343 = vpop.f32.mrf.mxu0
    %v5344 = vadd.f32 0.0, %v5343
    %5345 = vdwg.mxu0
    %5346 = vmatpush.msra.mxu0 %v5179
    %5347 = vmatpush.msra.mxu0 %v5170
    %5348 = vmatpush.msra.mxu0 %v5161
    %5349 = vmatpush.msra.mxu0 %v5152
    %5350 = vmatpush.msra.mxu0 %v5143
    %5351 = vmatpush.msra.mxu0 %v5134
    %5352 = vmatpush.msra.mxu0 %v5125
    %5353 = vmatpush.msra.mxu0 %v5116
    %5354 = vmatpush.msra.mxu0 %v5107
    %5355 = vmatpush.msra.mxu0 %v5098
    %5356 = vmatpush.msra.mxu0 %v5089
    %5357 = vmatpush.msra.mxu0 %v5080
    %5358 = vmatpush.msra.mxu0 %v5071
    %5359 = vmatpush.msra.mxu0 %v5062
    %5360 = vmatpush.msra.mxu0 %v5053
    %5361 = vmatpush.msra.mxu0 %v5044
    %5362 = vmatmul.f32.gmra.mxu0 %v4894
    %v5363 = vpop.f32.mrf.mxu0
    %v5364 = vadd.f32 %v5341, %v5363
    %5365 = vmatmul.f32.gmra.mxu0 %v4896
    %v5366 = vpop.f32.mrf.mxu0
    %v5367 = vadd.f32 %v5344, %v5366
    %5368 = vdwg.mxu0
    %5369 = vmatpush.msra.mxu0 %v5036
    %5370 = vmatpush.msra.mxu0 %v5027
    %5371 = vmatpush.msra.mxu0 %v5018
    %5372 = vmatpush.msra.mxu0 %v5009
    %5373 = vmatpush.msra.mxu0 %v5000
    %5374 = vmatpush.msra.mxu0 %v4991
    %5375 = vmatpush.msra.mxu0 %v4982
    %5376 = vmatpush.msra.mxu0 %v4973
    %5377 = vmatpush.msra.mxu0 %v4964
    %5378 = vmatpush.msra.mxu0 %v4955
    %5379 = vmatpush.msra.mxu0 %v4946
    %5380 = vmatpush.msra.mxu0 %v4937
    %5381 = vmatpush.msra.mxu0 %v4928
    %5382 = vmatpush.msra.mxu0 %v4919
    %5383 = vmatpush.msra.mxu0 %v4910
    %5384 = vmatpush.msra.mxu0 %v4901
    %5385 = vmatmul.f32.gmra.mxu0 %v4893
    %v5386 = vpop.f32.mrf.mxu0
    %v5387 = vadd.f32 0.0, %v5386
    %5388 = vmatmul.f32.gmra.mxu0 %v4895
    %v5389 = vpop.f32.mrf.mxu0
    %v5390 = vadd.f32 0.0, %v5389
    %5391 = vdwg.mxu0
    %5392 = vmatpush.msra.mxu0 %v5180
    %5393 = vmatpush.msra.mxu0 %v5171
    %5394 = vmatpush.msra.mxu0 %v5162
    %5395 = vmatpush.msra.mxu0 %v5153
    %5396 = vmatpush.msra.mxu0 %v5144
    %5397 = vmatpush.msra.mxu0 %v5135
    %5398 = vmatpush.msra.mxu0 %v5126
    %5399 = vmatpush.msra.mxu0 %v5117
    %5400 = vmatpush.msra.mxu0 %v5108
    %5401 = vmatpush.msra.mxu0 %v5099
    %5402 = vmatpush.msra.mxu0 %v5090
    %5403 = vmatpush.msra.mxu0 %v5081
    %5404 = vmatpush.msra.mxu0 %v5072
    %5405 = vmatpush.msra.mxu0 %v5063
    %5406 = vmatpush.msra.mxu0 %v5054
    %5407 = vmatpush.msra.mxu0 %v5045
    %5408 = vmatmul.f32.gmra.mxu0 %v4894
    %v5409 = vpop.f32.mrf.mxu0
    %v5410 = vadd.f32 %v5387, %v5409
    %5411 = vmatmul.f32.gmra.mxu0 %v4896
    %v5412 = vpop.f32.mrf.mxu0
    %v5413 = vadd.f32 %v5390, %v5412
    %5414 = vdwg.mxu0
    %5415 = vmatpush.msra.mxu0 %v5037
    %5416 = vmatpush.msra.mxu0 %v5028
    %5417 = vmatpush.msra.mxu0 %v5019
    %5418 = vmatpush.msra.mxu0 %v5010
    %5419 = vmatpush.msra.mxu0 %v5001
    %5420 = vmatpush.msra.mxu0 %v4992
    %5421 = vmatpush.msra.mxu0 %v4983
    %5422 = vmatpush.msra.mxu0 %v4974
    %5423 = vmatpush.msra.mxu0 %v4965
    %5424 = vmatpush.msra.mxu0 %v4956
    %5425 = vmatpush.msra.mxu0 %v4947
    %5426 = vmatpush.msra.mxu0 %v4938
    %5427 = vmatpush.msra.mxu0 %v4929
    %5428 = vmatpush.msra.mxu0 %v4920
    %5429 = vmatpush.msra.mxu0 %v4911
    %5430 = vmatpush.msra.mxu0 %v4902
    %5431 = vmatmul.f32.gmra.mxu0 %v4893
    %v5432 = vpop.f32.mrf.mxu0
    %v5433 = vadd.f32 0.0, %v5432
    %5434 = vmatmul.f32.gmra.mxu0 %v4895
    %v5435 = vpop.f32.mrf.mxu0
    %v5436 = vadd.f32 0.0, %v5435
    %5437 = vdwg.mxu0
    %5438 = vmatpush.msra.mxu0 %v5181
    %5439 = vmatpush.msra.mxu0 %v5172
    %5440 = vmatpush.msra.mxu0 %v5163
    %5441 = vmatpush.msra.mxu0 %v5154
    %5442 = vmatpush.msra.mxu0 %v5145
    %5443 = vmatpush.msra.mxu0 %v5136
    %5444 = vmatpush.msra.mxu0 %v5127
    %5445 = vmatpush.msra.mxu0 %v5118
    %5446 = vmatpush.msra.mxu0 %v5109
    %5447 = vmatpush.msra.mxu0 %v5100
    %5448 = vmatpush.msra.mxu0 %v5091
    %5449 = vmatpush.msra.mxu0 %v5082
    %5450 = vmatpush.msra.mxu0 %v5073
    %5451 = vmatpush.msra.mxu0 %v5064
    %5452 = vmatpush.msra.mxu0 %v5055
    %5453 = vmatpush.msra.mxu0 %v5046
    %5454 = vmatmul.f32.gmra.mxu0 %v4894
    %v5455 = vpop.f32.mrf.mxu0
    %v5456 = vadd.f32 %v5433, %v5455
    %5457 = vmatmul.f32.gmra.mxu0 %v4896
    %v5458 = vpop.f32.mrf.mxu0
    %v5459 = vadd.f32 %v5436, %v5458
    %5460 = vdwg.mxu0
    %5461 = vmatpush.msra.mxu0 %v5038
    %5462 = vmatpush.msra.mxu0 %v5029
    %5463 = vmatpush.msra.mxu0 %v5020
    %5464 = vmatpush.msra.mxu0 %v5011
    %5465 = vmatpush.msra.mxu0 %v5002
    %5466 = vmatpush.msra.mxu0 %v4993
    %5467 = vmatpush.msra.mxu0 %v4984
    %5468 = vmatpush.msra.mxu0 %v4975
    %5469 = vmatpush.msra.mxu0 %v4966
    %5470 = vmatpush.msra.mxu0 %v4957
    %5471 = vmatpush.msra.mxu0 %v4948
    %5472 = vmatpush.msra.mxu0 %v4939
    %5473 = vmatpush.msra.mxu0 %v4930
    %5474 = vmatpush.msra.mxu0 %v4921
    %5475 = vmatpush.msra.mxu0 %v4912
    %5476 = vmatpush.msra.mxu0 %v4903
    %5477 = vmatmul.f32.gmra.mxu0 %v4893
    %v5478 = vpop.f32.mrf.mxu0
    %v5479 = vadd.f32 0.0, %v5478
    %5480 = vmatmul.f32.gmra.mxu0 %v4895
    %v5481 = vpop.f32.mrf.mxu0
    %v5482 = vadd.f32 0.0, %v5481
    %5483 = vdwg.mxu0
    %5484 = vmatpush.msra.mxu0 %v5182
    %5485 = vmatpush.msra.mxu0 %v5173
    %5486 = vmatpush.msra.mxu0 %v5164
    %5487 = vmatpush.msra.mxu0 %v5155
    %5488 = vmatpush.msra.mxu0 %v5146
    %5489 = vmatpush.msra.mxu0 %v5137
    %5490 = vmatpush.msra.mxu0 %v5128
    %5491 = vmatpush.msra.mxu0 %v5119
    %5492 = vmatpush.msra.mxu0 %v5110
    %5493 = vmatpush.msra.mxu0 %v5101
    %5494 = vmatpush.msra.mxu0 %v5092
    %5495 = vmatpush.msra.mxu0 %v5083
    %5496 = vmatpush.msra.mxu0 %v5074
    %5497 = vmatpush.msra.mxu0 %v5065
    %5498 = vmatpush.msra.mxu0 %v5056
    %5499 = vmatpush.msra.mxu0 %v5047
    %5500 = vmatmul.f32.gmra.mxu0 %v4894
    %v5501 = vpop.f32.mrf.mxu0
    %v5502 = vadd.f32 %v5479, %v5501
    %5503 = vmatmul.f32.gmra.mxu0 %v4896
    %v5504 = vpop.f32.mrf.mxu0
    %v5505 = vadd.f32 %v5482, %v5504
    %5506 = vdwg.mxu0
    %5507 = vmatpush.msra.mxu0 %v5039
    %5508 = vmatpush.msra.mxu0 %v5030
    %5509 = vmatpush.msra.mxu0 %v5021
    %5510 = vmatpush.msra.mxu0 %v5012
    %5511 = vmatpush.msra.mxu0 %v5003
    %5512 = vmatpush.msra.mxu0 %v4994
    %5513 = vmatpush.msra.mxu0 %v4985
    %5514 = vmatpush.msra.mxu0 %v4976
    %5515 = vmatpush.msra.mxu0 %v4967
    %5516 = vmatpush.msra.mxu0 %v4958
    %5517 = vmatpush.msra.mxu0 %v4949
    %5518 = vmatpush.msra.mxu0 %v4940
    %5519 = vmatpush.msra.mxu0 %v4931
    %5520 = vmatpush.msra.mxu0 %v4922
    %5521 = vmatpush.msra.mxu0 %v4913
    %5522 = vmatpush.msra.mxu0 %v4904
    %5523 = vmatmul.f32.gmra.mxu0 %v4893
    %v5524 = vpop.f32.mrf.mxu0
    %v5525 = vadd.f32 0.0, %v5524
    %5526 = vmatmul.f32.gmra.mxu0 %v4895
    %v5527 = vpop.f32.mrf.mxu0
    %v5528 = vadd.f32 0.0, %v5527
    %5529 = vdwg.mxu0
    %5530 = vmatpush.msra.mxu0 %v5183
    %5531 = vmatpush.msra.mxu0 %v5174
    %5532 = vmatpush.msra.mxu0 %v5165
    %5533 = vmatpush.msra.mxu0 %v5156
    %5534 = vmatpush.msra.mxu0 %v5147
    %5535 = vmatpush.msra.mxu0 %v5138
    %5536 = vmatpush.msra.mxu0 %v5129
    %5537 = vmatpush.msra.mxu0 %v5120
    %5538 = vmatpush.msra.mxu0 %v5111
    %5539 = vmatpush.msra.mxu0 %v5102
    %5540 = vmatpush.msra.mxu0 %v5093
    %5541 = vmatpush.msra.mxu0 %v5084
    %5542 = vmatpush.msra.mxu0 %v5075
    %5543 = vmatpush.msra.mxu0 %v5066
    %5544 = vmatpush.msra.mxu0 %v5057
    %5545 = vmatpush.msra.mxu0 %v5048
    %5546 = vmatmul.f32.gmra.mxu0 %v4894
    %v5547 = vpop.f32.mrf.mxu0
    %v5548 = vadd.f32 %v5525, %v5547
    %5549 = vmatmul.f32.gmra.mxu0 %v4896
    %v5550 = vpop.f32.mrf.mxu0
    %v5551 = vadd.f32 %v5528, %v5550
    %5552 = vdwg.mxu0
    %5553 = vmatpush.msra.mxu0 %v5040
    %5554 = vmatpush.msra.mxu0 %v5031
    %5555 = vmatpush.msra.mxu0 %v5022
    %5556 = vmatpush.msra.mxu0 %v5013
    %5557 = vmatpush.msra.mxu0 %v5004
    %5558 = vmatpush.msra.mxu0 %v4995
    %5559 = vmatpush.msra.mxu0 %v4986
    %5560 = vmatpush.msra.mxu0 %v4977
    %5561 = vmatpush.msra.mxu0 %v4968
    %5562 = vmatpush.msra.mxu0 %v4959
    %5563 = vmatpush.msra.mxu0 %v4950
    %5564 = vmatpush.msra.mxu0 %v4941
    %5565 = vmatpush.msra.mxu0 %v4932
    %5566 = vmatpush.msra.mxu0 %v4923
    %5567 = vmatpush.msra.mxu0 %v4914
    %5568 = vmatpush.msra.mxu0 %v4905
    %5569 = vmatmul.f32.gmra.mxu0 %v4893
    %v5570 = vpop.f32.mrf.mxu0
    %v5571 = vadd.f32 0.0, %v5570
    %5572 = vmatmul.f32.gmra.mxu0 %v4895
    %v5573 = vpop.f32.mrf.mxu0
    %v5574 = vadd.f32 0.0, %v5573
    %5575 = vdwg.mxu0
    %5576 = vmatpush.msra.mxu0 %v5184
    %5577 = vmatpush.msra.mxu0 %v5175
    %5578 = vmatpush.msra.mxu0 %v5166
    %5579 = vmatpush.msra.mxu0 %v5157
    %5580 = vmatpush.msra.mxu0 %v5148
    %5581 = vmatpush.msra.mxu0 %v5139
    %5582 = vmatpush.msra.mxu0 %v5130
    %5583 = vmatpush.msra.mxu0 %v5121
    %5584 = vmatpush.msra.mxu0 %v5112
    %5585 = vmatpush.msra.mxu0 %v5103
    %5586 = vmatpush.msra.mxu0 %v5094
    %5587 = vmatpush.msra.mxu0 %v5085
    %5588 = vmatpush.msra.mxu0 %v5076
    %5589 = vmatpush.msra.mxu0 %v5067
    %5590 = vmatpush.msra.mxu0 %v5058
    %5591 = vmatpush.msra.mxu0 %v5049
    %5592 = vmatmul.f32.gmra.mxu0 %v4894
    %v5593 = vpop.f32.mrf.mxu0
    %v5594 = vadd.f32 %v5571, %v5593
    %5595 = vmatmul.f32.gmra.mxu0 %v4896
    %v5596 = vpop.f32.mrf.mxu0
    %v5597 = vadd.f32 %v5574, %v5596
    %5598 = vdwg.mxu0
    %vm5601 = vcmask 1045504
    %v5602 = vrot.slane %v5272, 2
    %v5603 = vrot.slane %v5275, 2
    %v5604 = vsel %vm5601, %v5602, %v5603
    %v5607 = vadd.f32 %v5226, %v5604
    %v5608 = vadd.f32 %v5229, %v5603
    %v5609 = vld [vmem:[#allocation11 + $0x10] sm:$0x1]
    %v5611 = vperm.slane %v5609, 0
    %v5613 = vadd.f32 %v5607, %v5611
    %v5614 = vadd.f32 %v5608, %v5611
    %v5615 = vmax.f32 %v5613, 0.0
    %v5616 = vmax.f32 %v5614, 0.0
    %v5617 = vtanh.pop %v5613
    %v5618 = vtanh.pop %v5614
    %5621 = vrot.lane.b32.xlu0 %v5617, 64
    %v5622 = vpop.permute.xlu0 %5621
    %5623 = vrot.lane.b32.xlu0 %v5618, 64
    %v5624 = vpop.permute.xlu0 %5623
    %v5627 = vmul.f32 %v5615, %v5622
    %v5628 = vmul.f32 %v5616, %v5624
    %v5630 = vrot.slane %v5627, 2
    %v5632 = vmax.f32 %v5627, %v5630
    %v5633 = vrot.slane %v5627, 4
    %v5635 = vmax.f32 %v5632, %v5633
    %v5636 = vrot.slane %v5627, 6
    %v5638 = vmax.f32 %v5635, %v5636
    %v5639 = vmax.f32 %v5638, %v5628
    %v5641 = vrot.slane %v5628, 2
    %v5643 = vmax.f32 %v5639, %v5641
    %v5644 = vrot.slane %v5628, 4
    %v5646 = vmax.f32 %v5643, %v5644
    %v5649 = vrot.slane %v5364, 2
    %v5650 = vrot.slane %v5367, 2
    %v5651 = vsel %vm5601, %v5649, %v5650
    %v5654 = vadd.f32 %v5318, %v5651
    %v5655 = vadd.f32 %v5321, %v5650
    %vm5658 = vcmask 1043456
    %v5659 = vrot.slane %v5410, 4
    %v5660 = vrot.slane %v5413, 4
    %v5661 = vsel %vm5658, %v5659, %v5660
    %v5664 = vadd.f32 %v5654, %v5661
    %v5665 = vadd.f32 %v5655, %v5660
    %v5666 = vld [vmem:[#allocation11 + $0x11] sm:$0x1]
    %v5668 = vperm.slane %v5666, 0
    %v5670 = vadd.f32 %v5664, %v5668
    %v5671 = vadd.f32 %v5665, %v5668
    %v5672 = vmax.f32 %v5670, 0.0
    %v5673 = vmax.f32 %v5671, 0.0
    %v5674 = vtanh.pop %v5670
    %v5675 = vtanh.pop %v5671
    %5678 = vrot.lane.b32.xlu0 %v5674, 64
    %v5679 = vpop.permute.xlu0 %5678
    %5680 = vrot.lane.b32.xlu0 %v5675, 64
    %v5681 = vpop.permute.xlu0 %5680
    %v5684 = vmul.f32 %v5672, %v5679
    %v5685 = vmul.f32 %v5673, %v5681
    %v5687 = vrot.slane %v5684, 2
    %v5689 = vmax.f32 %v5684, %v5687
    %v5690 = vrot.slane %v5684, 4
    %v5692 = vmax.f32 %v5689, %v5690
    %v5693 = vrot.slane %v5684, 6
    %v5695 = vmax.f32 %v5692, %v5693
    %v5696 = vmax.f32 %v5695, %v5685
    %v5698 = vrot.slane %v5685, 2
    %v5700 = vmax.f32 %v5696, %v5698
    %v5703 = vrot.slane %v5502, 2
    %v5704 = vrot.slane %v5505, 2
    %v5705 = vsel %vm5601, %v5703, %v5704
    %v5708 = vadd.f32 %v5456, %v5705
    %v5709 = vadd.f32 %v5459, %v5704
    %v5712 = vrot.slane %v5548, 4
    %v5713 = vrot.slane %v5551, 4
    %v5714 = vsel %vm5658, %v5712, %v5713
    %v5717 = vadd.f32 %v5708, %v5714
    %v5718 = vadd.f32 %v5709, %v5713
    %vm5721 = vcmask 1041408
    %v5722 = vrot.slane %v5594, 6
    %v5723 = vrot.slane %v5597, 6
    %v5724 = vsel %vm5721, %v5722, %v5723
    %v5727 = vadd.f32 %v5717, %v5724
    %v5728 = vadd.f32 %v5718, %v5723
    %v5729 = vld [vmem:[#allocation11 + $0x12] sm:$0x1]
    %v5731 = vperm.slane %v5729, 0
    %v5733 = vadd.f32 %v5727, %v5731
    %v5734 = vadd.f32 %v5728, %v5731
    %v5735 = vmax.f32 %v5733, 0.0
    %v5736 = vmax.f32 %v5734, 0.0
    %v5737 = vtanh.pop %v5733
    %v5738 = vtanh.pop %v5734
    %5741 = vrot.lane.b32.xlu0 %v5737, 64
    %v5742 = vpop.permute.xlu0 %5741
    %5743 = vrot.lane.b32.xlu0 %v5738, 64
    %v5744 = vpop.permute.xlu0 %5743
    %v5747 = vmul.f32 %v5735, %v5742
    %v5748 = vmul.f32 %v5736, %v5744
    %v5750 = vrot.slane %v5747, 2
    %v5752 = vmax.f32 %v5747, %v5750
    %v5753 = vrot.slane %v5747, 4
    %v5755 = vmax.f32 %v5752, %v5753
    %v5756 = vrot.slane %v5747, 6
    %v5758 = vmax.f32 %v5755, %v5756
    %v5759 = vmax.f32 %v5758, %v5748
    %5761 = vrot.lane.b32.xlu0 %v5700, 64
    %v5762 = vpop.permute.xlu0 %5761
    %v5764 = vsel %vm269, %v5646, %v5762
    %v5765 = vld [vmem:[%s5] sm:$0xff]
    %v5766 = vld [vmem:[%s5 + $0x8] sm:$0xff]
    %v5767 = vld [vmem:[%s5 + $0x10] sm:$0xff]
    %v5768 = vld [vmem:[%s5 + $0x18] sm:$0xff]
    %v5769 = vld [vmem:[%s5 + $0x20] sm:$0xff]
    %v5770 = vld [vmem:[%s5 + $0x28] sm:$0xff]
    %v5771 = vld [vmem:[%s5 + $0x30] sm:$0xff]
    %v5772 = vld [vmem:[%s5 + $0x38] sm:$0xff]
    %v5773 = vld [vmem:[%s5 + $0x40] sm:$0xff]
    %v5774 = vld [vmem:[%s5 + $0x48] sm:$0xff]
    %v5775 = vld [vmem:[%s5 + $0x50] sm:$0xff]
    %v5776 = vld [vmem:[%s5 + $0x58] sm:$0xff]
    %v5777 = vld [vmem:[%s5 + $0x60] sm:$0xff]
    %v5778 = vld [vmem:[%s5 + $0x68] sm:$0xff]
    %v5779 = vld [vmem:[%s5 + $0x70] sm:$0xff]
    %v5780 = vld [vmem:[%s5 + $0x78] sm:$0xff]
    %v5781 = vld [vmem:[%s5 + $0x80] sm:$0xff]
    %v5782 = vld [vmem:[%s5 + $0x88] sm:$0xff]
    %v5783 = vld [vmem:[%s5 + $0x90] sm:$0xff]
    %v5784 = vld [vmem:[%s5 + $0x98] sm:$0xff]
    %v5785 = vld [vmem:[%s5 + $0xa0] sm:$0xff]
    %v5786 = vld [vmem:[%s5 + $0xa8] sm:$0xff]
    %v5787 = vld [vmem:[%s5 + $0xb0] sm:$0xff]
    %v5788 = vld [vmem:[%s5 + $0xb8] sm:$0xff]
    %v5789 = vld [vmem:[#allocation11 + $0x13] sm:$0x1]
    %v5791 = vperm.slane %v5789, 0
    %v5794 = vsel %vm269, %v5759, 0
    %5796 = vmatpush.msra.mxu0 %v5780
    %5797 = vmatpush.msra.mxu0 %v5779
    %5798 = vmatpush.msra.mxu0 %v5778
    %5799 = vmatpush.msra.mxu0 %v5777
    %5800 = vmatpush.msra.mxu0 %v5776
    %5801 = vmatpush.msra.mxu0 %v5775
    %5802 = vmatpush.msra.mxu0 %v5774
    %5803 = vmatpush.msra.mxu0 %v5773
    %5804 = vmatpush.msra.mxu0 %v5772
    %5805 = vmatpush.msra.mxu0 %v5771
    %5806 = vmatpush.msra.mxu0 %v5770
    %5807 = vmatpush.msra.mxu0 %v5769
    %5808 = vmatpush.msra.mxu0 %v5768
    %5809 = vmatpush.msra.mxu0 %v5767
    %5810 = vmatpush.msra.mxu0 %v5766
    %5811 = vmatpush.msra.mxu0 %v5765
    %5812 = vmatmul.f32.gmra.mxu0 %v5764
    %v5813 = vpop.f32.mrf.mxu0
    %v5814 = vadd.f32 %v5791, %v5813
    %5815 = vdwg.mxu0
    %5816 = vmatpush.msra.mxu0 0.0
    %5817 = vmatpush.msra.mxu0 0.0
    %5818 = vmatpush.msra.mxu0 0.0
    %5819 = vmatpush.msra.mxu0 0.0
    %5820 = vmatpush.msra.mxu0 0.0
    %5821 = vmatpush.msra.mxu0 0.0
    %5822 = vmatpush.msra.mxu0 0.0
    %5823 = vmatpush.msra.mxu0 0.0
    %5824 = vmatpush.msra.mxu0 %v5788
    %5825 = vmatpush.msra.mxu0 %v5787
    %5826 = vmatpush.msra.mxu0 %v5786
    %5827 = vmatpush.msra.mxu0 %v5785
    %5828 = vmatpush.msra.mxu0 %v5784
    %5829 = vmatpush.msra.mxu0 %v5783
    %5830 = vmatpush.msra.mxu0 %v5782
    %5831 = vmatpush.msra.mxu0 %v5781
    %5832 = vmatmul.f32.gmra.mxu0 %v5794
    %v5833 = vpop.f32.mrf.mxu0
    %v5834 = vadd.f32 %v5814, %v5833
    %5835 = vdwg.mxu0
    %v5836 = vld [vmem:[%s6] sm:$0xff]
    %v5837 = vld [vmem:[%s6 + $0x8] sm:$0xff]
    %v5838 = vld [vmem:[%s6 + $0x10] sm:$0xff]
    %v5839 = vld [vmem:[%s6 + $0x18] sm:$0xff]
    %v5840 = vld [vmem:[#allocation11 + $0x14] sm:$0x1]
    %v5842 = vperm.slane %v5840, 0
    %vm5844 = vcmask 261120
    %v5846 = vsel %vm5844, %v5834, 0
    %5848 = vmatpush.msra.mxu0 0.0
    %5849 = vmatpush.msra.mxu0 0.0
    %5850 = vmatpush.msra.mxu0 0.0
    %5851 = vmatpush.msra.mxu0 0.0
    %5852 = vmatpush.msra.mxu0 0.0
    %5853 = vmatpush.msra.mxu0 0.0
    %5854 = vmatpush.msra.mxu0 0.0
    %5855 = vmatpush.msra.mxu0 0.0
    %5856 = vmatpush.msra.mxu0 0.0
    %5857 = vmatpush.msra.mxu0 0.0
    %5858 = vmatpush.msra.mxu0 0.0
    %5859 = vmatpush.msra.mxu0 0.0
    %5860 = vmatpush.msra.mxu0 %v5839
    %5861 = vmatpush.msra.mxu0 %v5838
    %5862 = vmatpush.msra.mxu0 %v5837
    %5863 = vmatpush.msra.mxu0 %v5836
    %5864 = vmatmul.f32.gmra.mxu0 %v5846
    %v5865 = vpop.f32.mrf.mxu0
    %v5866 = vadd.f32 %v5842, %v5865
    %5867 = vdwg.mxu0
    %vm5868 = vcmask 58368
    %5869 = vst.msk [vmem:[#allocation12] sm:$0x3] %vm5868, %v5866
    // Predicated region
    $region50: #{tpu_custom_call.1} parent=1 // pred_check
      _
    $region51: #{tpu_custom_call.1} parent=1 // pred_check_branch
      %5871 = sbr.rel (0) target = $region53
    $region52: #{tpu_custom_call.1} parent=1 // pred_region
      %5873 = vsyncadd [#allocation5], 0
      %s5875 = sshll.u32 [#allocation12], 4
      %s5876 = int_to_ptr.vmem [resolvable:$true] %s5875
      %s5877 = sshll.u32 %s7, 4
      %s5878 = int_to_ptr.hbm [resolvable:$true] %s5877
      %5880 = dma.vmem_to_hbm [thread:$0]  %s5876, 32, %s5878, [#allocation5]
    $region53: #{tpu_custom_call.1} parent=1 // pred_fallthru
      _
    // Predicated region
    $region54: #{tpu_custom_call.1} parent=1 // pred_check
      _
    $region55: #{tpu_custom_call.1} parent=1 // pred_check_branch
      %5882 = sbr.rel (0) target = $region57
    $region56: #{tpu_custom_call.1} parent=1 // pred_region
      %5884 = dma.done [#allocation5], 32
    $region57: #{tpu_custom_call.1} parent=1 // pred_fallthru
      _
    %5885 = vsyncpa [#allocation4], 1
    %5886 = vsyncpa [#allocation7], 1
    %5887 = vsyncpa [#allocation10], 1
    %5888 = vsyncpa [#allocation5], 1

</llo_original>
